<compile_context>
chip_gen: v6e
topology: v6e:2x2x1
jax: 0.10.0
libtpu: 0.0.40
codegen_flags: <defaults>
</compile_context>

<pallas_src>
import functools

import jax
import jax.numpy as jnp
from jax import lax
from jax.experimental import pallas as pl
from jax.experimental.pallas import tpu as pltpu

H, W = 10, 5              # board size (fc1 expects 64 * 10 * 5 inputs)
HP, WP = H + 2, W + 2     # zero-padded board (12 x 7)
NPOS = HP * WP            # 84 padded positions
C1, C2 = 32, 64           # conv channel counts
K2 = 9 * C1               # 288  = conv2 im2col contraction size
KF = H * W * C2           # 3200 = fc1 contraction size
FC1_OUT = 128
OUT_LANES = 128           # fc2 output padded to a full lane tile

Q0 = WP + 1               # 8  : first interior padded position
Q1 = H * WP + W           # 75 : last interior padded position
NQ = Q1 - Q0 + 1          # 68 : positions actually computed by conv1/conv2

# 3x3 tap shifts in padded-position units; tap t = 3*dh + dw matches the
# PyTorch weight[..., dh, dw] ordering folded into w_conv1 / w_conv2.
_TAP_SHIFTS = tuple((dh - 1) * WP + (dw - 1) for dh in range(3) for dw in range(3))


# ----------------------------------------------------------------------------
# Fused kernel.  Row layout for conv activations: row = padded_pos * BP + b,
# lanes = channels.  BP (padded batch) is a multiple of 8 so every static
# slice start below is sublane-aligned.
# ----------------------------------------------------------------------------
def _tetris_kernel(x_ref, w1_ref, b1_ref, w2_ref, b2_ref,
                   wf1_ref, bf1_ref, wf2_ref, bf2_ref, o_ref,
                   a1_ref, col_ref, a2_ref, slab_ref, *, bp):
    BP = bp
    RQ = NQ * BP
    f32 = jnp.float32
    bf16 = jnp.bfloat16

    # ---- conv1 + ReLU: 9 rank-1 VPU taps (C_in = 1), positions [Q0, Q1]. ----
    acc1 = jnp.zeros((RQ, C1), f32)
    for t, s in enumerate(_TAP_SHIFTS):
        xs = x_ref[pl.ds((Q0 + s) * BP, RQ), :]         # [RQ, 1]
        acc1 = acc1 + xs * w1_ref[t]                    # [RQ,1]*[1,32] -> [RQ,32]
    a1 = jnp.maximum(acc1 + b1_ref[...], 0.0).astype(bf16)   # cast ONCE (bf16 scratch)

    # Stage a1 over the full padded 12x7 grid.  Only the guard blocks (positions
    # < Q0 and > Q1) and the 9 left/right halo-column pairs are zeroed; the rest
    # is the single interior store (no redundant full-buffer zero fill).
    a1_ref[pl.ds(0, Q0 * BP), :] = jnp.zeros((Q0 * BP, C1), bf16)
    a1_ref[pl.ds((Q1 + 1) * BP, (NPOS - Q1 - 1) * BP), :] = (
        jnp.zeros(((NPOS - Q1 - 1) * BP, C1), bf16))
    a1_ref[pl.ds(Q0 * BP, RQ), :] = a1
    for k in range(1, H):                               # positions {7k+6, 7k+7}
        a1_ref[pl.ds((k * WP + W + 1) * BP, 2 * BP), :] = jnp.zeros((2 * BP, C1), bf16)

    # ---- conv2 + ReLU: build bf16 im2col slab [RQ, 288], ONE MXU matmul. ----
    for t, s in enumerate(_TAP_SHIFTS):
        col_ref[:, t * C1:(t + 1) * C1] = a1_ref[pl.ds((Q0 + s) * BP, RQ), :]
    acc2 = jnp.dot(col_ref[...], w2_ref[...], preferred_element_type=f32)   # [RQ, 64]
    a2_ref[...] = jnp.maximum(acc2 + b2_ref[...], 0.0).astype(bf16)

    # ---- flatten: relayout the 50 interior rows into a batch-major bf16 slab
    #      [BP, 3200] (lane index = p*64 + c, matching w_fc1's layout).
    for p in range(H * W):
        hh, ww = p // W, p % W
        r = ((hh + 1) * WP + (ww + 1) - Q0) * BP
        slab_ref[:, p * C2:(p + 1) * C2] = a2_ref[pl.ds(r, BP), :]

    # ---- fc1 + ReLU: ONE [BP,3200]x[3200,128] MXU matmul. ----
    hid = jnp.dot(slab_ref[...], wf1_ref[...], preferred_element_type=f32)
    hid = jnp.maximum(hid + bf1_ref[...], 0.0)          # stays f32

    # ---- fc2 (f32, tiny): lane-dense (BP, 128) output. ----
    o_ref[...] = jnp.dot(hid, wf2_ref[...], preferred_element_type=f32) + bf2_ref[...]


# ----------------------------------------------------------------------------
# Host-side input marshalling (only the 50*B-float raw input is touched here).
# ----------------------------------------------------------------------------
def _build_padded_flat_input(x_nchw, bp):
    """[B,1,H,W] -> [(NPOS*bp), 1] column; rows ordered (padded_pos, batch)
    with the conv zero halo baked in and batch zero-padded to bp."""
    b = x_nchw.shape[0]
    xs = jnp.transpose(x_nchw[:, 0, :, :], (1, 2, 0))            # [H, W, B]
    xp = jnp.pad(xs, ((1, 1), (1, 1), (0, bp - b)))               # [HP, WP, bp]
    return xp.reshape(NPOS * bp, 1).astype(jnp.float32)


def tetris_net_forward(x_nchw, params, action_dim):
    assert x_nchw.shape[1:] == (1, H, W), x_nchw.shape
    B = x_nchw.shape[0]
    BP = max(8, -(-B // 8) * 8)          # batch padded to a multiple of 8
    RQ = NQ * BP

    x_col = _build_padded_flat_input(x_nchw, BP)

    out = pl.pallas_call(
        functools.partial(_tetris_kernel, bp=BP),
        out_shape=jax.ShapeDtypeStruct((BP, OUT_LANES), jnp.float32),
        scratch_shapes=[
            pltpu.VMEM((NPOS * BP, C1), jnp.bfloat16),   # a1: full padded grid
            pltpu.VMEM((RQ, K2), jnp.bfloat16),          # conv2 im2col slab
            pltpu.VMEM((RQ, C2), jnp.bfloat16),          # conv2 output
            pltpu.VMEM((BP, KF), jnp.bfloat16),          # fc1 batch-major slab
        ],
    )(x_col,
      params["w_conv1"], params["b_conv1"],
      params["w_conv2"], params["b_conv2"],
      params["w_fc1"], params["b_fc1"],
      params["w_fc2"], params["b_fc2"])

    return out[:B, :action_dim]                          # single slice at the end


# ----------------------------------------------------------------------------
# Parameters.  Layouts fixed at init time (no per-forward reshaping):
#   w_conv1: [tap = 3*dh + dw, 1, 32]            (f32; used on the VPU)
#   w_conv2: [tap*32 + ci, 64]                   == torch_w.permute(2,3,1,0).reshape(288,64)   (bf16)
#   w_fc1  : [p*64 + c, 128], p = h*W + w        == torch_w.T re-indexed for the batch-major slab (bf16)
#   w_fc2  : [128, 128] zero-padded to 128 lanes == torch_w.T padded                            (f32)
# ----------------------------------------------------------------------------
def init_params(key, action_dim):
    assert action_dim <= OUT_LANES
    ks = jax.random.split(key, 8)
    s = 0.05
    f32, bf16 = jnp.float32, jnp.bfloat16
    w_fc2 = jax.random.normal(ks[6], (FC1_OUT, action_dim), f32) * s
    b_fc2 = jax.random.normal(ks[7], (action_dim,), f32) * s
    return {
        "w_conv1": jax.random.normal(ks[0], (9, 1, C1), f32) * s,
        "b_conv1": (jax.random.normal(ks[1], (C1,), f32) * s).reshape(1, C1),
        "w_conv2": (jax.random.normal(ks[2], (K2, C2), f32) * s).astype(bf16),
        "b_conv2": (jax.random.normal(ks[3], (C2,), f32) * s).reshape(1, C2),
        "w_fc1": (jax.random.normal(ks[4], (KF, FC1_OUT), f32) * s).astype(bf16),
        "b_fc1": (jax.random.normal(ks[5], (FC1_OUT,), f32) * s).reshape(1, FC1_OUT),
        "w_fc2": jnp.zeros((FC1_OUT, OUT_LANES), f32).at[:, :action_dim].set(w_fc2),
        "b_fc2": jnp.zeros((1, OUT_LANES), f32).at[0, :action_dim].set(b_fc2),
    }


# ----------------------------------------------------------------------------
# Pure-JAX reference (same params, PyTorch semantics) for a correctness check.
# ----------------------------------------------------------------------------
def reference_forward(x_nchw, params):
    f32 = jnp.float32
    hp = lax.Precision.HIGHEST
    w1 = params["w_conv1"].astype(f32).reshape(3, 3, 1, C1).transpose(3, 2, 0, 1)
    w2 = params["w_conv2"].astype(f32).reshape(3, 3, C1, C2).transpose(3, 2, 0, 1)
    a = lax.conv_general_dilated(x_nchw.astype(f32), w1, (1, 1), ((1, 1), (1, 1)),
                                 dimension_numbers=("NCHW", "OIHW", "NCHW"),
                                 precision=hp)
    a = jax.nn.relu(a + params["b_conv1"].astype(f32).reshape(1, C1, 1, 1))
    a = lax.conv_general_dilated(a, w2, (1, 1), ((1, 1), (1, 1)),
                                 dimension_numbers=("NCHW", "OIHW", "NCHW"),
                                 precision=hp)
    a = jax.nn.relu(a + params["b_conv2"].astype(f32).reshape(1, C2, 1, 1))
    a = a.reshape(a.shape[0], -1)                                  # NCHW flatten
    wf1 = (params["w_fc1"].astype(f32)
           .reshape(H * W, C2, FC1_OUT).transpose(1, 0, 2).reshape(C2 * H * W, FC1_OUT))
    a = jax.nn.relu(jnp.dot(a, wf1, precision=hp) + params["b_fc1"].astype(f32))
    return jnp.dot(a, params["w_fc2"].astype(f32), precision=hp) + params["b_fc2"]


if __name__ == "__main__":
    key = jax.random.PRNGKey(0)
    k_in, k_par = jax.random.split(key)

    B, C, action_dim = 2, 1, 6
    x = jax.random.normal(k_in, (B, C, H, W), jnp.float32)
    params = init_params(k_par, action_dim)

    fwd = jax.jit(lambda xx, pp: tetris_net_forward(xx, pp, action_dim))
    out = jax.block_until_ready(fwd(x, params))

    assert out.shape == (B, action_dim), out.shape
    assert bool(jnp.all(jnp.isfinite(out)))

    ref = jax.block_until_ready(jax.jit(reference_forward)(x, params))[:, :action_dim]
    max_err = float(jnp.max(jnp.abs(out - ref)))
    assert jnp.allclose(out, ref, atol=2e-2, rtol=2e-2), max_err

    print("KERNEL_OK")
</pallas_src>

<mosaic_0001>
module attributes {stable_mosaic.version = 11 : i64} {
  func.func @_tetris_kernel(%arg0: memref<672x1xf32, #tpu.memory_space<vmem>>, %arg1: memref<9x1x32xf32, #tpu.memory_space<vmem>>, %arg2: memref<1x32xf32, #tpu.memory_space<vmem>>, %arg3: memref<288x64xbf16, #tpu.memory_space<vmem>>, %arg4: memref<1x64xf32, #tpu.memory_space<vmem>>, %arg5: memref<3200x128xbf16, #tpu.memory_space<vmem>>, %arg6: memref<1x128xf32, #tpu.memory_space<vmem>>, %arg7: memref<128x128xf32, #tpu.memory_space<vmem>>, %arg8: memref<1x128xf32, #tpu.memory_space<vmem>>, %arg9: memref<8x128xf32, #tpu.memory_space<vmem>>, %arg10: memref<672x32xbf16, #tpu.memory_space<vmem>>, %arg11: memref<544x288xbf16, #tpu.memory_space<vmem>>, %arg12: memref<544x64xbf16, #tpu.memory_space<vmem>>, %arg13: memref<8x3200xbf16, #tpu.memory_space<vmem>>) attributes {dimension_semantics = [], scalar_prefetch = 0 : i64, scratch_operands = 4 : i64, tpu.core_type = #tpu.core_type<tc>} {
    %cst = arith.constant 0.000000e+00 : f32
    %0 = vector.broadcast %cst : f32 to vector<544x32xf32>
    %c0 = arith.constant 0 : index
    %c0_0 = arith.constant 0 : index
    %1 = vector.load %arg0[%c0, %c0_0] : memref<672x1xf32, #tpu.memory_space<vmem>>, vector<544x1xf32>
    %c0_1 = arith.constant 0 : index
    %c0_2 = arith.constant 0 : index
    %c0_3 = arith.constant 0 : index
    %2 = vector.load %arg1[%c0_1, %c0_2, %c0_3] : memref<9x1x32xf32, #tpu.memory_space<vmem>>, vector<1x1x32xf32>
    %3 = vector.shape_cast %2 : vector<1x1x32xf32> to vector<1x32xf32>
    %4 = vector.broadcast %1 : vector<544x1xf32> to vector<544x32xf32>
    %5 = vector.broadcast %3 : vector<1x32xf32> to vector<544x32xf32>
    %6 = arith.mulf %4, %5 : vector<544x32xf32>
    %7 = arith.addf %0, %6 : vector<544x32xf32>
    %c8 = arith.constant 8 : index
    %c0_4 = arith.constant 0 : index
    %8 = vector.load %arg0[%c8, %c0_4] : memref<672x1xf32, #tpu.memory_space<vmem>>, vector<544x1xf32>
    %c1 = arith.constant 1 : index
    %c0_5 = arith.constant 0 : index
    %c0_6 = arith.constant 0 : index
    %9 = vector.load %arg1[%c1, %c0_5, %c0_6] : memref<9x1x32xf32, #tpu.memory_space<vmem>>, vector<1x1x32xf32>
    %10 = vector.shape_cast %9 : vector<1x1x32xf32> to vector<1x32xf32>
    %11 = vector.broadcast %8 : vector<544x1xf32> to vector<544x32xf32>
    %12 = vector.broadcast %10 : vector<1x32xf32> to vector<544x32xf32>
    %13 = arith.mulf %11, %12 : vector<544x32xf32>
    %14 = arith.addf %7, %13 : vector<544x32xf32>
    %c16 = arith.constant 16 : index
    %c0_7 = arith.constant 0 : index
    %15 = vector.load %arg0[%c16, %c0_7] : memref<672x1xf32, #tpu.memory_space<vmem>>, vector<544x1xf32>
    %c2 = arith.constant 2 : index
    %c0_8 = arith.constant 0 : index
    %c0_9 = arith.constant 0 : index
    %16 = vector.load %arg1[%c2, %c0_8, %c0_9] : memref<9x1x32xf32, #tpu.memory_space<vmem>>, vector<1x1x32xf32>
    %17 = vector.shape_cast %16 : vector<1x1x32xf32> to vector<1x32xf32>
    %18 = vector.broadcast %15 : vector<544x1xf32> to vector<544x32xf32>
    %19 = vector.broadcast %17 : vector<1x32xf32> to vector<544x32xf32>
    %20 = arith.mulf %18, %19 : vector<544x32xf32>
    %21 = arith.addf %14, %20 : vector<544x32xf32>
    %c56 = arith.constant 56 : index
    %c0_10 = arith.constant 0 : index
    %22 = vector.load %arg0[%c56, %c0_10] : memref<672x1xf32, #tpu.memory_space<vmem>>, vector<544x1xf32>
    %c3 = arith.constant 3 : index
    %c0_11 = arith.constant 0 : index
    %c0_12 = arith.constant 0 : index
    %23 = vector.load %arg1[%c3, %c0_11, %c0_12] : memref<9x1x32xf32, #tpu.memory_space<vmem>>, vector<1x1x32xf32>
    %24 = vector.shape_cast %23 : vector<1x1x32xf32> to vector<1x32xf32>
    %25 = vector.broadcast %22 : vector<544x1xf32> to vector<544x32xf32>
    %26 = vector.broadcast %24 : vector<1x32xf32> to vector<544x32xf32>
    %27 = arith.mulf %25, %26 : vector<544x32xf32>
    %28 = arith.addf %21, %27 : vector<544x32xf32>
    %c64 = arith.constant 64 : index
    %c0_13 = arith.constant 0 : index
    %29 = vector.load %arg0[%c64, %c0_13] : memref<672x1xf32, #tpu.memory_space<vmem>>, vector<544x1xf32>
    %c4 = arith.constant 4 : index
    %c0_14 = arith.constant 0 : index
    %c0_15 = arith.constant 0 : index
    %30 = vector.load %arg1[%c4, %c0_14, %c0_15] : memref<9x1x32xf32, #tpu.memory_space<vmem>>, vector<1x1x32xf32>
    %31 = vector.shape_cast %30 : vector<1x1x32xf32> to vector<1x32xf32>
    %32 = vector.broadcast %29 : vector<544x1xf32> to vector<544x32xf32>
    %33 = vector.broadcast %31 : vector<1x32xf32> to vector<544x32xf32>
    %34 = arith.mulf %32, %33 : vector<544x32xf32>
    %35 = arith.addf %28, %34 : vector<544x32xf32>
    %c72 = arith.constant 72 : index
    %c0_16 = arith.constant 0 : index
    %36 = vector.load %arg0[%c72, %c0_16] : memref<672x1xf32, #tpu.memory_space<vmem>>, vector<544x1xf32>
    %c5 = arith.constant 5 : index
    %c0_17 = arith.constant 0 : index
    %c0_18 = arith.constant 0 : index
    %37 = vector.load %arg1[%c5, %c0_17, %c0_18] : memref<9x1x32xf32, #tpu.memory_space<vmem>>, vector<1x1x32xf32>
    %38 = vector.shape_cast %37 : vector<1x1x32xf32> to vector<1x32xf32>
    %39 = vector.broadcast %36 : vector<544x1xf32> to vector<544x32xf32>
    %40 = vector.broadcast %38 : vector<1x32xf32> to vector<544x32xf32>
    %41 = arith.mulf %39, %40 : vector<544x32xf32>
    %42 = arith.addf %35, %41 : vector<544x32xf32>
    %c112 = arith.constant 112 : index
    %c0_19 = arith.constant 0 : index
    %43 = vector.load %arg0[%c112, %c0_19] : memref<672x1xf32, #tpu.memory_space<vmem>>, vector<544x1xf32>
    %c6 = arith.constant 6 : index
    %c0_20 = arith.constant 0 : index
    %c0_21 = arith.constant 0 : index
    %44 = vector.load %arg1[%c6, %c0_20, %c0_21] : memref<9x1x32xf32, #tpu.memory_space<vmem>>, vector<1x1x32xf32>
    %45 = vector.shape_cast %44 : vector<1x1x32xf32> to vector<1x32xf32>
    %46 = vector.broadcast %43 : vector<544x1xf32> to vector<544x32xf32>
    %47 = vector.broadcast %45 : vector<1x32xf32> to vector<544x32xf32>
    %48 = arith.mulf %46, %47 : vector<544x32xf32>
    %49 = arith.addf %42, %48 : vector<544x32xf32>
    %c120 = arith.constant 120 : index
    %c0_22 = arith.constant 0 : index
    %50 = vector.load %arg0[%c120, %c0_22] : memref<672x1xf32, #tpu.memory_space<vmem>>, vector<544x1xf32>
    %c7 = arith.constant 7 : index
    %c0_23 = arith.constant 0 : index
    %c0_24 = arith.constant 0 : index
    %51 = vector.load %arg1[%c7, %c0_23, %c0_24] : memref<9x1x32xf32, #tpu.memory_space<vmem>>, vector<1x1x32xf32>
    %52 = vector.shape_cast %51 : vector<1x1x32xf32> to vector<1x32xf32>
    %53 = vector.broadcast %50 : vector<544x1xf32> to vector<544x32xf32>
    %54 = vector.broadcast %52 : vector<1x32xf32> to vector<544x32xf32>
    %55 = arith.mulf %53, %54 : vector<544x32xf32>
    %56 = arith.addf %49, %55 : vector<544x32xf32>
    %c128 = arith.constant 128 : index
    %c0_25 = arith.constant 0 : index
    %57 = vector.load %arg0[%c128, %c0_25] : memref<672x1xf32, #tpu.memory_space<vmem>>, vector<544x1xf32>
    %c8_26 = arith.constant 8 : index
    %c0_27 = arith.constant 0 : index
    %c0_28 = arith.constant 0 : index
    %58 = vector.load %arg1[%c8_26, %c0_27, %c0_28] : memref<9x1x32xf32, #tpu.memory_space<vmem>>, vector<1x1x32xf32>
    %59 = vector.shape_cast %58 : vector<1x1x32xf32> to vector<1x32xf32>
    %60 = vector.broadcast %57 : vector<544x1xf32> to vector<544x32xf32>
    %61 = vector.broadcast %59 : vector<1x32xf32> to vector<544x32xf32>
    %62 = arith.mulf %60, %61 : vector<544x32xf32>
    %63 = arith.addf %56, %62 : vector<544x32xf32>
    %c0_29 = arith.constant 0 : index
    %c0_30 = arith.constant 0 : index
    %64 = vector.load %arg2[%c0_29, %c0_30] : memref<1x32xf32, #tpu.memory_space<vmem>>, vector<1x32xf32>
    %65 = vector.broadcast %64 : vector<1x32xf32> to vector<544x32xf32>
    %66 = arith.addf %63, %65 : vector<544x32xf32>
    %cst_31 = arith.constant 0.000000e+00 : f32
    %67 = vector.broadcast %cst_31 : f32 to vector<544x32xf32>
    %68 = arith.maximumf %66, %67 : vector<544x32xf32>
    %69 = arith.truncf %68 : vector<544x32xf32> to vector<544x32xbf16>
    %cst_32 = arith.constant 0.000000e+00 : bf16
    %70 = vector.broadcast %cst_32 : bf16 to vector<64x32xbf16>
    %c0_33 = arith.constant 0 : index
    %c0_34 = arith.constant 0 : index
    %71 = vector.load %arg10[%c0_33, %c0_34] : memref<672x32xbf16, #tpu.memory_space<vmem>>, vector<64x32xbf16>
    tpu.vector_store %arg10[%c0_33, %c0_34], %70 {strides = array<i32>} : memref<672x32xbf16, #tpu.memory_space<vmem>>, vector<64x32xbf16>,
    %cst_35 = arith.constant 0.000000e+00 : bf16
    %72 = vector.broadcast %cst_35 : bf16 to vector<64x32xbf16>
    %c608 = arith.constant 608 : index
    %c0_36 = arith.constant 0 : index
    %73 = vector.load %arg10[%c608, %c0_36] : memref<672x32xbf16, #tpu.memory_space<vmem>>, vector<64x32xbf16>
    tpu.vector_store %arg10[%c608, %c0_36], %72 {strides = array<i32>} : memref<672x32xbf16, #tpu.memory_space<vmem>>, vector<64x32xbf16>,
    %c64_37 = arith.constant 64 : index
    %c0_38 = arith.constant 0 : index
    %74 = vector.load %arg10[%c64_37, %c0_38] : memref<672x32xbf16, #tpu.memory_space<vmem>>, vector<544x32xbf16>
    tpu.vector_store %arg10[%c64_37, %c0_38], %69 {strides = array<i32>} : memref<672x32xbf16, #tpu.memory_space<vmem>>, vector<544x32xbf16>,
    %cst_39 = arith.constant 0.000000e+00 : bf16
    %75 = vector.broadcast %cst_39 : bf16 to vector<16x32xbf16>
    %c104 = arith.constant 104 : index
    %c0_40 = arith.constant 0 : index
    %76 = vector.load %arg10[%c104, %c0_40] : memref<672x32xbf16, #tpu.memory_space<vmem>>, vector<16x32xbf16>
    tpu.vector_store %arg10[%c104, %c0_40], %75 {strides = array<i32>} : memref<672x32xbf16, #tpu.memory_space<vmem>>, vector<16x32xbf16>,
    %cst_41 = arith.constant 0.000000e+00 : bf16
    %77 = vector.broadcast %cst_41 : bf16 to vector<16x32xbf16>
    %c160 = arith.constant 160 : index
    %c0_42 = arith.constant 0 : index
    %78 = vector.load %arg10[%c160, %c0_42] : memref<672x32xbf16, #tpu.memory_space<vmem>>, vector<16x32xbf16>
    tpu.vector_store %arg10[%c160, %c0_42], %77 {strides = array<i32>} : memref<672x32xbf16, #tpu.memory_space<vmem>>, vector<16x32xbf16>,
    %cst_43 = arith.constant 0.000000e+00 : bf16
    %79 = vector.broadcast %cst_43 : bf16 to vector<16x32xbf16>
    %c216 = arith.constant 216 : index
    %c0_44 = arith.constant 0 : index
    %80 = vector.load %arg10[%c216, %c0_44] : memref<672x32xbf16, #tpu.memory_space<vmem>>, vector<16x32xbf16>
    tpu.vector_store %arg10[%c216, %c0_44], %79 {strides = array<i32>} : memref<672x32xbf16, #tpu.memory_space<vmem>>, vector<16x32xbf16>,
    %cst_45 = arith.constant 0.000000e+00 : bf16
    %81 = vector.broadcast %cst_45 : bf16 to vector<16x32xbf16>
    %c272 = arith.constant 272 : index
    %c0_46 = arith.constant 0 : index
    %82 = vector.load %arg10[%c272, %c0_46] : memref<672x32xbf16, #tpu.memory_space<vmem>>, vector<16x32xbf16>
    tpu.vector_store %arg10[%c272, %c0_46], %81 {strides = array<i32>} : memref<672x32xbf16, #tpu.memory_space<vmem>>, vector<16x32xbf16>,
    %cst_47 = arith.constant 0.000000e+00 : bf16
    %83 = vector.broadcast %cst_47 : bf16 to vector<16x32xbf16>
    %c328 = arith.constant 328 : index
    %c0_48 = arith.constant 0 : index
    %84 = vector.load %arg10[%c328, %c0_48] : memref<672x32xbf16, #tpu.memory_space<vmem>>, vector<16x32xbf16>
    tpu.vector_store %arg10[%c328, %c0_48], %83 {strides = array<i32>} : memref<672x32xbf16, #tpu.memory_space<vmem>>, vector<16x32xbf16>,
    %cst_49 = arith.constant 0.000000e+00 : bf16
    %85 = vector.broadcast %cst_49 : bf16 to vector<16x32xbf16>
    %c384 = arith.constant 384 : index
    %c0_50 = arith.constant 0 : index
    %86 = vector.load %arg10[%c384, %c0_50] : memref<672x32xbf16, #tpu.memory_space<vmem>>, vector<16x32xbf16>
    tpu.vector_store %arg10[%c384, %c0_50], %85 {strides = array<i32>} : memref<672x32xbf16, #tpu.memory_space<vmem>>, vector<16x32xbf16>,
    %cst_51 = arith.constant 0.000000e+00 : bf16
    %87 = vector.broadcast %cst_51 : bf16 to vector<16x32xbf16>
    %c440 = arith.constant 440 : index
    %c0_52 = arith.constant 0 : index
    %88 = vector.load %arg10[%c440, %c0_52] : memref<672x32xbf16, #tpu.memory_space<vmem>>, vector<16x32xbf16>
    tpu.vector_store %arg10[%c440, %c0_52], %87 {strides = array<i32>} : memref<672x32xbf16, #tpu.memory_space<vmem>>, vector<16x32xbf16>,
    %cst_53 = arith.constant 0.000000e+00 : bf16
    %89 = vector.broadcast %cst_53 : bf16 to vector<16x32xbf16>
    %c496 = arith.constant 496 : index
    %c0_54 = arith.constant 0 : index
    %90 = vector.load %arg10[%c496, %c0_54] : memref<672x32xbf16, #tpu.memory_space<vmem>>, vector<16x32xbf16>
    tpu.vector_store %arg10[%c496, %c0_54], %89 {strides = array<i32>} : memref<672x32xbf16, #tpu.memory_space<vmem>>, vector<16x32xbf16>,
    %cst_55 = arith.constant 0.000000e+00 : bf16
    %91 = vector.broadcast %cst_55 : bf16 to vector<16x32xbf16>
    %c552 = arith.constant 552 : index
    %c0_56 = arith.constant 0 : index
    %92 = vector.load %arg10[%c552, %c0_56] : memref<672x32xbf16, #tpu.memory_space<vmem>>, vector<16x32xbf16>
    tpu.vector_store %arg10[%c552, %c0_56], %91 {strides = array<i32>} : memref<672x32xbf16, #tpu.memory_space<vmem>>, vector<16x32xbf16>,
    %c0_57 = arith.constant 0 : index
    %c0_58 = arith.constant 0 : index
    %93 = vector.load %arg10[%c0_57, %c0_58] : memref<672x32xbf16, #tpu.memory_space<vmem>>, vector<544x32xbf16>
    %c0_59 = arith.constant 0 : index
    %c0_60 = arith.constant 0 : index
    %94 = vector.load %arg11[%c0_59, %c0_60] : memref<544x288xbf16, #tpu.memory_space<vmem>>, vector<544x32xbf16>
    tpu.vector_store %arg11[%c0_59, %c0_60], %93 {strides = array<i32>} : memref<544x288xbf16, #tpu.memory_space<vmem>>, vector<544x32xbf16>,
    %c8_61 = arith.constant 8 : index
    %c0_62 = arith.constant 0 : index
    %95 = vector.load %arg10[%c8_61, %c0_62] : memref<672x32xbf16, #tpu.memory_space<vmem>>, vector<544x32xbf16>
    %c0_63 = arith.constant 0 : index
    %c32 = arith.constant 32 : index
    %96 = vector.load %arg11[%c0_63, %c32] : memref<544x288xbf16, #tpu.memory_space<vmem>>, vector<544x32xbf16>
    tpu.vector_store %arg11[%c0_63, %c32], %95 {strides = array<i32>} : memref<544x288xbf16, #tpu.memory_space<vmem>>, vector<544x32xbf16>,
    %c16_64 = arith.constant 16 : index
    %c0_65 = arith.constant 0 : index
    %97 = vector.load %arg10[%c16_64, %c0_65] : memref<672x32xbf16, #tpu.memory_space<vmem>>, vector<544x32xbf16>
    %c0_66 = arith.constant 0 : index
    %c64_67 = arith.constant 64 : index
    %98 = vector.load %arg11[%c0_66, %c64_67] : memref<544x288xbf16, #tpu.memory_space<vmem>>, vector<544x32xbf16>
    tpu.vector_store %arg11[%c0_66, %c64_67], %97 {strides = array<i32>} : memref<544x288xbf16, #tpu.memory_space<vmem>>, vector<544x32xbf16>,
    %c56_68 = arith.constant 56 : index
    %c0_69 = arith.constant 0 : index
    %99 = vector.load %arg10[%c56_68, %c0_69] : memref<672x32xbf16, #tpu.memory_space<vmem>>, vector<544x32xbf16>
    %c0_70 = arith.constant 0 : index
    %c96 = arith.constant 96 : index
    %100 = vector.load %arg11[%c0_70, %c96] : memref<544x288xbf16, #tpu.memory_space<vmem>>, vector<544x32xbf16>
    tpu.vector_store %arg11[%c0_70, %c96], %99 {strides = array<i32>} : memref<544x288xbf16, #tpu.memory_space<vmem>>, vector<544x32xbf16>,
    %c64_71 = arith.constant 64 : index
    %c0_72 = arith.constant 0 : index
    %101 = vector.load %arg10[%c64_71, %c0_72] : memref<672x32xbf16, #tpu.memory_space<vmem>>, vector<544x32xbf16>
    %c0_73 = arith.constant 0 : index
    %c128_74 = arith.constant 128 : index
    %102 = vector.load %arg11[%c0_73, %c128_74] : memref<544x288xbf16, #tpu.memory_space<vmem>>, vector<544x32xbf16>
    tpu.vector_store %arg11[%c0_73, %c128_74], %101 {strides = array<i32>} : memref<544x288xbf16, #tpu.memory_space<vmem>>, vector<544x32xbf16>,
    %c72_75 = arith.constant 72 : index
    %c0_76 = arith.constant 0 : index
    %103 = vector.load %arg10[%c72_75, %c0_76] : memref<672x32xbf16, #tpu.memory_space<vmem>>, vector<544x32xbf16>
    %c0_77 = arith.constant 0 : index
    %c160_78 = arith.constant 160 : index
    %104 = vector.load %arg11[%c0_77, %c160_78] : memref<544x288xbf16, #tpu.memory_space<vmem>>, vector<544x32xbf16>
    tpu.vector_store %arg11[%c0_77, %c160_78], %103 {strides = array<i32>} : memref<544x288xbf16, #tpu.memory_space<vmem>>, vector<544x32xbf16>,
    %c112_79 = arith.constant 112 : index
    %c0_80 = arith.constant 0 : index
    %105 = vector.load %arg10[%c112_79, %c0_80] : memref<672x32xbf16, #tpu.memory_space<vmem>>, vector<544x32xbf16>
    %c0_81 = arith.constant 0 : index
    %c192 = arith.constant 192 : index
    %106 = vector.load %arg11[%c0_81, %c192] : memref<544x288xbf16, #tpu.memory_space<vmem>>, vector<544x32xbf16>
    tpu.vector_store %arg11[%c0_81, %c192], %105 {strides = array<i32>} : memref<544x288xbf16, #tpu.memory_space<vmem>>, vector<544x32xbf16>,
    %c120_82 = arith.constant 120 : index
    %c0_83 = arith.constant 0 : index
    %107 = vector.load %arg10[%c120_82, %c0_83] : memref<672x32xbf16, #tpu.memory_space<vmem>>, vector<544x32xbf16>
    %c0_84 = arith.constant 0 : index
    %c224 = arith.constant 224 : index
    %108 = vector.load %arg11[%c0_84, %c224] : memref<544x288xbf16, #tpu.memory_space<vmem>>, vector<544x32xbf16>
    tpu.vector_store %arg11[%c0_84, %c224], %107 {strides = array<i32>} : memref<544x288xbf16, #tpu.memory_space<vmem>>, vector<544x32xbf16>,
    %c128_85 = arith.constant 128 : index
    %c0_86 = arith.constant 0 : index
    %109 = vector.load %arg10[%c128_85, %c0_86] : memref<672x32xbf16, #tpu.memory_space<vmem>>, vector<544x32xbf16>
    %c0_87 = arith.constant 0 : index
    %c256 = arith.constant 256 : index
    %110 = vector.load %arg11[%c0_87, %c256] : memref<544x288xbf16, #tpu.memory_space<vmem>>, vector<544x32xbf16>
    tpu.vector_store %arg11[%c0_87, %c256], %109 {strides = array<i32>} : memref<544x288xbf16, #tpu.memory_space<vmem>>, vector<544x32xbf16>,
    %c0_88 = arith.constant 0 : index
    %c0_89 = arith.constant 0 : index
    %111 = vector.load %arg11[%c0_88, %c0_89] : memref<544x288xbf16, #tpu.memory_space<vmem>>, vector<544x288xbf16>
    %c0_90 = arith.constant 0 : index
    %c0_91 = arith.constant 0 : index
    %112 = vector.load %arg3[%c0_90, %c0_91] : memref<288x64xbf16, #tpu.memory_space<vmem>>, vector<288x64xbf16>
    %cst_92 = arith.constant dense<0.000000e+00> : vector<544x64xf32>
    %113 = tpu.matmul %111, %112, %cst_92 {dimension_numbers = #tpu.dot_dimension_numbers<[1], [0], [0], [1], [0, 0, 1, 1], [], []>} : vector<544x288xbf16>, vector<288x64xbf16>, vector<544x64xf32> -> vector<544x64xf32>
    %c0_93 = arith.constant 0 : index
    %c0_94 = arith.constant 0 : index
    %114 = vector.load %arg4[%c0_93, %c0_94] : memref<1x64xf32, #tpu.memory_space<vmem>>, vector<1x64xf32>
    %115 = vector.broadcast %114 : vector<1x64xf32> to vector<544x64xf32>
    %116 = arith.addf %113, %115 : vector<544x64xf32>
    %cst_95 = arith.constant 0.000000e+00 : f32
    %117 = vector.broadcast %cst_95 : f32 to vector<544x64xf32>
    %118 = arith.maximumf %116, %117 : vector<544x64xf32>
    %119 = arith.truncf %118 : vector<544x64xf32> to vector<544x64xbf16>
    %c0_96 = arith.constant 0 : index
    %c0_97 = arith.constant 0 : index
    %120 = vector.load %arg12[%c0_96, %c0_97] : memref<544x64xbf16, #tpu.memory_space<vmem>>, vector<544x64xbf16>
    tpu.vector_store %arg12[%c0_96, %c0_97], %119 {strides = array<i32>} : memref<544x64xbf16, #tpu.memory_space<vmem>>, vector<544x64xbf16>,
    %c0_98 = arith.constant 0 : index
    %c0_99 = arith.constant 0 : index
    %121 = vector.load %arg12[%c0_98, %c0_99] : memref<544x64xbf16, #tpu.memory_space<vmem>>, vector<8x64xbf16>
    %c0_100 = arith.constant 0 : index
    %c0_101 = arith.constant 0 : index
    %122 = vector.load %arg13[%c0_100, %c0_101] : memref<8x3200xbf16, #tpu.memory_space<vmem>>, vector<8x64xbf16>
    tpu.vector_store %arg13[%c0_100, %c0_101], %121 {strides = array<i32>} : memref<8x3200xbf16, #tpu.memory_space<vmem>>, vector<8x64xbf16>,
    %c8_102 = arith.constant 8 : index
    %c0_103 = arith.constant 0 : index
    %123 = vector.load %arg12[%c8_102, %c0_103] : memref<544x64xbf16, #tpu.memory_space<vmem>>, vector<8x64xbf16>
    %c0_104 = arith.constant 0 : index
    %c64_105 = arith.constant 64 : index
    %124 = vector.load %arg13[%c0_104, %c64_105] : memref<8x3200xbf16, #tpu.memory_space<vmem>>, vector<8x64xbf16>
    tpu.vector_store %arg13[%c0_104, %c64_105], %123 {strides = array<i32>} : memref<8x3200xbf16, #tpu.memory_space<vmem>>, vector<8x64xbf16>,
    %c16_106 = arith.constant 16 : index
    %c0_107 = arith.constant 0 : index
    %125 = vector.load %arg12[%c16_106, %c0_107] : memref<544x64xbf16, #tpu.memory_space<vmem>>, vector<8x64xbf16>
    %c0_108 = arith.constant 0 : index
    %c128_109 = arith.constant 128 : index
    %126 = vector.load %arg13[%c0_108, %c128_109] : memref<8x3200xbf16, #tpu.memory_space<vmem>>, vector<8x64xbf16>
    tpu.vector_store %arg13[%c0_108, %c128_109], %125 {strides = array<i32>} : memref<8x3200xbf16, #tpu.memory_space<vmem>>, vector<8x64xbf16>,
    %c24 = arith.constant 24 : index
    %c0_110 = arith.constant 0 : index
    %127 = vector.load %arg12[%c24, %c0_110] : memref<544x64xbf16, #tpu.memory_space<vmem>>, vector<8x64xbf16>
    %c0_111 = arith.constant 0 : index
    %c192_112 = arith.constant 192 : index
    %128 = vector.load %arg13[%c0_111, %c192_112] : memref<8x3200xbf16, #tpu.memory_space<vmem>>, vector<8x64xbf16>
    tpu.vector_store %arg13[%c0_111, %c192_112], %127 {strides = array<i32>} : memref<8x3200xbf16, #tpu.memory_space<vmem>>, vector<8x64xbf16>,
    %c32_113 = arith.constant 32 : index
    %c0_114 = arith.constant 0 : index
    %129 = vector.load %arg12[%c32_113, %c0_114] : memref<544x64xbf16, #tpu.memory_space<vmem>>, vector<8x64xbf16>
    %c0_115 = arith.constant 0 : index
    %c256_116 = arith.constant 256 : index
    %130 = vector.load %arg13[%c0_115, %c256_116] : memref<8x3200xbf16, #tpu.memory_space<vmem>>, vector<8x64xbf16>
    tpu.vector_store %arg13[%c0_115, %c256_116], %129 {strides = array<i32>} : memref<8x3200xbf16, #tpu.memory_space<vmem>>, vector<8x64xbf16>,
    %c56_117 = arith.constant 56 : index
    %c0_118 = arith.constant 0 : index
    %131 = vector.load %arg12[%c56_117, %c0_118] : memref<544x64xbf16, #tpu.memory_space<vmem>>, vector<8x64xbf16>
    %c0_119 = arith.constant 0 : index
    %c320 = arith.constant 320 : index
    %132 = vector.load %arg13[%c0_119, %c320] : memref<8x3200xbf16, #tpu.memory_space<vmem>>, vector<8x64xbf16>
    tpu.vector_store %arg13[%c0_119, %c320], %131 {strides = array<i32>} : memref<8x3200xbf16, #tpu.memory_space<vmem>>, vector<8x64xbf16>,
    %c64_120 = arith.constant 64 : index
    %c0_121 = arith.constant 0 : index
    %133 = vector.load %arg12[%c64_120, %c0_121] : memref<544x64xbf16, #tpu.memory_space<vmem>>, vector<8x64xbf16>
    %c0_122 = arith.constant 0 : index
    %c384_123 = arith.constant 384 : index
    %134 = vector.load %arg13[%c0_122, %c384_123] : memref<8x3200xbf16, #tpu.memory_space<vmem>>, vector<8x64xbf16>
    tpu.vector_store %arg13[%c0_122, %c384_123], %133 {strides = array<i32>} : memref<8x3200xbf16, #tpu.memory_space<vmem>>, vector<8x64xbf16>,
    %c72_124 = arith.constant 72 : index
    %c0_125 = arith.constant 0 : index
    %135 = vector.load %arg12[%c72_124, %c0_125] : memref<544x64xbf16, #tpu.memory_space<vmem>>, vector<8x64xbf16>
    %c0_126 = arith.constant 0 : index
    %c448 = arith.constant 448 : index
    %136 = vector.load %arg13[%c0_126, %c448] : memref<8x3200xbf16, #tpu.memory_space<vmem>>, vector<8x64xbf16>
    tpu.vector_store %arg13[%c0_126, %c448], %135 {strides = array<i32>} : memref<8x3200xbf16, #tpu.memory_space<vmem>>, vector<8x64xbf16>,
    %c80 = arith.constant 80 : index
    %c0_127 = arith.constant 0 : index
    %137 = vector.load %arg12[%c80, %c0_127] : memref<544x64xbf16, #tpu.memory_space<vmem>>, vector<8x64xbf16>
    %c0_128 = arith.constant 0 : index
    %c512 = arith.constant 512 : index
    %138 = vector.load %arg13[%c0_128, %c512] : memref<8x3200xbf16, #tpu.memory_space<vmem>>, vector<8x64xbf16>
    tpu.vector_store %arg13[%c0_128, %c512], %137 {strides = array<i32>} : memref<8x3200xbf16, #tpu.memory_space<vmem>>, vector<8x64xbf16>,
    %c88 = arith.constant 88 : index
    %c0_129 = arith.constant 0 : index
    %139 = vector.load %arg12[%c88, %c0_129] : memref<544x64xbf16, #tpu.memory_space<vmem>>, vector<8x64xbf16>
    %c0_130 = arith.constant 0 : index
    %c576 = arith.constant 576 : index
    %140 = vector.load %arg13[%c0_130, %c576] : memref<8x3200xbf16, #tpu.memory_space<vmem>>, vector<8x64xbf16>
    tpu.vector_store %arg13[%c0_130, %c576], %139 {strides = array<i32>} : memref<8x3200xbf16, #tpu.memory_space<vmem>>, vector<8x64xbf16>,
    %c112_131 = arith.constant 112 : index
    %c0_132 = arith.constant 0 : index
    %141 = vector.load %arg12[%c112_131, %c0_132] : memref<544x64xbf16, #tpu.memory_space<vmem>>, vector<8x64xbf16>
    %c0_133 = arith.constant 0 : index
    %c640 = arith.constant 640 : index
    %142 = vector.load %arg13[%c0_133, %c640] : memref<8x3200xbf16, #tpu.memory_space<vmem>>, vector<8x64xbf16>
    tpu.vector_store %arg13[%c0_133, %c640], %141 {strides = array<i32>} : memref<8x3200xbf16, #tpu.memory_space<vmem>>, vector<8x64xbf16>,
    %c120_134 = arith.constant 120 : index
    %c0_135 = arith.constant 0 : index
    %143 = vector.load %arg12[%c120_134, %c0_135] : memref<544x64xbf16, #tpu.memory_space<vmem>>, vector<8x64xbf16>
    %c0_136 = arith.constant 0 : index
    %c704 = arith.constant 704 : index
    %144 = vector.load %arg13[%c0_136, %c704] : memref<8x3200xbf16, #tpu.memory_space<vmem>>, vector<8x64xbf16>
    tpu.vector_store %arg13[%c0_136, %c704], %143 {strides = array<i32>} : memref<8x3200xbf16, #tpu.memory_space<vmem>>, vector<8x64xbf16>,
    %c128_137 = arith.constant 128 : index
    %c0_138 = arith.constant 0 : index
    %145 = vector.load %arg12[%c128_137, %c0_138] : memref<544x64xbf16, #tpu.memory_space<vmem>>, vector<8x64xbf16>
    %c0_139 = arith.constant 0 : index
    %c768 = arith.constant 768 : index
    %146 = vector.load %arg13[%c0_139, %c768] : memref<8x3200xbf16, #tpu.memory_space<vmem>>, vector<8x64xbf16>
    tpu.vector_store %arg13[%c0_139, %c768], %145 {strides = array<i32>} : memref<8x3200xbf16, #tpu.memory_space<vmem>>, vector<8x64xbf16>,
    %c136 = arith.constant 136 : index
    %c0_140 = arith.constant 0 : index
    %147 = vector.load %arg12[%c136, %c0_140] : memref<544x64xbf16, #tpu.memory_space<vmem>>, vector<8x64xbf16>
    %c0_141 = arith.constant 0 : index
    %c832 = arith.constant 832 : index
    %148 = vector.load %arg13[%c0_141, %c832] : memref<8x3200xbf16, #tpu.memory_space<vmem>>, vector<8x64xbf16>
    tpu.vector_store %arg13[%c0_141, %c832], %147 {strides = array<i32>} : memref<8x3200xbf16, #tpu.memory_space<vmem>>, vector<8x64xbf16>,
    %c144 = arith.constant 144 : index
    %c0_142 = arith.constant 0 : index
    %149 = vector.load %arg12[%c144, %c0_142] : memref<544x64xbf16, #tpu.memory_space<vmem>>, vector<8x64xbf16>
    %c0_143 = arith.constant 0 : index
    %c896 = arith.constant 896 : index
    %150 = vector.load %arg13[%c0_143, %c896] : memref<8x3200xbf16, #tpu.memory_space<vmem>>, vector<8x64xbf16>
    tpu.vector_store %arg13[%c0_143, %c896], %149 {strides = array<i32>} : memref<8x3200xbf16, #tpu.memory_space<vmem>>, vector<8x64xbf16>,
    %c168 = arith.constant 168 : index
    %c0_144 = arith.constant 0 : index
    %151 = vector.load %arg12[%c168, %c0_144] : memref<544x64xbf16, #tpu.memory_space<vmem>>, vector<8x64xbf16>
    %c0_145 = arith.constant 0 : index
    %c960 = arith.constant 960 : index
    %152 = vector.load %arg13[%c0_145, %c960] : memref<8x3200xbf16, #tpu.memory_space<vmem>>, vector<8x64xbf16>
    tpu.vector_store %arg13[%c0_145, %c960], %151 {strides = array<i32>} : memref<8x3200xbf16, #tpu.memory_space<vmem>>, vector<8x64xbf16>,
    %c176 = arith.constant 176 : index
    %c0_146 = arith.constant 0 : index
    %153 = vector.load %arg12[%c176, %c0_146] : memref<544x64xbf16, #tpu.memory_space<vmem>>, vector<8x64xbf16>
    %c0_147 = arith.constant 0 : index
    %c1024 = arith.constant 1024 : index
    %154 = vector.load %arg13[%c0_147, %c1024] : memref<8x3200xbf16, #tpu.memory_space<vmem>>, vector<8x64xbf16>
    tpu.vector_store %arg13[%c0_147, %c1024], %153 {strides = array<i32>} : memref<8x3200xbf16, #tpu.memory_space<vmem>>, vector<8x64xbf16>,
    %c184 = arith.constant 184 : index
    %c0_148 = arith.constant 0 : index
    %155 = vector.load %arg12[%c184, %c0_148] : memref<544x64xbf16, #tpu.memory_space<vmem>>, vector<8x64xbf16>
    %c0_149 = arith.constant 0 : index
    %c1088 = arith.constant 1088 : index
    %156 = vector.load %arg13[%c0_149, %c1088] : memref<8x3200xbf16, #tpu.memory_space<vmem>>, vector<8x64xbf16>
    tpu.vector_store %arg13[%c0_149, %c1088], %155 {strides = array<i32>} : memref<8x3200xbf16, #tpu.memory_space<vmem>>, vector<8x64xbf16>,
    %c192_150 = arith.constant 192 : index
    %c0_151 = arith.constant 0 : index
    %157 = vector.load %arg12[%c192_150, %c0_151] : memref<544x64xbf16, #tpu.memory_space<vmem>>, vector<8x64xbf16>
    %c0_152 = arith.constant 0 : index
    %c1152 = arith.constant 1152 : index
    %158 = vector.load %arg13[%c0_152, %c1152] : memref<8x3200xbf16, #tpu.memory_space<vmem>>, vector<8x64xbf16>
    tpu.vector_store %arg13[%c0_152, %c1152], %157 {strides = array<i32>} : memref<8x3200xbf16, #tpu.memory_space<vmem>>, vector<8x64xbf16>,
    %c200 = arith.constant 200 : index
    %c0_153 = arith.constant 0 : index
    %159 = vector.load %arg12[%c200, %c0_153] : memref<544x64xbf16, #tpu.memory_space<vmem>>, vector<8x64xbf16>
    %c0_154 = arith.constant 0 : index
    %c1216 = arith.constant 1216 : index
    %160 = vector.load %arg13[%c0_154, %c1216] : memref<8x3200xbf16, #tpu.memory_space<vmem>>, vector<8x64xbf16>
    tpu.vector_store %arg13[%c0_154, %c1216], %159 {strides = array<i32>} : memref<8x3200xbf16, #tpu.memory_space<vmem>>, vector<8x64xbf16>,
    %c224_155 = arith.constant 224 : index
    %c0_156 = arith.constant 0 : index
    %161 = vector.load %arg12[%c224_155, %c0_156] : memref<544x64xbf16, #tpu.memory_space<vmem>>, vector<8x64xbf16>
    %c0_157 = arith.constant 0 : index
    %c1280 = arith.constant 1280 : index
    %162 = vector.load %arg13[%c0_157, %c1280] : memref<8x3200xbf16, #tpu.memory_space<vmem>>, vector<8x64xbf16>
    tpu.vector_store %arg13[%c0_157, %c1280], %161 {strides = array<i32>} : memref<8x3200xbf16, #tpu.memory_space<vmem>>, vector<8x64xbf16>,
    %c232 = arith.constant 232 : index
    %c0_158 = arith.constant 0 : index
    %163 = vector.load %arg12[%c232, %c0_158] : memref<544x64xbf16, #tpu.memory_space<vmem>>, vector<8x64xbf16>
    %c0_159 = arith.constant 0 : index
    %c1344 = arith.constant 1344 : index
    %164 = vector.load %arg13[%c0_159, %c1344] : memref<8x3200xbf16, #tpu.memory_space<vmem>>, vector<8x64xbf16>
    tpu.vector_store %arg13[%c0_159, %c1344], %163 {strides = array<i32>} : memref<8x3200xbf16, #tpu.memory_space<vmem>>, vector<8x64xbf16>,
    %c240 = arith.constant 240 : index
    %c0_160 = arith.constant 0 : index
    %165 = vector.load %arg12[%c240, %c0_160] : memref<544x64xbf16, #tpu.memory_space<vmem>>, vector<8x64xbf16>
    %c0_161 = arith.constant 0 : index
    %c1408 = arith.constant 1408 : index
    %166 = vector.load %arg13[%c0_161, %c1408] : memref<8x3200xbf16, #tpu.memory_space<vmem>>, vector<8x64xbf16>
    tpu.vector_store %arg13[%c0_161, %c1408], %165 {strides = array<i32>} : memref<8x3200xbf16, #tpu.memory_space<vmem>>, vector<8x64xbf16>,
    %c248 = arith.constant 248 : index
    %c0_162 = arith.constant 0 : index
    %167 = vector.load %arg12[%c248, %c0_162] : memref<544x64xbf16, #tpu.memory_space<vmem>>, vector<8x64xbf16>
    %c0_163 = arith.constant 0 : index
    %c1472 = arith.constant 1472 : index
    %168 = vector.load %arg13[%c0_163, %c1472] : memref<8x3200xbf16, #tpu.memory_space<vmem>>, vector<8x64xbf16>
    tpu.vector_store %arg13[%c0_163, %c1472], %167 {strides = array<i32>} : memref<8x3200xbf16, #tpu.memory_space<vmem>>, vector<8x64xbf16>,
    %c256_164 = arith.constant 256 : index
    %c0_165 = arith.constant 0 : index
    %169 = vector.load %arg12[%c256_164, %c0_165] : memref<544x64xbf16, #tpu.memory_space<vmem>>, vector<8x64xbf16>
    %c0_166 = arith.constant 0 : index
    %c1536 = arith.constant 1536 : index
    %170 = vector.load %arg13[%c0_166, %c1536] : memref<8x3200xbf16, #tpu.memory_space<vmem>>, vector<8x64xbf16>
    tpu.vector_store %arg13[%c0_166, %c1536], %169 {strides = array<i32>} : memref<8x3200xbf16, #tpu.memory_space<vmem>>, vector<8x64xbf16>,
    %c280 = arith.constant 280 : index
    %c0_167 = arith.constant 0 : index
    %171 = vector.load %arg12[%c280, %c0_167] : memref<544x64xbf16, #tpu.memory_space<vmem>>, vector<8x64xbf16>
    %c0_168 = arith.constant 0 : index
    %c1600 = arith.constant 1600 : index
    %172 = vector.load %arg13[%c0_168, %c1600] : memref<8x3200xbf16, #tpu.memory_space<vmem>>, vector<8x64xbf16>
    tpu.vector_store %arg13[%c0_168, %c1600], %171 {strides = array<i32>} : memref<8x3200xbf16, #tpu.memory_space<vmem>>, vector<8x64xbf16>,
    %c288 = arith.constant 288 : index
    %c0_169 = arith.constant 0 : index
    %173 = vector.load %arg12[%c288, %c0_169] : memref<544x64xbf16, #tpu.memory_space<vmem>>, vector<8x64xbf16>
    %c0_170 = arith.constant 0 : index
    %c1664 = arith.constant 1664 : index
    %174 = vector.load %arg13[%c0_170, %c1664] : memref<8x3200xbf16, #tpu.memory_space<vmem>>, vector<8x64xbf16>
    tpu.vector_store %arg13[%c0_170, %c1664], %173 {strides = array<i32>} : memref<8x3200xbf16, #tpu.memory_space<vmem>>, vector<8x64xbf16>,
    %c296 = arith.constant 296 : index
    %c0_171 = arith.constant 0 : index
    %175 = vector.load %arg12[%c296, %c0_171] : memref<544x64xbf16, #tpu.memory_space<vmem>>, vector<8x64xbf16>
    %c0_172 = arith.constant 0 : index
    %c1728 = arith.constant 1728 : index
    %176 = vector.load %arg13[%c0_172, %c1728] : memref<8x3200xbf16, #tpu.memory_space<vmem>>, vector<8x64xbf16>
    tpu.vector_store %arg13[%c0_172, %c1728], %175 {strides = array<i32>} : memref<8x3200xbf16, #tpu.memory_space<vmem>>, vector<8x64xbf16>,
    %c304 = arith.constant 304 : index
    %c0_173 = arith.constant 0 : index
    %177 = vector.load %arg12[%c304, %c0_173] : memref<544x64xbf16, #tpu.memory_space<vmem>>, vector<8x64xbf16>
    %c0_174 = arith.constant 0 : index
    %c1792 = arith.constant 1792 : index
    %178 = vector.load %arg13[%c0_174, %c1792] : memref<8x3200xbf16, #tpu.memory_space<vmem>>, vector<8x64xbf16>
    tpu.vector_store %arg13[%c0_174, %c1792], %177 {strides = array<i32>} : memref<8x3200xbf16, #tpu.memory_space<vmem>>, vector<8x64xbf16>,
    %c312 = arith.constant 312 : index
    %c0_175 = arith.constant 0 : index
    %179 = vector.load %arg12[%c312, %c0_175] : memref<544x64xbf16, #tpu.memory_space<vmem>>, vector<8x64xbf16>
    %c0_176 = arith.constant 0 : index
    %c1856 = arith.constant 1856 : index
    %180 = vector.load %arg13[%c0_176, %c1856] : memref<8x3200xbf16, #tpu.memory_space<vmem>>, vector<8x64xbf16>
    tpu.vector_store %arg13[%c0_176, %c1856], %179 {strides = array<i32>} : memref<8x3200xbf16, #tpu.memory_space<vmem>>, vector<8x64xbf16>,
    %c336 = arith.constant 336 : index
    %c0_177 = arith.constant 0 : index
    %181 = vector.load %arg12[%c336, %c0_177] : memref<544x64xbf16, #tpu.memory_space<vmem>>, vector<8x64xbf16>
    %c0_178 = arith.constant 0 : index
    %c1920 = arith.constant 1920 : index
    %182 = vector.load %arg13[%c0_178, %c1920] : memref<8x3200xbf16, #tpu.memory_space<vmem>>, vector<8x64xbf16>
    tpu.vector_store %arg13[%c0_178, %c1920], %181 {strides = array<i32>} : memref<8x3200xbf16, #tpu.memory_space<vmem>>, vector<8x64xbf16>,
    %c344 = arith.constant 344 : index
    %c0_179 = arith.constant 0 : index
    %183 = vector.load %arg12[%c344, %c0_179] : memref<544x64xbf16, #tpu.memory_space<vmem>>, vector<8x64xbf16>
    %c0_180 = arith.constant 0 : index
    %c1984 = arith.constant 1984 : index
    %184 = vector.load %arg13[%c0_180, %c1984] : memref<8x3200xbf16, #tpu.memory_space<vmem>>, vector<8x64xbf16>
    tpu.vector_store %arg13[%c0_180, %c1984], %183 {strides = array<i32>} : memref<8x3200xbf16, #tpu.memory_space<vmem>>, vector<8x64xbf16>,
    %c352 = arith.constant 352 : index
    %c0_181 = arith.constant 0 : index
    %185 = vector.load %arg12[%c352, %c0_181] : memref<544x64xbf16, #tpu.memory_space<vmem>>, vector<8x64xbf16>
    %c0_182 = arith.constant 0 : index
    %c2048 = arith.constant 2048 : index
    %186 = vector.load %arg13[%c0_182, %c2048] : memref<8x3200xbf16, #tpu.memory_space<vmem>>, vector<8x64xbf16>
    tpu.vector_store %arg13[%c0_182, %c2048], %185 {strides = array<i32>} : memref<8x3200xbf16, #tpu.memory_space<vmem>>, vector<8x64xbf16>,
    %c360 = arith.constant 360 : index
    %c0_183 = arith.constant 0 : index
    %187 = vector.load %arg12[%c360, %c0_183] : memref<544x64xbf16, #tpu.memory_space<vmem>>, vector<8x64xbf16>
    %c0_184 = arith.constant 0 : index
    %c2112 = arith.constant 2112 : index
    %188 = vector.load %arg13[%c0_184, %c2112] : memref<8x3200xbf16, #tpu.memory_space<vmem>>, vector<8x64xbf16>
    tpu.vector_store %arg13[%c0_184, %c2112], %187 {strides = array<i32>} : memref<8x3200xbf16, #tpu.memory_space<vmem>>, vector<8x64xbf16>,
    %c368 = arith.constant 368 : index
    %c0_185 = arith.constant 0 : index
    %189 = vector.load %arg12[%c368, %c0_185] : memref<544x64xbf16, #tpu.memory_space<vmem>>, vector<8x64xbf16>
    %c0_186 = arith.constant 0 : index
    %c2176 = arith.constant 2176 : index
    %190 = vector.load %arg13[%c0_186, %c2176] : memref<8x3200xbf16, #tpu.memory_space<vmem>>, vector<8x64xbf16>
    tpu.vector_store %arg13[%c0_186, %c2176], %189 {strides = array<i32>} : memref<8x3200xbf16, #tpu.memory_space<vmem>>, vector<8x64xbf16>,
    %c392 = arith.constant 392 : index
    %c0_187 = arith.constant 0 : index
    %191 = vector.load %arg12[%c392, %c0_187] : memref<544x64xbf16, #tpu.memory_space<vmem>>, vector<8x64xbf16>
    %c0_188 = arith.constant 0 : index
    %c2240 = arith.constant 2240 : index
    %192 = vector.load %arg13[%c0_188, %c2240] : memref<8x3200xbf16, #tpu.memory_space<vmem>>, vector<8x64xbf16>
    tpu.vector_store %arg13[%c0_188, %c2240], %191 {strides = array<i32>} : memref<8x3200xbf16, #tpu.memory_space<vmem>>, vector<8x64xbf16>,
    %c400 = arith.constant 400 : index
    %c0_189 = arith.constant 0 : index
    %193 = vector.load %arg12[%c400, %c0_189] : memref<544x64xbf16, #tpu.memory_space<vmem>>, vector<8x64xbf16>
    %c0_190 = arith.constant 0 : index
    %c2304 = arith.constant 2304 : index
    %194 = vector.load %arg13[%c0_190, %c2304] : memref<8x3200xbf16, #tpu.memory_space<vmem>>, vector<8x64xbf16>
    tpu.vector_store %arg13[%c0_190, %c2304], %193 {strides = array<i32>} : memref<8x3200xbf16, #tpu.memory_space<vmem>>, vector<8x64xbf16>,
    %c408 = arith.constant 408 : index
    %c0_191 = arith.constant 0 : index
    %195 = vector.load %arg12[%c408, %c0_191] : memref<544x64xbf16, #tpu.memory_space<vmem>>, vector<8x64xbf16>
    %c0_192 = arith.constant 0 : index
    %c2368 = arith.constant 2368 : index
    %196 = vector.load %arg13[%c0_192, %c2368] : memref<8x3200xbf16, #tpu.memory_space<vmem>>, vector<8x64xbf16>
    tpu.vector_store %arg13[%c0_192, %c2368], %195 {strides = array<i32>} : memref<8x3200xbf16, #tpu.memory_space<vmem>>, vector<8x64xbf16>,
    %c416 = arith.constant 416 : index
    %c0_193 = arith.constant 0 : index
    %197 = vector.load %arg12[%c416, %c0_193] : memref<544x64xbf16, #tpu.memory_space<vmem>>, vector<8x64xbf16>
    %c0_194 = arith.constant 0 : index
    %c2432 = arith.constant 2432 : index
    %198 = vector.load %arg13[%c0_194, %c2432] : memref<8x3200xbf16, #tpu.memory_space<vmem>>, vector<8x64xbf16>
    tpu.vector_store %arg13[%c0_194, %c2432], %197 {strides = array<i32>} : memref<8x3200xbf16, #tpu.memory_space<vmem>>, vector<8x64xbf16>,
    %c424 = arith.constant 424 : index
    %c0_195 = arith.constant 0 : index
    %199 = vector.load %arg12[%c424, %c0_195] : memref<544x64xbf16, #tpu.memory_space<vmem>>, vector<8x64xbf16>
    %c0_196 = arith.constant 0 : index
    %c2496 = arith.constant 2496 : index
    %200 = vector.load %arg13[%c0_196, %c2496] : memref<8x3200xbf16, #tpu.memory_space<vmem>>, vector<8x64xbf16>
    tpu.vector_store %arg13[%c0_196, %c2496], %199 {strides = array<i32>} : memref<8x3200xbf16, #tpu.memory_space<vmem>>, vector<8x64xbf16>,
    %c448_197 = arith.constant 448 : index
    %c0_198 = arith.constant 0 : index
    %201 = vector.load %arg12[%c448_197, %c0_198] : memref<544x64xbf16, #tpu.memory_space<vmem>>, vector<8x64xbf16>
    %c0_199 = arith.constant 0 : index
    %c2560 = arith.constant 2560 : index
    %202 = vector.load %arg13[%c0_199, %c2560] : memref<8x3200xbf16, #tpu.memory_space<vmem>>, vector<8x64xbf16>
    tpu.vector_store %arg13[%c0_199, %c2560], %201 {strides = array<i32>} : memref<8x3200xbf16, #tpu.memory_space<vmem>>, vector<8x64xbf16>,
    %c456 = arith.constant 456 : index
    %c0_200 = arith.constant 0 : index
    %203 = vector.load %arg12[%c456, %c0_200] : memref<544x64xbf16, #tpu.memory_space<vmem>>, vector<8x64xbf16>
    %c0_201 = arith.constant 0 : index
    %c2624 = arith.constant 2624 : index
    %204 = vector.load %arg13[%c0_201, %c2624] : memref<8x3200xbf16, #tpu.memory_space<vmem>>, vector<8x64xbf16>
    tpu.vector_store %arg13[%c0_201, %c2624], %203 {strides = array<i32>} : memref<8x3200xbf16, #tpu.memory_space<vmem>>, vector<8x64xbf16>,
    %c464 = arith.constant 464 : index
    %c0_202 = arith.constant 0 : index
    %205 = vector.load %arg12[%c464, %c0_202] : memref<544x64xbf16, #tpu.memory_space<vmem>>, vector<8x64xbf16>
    %c0_203 = arith.constant 0 : index
    %c2688 = arith.constant 2688 : index
    %206 = vector.load %arg13[%c0_203, %c2688] : memref<8x3200xbf16, #tpu.memory_space<vmem>>, vector<8x64xbf16>
    tpu.vector_store %arg13[%c0_203, %c2688], %205 {strides = array<i32>} : memref<8x3200xbf16, #tpu.memory_space<vmem>>, vector<8x64xbf16>,
    %c472 = arith.constant 472 : index
    %c0_204 = arith.constant 0 : index
    %207 = vector.load %arg12[%c472, %c0_204] : memref<544x64xbf16, #tpu.memory_space<vmem>>, vector<8x64xbf16>
    %c0_205 = arith.constant 0 : index
    %c2752 = arith.constant 2752 : index
    %208 = vector.load %arg13[%c0_205, %c2752] : memref<8x3200xbf16, #tpu.memory_space<vmem>>, vector<8x64xbf16>
    tpu.vector_store %arg13[%c0_205, %c2752], %207 {strides = array<i32>} : memref<8x3200xbf16, #tpu.memory_space<vmem>>, vector<8x64xbf16>,
    %c480 = arith.constant 480 : index
    %c0_206 = arith.constant 0 : index
    %209 = vector.load %arg12[%c480, %c0_206] : memref<544x64xbf16, #tpu.memory_space<vmem>>, vector<8x64xbf16>
    %c0_207 = arith.constant 0 : index
    %c2816 = arith.constant 2816 : index
    %210 = vector.load %arg13[%c0_207, %c2816] : memref<8x3200xbf16, #tpu.memory_space<vmem>>, vector<8x64xbf16>
    tpu.vector_store %arg13[%c0_207, %c2816], %209 {strides = array<i32>} : memref<8x3200xbf16, #tpu.memory_space<vmem>>, vector<8x64xbf16>,
    %c504 = arith.constant 504 : index
    %c0_208 = arith.constant 0 : index
    %211 = vector.load %arg12[%c504, %c0_208] : memref<544x64xbf16, #tpu.memory_space<vmem>>, vector<8x64xbf16>
    %c0_209 = arith.constant 0 : index
    %c2880 = arith.constant 2880 : index
    %212 = vector.load %arg13[%c0_209, %c2880] : memref<8x3200xbf16, #tpu.memory_space<vmem>>, vector<8x64xbf16>
    tpu.vector_store %arg13[%c0_209, %c2880], %211 {strides = array<i32>} : memref<8x3200xbf16, #tpu.memory_space<vmem>>, vector<8x64xbf16>,
    %c512_210 = arith.constant 512 : index
    %c0_211 = arith.constant 0 : index
    %213 = vector.load %arg12[%c512_210, %c0_211] : memref<544x64xbf16, #tpu.memory_space<vmem>>, vector<8x64xbf16>
    %c0_212 = arith.constant 0 : index
    %c2944 = arith.constant 2944 : index
    %214 = vector.load %arg13[%c0_212, %c2944] : memref<8x3200xbf16, #tpu.memory_space<vmem>>, vector<8x64xbf16>
    tpu.vector_store %arg13[%c0_212, %c2944], %213 {strides = array<i32>} : memref<8x3200xbf16, #tpu.memory_space<vmem>>, vector<8x64xbf16>,
    %c520 = arith.constant 520 : index
    %c0_213 = arith.constant 0 : index
    %215 = vector.load %arg12[%c520, %c0_213] : memref<544x64xbf16, #tpu.memory_space<vmem>>, vector<8x64xbf16>
    %c0_214 = arith.constant 0 : index
    %c3008 = arith.constant 3008 : index
    %216 = vector.load %arg13[%c0_214, %c3008] : memref<8x3200xbf16, #tpu.memory_space<vmem>>, vector<8x64xbf16>
    tpu.vector_store %arg13[%c0_214, %c3008], %215 {strides = array<i32>} : memref<8x3200xbf16, #tpu.memory_space<vmem>>, vector<8x64xbf16>,
    %c528 = arith.constant 528 : index
    %c0_215 = arith.constant 0 : index
    %217 = vector.load %arg12[%c528, %c0_215] : memref<544x64xbf16, #tpu.memory_space<vmem>>, vector<8x64xbf16>
    %c0_216 = arith.constant 0 : index
    %c3072 = arith.constant 3072 : index
    %218 = vector.load %arg13[%c0_216, %c3072] : memref<8x3200xbf16, #tpu.memory_space<vmem>>, vector<8x64xbf16>
    tpu.vector_store %arg13[%c0_216, %c3072], %217 {strides = array<i32>} : memref<8x3200xbf16, #tpu.memory_space<vmem>>, vector<8x64xbf16>,
    %c536 = arith.constant 536 : index
    %c0_217 = arith.constant 0 : index
    %219 = vector.load %arg12[%c536, %c0_217] : memref<544x64xbf16, #tpu.memory_space<vmem>>, vector<8x64xbf16>
    %c0_218 = arith.constant 0 : index
    %c3136 = arith.constant 3136 : index
    %220 = vector.load %arg13[%c0_218, %c3136] : memref<8x3200xbf16, #tpu.memory_space<vmem>>, vector<8x64xbf16>
    tpu.vector_store %arg13[%c0_218, %c3136], %219 {strides = array<i32>} : memref<8x3200xbf16, #tpu.memory_space<vmem>>, vector<8x64xbf16>,
    %c0_219 = arith.constant 0 : index
    %c0_220 = arith.constant 0 : index
    %221 = vector.load %arg13[%c0_219, %c0_220] : memref<8x3200xbf16, #tpu.memory_space<vmem>>, vector<8x3200xbf16>
    %c0_221 = arith.constant 0 : index
    %c0_222 = arith.constant 0 : index
    %222 = vector.load %arg5[%c0_221, %c0_222] : memref<3200x128xbf16, #tpu.memory_space<vmem>>, vector<3200x128xbf16>
    %cst_223 = arith.constant dense<0.000000e+00> : vector<8x128xf32>
    %223 = tpu.matmul %221, %222, %cst_223 {dimension_numbers = #tpu.dot_dimension_numbers<[1], [0], [0], [1], [0, 0, 1, 1], [], []>} : vector<8x3200xbf16>, vector<3200x128xbf16>, vector<8x128xf32> -> vector<8x128xf32>
    %c0_224 = arith.constant 0 : index
    %c0_225 = arith.constant 0 : index
    %224 = vector.load %arg6[%c0_224, %c0_225] : memref<1x128xf32, #tpu.memory_space<vmem>>, vector<1x128xf32>
    %225 = vector.broadcast %224 : vector<1x128xf32> to vector<8x128xf32>
    %226 = arith.addf %223, %225 : vector<8x128xf32>
    %cst_226 = arith.constant 0.000000e+00 : f32
    %227 = vector.broadcast %cst_226 : f32 to vector<8x128xf32>
    %228 = arith.maximumf %226, %227 : vector<8x128xf32>
    %c0_227 = arith.constant 0 : index
    %c0_228 = arith.constant 0 : index
    %229 = vector.load %arg7[%c0_227, %c0_228] : memref<128x128xf32, #tpu.memory_space<vmem>>, vector<128x128xf32>
    %cst_229 = arith.constant dense<0.000000e+00> : vector<8x128xf32>
    %230 = tpu.matmul %228, %229, %cst_229 {dimension_numbers = #tpu.dot_dimension_numbers<[1], [0], [0], [1], [0, 0, 1, 1], [], []>} : vector<8x128xf32>, vector<128x128xf32>, vector<8x128xf32> -> vector<8x128xf32>
    %c0_230 = arith.constant 0 : index
    %c0_231 = arith.constant 0 : index
    %231 = vector.load %arg8[%c0_230, %c0_231] : memref<1x128xf32, #tpu.memory_space<vmem>>, vector<1x128xf32>
    %232 = vector.broadcast %231 : vector<1x128xf32> to vector<8x128xf32>
    %233 = arith.addf %230, %232 : vector<8x128xf32>
    %c0_232 = arith.constant 0 : index
    %c0_233 = arith.constant 0 : index
    %234 = vector.load %arg9[%c0_232, %c0_233] : memref<8x128xf32, #tpu.memory_space<vmem>>, vector<8x128xf32>
    tpu.vector_store %arg9[%c0_232, %c0_233], %233 {strides = array<i32>} : memref<8x128xf32, #tpu.memory_space<vmem>>, vector<8x128xf32>,
    return
  }
}

</mosaic_0001>

<llo_original>
// kernel: _lambda_.1
$region0: #{_lambda_.1}
  #allocation0 [shape = 'u32[]', space=smem, size = 0x4, offset = 0x4, fixed_abs, tag = 'smem constant byte address 0x4 - core index']
  #allocation1 [shape = 'u32[144,128]{1,0:T(1,128)}', space=vmem, size = 0x12000, scoped, tag = 'internal scratch']
  #allocation2 [shape = 'bf16[672,32]{1,0:T(8,128)(2,1)}', space=vmem, size = 0x2a000, scoped, tag = 'scratch operand']
  #allocation3 [shape = 'bf16[544,288]{1,0:T(8,128)(2,1)}', space=vmem, size = 0x66000, scoped, tag = 'scratch operand']
  #allocation4 [shape = 'bf16[544,64]{1,0:T(8,128)(2,1)}', space=vmem, size = 0x22000, scoped, tag = 'scratch operand']
  #allocation5 [shape = 'bf16[8,3200]{1,0:T(8,128)(2,1)}', space=vmem, size = 0xc800, scoped, tag = 'scratch operand']
  %s0 = inlined_call_operand.vmem [shape: f32[672,1], index: 0, kind: input, shape index: {}]
  %s1 = inlined_call_operand.vmem [shape: f32[9,1,32], index: 1, kind: input, shape index: {}]
  %s2 = inlined_call_operand.vmem [shape: f32[1,32], index: 2, kind: input, shape index: {}]
  %s3 = inlined_call_operand.vmem [shape: bf16[288,64], index: 3, kind: input, shape index: {}]
  %s4 = inlined_call_operand.vmem [shape: f32[1,64], index: 4, kind: input, shape index: {}]
  %s5 = inlined_call_operand.hbm [shape: bf16[3200,128], index: 5, kind: input, shape index: {}]
  %s6 = inlined_call_operand.vmem [shape: f32[1,128], index: 6, kind: input, shape index: {}]
  %s7 = inlined_call_operand.vmem [shape: f32[128,128], index: 7, kind: input, shape index: {}]
  %s8 = inlined_call_operand.vmem [shape: f32[1,128], index: 8, kind: input, shape index: {}]
  %s9 = inlined_call_operand.vmem [shape: f32[8,128], index: 9, kind: output, shape index: {}]
  %s10 = sld [smem:[#allocation0]]
  $region50: #{_lambda_.1} parent=0
    _
  %s12 = ssub.s32 1, %s10
  %s13 = scalar_select 0, %s12, %s10
  $region1: #{_lambda_.1} parent=0
    #allocation6 [shape = 'u8[819200]{0}', space=vmem, size = 0xc8000, scoped, tag = 'input window, operand 5, single buffered']
    #allocation7 [shape = 's32[1]{0}', space=sflag, size = 0x4, scoped, tag = 'scoped memory for _lambda_.1']
    %14 = vsyncpa [#allocation7], 0
    // Predicated region
    $region2: #{_lambda_.1} parent=1 // pred_check
      _
    $region3: #{_lambda_.1} parent=1 // pred_check_branch
      %16 = sbr.rel (0) target = $region5
    $region4: #{_lambda_.1} parent=1 // pred_region
      _
    $region5: #{_lambda_.1} parent=1 // pred_fallthru
      _
    // Predicated region
    $region6: #{_lambda_.1} parent=1 // pred_check
      _
    $region7: #{_lambda_.1} parent=1 // pred_check_branch
      %18 = sbr.rel (0) target = $region9
    $region8: #{_lambda_.1} parent=1 // pred_region
      _
    $region9: #{_lambda_.1} parent=1 // pred_fallthru
      _
    // Predicated region
    $region10: #{_lambda_.1} parent=1 // pred_check
      _
    $region11: #{_lambda_.1} parent=1 // pred_check_branch
      %20 = sbr.rel (0) target = $region13
    $region12: #{_lambda_.1} parent=1 // pred_region
      _
    $region13: #{_lambda_.1} parent=1 // pred_fallthru
      _
    // Predicated region
    $region14: #{_lambda_.1} parent=1 // pred_check
      _
    $region15: #{_lambda_.1} parent=1 // pred_check_branch
      %22 = sbr.rel (0) target = $region17
    $region16: #{_lambda_.1} parent=1 // pred_region
      _
    $region17: #{_lambda_.1} parent=1 // pred_fallthru
      _
    // Predicated region
    $region18: #{_lambda_.1} parent=1 // pred_check
      _
    $region19: #{_lambda_.1} parent=1 // pred_check_branch
      %24 = sbr.rel (0) target = $region21
    $region20: #{_lambda_.1} parent=1 // pred_region
      _
    $region21: #{_lambda_.1} parent=1 // pred_fallthru
      _
    // Predicated region
    $region22: #{_lambda_.1} parent=1 // pred_check
      _
    $region23: #{_lambda_.1} parent=1 // pred_check_branch
      %26 = sbr.rel (0) target = $region25
    $region24: #{_lambda_.1} parent=1 // pred_region
      %s28 = ssub.s32 25600, 25600
      %29 = vsyncadd [#allocation7], %s28
      %s30 = sshll.u32 [#allocation6], 4
      %s31 = int_to_ptr.vmem [resolvable:$true] %s30
      %36 = dma.hbm_to_vmem [thread:$0]  %s5, 25600, %s31, [#allocation7], 64, 64, 4
    $region25: #{_lambda_.1} parent=1 // pred_fallthru
      _
    // Predicated region
    $region26: #{_lambda_.1} parent=1 // pred_check
      _
    $region27: #{_lambda_.1} parent=1 // pred_check_branch
      %38 = sbr.rel (0) target = $region29
    $region28: #{_lambda_.1} parent=1 // pred_region
      _
    $region29: #{_lambda_.1} parent=1 // pred_fallthru
      _
    // Predicated region
    $region30: #{_lambda_.1} parent=1 // pred_check
      _
    $region31: #{_lambda_.1} parent=1 // pred_check_branch
      %40 = sbr.rel (0) target = $region33
    $region32: #{_lambda_.1} parent=1 // pred_region
      _
    $region33: #{_lambda_.1} parent=1 // pred_fallthru
      _
    // Predicated region
    $region34: #{_lambda_.1} parent=1 // pred_check
      _
    $region35: #{_lambda_.1} parent=1 // pred_check_branch
      %42 = sbr.rel (0) target = $region37
    $region36: #{_lambda_.1} parent=1 // pred_region
      _
    $region37: #{_lambda_.1} parent=1 // pred_fallthru
      _
    // Predicated region
    $region38: #{_lambda_.1} parent=1 // pred_check
      _
    $region39: #{_lambda_.1} parent=1 // pred_check_branch
      %44 = sbr.rel (0) target = $region41
    $region40: #{_lambda_.1} parent=1 // pred_region
      %45 = dma.done [#allocation7], 25600
    $region41: #{_lambda_.1} parent=1 // pred_fallthru
      _
    %v47 = vld [vmem:[%s0] sm:$0xff]
    %v48 = vld [vmem:[%s0 + $0x8] sm:$0xff]
    %v49 = vld [vmem:[%s0 + $0x10] sm:$0xff]
    %v50 = vld [vmem:[%s0 + $0x18] sm:$0xff]
    %v51 = vld [vmem:[%s0 + $0x20] sm:$0xff]
    %v52 = vld [vmem:[%s0 + $0x28] sm:$0xff]
    %v53 = vld [vmem:[%s0 + $0x30] sm:$0xff]
    %v54 = vld [vmem:[%s0 + $0x38] sm:$0xff]
    %v55 = vld [vmem:[%s0 + $0x40] sm:$0xff]
    %v56 = vld [vmem:[%s0 + $0x48] sm:$0xff]
    %v57 = vld [vmem:[%s0 + $0x50] sm:$0xff]
    %v58 = vld [vmem:[%s0 + $0x58] sm:$0xff]
    %v59 = vld [vmem:[%s0 + $0x60] sm:$0xff]
    %v60 = vld [vmem:[%s0 + $0x68] sm:$0xff]
    %v61 = vld [vmem:[%s0 + $0x70] sm:$0xff]
    %v62 = vld [vmem:[%s0 + $0x78] sm:$0xff]
    %v63 = vld [vmem:[%s0 + $0x80] sm:$0xff]
    %v64 = vld [vmem:[%s0 + $0x88] sm:$0xff]
    %v65 = vld [vmem:[%s0 + $0x90] sm:$0xff]
    %v66 = vld [vmem:[%s0 + $0x98] sm:$0xff]
    %v67 = vld [vmem:[%s0 + $0xa0] sm:$0xff]
    %v68 = vld [vmem:[%s0 + $0xa8] sm:$0xff]
    %v69 = vld [vmem:[%s0 + $0xb0] sm:$0xff]
    %v70 = vld [vmem:[%s0 + $0xb8] sm:$0xff]
    %v71 = vld [vmem:[%s0 + $0xc0] sm:$0xff]
    %v72 = vld [vmem:[%s0 + $0xc8] sm:$0xff]
    %v73 = vld [vmem:[%s0 + $0xd0] sm:$0xff]
    %v74 = vld [vmem:[%s0 + $0xd8] sm:$0xff]
    %v75 = vld [vmem:[%s0 + $0xe0] sm:$0xff]
    %v76 = vld [vmem:[%s0 + $0xe8] sm:$0xff]
    %v77 = vld [vmem:[%s0 + $0xf0] sm:$0xff]
    %v78 = vld [vmem:[%s0 + $0xf8] sm:$0xff]
    %v79 = vld [vmem:[%s0 + $0x100] sm:$0xff]
    %v80 = vld [vmem:[%s0 + $0x108] sm:$0xff]
    %v81 = vld [vmem:[%s0 + $0x110] sm:$0xff]
    %v82 = vld [vmem:[%s0 + $0x118] sm:$0xff]
    %v83 = vld [vmem:[%s0 + $0x120] sm:$0xff]
    %v84 = vld [vmem:[%s0 + $0x128] sm:$0xff]
    %v85 = vld [vmem:[%s0 + $0x130] sm:$0xff]
    %v86 = vld [vmem:[%s0 + $0x138] sm:$0xff]
    %v87 = vld [vmem:[%s0 + $0x140] sm:$0xff]
    %v88 = vld [vmem:[%s0 + $0x148] sm:$0xff]
    %v89 = vld [vmem:[%s0 + $0x150] sm:$0xff]
    %v90 = vld [vmem:[%s0 + $0x158] sm:$0xff]
    %v91 = vld [vmem:[%s0 + $0x160] sm:$0xff]
    %v92 = vld [vmem:[%s0 + $0x168] sm:$0xff]
    %v93 = vld [vmem:[%s0 + $0x170] sm:$0xff]
    %v94 = vld [vmem:[%s0 + $0x178] sm:$0xff]
    %v95 = vld [vmem:[%s0 + $0x180] sm:$0xff]
    %v96 = vld [vmem:[%s0 + $0x188] sm:$0xff]
    %v97 = vld [vmem:[%s0 + $0x190] sm:$0xff]
    %v98 = vld [vmem:[%s0 + $0x198] sm:$0xff]
    %v99 = vld [vmem:[%s0 + $0x1a0] sm:$0xff]
    %v100 = vld [vmem:[%s0 + $0x1a8] sm:$0xff]
    %v101 = vld [vmem:[%s0 + $0x1b0] sm:$0xff]
    %v102 = vld [vmem:[%s0 + $0x1b8] sm:$0xff]
    %v103 = vld [vmem:[%s0 + $0x1c0] sm:$0xff]
    %v104 = vld [vmem:[%s0 + $0x1c8] sm:$0xff]
    %v105 = vld [vmem:[%s0 + $0x1d0] sm:$0xff]
    %v106 = vld [vmem:[%s0 + $0x1d8] sm:$0xff]
    %v107 = vld [vmem:[%s0 + $0x1e0] sm:$0xff]
    %v108 = vld [vmem:[%s0 + $0x1e8] sm:$0xff]
    %v109 = vld [vmem:[%s0 + $0x1f0] sm:$0xff]
    %v110 = vld [vmem:[%s0 + $0x1f8] sm:$0xff]
    %v111 = vld [vmem:[%s0 + $0x200] sm:$0xff]
    %v112 = vld [vmem:[%s0 + $0x208] sm:$0xff]
    %v113 = vld [vmem:[%s0 + $0x210] sm:$0xff]
    %v114 = vld [vmem:[%s0 + $0x218] sm:$0xff]
    %v115 = vld [vmem:[%s1] sm:$0x1]
    %117 = vset.pattern.permute.xlu0 0
    %118 = vperm.xlu0 %117, %v47
    %v119 = vpop.permute.xlu0 %118
    %122 = vset.pattern.permute.xlu0 0
    %123 = vperm.xlu0 %122, %v48
    %v124 = vpop.permute.xlu0 %123
    %127 = vset.pattern.permute.xlu0 0
    %128 = vperm.xlu0 %127, %v49
    %v129 = vpop.permute.xlu0 %128
    %132 = vset.pattern.permute.xlu0 0
    %133 = vperm.xlu0 %132, %v50
    %v134 = vpop.permute.xlu0 %133
    %137 = vset.pattern.permute.xlu0 0
    %138 = vperm.xlu0 %137, %v51
    %v139 = vpop.permute.xlu0 %138
    %142 = vset.pattern.permute.xlu0 0
    %143 = vperm.xlu0 %142, %v52
    %v144 = vpop.permute.xlu0 %143
    %147 = vset.pattern.permute.xlu0 0
    %148 = vperm.xlu0 %147, %v53
    %v149 = vpop.permute.xlu0 %148
    %152 = vset.pattern.permute.xlu0 0
    %153 = vperm.xlu0 %152, %v54
    %v154 = vpop.permute.xlu0 %153
    %157 = vset.pattern.permute.xlu0 0
    %158 = vperm.xlu0 %157, %v55
    %v159 = vpop.permute.xlu0 %158
    %162 = vset.pattern.permute.xlu0 0
    %163 = vperm.xlu0 %162, %v56
    %v164 = vpop.permute.xlu0 %163
    %167 = vset.pattern.permute.xlu0 0
    %168 = vperm.xlu0 %167, %v57
    %v169 = vpop.permute.xlu0 %168
    %172 = vset.pattern.permute.xlu0 0
    %173 = vperm.xlu0 %172, %v58
    %v174 = vpop.permute.xlu0 %173
    %177 = vset.pattern.permute.xlu0 0
    %178 = vperm.xlu0 %177, %v59
    %v179 = vpop.permute.xlu0 %178
    %182 = vset.pattern.permute.xlu0 0
    %183 = vperm.xlu0 %182, %v60
    %v184 = vpop.permute.xlu0 %183
    %187 = vset.pattern.permute.xlu0 0
    %188 = vperm.xlu0 %187, %v61
    %v189 = vpop.permute.xlu0 %188
    %192 = vset.pattern.permute.xlu0 0
    %193 = vperm.xlu0 %192, %v62
    %v194 = vpop.permute.xlu0 %193
    %197 = vset.pattern.permute.xlu0 0
    %198 = vperm.xlu0 %197, %v63
    %v199 = vpop.permute.xlu0 %198
    %202 = vset.pattern.permute.xlu0 0
    %203 = vperm.xlu0 %202, %v64
    %v204 = vpop.permute.xlu0 %203
    %207 = vset.pattern.permute.xlu0 0
    %208 = vperm.xlu0 %207, %v65
    %v209 = vpop.permute.xlu0 %208
    %212 = vset.pattern.permute.xlu0 0
    %213 = vperm.xlu0 %212, %v66
    %v214 = vpop.permute.xlu0 %213
    %217 = vset.pattern.permute.xlu0 0
    %218 = vperm.xlu0 %217, %v67
    %v219 = vpop.permute.xlu0 %218
    %222 = vset.pattern.permute.xlu0 0
    %223 = vperm.xlu0 %222, %v68
    %v224 = vpop.permute.xlu0 %223
    %227 = vset.pattern.permute.xlu0 0
    %228 = vperm.xlu0 %227, %v69
    %v229 = vpop.permute.xlu0 %228
    %232 = vset.pattern.permute.xlu0 0
    %233 = vperm.xlu0 %232, %v70
    %v234 = vpop.permute.xlu0 %233
    %237 = vset.pattern.permute.xlu0 0
    %238 = vperm.xlu0 %237, %v71
    %v239 = vpop.permute.xlu0 %238
    %242 = vset.pattern.permute.xlu0 0
    %243 = vperm.xlu0 %242, %v72
    %v244 = vpop.permute.xlu0 %243
    %247 = vset.pattern.permute.xlu0 0
    %248 = vperm.xlu0 %247, %v73
    %v249 = vpop.permute.xlu0 %248
    %252 = vset.pattern.permute.xlu0 0
    %253 = vperm.xlu0 %252, %v74
    %v254 = vpop.permute.xlu0 %253
    %257 = vset.pattern.permute.xlu0 0
    %258 = vperm.xlu0 %257, %v75
    %v259 = vpop.permute.xlu0 %258
    %262 = vset.pattern.permute.xlu0 0
    %263 = vperm.xlu0 %262, %v76
    %v264 = vpop.permute.xlu0 %263
    %267 = vset.pattern.permute.xlu0 0
    %268 = vperm.xlu0 %267, %v77
    %v269 = vpop.permute.xlu0 %268
    %272 = vset.pattern.permute.xlu0 0
    %273 = vperm.xlu0 %272, %v78
    %v274 = vpop.permute.xlu0 %273
    %277 = vset.pattern.permute.xlu0 0
    %278 = vperm.xlu0 %277, %v79
    %v279 = vpop.permute.xlu0 %278
    %282 = vset.pattern.permute.xlu0 0
    %283 = vperm.xlu0 %282, %v80
    %v284 = vpop.permute.xlu0 %283
    %287 = vset.pattern.permute.xlu0 0
    %288 = vperm.xlu0 %287, %v81
    %v289 = vpop.permute.xlu0 %288
    %292 = vset.pattern.permute.xlu0 0
    %293 = vperm.xlu0 %292, %v82
    %v294 = vpop.permute.xlu0 %293
    %297 = vset.pattern.permute.xlu0 0
    %298 = vperm.xlu0 %297, %v83
    %v299 = vpop.permute.xlu0 %298
    %302 = vset.pattern.permute.xlu0 0
    %303 = vperm.xlu0 %302, %v84
    %v304 = vpop.permute.xlu0 %303
    %307 = vset.pattern.permute.xlu0 0
    %308 = vperm.xlu0 %307, %v85
    %v309 = vpop.permute.xlu0 %308
    %312 = vset.pattern.permute.xlu0 0
    %313 = vperm.xlu0 %312, %v86
    %v314 = vpop.permute.xlu0 %313
    %317 = vset.pattern.permute.xlu0 0
    %318 = vperm.xlu0 %317, %v87
    %v319 = vpop.permute.xlu0 %318
    %322 = vset.pattern.permute.xlu0 0
    %323 = vperm.xlu0 %322, %v88
    %v324 = vpop.permute.xlu0 %323
    %327 = vset.pattern.permute.xlu0 0
    %328 = vperm.xlu0 %327, %v89
    %v329 = vpop.permute.xlu0 %328
    %332 = vset.pattern.permute.xlu0 0
    %333 = vperm.xlu0 %332, %v90
    %v334 = vpop.permute.xlu0 %333
    %337 = vset.pattern.permute.xlu0 0
    %338 = vperm.xlu0 %337, %v91
    %v339 = vpop.permute.xlu0 %338
    %342 = vset.pattern.permute.xlu0 0
    %343 = vperm.xlu0 %342, %v92
    %v344 = vpop.permute.xlu0 %343
    %347 = vset.pattern.permute.xlu0 0
    %348 = vperm.xlu0 %347, %v93
    %v349 = vpop.permute.xlu0 %348
    %352 = vset.pattern.permute.xlu0 0
    %353 = vperm.xlu0 %352, %v94
    %v354 = vpop.permute.xlu0 %353
    %357 = vset.pattern.permute.xlu0 0
    %358 = vperm.xlu0 %357, %v95
    %v359 = vpop.permute.xlu0 %358
    %362 = vset.pattern.permute.xlu0 0
    %363 = vperm.xlu0 %362, %v96
    %v364 = vpop.permute.xlu0 %363
    %367 = vset.pattern.permute.xlu0 0
    %368 = vperm.xlu0 %367, %v97
    %v369 = vpop.permute.xlu0 %368
    %372 = vset.pattern.permute.xlu0 0
    %373 = vperm.xlu0 %372, %v98
    %v374 = vpop.permute.xlu0 %373
    %377 = vset.pattern.permute.xlu0 0
    %378 = vperm.xlu0 %377, %v99
    %v379 = vpop.permute.xlu0 %378
    %382 = vset.pattern.permute.xlu0 0
    %383 = vperm.xlu0 %382, %v100
    %v384 = vpop.permute.xlu0 %383
    %387 = vset.pattern.permute.xlu0 0
    %388 = vperm.xlu0 %387, %v101
    %v389 = vpop.permute.xlu0 %388
    %392 = vset.pattern.permute.xlu0 0
    %393 = vperm.xlu0 %392, %v102
    %v394 = vpop.permute.xlu0 %393
    %397 = vset.pattern.permute.xlu0 0
    %398 = vperm.xlu0 %397, %v103
    %v399 = vpop.permute.xlu0 %398
    %402 = vset.pattern.permute.xlu0 0
    %403 = vperm.xlu0 %402, %v104
    %v404 = vpop.permute.xlu0 %403
    %407 = vset.pattern.permute.xlu0 0
    %408 = vperm.xlu0 %407, %v105
    %v409 = vpop.permute.xlu0 %408
    %412 = vset.pattern.permute.xlu0 0
    %413 = vperm.xlu0 %412, %v106
    %v414 = vpop.permute.xlu0 %413
    %417 = vset.pattern.permute.xlu0 0
    %418 = vperm.xlu0 %417, %v107
    %v419 = vpop.permute.xlu0 %418
    %422 = vset.pattern.permute.xlu0 0
    %423 = vperm.xlu0 %422, %v108
    %v424 = vpop.permute.xlu0 %423
    %427 = vset.pattern.permute.xlu0 0
    %428 = vperm.xlu0 %427, %v109
    %v429 = vpop.permute.xlu0 %428
    %432 = vset.pattern.permute.xlu0 0
    %433 = vperm.xlu0 %432, %v110
    %v434 = vpop.permute.xlu0 %433
    %437 = vset.pattern.permute.xlu0 0
    %438 = vperm.xlu0 %437, %v111
    %v439 = vpop.permute.xlu0 %438
    %442 = vset.pattern.permute.xlu0 0
    %443 = vperm.xlu0 %442, %v112
    %v444 = vpop.permute.xlu0 %443
    %447 = vset.pattern.permute.xlu0 0
    %448 = vperm.xlu0 %447, %v113
    %v449 = vpop.permute.xlu0 %448
    %452 = vset.pattern.permute.xlu0 0
    %453 = vperm.xlu0 %452, %v114
    %v454 = vpop.permute.xlu0 %453
    %v457 = vlaneseq
    %v458 = vshrl.u32 %v457, 7
    %v459 = vsub.s32 0, %v458
    %v460 = vrot.slane %v115, %v459
    %v462 = vmul.f32 %v119, %v460
    %v463 = vmul.f32 %v124, %v460
    %v464 = vmul.f32 %v129, %v460
    %v465 = vmul.f32 %v134, %v460
    %v466 = vmul.f32 %v139, %v460
    %v467 = vmul.f32 %v144, %v460
    %v468 = vmul.f32 %v149, %v460
    %v469 = vmul.f32 %v154, %v460
    %v470 = vmul.f32 %v159, %v460
    %v471 = vmul.f32 %v164, %v460
    %v472 = vmul.f32 %v169, %v460
    %v473 = vmul.f32 %v174, %v460
    %v474 = vmul.f32 %v179, %v460
    %v475 = vmul.f32 %v184, %v460
    %v476 = vmul.f32 %v189, %v460
    %v477 = vmul.f32 %v194, %v460
    %v478 = vmul.f32 %v199, %v460
    %v479 = vmul.f32 %v204, %v460
    %v480 = vmul.f32 %v209, %v460
    %v481 = vmul.f32 %v214, %v460
    %v482 = vmul.f32 %v219, %v460
    %v483 = vmul.f32 %v224, %v460
    %v484 = vmul.f32 %v229, %v460
    %v485 = vmul.f32 %v234, %v460
    %v486 = vmul.f32 %v239, %v460
    %v487 = vmul.f32 %v244, %v460
    %v488 = vmul.f32 %v249, %v460
    %v489 = vmul.f32 %v254, %v460
    %v490 = vmul.f32 %v259, %v460
    %v491 = vmul.f32 %v264, %v460
    %v492 = vmul.f32 %v269, %v460
    %v493 = vmul.f32 %v274, %v460
    %v494 = vmul.f32 %v279, %v460
    %v495 = vmul.f32 %v284, %v460
    %v496 = vmul.f32 %v289, %v460
    %v497 = vmul.f32 %v294, %v460
    %v498 = vmul.f32 %v299, %v460
    %v499 = vmul.f32 %v304, %v460
    %v500 = vmul.f32 %v309, %v460
    %v501 = vmul.f32 %v314, %v460
    %v502 = vmul.f32 %v319, %v460
    %v503 = vmul.f32 %v324, %v460
    %v504 = vmul.f32 %v329, %v460
    %v505 = vmul.f32 %v334, %v460
    %v506 = vmul.f32 %v339, %v460
    %v507 = vmul.f32 %v344, %v460
    %v508 = vmul.f32 %v349, %v460
    %v509 = vmul.f32 %v354, %v460
    %v510 = vmul.f32 %v359, %v460
    %v511 = vmul.f32 %v364, %v460
    %v512 = vmul.f32 %v369, %v460
    %v513 = vmul.f32 %v374, %v460
    %v514 = vmul.f32 %v379, %v460
    %v515 = vmul.f32 %v384, %v460
    %v516 = vmul.f32 %v389, %v460
    %v517 = vmul.f32 %v394, %v460
    %v518 = vmul.f32 %v399, %v460
    %v519 = vmul.f32 %v404, %v460
    %v520 = vmul.f32 %v409, %v460
    %v521 = vmul.f32 %v414, %v460
    %v522 = vmul.f32 %v419, %v460
    %v523 = vmul.f32 %v424, %v460
    %v524 = vmul.f32 %v429, %v460
    %v525 = vmul.f32 %v434, %v460
    %v526 = vmul.f32 %v439, %v460
    %v527 = vmul.f32 %v444, %v460
    %v528 = vmul.f32 %v449, %v460
    %v529 = vmul.f32 %v454, %v460
    %v530 = vadd.f32 %v462, 0.0
    %v531 = vadd.f32 %v463, 0.0
    %v532 = vadd.f32 %v464, 0.0
    %v533 = vadd.f32 %v465, 0.0
    %v534 = vadd.f32 %v466, 0.0
    %v535 = vadd.f32 %v467, 0.0
    %v536 = vadd.f32 %v468, 0.0
    %v537 = vadd.f32 %v469, 0.0
    %v538 = vadd.f32 %v470, 0.0
    %v539 = vadd.f32 %v471, 0.0
    %v540 = vadd.f32 %v472, 0.0
    %v541 = vadd.f32 %v473, 0.0
    %v542 = vadd.f32 %v474, 0.0
    %v543 = vadd.f32 %v475, 0.0
    %v544 = vadd.f32 %v476, 0.0
    %v545 = vadd.f32 %v477, 0.0
    %v546 = vadd.f32 %v478, 0.0
    %v547 = vadd.f32 %v479, 0.0
    %v548 = vadd.f32 %v480, 0.0
    %v549 = vadd.f32 %v481, 0.0
    %v550 = vadd.f32 %v482, 0.0
    %v551 = vadd.f32 %v483, 0.0
    %v552 = vadd.f32 %v484, 0.0
    %v553 = vadd.f32 %v485, 0.0
    %v554 = vadd.f32 %v486, 0.0
    %v555 = vadd.f32 %v487, 0.0
    %v556 = vadd.f32 %v488, 0.0
    %v557 = vadd.f32 %v489, 0.0
    %v558 = vadd.f32 %v490, 0.0
    %v559 = vadd.f32 %v491, 0.0
    %v560 = vadd.f32 %v492, 0.0
    %v561 = vadd.f32 %v493, 0.0
    %v562 = vadd.f32 %v494, 0.0
    %v563 = vadd.f32 %v495, 0.0
    %v564 = vadd.f32 %v496, 0.0
    %v565 = vadd.f32 %v497, 0.0
    %v566 = vadd.f32 %v498, 0.0
    %v567 = vadd.f32 %v499, 0.0
    %v568 = vadd.f32 %v500, 0.0
    %v569 = vadd.f32 %v501, 0.0
    %v570 = vadd.f32 %v502, 0.0
    %v571 = vadd.f32 %v503, 0.0
    %v572 = vadd.f32 %v504, 0.0
    %v573 = vadd.f32 %v505, 0.0
    %v574 = vadd.f32 %v506, 0.0
    %v575 = vadd.f32 %v507, 0.0
    %v576 = vadd.f32 %v508, 0.0
    %v577 = vadd.f32 %v509, 0.0
    %v578 = vadd.f32 %v510, 0.0
    %v579 = vadd.f32 %v511, 0.0
    %v580 = vadd.f32 %v512, 0.0
    %v581 = vadd.f32 %v513, 0.0
    %v582 = vadd.f32 %v514, 0.0
    %v583 = vadd.f32 %v515, 0.0
    %v584 = vadd.f32 %v516, 0.0
    %v585 = vadd.f32 %v517, 0.0
    %v586 = vadd.f32 %v518, 0.0
    %v587 = vadd.f32 %v519, 0.0
    %v588 = vadd.f32 %v520, 0.0
    %v589 = vadd.f32 %v521, 0.0
    %v590 = vadd.f32 %v522, 0.0
    %v591 = vadd.f32 %v523, 0.0
    %v592 = vadd.f32 %v524, 0.0
    %v593 = vadd.f32 %v525, 0.0
    %v594 = vadd.f32 %v526, 0.0
    %v595 = vadd.f32 %v527, 0.0
    %v596 = vadd.f32 %v528, 0.0
    %v597 = vadd.f32 %v529, 0.0
    %v598 = vld [vmem:[%s0 + $0x8] sm:$0xff]
    %v599 = vld [vmem:[%s0 + $0x10] sm:$0xff]
    %v600 = vld [vmem:[%s0 + $0x18] sm:$0xff]
    %v601 = vld [vmem:[%s0 + $0x20] sm:$0xff]
    %v602 = vld [vmem:[%s0 + $0x28] sm:$0xff]
    %v603 = vld [vmem:[%s0 + $0x30] sm:$0xff]
    %v604 = vld [vmem:[%s0 + $0x38] sm:$0xff]
    %v605 = vld [vmem:[%s0 + $0x40] sm:$0xff]
    %v606 = vld [vmem:[%s0 + $0x48] sm:$0xff]
    %v607 = vld [vmem:[%s0 + $0x50] sm:$0xff]
    %v608 = vld [vmem:[%s0 + $0x58] sm:$0xff]
    %v609 = vld [vmem:[%s0 + $0x60] sm:$0xff]
    %v610 = vld [vmem:[%s0 + $0x68] sm:$0xff]
    %v611 = vld [vmem:[%s0 + $0x70] sm:$0xff]
    %v612 = vld [vmem:[%s0 + $0x78] sm:$0xff]
    %v613 = vld [vmem:[%s0 + $0x80] sm:$0xff]
    %v614 = vld [vmem:[%s0 + $0x88] sm:$0xff]
    %v615 = vld [vmem:[%s0 + $0x90] sm:$0xff]
    %v616 = vld [vmem:[%s0 + $0x98] sm:$0xff]
    %v617 = vld [vmem:[%s0 + $0xa0] sm:$0xff]
    %v618 = vld [vmem:[%s0 + $0xa8] sm:$0xff]
    %v619 = vld [vmem:[%s0 + $0xb0] sm:$0xff]
    %v620 = vld [vmem:[%s0 + $0xb8] sm:$0xff]
    %v621 = vld [vmem:[%s0 + $0xc0] sm:$0xff]
    %v622 = vld [vmem:[%s0 + $0xc8] sm:$0xff]
    %v623 = vld [vmem:[%s0 + $0xd0] sm:$0xff]
    %v624 = vld [vmem:[%s0 + $0xd8] sm:$0xff]
    %v625 = vld [vmem:[%s0 + $0xe0] sm:$0xff]
    %v626 = vld [vmem:[%s0 + $0xe8] sm:$0xff]
    %v627 = vld [vmem:[%s0 + $0xf0] sm:$0xff]
    %v628 = vld [vmem:[%s0 + $0xf8] sm:$0xff]
    %v629 = vld [vmem:[%s0 + $0x100] sm:$0xff]
    %v630 = vld [vmem:[%s0 + $0x108] sm:$0xff]
    %v631 = vld [vmem:[%s0 + $0x110] sm:$0xff]
    %v632 = vld [vmem:[%s0 + $0x118] sm:$0xff]
    %v633 = vld [vmem:[%s0 + $0x120] sm:$0xff]
    %v634 = vld [vmem:[%s0 + $0x128] sm:$0xff]
    %v635 = vld [vmem:[%s0 + $0x130] sm:$0xff]
    %v636 = vld [vmem:[%s0 + $0x138] sm:$0xff]
    %v637 = vld [vmem:[%s0 + $0x140] sm:$0xff]
    %v638 = vld [vmem:[%s0 + $0x148] sm:$0xff]
    %v639 = vld [vmem:[%s0 + $0x150] sm:$0xff]
    %v640 = vld [vmem:[%s0 + $0x158] sm:$0xff]
    %v641 = vld [vmem:[%s0 + $0x160] sm:$0xff]
    %v642 = vld [vmem:[%s0 + $0x168] sm:$0xff]
    %v643 = vld [vmem:[%s0 + $0x170] sm:$0xff]
    %v644 = vld [vmem:[%s0 + $0x178] sm:$0xff]
    %v645 = vld [vmem:[%s0 + $0x180] sm:$0xff]
    %v646 = vld [vmem:[%s0 + $0x188] sm:$0xff]
    %v647 = vld [vmem:[%s0 + $0x190] sm:$0xff]
    %v648 = vld [vmem:[%s0 + $0x198] sm:$0xff]
    %v649 = vld [vmem:[%s0 + $0x1a0] sm:$0xff]
    %v650 = vld [vmem:[%s0 + $0x1a8] sm:$0xff]
    %v651 = vld [vmem:[%s0 + $0x1b0] sm:$0xff]
    %v652 = vld [vmem:[%s0 + $0x1b8] sm:$0xff]
    %v653 = vld [vmem:[%s0 + $0x1c0] sm:$0xff]
    %v654 = vld [vmem:[%s0 + $0x1c8] sm:$0xff]
    %v655 = vld [vmem:[%s0 + $0x1d0] sm:$0xff]
    %v656 = vld [vmem:[%s0 + $0x1d8] sm:$0xff]
    %v657 = vld [vmem:[%s0 + $0x1e0] sm:$0xff]
    %v658 = vld [vmem:[%s0 + $0x1e8] sm:$0xff]
    %v659 = vld [vmem:[%s0 + $0x1f0] sm:$0xff]
    %v660 = vld [vmem:[%s0 + $0x1f8] sm:$0xff]
    %v661 = vld [vmem:[%s0 + $0x200] sm:$0xff]
    %v662 = vld [vmem:[%s0 + $0x208] sm:$0xff]
    %v663 = vld [vmem:[%s0 + $0x210] sm:$0xff]
    %v664 = vld [vmem:[%s0 + $0x218] sm:$0xff]
    %v665 = vld [vmem:[%s0 + $0x220] sm:$0xff]
    %s666 = scalar_lea.vmem %s1, 1
    %v667 = vld [vmem:[%s666] sm:$0x1]
    %669 = vset.pattern.permute.xlu0 0
    %670 = vperm.xlu0 %669, %v598
    %v671 = vpop.permute.xlu0 %670
    %674 = vset.pattern.permute.xlu0 0
    %675 = vperm.xlu0 %674, %v599
    %v676 = vpop.permute.xlu0 %675
    %679 = vset.pattern.permute.xlu0 0
    %680 = vperm.xlu0 %679, %v600
    %v681 = vpop.permute.xlu0 %680
    %684 = vset.pattern.permute.xlu0 0
    %685 = vperm.xlu0 %684, %v601
    %v686 = vpop.permute.xlu0 %685
    %689 = vset.pattern.permute.xlu0 0
    %690 = vperm.xlu0 %689, %v602
    %v691 = vpop.permute.xlu0 %690
    %694 = vset.pattern.permute.xlu0 0
    %695 = vperm.xlu0 %694, %v603
    %v696 = vpop.permute.xlu0 %695
    %699 = vset.pattern.permute.xlu0 0
    %700 = vperm.xlu0 %699, %v604
    %v701 = vpop.permute.xlu0 %700
    %704 = vset.pattern.permute.xlu0 0
    %705 = vperm.xlu0 %704, %v605
    %v706 = vpop.permute.xlu0 %705
    %709 = vset.pattern.permute.xlu0 0
    %710 = vperm.xlu0 %709, %v606
    %v711 = vpop.permute.xlu0 %710
    %714 = vset.pattern.permute.xlu0 0
    %715 = vperm.xlu0 %714, %v607
    %v716 = vpop.permute.xlu0 %715
    %719 = vset.pattern.permute.xlu0 0
    %720 = vperm.xlu0 %719, %v608
    %v721 = vpop.permute.xlu0 %720
    %724 = vset.pattern.permute.xlu0 0
    %725 = vperm.xlu0 %724, %v609
    %v726 = vpop.permute.xlu0 %725
    %729 = vset.pattern.permute.xlu0 0
    %730 = vperm.xlu0 %729, %v610
    %v731 = vpop.permute.xlu0 %730
    %734 = vset.pattern.permute.xlu0 0
    %735 = vperm.xlu0 %734, %v611
    %v736 = vpop.permute.xlu0 %735
    %739 = vset.pattern.permute.xlu0 0
    %740 = vperm.xlu0 %739, %v612
    %v741 = vpop.permute.xlu0 %740
    %744 = vset.pattern.permute.xlu0 0
    %745 = vperm.xlu0 %744, %v613
    %v746 = vpop.permute.xlu0 %745
    %749 = vset.pattern.permute.xlu0 0
    %750 = vperm.xlu0 %749, %v614
    %v751 = vpop.permute.xlu0 %750
    %754 = vset.pattern.permute.xlu0 0
    %755 = vperm.xlu0 %754, %v615
    %v756 = vpop.permute.xlu0 %755
    %759 = vset.pattern.permute.xlu0 0
    %760 = vperm.xlu0 %759, %v616
    %v761 = vpop.permute.xlu0 %760
    %764 = vset.pattern.permute.xlu0 0
    %765 = vperm.xlu0 %764, %v617
    %v766 = vpop.permute.xlu0 %765
    %769 = vset.pattern.permute.xlu0 0
    %770 = vperm.xlu0 %769, %v618
    %v771 = vpop.permute.xlu0 %770
    %774 = vset.pattern.permute.xlu0 0
    %775 = vperm.xlu0 %774, %v619
    %v776 = vpop.permute.xlu0 %775
    %779 = vset.pattern.permute.xlu0 0
    %780 = vperm.xlu0 %779, %v620
    %v781 = vpop.permute.xlu0 %780
    %784 = vset.pattern.permute.xlu0 0
    %785 = vperm.xlu0 %784, %v621
    %v786 = vpop.permute.xlu0 %785
    %789 = vset.pattern.permute.xlu0 0
    %790 = vperm.xlu0 %789, %v622
    %v791 = vpop.permute.xlu0 %790
    %794 = vset.pattern.permute.xlu0 0
    %795 = vperm.xlu0 %794, %v623
    %v796 = vpop.permute.xlu0 %795
    %799 = vset.pattern.permute.xlu0 0
    %800 = vperm.xlu0 %799, %v624
    %v801 = vpop.permute.xlu0 %800
    %804 = vset.pattern.permute.xlu0 0
    %805 = vperm.xlu0 %804, %v625
    %v806 = vpop.permute.xlu0 %805
    %809 = vset.pattern.permute.xlu0 0
    %810 = vperm.xlu0 %809, %v626
    %v811 = vpop.permute.xlu0 %810
    %814 = vset.pattern.permute.xlu0 0
    %815 = vperm.xlu0 %814, %v627
    %v816 = vpop.permute.xlu0 %815
    %819 = vset.pattern.permute.xlu0 0
    %820 = vperm.xlu0 %819, %v628
    %v821 = vpop.permute.xlu0 %820
    %824 = vset.pattern.permute.xlu0 0
    %825 = vperm.xlu0 %824, %v629
    %v826 = vpop.permute.xlu0 %825
    %829 = vset.pattern.permute.xlu0 0
    %830 = vperm.xlu0 %829, %v630
    %v831 = vpop.permute.xlu0 %830
    %834 = vset.pattern.permute.xlu0 0
    %835 = vperm.xlu0 %834, %v631
    %v836 = vpop.permute.xlu0 %835
    %839 = vset.pattern.permute.xlu0 0
    %840 = vperm.xlu0 %839, %v632
    %v841 = vpop.permute.xlu0 %840
    %844 = vset.pattern.permute.xlu0 0
    %845 = vperm.xlu0 %844, %v633
    %v846 = vpop.permute.xlu0 %845
    %849 = vset.pattern.permute.xlu0 0
    %850 = vperm.xlu0 %849, %v634
    %v851 = vpop.permute.xlu0 %850
    %854 = vset.pattern.permute.xlu0 0
    %855 = vperm.xlu0 %854, %v635
    %v856 = vpop.permute.xlu0 %855
    %859 = vset.pattern.permute.xlu0 0
    %860 = vperm.xlu0 %859, %v636
    %v861 = vpop.permute.xlu0 %860
    %864 = vset.pattern.permute.xlu0 0
    %865 = vperm.xlu0 %864, %v637
    %v866 = vpop.permute.xlu0 %865
    %869 = vset.pattern.permute.xlu0 0
    %870 = vperm.xlu0 %869, %v638
    %v871 = vpop.permute.xlu0 %870
    %874 = vset.pattern.permute.xlu0 0
    %875 = vperm.xlu0 %874, %v639
    %v876 = vpop.permute.xlu0 %875
    %879 = vset.pattern.permute.xlu0 0
    %880 = vperm.xlu0 %879, %v640
    %v881 = vpop.permute.xlu0 %880
    %884 = vset.pattern.permute.xlu0 0
    %885 = vperm.xlu0 %884, %v641
    %v886 = vpop.permute.xlu0 %885
    %889 = vset.pattern.permute.xlu0 0
    %890 = vperm.xlu0 %889, %v642
    %v891 = vpop.permute.xlu0 %890
    %894 = vset.pattern.permute.xlu0 0
    %895 = vperm.xlu0 %894, %v643
    %v896 = vpop.permute.xlu0 %895
    %899 = vset.pattern.permute.xlu0 0
    %900 = vperm.xlu0 %899, %v644
    %v901 = vpop.permute.xlu0 %900
    %904 = vset.pattern.permute.xlu0 0
    %905 = vperm.xlu0 %904, %v645
    %v906 = vpop.permute.xlu0 %905
    %909 = vset.pattern.permute.xlu0 0
    %910 = vperm.xlu0 %909, %v646
    %v911 = vpop.permute.xlu0 %910
    %914 = vset.pattern.permute.xlu0 0
    %915 = vperm.xlu0 %914, %v647
    %v916 = vpop.permute.xlu0 %915
    %919 = vset.pattern.permute.xlu0 0
    %920 = vperm.xlu0 %919, %v648
    %v921 = vpop.permute.xlu0 %920
    %924 = vset.pattern.permute.xlu0 0
    %925 = vperm.xlu0 %924, %v649
    %v926 = vpop.permute.xlu0 %925
    %929 = vset.pattern.permute.xlu0 0
    %930 = vperm.xlu0 %929, %v650
    %v931 = vpop.permute.xlu0 %930
    %934 = vset.pattern.permute.xlu0 0
    %935 = vperm.xlu0 %934, %v651
    %v936 = vpop.permute.xlu0 %935
    %939 = vset.pattern.permute.xlu0 0
    %940 = vperm.xlu0 %939, %v652
    %v941 = vpop.permute.xlu0 %940
    %944 = vset.pattern.permute.xlu0 0
    %945 = vperm.xlu0 %944, %v653
    %v946 = vpop.permute.xlu0 %945
    %949 = vset.pattern.permute.xlu0 0
    %950 = vperm.xlu0 %949, %v654
    %v951 = vpop.permute.xlu0 %950
    %954 = vset.pattern.permute.xlu0 0
    %955 = vperm.xlu0 %954, %v655
    %v956 = vpop.permute.xlu0 %955
    %959 = vset.pattern.permute.xlu0 0
    %960 = vperm.xlu0 %959, %v656
    %v961 = vpop.permute.xlu0 %960
    %964 = vset.pattern.permute.xlu0 0
    %965 = vperm.xlu0 %964, %v657
    %v966 = vpop.permute.xlu0 %965
    %969 = vset.pattern.permute.xlu0 0
    %970 = vperm.xlu0 %969, %v658
    %v971 = vpop.permute.xlu0 %970
    %974 = vset.pattern.permute.xlu0 0
    %975 = vperm.xlu0 %974, %v659
    %v976 = vpop.permute.xlu0 %975
    %979 = vset.pattern.permute.xlu0 0
    %980 = vperm.xlu0 %979, %v660
    %v981 = vpop.permute.xlu0 %980
    %984 = vset.pattern.permute.xlu0 0
    %985 = vperm.xlu0 %984, %v661
    %v986 = vpop.permute.xlu0 %985
    %989 = vset.pattern.permute.xlu0 0
    %990 = vperm.xlu0 %989, %v662
    %v991 = vpop.permute.xlu0 %990
    %994 = vset.pattern.permute.xlu0 0
    %995 = vperm.xlu0 %994, %v663
    %v996 = vpop.permute.xlu0 %995
    %999 = vset.pattern.permute.xlu0 0
    %1000 = vperm.xlu0 %999, %v664
    %v1001 = vpop.permute.xlu0 %1000
    %1004 = vset.pattern.permute.xlu0 0
    %1005 = vperm.xlu0 %1004, %v665
    %v1006 = vpop.permute.xlu0 %1005
    %v1009 = vlaneseq
    %v1010 = vshrl.u32 %v1009, 7
    %v1011 = vsub.s32 0, %v1010
    %v1012 = vrot.slane %v667, %v1011
    %v1014 = vmul.f32 %v671, %v1012
    %v1015 = vmul.f32 %v676, %v1012
    %v1016 = vmul.f32 %v681, %v1012
    %v1017 = vmul.f32 %v686, %v1012
    %v1018 = vmul.f32 %v691, %v1012
    %v1019 = vmul.f32 %v696, %v1012
    %v1020 = vmul.f32 %v701, %v1012
    %v1021 = vmul.f32 %v706, %v1012
    %v1022 = vmul.f32 %v711, %v1012
    %v1023 = vmul.f32 %v716, %v1012
    %v1024 = vmul.f32 %v721, %v1012
    %v1025 = vmul.f32 %v726, %v1012
    %v1026 = vmul.f32 %v731, %v1012
    %v1027 = vmul.f32 %v736, %v1012
    %v1028 = vmul.f32 %v741, %v1012
    %v1029 = vmul.f32 %v746, %v1012
    %v1030 = vmul.f32 %v751, %v1012
    %v1031 = vmul.f32 %v756, %v1012
    %v1032 = vmul.f32 %v761, %v1012
    %v1033 = vmul.f32 %v766, %v1012
    %v1034 = vmul.f32 %v771, %v1012
    %v1035 = vmul.f32 %v776, %v1012
    %v1036 = vmul.f32 %v781, %v1012
    %v1037 = vmul.f32 %v786, %v1012
    %v1038 = vmul.f32 %v791, %v1012
    %v1039 = vmul.f32 %v796, %v1012
    %v1040 = vmul.f32 %v801, %v1012
    %v1041 = vmul.f32 %v806, %v1012
    %v1042 = vmul.f32 %v811, %v1012
    %v1043 = vmul.f32 %v816, %v1012
    %v1044 = vmul.f32 %v821, %v1012
    %v1045 = vmul.f32 %v826, %v1012
    %v1046 = vmul.f32 %v831, %v1012
    %v1047 = vmul.f32 %v836, %v1012
    %v1048 = vmul.f32 %v841, %v1012
    %v1049 = vmul.f32 %v846, %v1012
    %v1050 = vmul.f32 %v851, %v1012
    %v1051 = vmul.f32 %v856, %v1012
    %v1052 = vmul.f32 %v861, %v1012
    %v1053 = vmul.f32 %v866, %v1012
    %v1054 = vmul.f32 %v871, %v1012
    %v1055 = vmul.f32 %v876, %v1012
    %v1056 = vmul.f32 %v881, %v1012
    %v1057 = vmul.f32 %v886, %v1012
    %v1058 = vmul.f32 %v891, %v1012
    %v1059 = vmul.f32 %v896, %v1012
    %v1060 = vmul.f32 %v901, %v1012
    %v1061 = vmul.f32 %v906, %v1012
    %v1062 = vmul.f32 %v911, %v1012
    %v1063 = vmul.f32 %v916, %v1012
    %v1064 = vmul.f32 %v921, %v1012
    %v1065 = vmul.f32 %v926, %v1012
    %v1066 = vmul.f32 %v931, %v1012
    %v1067 = vmul.f32 %v936, %v1012
    %v1068 = vmul.f32 %v941, %v1012
    %v1069 = vmul.f32 %v946, %v1012
    %v1070 = vmul.f32 %v951, %v1012
    %v1071 = vmul.f32 %v956, %v1012
    %v1072 = vmul.f32 %v961, %v1012
    %v1073 = vmul.f32 %v966, %v1012
    %v1074 = vmul.f32 %v971, %v1012
    %v1075 = vmul.f32 %v976, %v1012
    %v1076 = vmul.f32 %v981, %v1012
    %v1077 = vmul.f32 %v986, %v1012
    %v1078 = vmul.f32 %v991, %v1012
    %v1079 = vmul.f32 %v996, %v1012
    %v1080 = vmul.f32 %v1001, %v1012
    %v1081 = vmul.f32 %v1006, %v1012
    %v1082 = vadd.f32 %v530, %v1014
    %v1083 = vadd.f32 %v531, %v1015
    %v1084 = vadd.f32 %v532, %v1016
    %v1085 = vadd.f32 %v533, %v1017
    %v1086 = vadd.f32 %v534, %v1018
    %v1087 = vadd.f32 %v535, %v1019
    %v1088 = vadd.f32 %v536, %v1020
    %v1089 = vadd.f32 %v537, %v1021
    %v1090 = vadd.f32 %v538, %v1022
    %v1091 = vadd.f32 %v539, %v1023
    %v1092 = vadd.f32 %v540, %v1024
    %v1093 = vadd.f32 %v541, %v1025
    %v1094 = vadd.f32 %v542, %v1026
    %v1095 = vadd.f32 %v543, %v1027
    %v1096 = vadd.f32 %v544, %v1028
    %v1097 = vadd.f32 %v545, %v1029
    %v1098 = vadd.f32 %v546, %v1030
    %v1099 = vadd.f32 %v547, %v1031
    %v1100 = vadd.f32 %v548, %v1032
    %v1101 = vadd.f32 %v549, %v1033
    %v1102 = vadd.f32 %v550, %v1034
    %v1103 = vadd.f32 %v551, %v1035
    %v1104 = vadd.f32 %v552, %v1036
    %v1105 = vadd.f32 %v553, %v1037
    %v1106 = vadd.f32 %v554, %v1038
    %v1107 = vadd.f32 %v555, %v1039
    %v1108 = vadd.f32 %v556, %v1040
    %v1109 = vadd.f32 %v557, %v1041
    %v1110 = vadd.f32 %v558, %v1042
    %v1111 = vadd.f32 %v559, %v1043
    %v1112 = vadd.f32 %v560, %v1044
    %v1113 = vadd.f32 %v561, %v1045
    %v1114 = vadd.f32 %v562, %v1046
    %v1115 = vadd.f32 %v563, %v1047
    %v1116 = vadd.f32 %v564, %v1048
    %v1117 = vadd.f32 %v565, %v1049
    %v1118 = vadd.f32 %v566, %v1050
    %v1119 = vadd.f32 %v567, %v1051
    %v1120 = vadd.f32 %v568, %v1052
    %v1121 = vadd.f32 %v569, %v1053
    %v1122 = vadd.f32 %v570, %v1054
    %v1123 = vadd.f32 %v571, %v1055
    %v1124 = vadd.f32 %v572, %v1056
    %v1125 = vadd.f32 %v573, %v1057
    %v1126 = vadd.f32 %v574, %v1058
    %v1127 = vadd.f32 %v575, %v1059
    %v1128 = vadd.f32 %v576, %v1060
    %v1129 = vadd.f32 %v577, %v1061
    %v1130 = vadd.f32 %v578, %v1062
    %v1131 = vadd.f32 %v579, %v1063
    %v1132 = vadd.f32 %v580, %v1064
    %v1133 = vadd.f32 %v581, %v1065
    %v1134 = vadd.f32 %v582, %v1066
    %v1135 = vadd.f32 %v583, %v1067
    %v1136 = vadd.f32 %v584, %v1068
    %v1137 = vadd.f32 %v585, %v1069
    %v1138 = vadd.f32 %v586, %v1070
    %v1139 = vadd.f32 %v587, %v1071
    %v1140 = vadd.f32 %v588, %v1072
    %v1141 = vadd.f32 %v589, %v1073
    %v1142 = vadd.f32 %v590, %v1074
    %v1143 = vadd.f32 %v591, %v1075
    %v1144 = vadd.f32 %v592, %v1076
    %v1145 = vadd.f32 %v593, %v1077
    %v1146 = vadd.f32 %v594, %v1078
    %v1147 = vadd.f32 %v595, %v1079
    %v1148 = vadd.f32 %v596, %v1080
    %v1149 = vadd.f32 %v597, %v1081
    %v1150 = vld [vmem:[%s0 + $0x10] sm:$0xff]
    %v1151 = vld [vmem:[%s0 + $0x18] sm:$0xff]
    %v1152 = vld [vmem:[%s0 + $0x20] sm:$0xff]
    %v1153 = vld [vmem:[%s0 + $0x28] sm:$0xff]
    %v1154 = vld [vmem:[%s0 + $0x30] sm:$0xff]
    %v1155 = vld [vmem:[%s0 + $0x38] sm:$0xff]
    %v1156 = vld [vmem:[%s0 + $0x40] sm:$0xff]
    %v1157 = vld [vmem:[%s0 + $0x48] sm:$0xff]
    %v1158 = vld [vmem:[%s0 + $0x50] sm:$0xff]
    %v1159 = vld [vmem:[%s0 + $0x58] sm:$0xff]
    %v1160 = vld [vmem:[%s0 + $0x60] sm:$0xff]
    %v1161 = vld [vmem:[%s0 + $0x68] sm:$0xff]
    %v1162 = vld [vmem:[%s0 + $0x70] sm:$0xff]
    %v1163 = vld [vmem:[%s0 + $0x78] sm:$0xff]
    %v1164 = vld [vmem:[%s0 + $0x80] sm:$0xff]
    %v1165 = vld [vmem:[%s0 + $0x88] sm:$0xff]
    %v1166 = vld [vmem:[%s0 + $0x90] sm:$0xff]
    %v1167 = vld [vmem:[%s0 + $0x98] sm:$0xff]
    %v1168 = vld [vmem:[%s0 + $0xa0] sm:$0xff]
    %v1169 = vld [vmem:[%s0 + $0xa8] sm:$0xff]
    %v1170 = vld [vmem:[%s0 + $0xb0] sm:$0xff]
    %v1171 = vld [vmem:[%s0 + $0xb8] sm:$0xff]
    %v1172 = vld [vmem:[%s0 + $0xc0] sm:$0xff]
    %v1173 = vld [vmem:[%s0 + $0xc8] sm:$0xff]
    %v1174 = vld [vmem:[%s0 + $0xd0] sm:$0xff]
    %v1175 = vld [vmem:[%s0 + $0xd8] sm:$0xff]
    %v1176 = vld [vmem:[%s0 + $0xe0] sm:$0xff]
    %v1177 = vld [vmem:[%s0 + $0xe8] sm:$0xff]
    %v1178 = vld [vmem:[%s0 + $0xf0] sm:$0xff]
    %v1179 = vld [vmem:[%s0 + $0xf8] sm:$0xff]
    %v1180 = vld [vmem:[%s0 + $0x100] sm:$0xff]
    %v1181 = vld [vmem:[%s0 + $0x108] sm:$0xff]
    %v1182 = vld [vmem:[%s0 + $0x110] sm:$0xff]
    %v1183 = vld [vmem:[%s0 + $0x118] sm:$0xff]
    %v1184 = vld [vmem:[%s0 + $0x120] sm:$0xff]
    %v1185 = vld [vmem:[%s0 + $0x128] sm:$0xff]
    %v1186 = vld [vmem:[%s0 + $0x130] sm:$0xff]
    %v1187 = vld [vmem:[%s0 + $0x138] sm:$0xff]
    %v1188 = vld [vmem:[%s0 + $0x140] sm:$0xff]
    %v1189 = vld [vmem:[%s0 + $0x148] sm:$0xff]
    %v1190 = vld [vmem:[%s0 + $0x150] sm:$0xff]
    %v1191 = vld [vmem:[%s0 + $0x158] sm:$0xff]
    %v1192 = vld [vmem:[%s0 + $0x160] sm:$0xff]
    %v1193 = vld [vmem:[%s0 + $0x168] sm:$0xff]
    %v1194 = vld [vmem:[%s0 + $0x170] sm:$0xff]
    %v1195 = vld [vmem:[%s0 + $0x178] sm:$0xff]
    %v1196 = vld [vmem:[%s0 + $0x180] sm:$0xff]
    %v1197 = vld [vmem:[%s0 + $0x188] sm:$0xff]
    %v1198 = vld [vmem:[%s0 + $0x190] sm:$0xff]
    %v1199 = vld [vmem:[%s0 + $0x198] sm:$0xff]
    %v1200 = vld [vmem:[%s0 + $0x1a0] sm:$0xff]
    %v1201 = vld [vmem:[%s0 + $0x1a8] sm:$0xff]
    %v1202 = vld [vmem:[%s0 + $0x1b0] sm:$0xff]
    %v1203 = vld [vmem:[%s0 + $0x1b8] sm:$0xff]
    %v1204 = vld [vmem:[%s0 + $0x1c0] sm:$0xff]
    %v1205 = vld [vmem:[%s0 + $0x1c8] sm:$0xff]
    %v1206 = vld [vmem:[%s0 + $0x1d0] sm:$0xff]
    %v1207 = vld [vmem:[%s0 + $0x1d8] sm:$0xff]
    %v1208 = vld [vmem:[%s0 + $0x1e0] sm:$0xff]
    %v1209 = vld [vmem:[%s0 + $0x1e8] sm:$0xff]
    %v1210 = vld [vmem:[%s0 + $0x1f0] sm:$0xff]
    %v1211 = vld [vmem:[%s0 + $0x1f8] sm:$0xff]
    %v1212 = vld [vmem:[%s0 + $0x200] sm:$0xff]
    %v1213 = vld [vmem:[%s0 + $0x208] sm:$0xff]
    %v1214 = vld [vmem:[%s0 + $0x210] sm:$0xff]
    %v1215 = vld [vmem:[%s0 + $0x218] sm:$0xff]
    %v1216 = vld [vmem:[%s0 + $0x220] sm:$0xff]
    %v1217 = vld [vmem:[%s0 + $0x228] sm:$0xff]
    %s1218 = scalar_lea.vmem %s1, 2
    %v1219 = vld [vmem:[%s1218] sm:$0x1]
    %1221 = vset.pattern.permute.xlu0 0
    %1222 = vperm.xlu0 %1221, %v1150
    %v1223 = vpop.permute.xlu0 %1222
    %1226 = vset.pattern.permute.xlu0 0
    %1227 = vperm.xlu0 %1226, %v1151
    %v1228 = vpop.permute.xlu0 %1227
    %1231 = vset.pattern.permute.xlu0 0
    %1232 = vperm.xlu0 %1231, %v1152
    %v1233 = vpop.permute.xlu0 %1232
    %1236 = vset.pattern.permute.xlu0 0
    %1237 = vperm.xlu0 %1236, %v1153
    %v1238 = vpop.permute.xlu0 %1237
    %1241 = vset.pattern.permute.xlu0 0
    %1242 = vperm.xlu0 %1241, %v1154
    %v1243 = vpop.permute.xlu0 %1242
    %1246 = vset.pattern.permute.xlu0 0
    %1247 = vperm.xlu0 %1246, %v1155
    %v1248 = vpop.permute.xlu0 %1247
    %1251 = vset.pattern.permute.xlu0 0
    %1252 = vperm.xlu0 %1251, %v1156
    %v1253 = vpop.permute.xlu0 %1252
    %1256 = vset.pattern.permute.xlu0 0
    %1257 = vperm.xlu0 %1256, %v1157
    %v1258 = vpop.permute.xlu0 %1257
    %1261 = vset.pattern.permute.xlu0 0
    %1262 = vperm.xlu0 %1261, %v1158
    %v1263 = vpop.permute.xlu0 %1262
    %1266 = vset.pattern.permute.xlu0 0
    %1267 = vperm.xlu0 %1266, %v1159
    %v1268 = vpop.permute.xlu0 %1267
    %1271 = vset.pattern.permute.xlu0 0
    %1272 = vperm.xlu0 %1271, %v1160
    %v1273 = vpop.permute.xlu0 %1272
    %1276 = vset.pattern.permute.xlu0 0
    %1277 = vperm.xlu0 %1276, %v1161
    %v1278 = vpop.permute.xlu0 %1277
    %1281 = vset.pattern.permute.xlu0 0
    %1282 = vperm.xlu0 %1281, %v1162
    %v1283 = vpop.permute.xlu0 %1282
    %1286 = vset.pattern.permute.xlu0 0
    %1287 = vperm.xlu0 %1286, %v1163
    %v1288 = vpop.permute.xlu0 %1287
    %1291 = vset.pattern.permute.xlu0 0
    %1292 = vperm.xlu0 %1291, %v1164
    %v1293 = vpop.permute.xlu0 %1292
    %1296 = vset.pattern.permute.xlu0 0
    %1297 = vperm.xlu0 %1296, %v1165
    %v1298 = vpop.permute.xlu0 %1297
    %1301 = vset.pattern.permute.xlu0 0
    %1302 = vperm.xlu0 %1301, %v1166
    %v1303 = vpop.permute.xlu0 %1302
    %1306 = vset.pattern.permute.xlu0 0
    %1307 = vperm.xlu0 %1306, %v1167
    %v1308 = vpop.permute.xlu0 %1307
    %1311 = vset.pattern.permute.xlu0 0
    %1312 = vperm.xlu0 %1311, %v1168
    %v1313 = vpop.permute.xlu0 %1312
    %1316 = vset.pattern.permute.xlu0 0
    %1317 = vperm.xlu0 %1316, %v1169
    %v1318 = vpop.permute.xlu0 %1317
    %1321 = vset.pattern.permute.xlu0 0
    %1322 = vperm.xlu0 %1321, %v1170
    %v1323 = vpop.permute.xlu0 %1322
    %1326 = vset.pattern.permute.xlu0 0
    %1327 = vperm.xlu0 %1326, %v1171
    %v1328 = vpop.permute.xlu0 %1327
    %1331 = vset.pattern.permute.xlu0 0
    %1332 = vperm.xlu0 %1331, %v1172
    %v1333 = vpop.permute.xlu0 %1332
    %1336 = vset.pattern.permute.xlu0 0
    %1337 = vperm.xlu0 %1336, %v1173
    %v1338 = vpop.permute.xlu0 %1337
    %1341 = vset.pattern.permute.xlu0 0
    %1342 = vperm.xlu0 %1341, %v1174
    %v1343 = vpop.permute.xlu0 %1342
    %1346 = vset.pattern.permute.xlu0 0
    %1347 = vperm.xlu0 %1346, %v1175
    %v1348 = vpop.permute.xlu0 %1347
    %1351 = vset.pattern.permute.xlu0 0
    %1352 = vperm.xlu0 %1351, %v1176
    %v1353 = vpop.permute.xlu0 %1352
    %1356 = vset.pattern.permute.xlu0 0
    %1357 = vperm.xlu0 %1356, %v1177
    %v1358 = vpop.permute.xlu0 %1357
    %1361 = vset.pattern.permute.xlu0 0
    %1362 = vperm.xlu0 %1361, %v1178
    %v1363 = vpop.permute.xlu0 %1362
    %1366 = vset.pattern.permute.xlu0 0
    %1367 = vperm.xlu0 %1366, %v1179
    %v1368 = vpop.permute.xlu0 %1367
    %1371 = vset.pattern.permute.xlu0 0
    %1372 = vperm.xlu0 %1371, %v1180
    %v1373 = vpop.permute.xlu0 %1372
    %1376 = vset.pattern.permute.xlu0 0
    %1377 = vperm.xlu0 %1376, %v1181
    %v1378 = vpop.permute.xlu0 %1377
    %1381 = vset.pattern.permute.xlu0 0
    %1382 = vperm.xlu0 %1381, %v1182
    %v1383 = vpop.permute.xlu0 %1382
    %1386 = vset.pattern.permute.xlu0 0
    %1387 = vperm.xlu0 %1386, %v1183
    %v1388 = vpop.permute.xlu0 %1387
    %1391 = vset.pattern.permute.xlu0 0
    %1392 = vperm.xlu0 %1391, %v1184
    %v1393 = vpop.permute.xlu0 %1392
    %1396 = vset.pattern.permute.xlu0 0
    %1397 = vperm.xlu0 %1396, %v1185
    %v1398 = vpop.permute.xlu0 %1397
    %1401 = vset.pattern.permute.xlu0 0
    %1402 = vperm.xlu0 %1401, %v1186
    %v1403 = vpop.permute.xlu0 %1402
    %1406 = vset.pattern.permute.xlu0 0
    %1407 = vperm.xlu0 %1406, %v1187
    %v1408 = vpop.permute.xlu0 %1407
    %1411 = vset.pattern.permute.xlu0 0
    %1412 = vperm.xlu0 %1411, %v1188
    %v1413 = vpop.permute.xlu0 %1412
    %1416 = vset.pattern.permute.xlu0 0
    %1417 = vperm.xlu0 %1416, %v1189
    %v1418 = vpop.permute.xlu0 %1417
    %1421 = vset.pattern.permute.xlu0 0
    %1422 = vperm.xlu0 %1421, %v1190
    %v1423 = vpop.permute.xlu0 %1422
    %1426 = vset.pattern.permute.xlu0 0
    %1427 = vperm.xlu0 %1426, %v1191
    %v1428 = vpop.permute.xlu0 %1427
    %1431 = vset.pattern.permute.xlu0 0
    %1432 = vperm.xlu0 %1431, %v1192
    %v1433 = vpop.permute.xlu0 %1432
    %1436 = vset.pattern.permute.xlu0 0
    %1437 = vperm.xlu0 %1436, %v1193
    %v1438 = vpop.permute.xlu0 %1437
    %1441 = vset.pattern.permute.xlu0 0
    %1442 = vperm.xlu0 %1441, %v1194
    %v1443 = vpop.permute.xlu0 %1442
    %1446 = vset.pattern.permute.xlu0 0
    %1447 = vperm.xlu0 %1446, %v1195
    %v1448 = vpop.permute.xlu0 %1447
    %1451 = vset.pattern.permute.xlu0 0
    %1452 = vperm.xlu0 %1451, %v1196
    %v1453 = vpop.permute.xlu0 %1452
    %1456 = vset.pattern.permute.xlu0 0
    %1457 = vperm.xlu0 %1456, %v1197
    %v1458 = vpop.permute.xlu0 %1457
    %1461 = vset.pattern.permute.xlu0 0
    %1462 = vperm.xlu0 %1461, %v1198
    %v1463 = vpop.permute.xlu0 %1462
    %1466 = vset.pattern.permute.xlu0 0
    %1467 = vperm.xlu0 %1466, %v1199
    %v1468 = vpop.permute.xlu0 %1467
    %1471 = vset.pattern.permute.xlu0 0
    %1472 = vperm.xlu0 %1471, %v1200
    %v1473 = vpop.permute.xlu0 %1472
    %1476 = vset.pattern.permute.xlu0 0
    %1477 = vperm.xlu0 %1476, %v1201
    %v1478 = vpop.permute.xlu0 %1477
    %1481 = vset.pattern.permute.xlu0 0
    %1482 = vperm.xlu0 %1481, %v1202
    %v1483 = vpop.permute.xlu0 %1482
    %1486 = vset.pattern.permute.xlu0 0
    %1487 = vperm.xlu0 %1486, %v1203
    %v1488 = vpop.permute.xlu0 %1487
    %1491 = vset.pattern.permute.xlu0 0
    %1492 = vperm.xlu0 %1491, %v1204
    %v1493 = vpop.permute.xlu0 %1492
    %1496 = vset.pattern.permute.xlu0 0
    %1497 = vperm.xlu0 %1496, %v1205
    %v1498 = vpop.permute.xlu0 %1497
    %1501 = vset.pattern.permute.xlu0 0
    %1502 = vperm.xlu0 %1501, %v1206
    %v1503 = vpop.permute.xlu0 %1502
    %1506 = vset.pattern.permute.xlu0 0
    %1507 = vperm.xlu0 %1506, %v1207
    %v1508 = vpop.permute.xlu0 %1507
    %1511 = vset.pattern.permute.xlu0 0
    %1512 = vperm.xlu0 %1511, %v1208
    %v1513 = vpop.permute.xlu0 %1512
    %1516 = vset.pattern.permute.xlu0 0
    %1517 = vperm.xlu0 %1516, %v1209
    %v1518 = vpop.permute.xlu0 %1517
    %1521 = vset.pattern.permute.xlu0 0
    %1522 = vperm.xlu0 %1521, %v1210
    %v1523 = vpop.permute.xlu0 %1522
    %1526 = vset.pattern.permute.xlu0 0
    %1527 = vperm.xlu0 %1526, %v1211
    %v1528 = vpop.permute.xlu0 %1527
    %1531 = vset.pattern.permute.xlu0 0
    %1532 = vperm.xlu0 %1531, %v1212
    %v1533 = vpop.permute.xlu0 %1532
    %1536 = vset.pattern.permute.xlu0 0
    %1537 = vperm.xlu0 %1536, %v1213
    %v1538 = vpop.permute.xlu0 %1537
    %1541 = vset.pattern.permute.xlu0 0
    %1542 = vperm.xlu0 %1541, %v1214
    %v1543 = vpop.permute.xlu0 %1542
    %1546 = vset.pattern.permute.xlu0 0
    %1547 = vperm.xlu0 %1546, %v1215
    %v1548 = vpop.permute.xlu0 %1547
    %1551 = vset.pattern.permute.xlu0 0
    %1552 = vperm.xlu0 %1551, %v1216
    %v1553 = vpop.permute.xlu0 %1552
    %1556 = vset.pattern.permute.xlu0 0
    %1557 = vperm.xlu0 %1556, %v1217
    %v1558 = vpop.permute.xlu0 %1557
    %v1561 = vlaneseq
    %v1562 = vshrl.u32 %v1561, 7
    %v1563 = vsub.s32 0, %v1562
    %v1564 = vrot.slane %v1219, %v1563
    %v1566 = vmul.f32 %v1223, %v1564
    %v1567 = vmul.f32 %v1228, %v1564
    %v1568 = vmul.f32 %v1233, %v1564
    %v1569 = vmul.f32 %v1238, %v1564
    %v1570 = vmul.f32 %v1243, %v1564
    %v1571 = vmul.f32 %v1248, %v1564
    %v1572 = vmul.f32 %v1253, %v1564
    %v1573 = vmul.f32 %v1258, %v1564
    %v1574 = vmul.f32 %v1263, %v1564
    %v1575 = vmul.f32 %v1268, %v1564
    %v1576 = vmul.f32 %v1273, %v1564
    %v1577 = vmul.f32 %v1278, %v1564
    %v1578 = vmul.f32 %v1283, %v1564
    %v1579 = vmul.f32 %v1288, %v1564
    %v1580 = vmul.f32 %v1293, %v1564
    %v1581 = vmul.f32 %v1298, %v1564
    %v1582 = vmul.f32 %v1303, %v1564
    %v1583 = vmul.f32 %v1308, %v1564
    %v1584 = vmul.f32 %v1313, %v1564
    %v1585 = vmul.f32 %v1318, %v1564
    %v1586 = vmul.f32 %v1323, %v1564
    %v1587 = vmul.f32 %v1328, %v1564
    %v1588 = vmul.f32 %v1333, %v1564
    %v1589 = vmul.f32 %v1338, %v1564
    %v1590 = vmul.f32 %v1343, %v1564
    %v1591 = vmul.f32 %v1348, %v1564
    %v1592 = vmul.f32 %v1353, %v1564
    %v1593 = vmul.f32 %v1358, %v1564
    %v1594 = vmul.f32 %v1363, %v1564
    %v1595 = vmul.f32 %v1368, %v1564
    %v1596 = vmul.f32 %v1373, %v1564
    %v1597 = vmul.f32 %v1378, %v1564
    %v1598 = vmul.f32 %v1383, %v1564
    %v1599 = vmul.f32 %v1388, %v1564
    %v1600 = vmul.f32 %v1393, %v1564
    %v1601 = vmul.f32 %v1398, %v1564
    %v1602 = vmul.f32 %v1403, %v1564
    %v1603 = vmul.f32 %v1408, %v1564
    %v1604 = vmul.f32 %v1413, %v1564
    %v1605 = vmul.f32 %v1418, %v1564
    %v1606 = vmul.f32 %v1423, %v1564
    %v1607 = vmul.f32 %v1428, %v1564
    %v1608 = vmul.f32 %v1433, %v1564
    %v1609 = vmul.f32 %v1438, %v1564
    %v1610 = vmul.f32 %v1443, %v1564
    %v1611 = vmul.f32 %v1448, %v1564
    %v1612 = vmul.f32 %v1453, %v1564
    %v1613 = vmul.f32 %v1458, %v1564
    %v1614 = vmul.f32 %v1463, %v1564
    %v1615 = vmul.f32 %v1468, %v1564
    %v1616 = vmul.f32 %v1473, %v1564
    %v1617 = vmul.f32 %v1478, %v1564
    %v1618 = vmul.f32 %v1483, %v1564
    %v1619 = vmul.f32 %v1488, %v1564
    %v1620 = vmul.f32 %v1493, %v1564
    %v1621 = vmul.f32 %v1498, %v1564
    %v1622 = vmul.f32 %v1503, %v1564
    %v1623 = vmul.f32 %v1508, %v1564
    %v1624 = vmul.f32 %v1513, %v1564
    %v1625 = vmul.f32 %v1518, %v1564
    %v1626 = vmul.f32 %v1523, %v1564
    %v1627 = vmul.f32 %v1528, %v1564
    %v1628 = vmul.f32 %v1533, %v1564
    %v1629 = vmul.f32 %v1538, %v1564
    %v1630 = vmul.f32 %v1543, %v1564
    %v1631 = vmul.f32 %v1548, %v1564
    %v1632 = vmul.f32 %v1553, %v1564
    %v1633 = vmul.f32 %v1558, %v1564
    %v1634 = vadd.f32 %v1082, %v1566
    %v1635 = vadd.f32 %v1083, %v1567
    %v1636 = vadd.f32 %v1084, %v1568
    %v1637 = vadd.f32 %v1085, %v1569
    %v1638 = vadd.f32 %v1086, %v1570
    %v1639 = vadd.f32 %v1087, %v1571
    %v1640 = vadd.f32 %v1088, %v1572
    %v1641 = vadd.f32 %v1089, %v1573
    %v1642 = vadd.f32 %v1090, %v1574
    %v1643 = vadd.f32 %v1091, %v1575
    %v1644 = vadd.f32 %v1092, %v1576
    %v1645 = vadd.f32 %v1093, %v1577
    %v1646 = vadd.f32 %v1094, %v1578
    %v1647 = vadd.f32 %v1095, %v1579
    %v1648 = vadd.f32 %v1096, %v1580
    %v1649 = vadd.f32 %v1097, %v1581
    %v1650 = vadd.f32 %v1098, %v1582
    %v1651 = vadd.f32 %v1099, %v1583
    %v1652 = vadd.f32 %v1100, %v1584
    %v1653 = vadd.f32 %v1101, %v1585
    %v1654 = vadd.f32 %v1102, %v1586
    %v1655 = vadd.f32 %v1103, %v1587
    %v1656 = vadd.f32 %v1104, %v1588
    %v1657 = vadd.f32 %v1105, %v1589
    %v1658 = vadd.f32 %v1106, %v1590
    %v1659 = vadd.f32 %v1107, %v1591
    %v1660 = vadd.f32 %v1108, %v1592
    %v1661 = vadd.f32 %v1109, %v1593
    %v1662 = vadd.f32 %v1110, %v1594
    %v1663 = vadd.f32 %v1111, %v1595
    %v1664 = vadd.f32 %v1112, %v1596
    %v1665 = vadd.f32 %v1113, %v1597
    %v1666 = vadd.f32 %v1114, %v1598
    %v1667 = vadd.f32 %v1115, %v1599
    %v1668 = vadd.f32 %v1116, %v1600
    %v1669 = vadd.f32 %v1117, %v1601
    %v1670 = vadd.f32 %v1118, %v1602
    %v1671 = vadd.f32 %v1119, %v1603
    %v1672 = vadd.f32 %v1120, %v1604
    %v1673 = vadd.f32 %v1121, %v1605
    %v1674 = vadd.f32 %v1122, %v1606
    %v1675 = vadd.f32 %v1123, %v1607
    %v1676 = vadd.f32 %v1124, %v1608
    %v1677 = vadd.f32 %v1125, %v1609
    %v1678 = vadd.f32 %v1126, %v1610
    %v1679 = vadd.f32 %v1127, %v1611
    %v1680 = vadd.f32 %v1128, %v1612
    %v1681 = vadd.f32 %v1129, %v1613
    %v1682 = vadd.f32 %v1130, %v1614
    %v1683 = vadd.f32 %v1131, %v1615
    %v1684 = vadd.f32 %v1132, %v1616
    %v1685 = vadd.f32 %v1133, %v1617
    %v1686 = vadd.f32 %v1134, %v1618
    %v1687 = vadd.f32 %v1135, %v1619
    %v1688 = vadd.f32 %v1136, %v1620
    %v1689 = vadd.f32 %v1137, %v1621
    %v1690 = vadd.f32 %v1138, %v1622
    %v1691 = vadd.f32 %v1139, %v1623
    %v1692 = vadd.f32 %v1140, %v1624
    %v1693 = vadd.f32 %v1141, %v1625
    %v1694 = vadd.f32 %v1142, %v1626
    %v1695 = vadd.f32 %v1143, %v1627
    %v1696 = vadd.f32 %v1144, %v1628
    %v1697 = vadd.f32 %v1145, %v1629
    %v1698 = vadd.f32 %v1146, %v1630
    %v1699 = vadd.f32 %v1147, %v1631
    %v1700 = vadd.f32 %v1148, %v1632
    %v1701 = vadd.f32 %v1149, %v1633
    %v1702 = vld [vmem:[%s0 + $0x38] sm:$0xff]
    %v1703 = vld [vmem:[%s0 + $0x40] sm:$0xff]
    %v1704 = vld [vmem:[%s0 + $0x48] sm:$0xff]
    %v1705 = vld [vmem:[%s0 + $0x50] sm:$0xff]
    %v1706 = vld [vmem:[%s0 + $0x58] sm:$0xff]
    %v1707 = vld [vmem:[%s0 + $0x60] sm:$0xff]
    %v1708 = vld [vmem:[%s0 + $0x68] sm:$0xff]
    %v1709 = vld [vmem:[%s0 + $0x70] sm:$0xff]
    %v1710 = vld [vmem:[%s0 + $0x78] sm:$0xff]
    %v1711 = vld [vmem:[%s0 + $0x80] sm:$0xff]
    %v1712 = vld [vmem:[%s0 + $0x88] sm:$0xff]
    %v1713 = vld [vmem:[%s0 + $0x90] sm:$0xff]
    %v1714 = vld [vmem:[%s0 + $0x98] sm:$0xff]
    %v1715 = vld [vmem:[%s0 + $0xa0] sm:$0xff]
    %v1716 = vld [vmem:[%s0 + $0xa8] sm:$0xff]
    %v1717 = vld [vmem:[%s0 + $0xb0] sm:$0xff]
    %v1718 = vld [vmem:[%s0 + $0xb8] sm:$0xff]
    %v1719 = vld [vmem:[%s0 + $0xc0] sm:$0xff]
    %v1720 = vld [vmem:[%s0 + $0xc8] sm:$0xff]
    %v1721 = vld [vmem:[%s0 + $0xd0] sm:$0xff]
    %v1722 = vld [vmem:[%s0 + $0xd8] sm:$0xff]
    %v1723 = vld [vmem:[%s0 + $0xe0] sm:$0xff]
    %v1724 = vld [vmem:[%s0 + $0xe8] sm:$0xff]
    %v1725 = vld [vmem:[%s0 + $0xf0] sm:$0xff]
    %v1726 = vld [vmem:[%s0 + $0xf8] sm:$0xff]
    %v1727 = vld [vmem:[%s0 + $0x100] sm:$0xff]
    %v1728 = vld [vmem:[%s0 + $0x108] sm:$0xff]
    %v1729 = vld [vmem:[%s0 + $0x110] sm:$0xff]
    %v1730 = vld [vmem:[%s0 + $0x118] sm:$0xff]
    %v1731 = vld [vmem:[%s0 + $0x120] sm:$0xff]
    %v1732 = vld [vmem:[%s0 + $0x128] sm:$0xff]
    %v1733 = vld [vmem:[%s0 + $0x130] sm:$0xff]
    %v1734 = vld [vmem:[%s0 + $0x138] sm:$0xff]
    %v1735 = vld [vmem:[%s0 + $0x140] sm:$0xff]
    %v1736 = vld [vmem:[%s0 + $0x148] sm:$0xff]
    %v1737 = vld [vmem:[%s0 + $0x150] sm:$0xff]
    %v1738 = vld [vmem:[%s0 + $0x158] sm:$0xff]
    %v1739 = vld [vmem:[%s0 + $0x160] sm:$0xff]
    %v1740 = vld [vmem:[%s0 + $0x168] sm:$0xff]
    %v1741 = vld [vmem:[%s0 + $0x170] sm:$0xff]
    %v1742 = vld [vmem:[%s0 + $0x178] sm:$0xff]
    %v1743 = vld [vmem:[%s0 + $0x180] sm:$0xff]
    %v1744 = vld [vmem:[%s0 + $0x188] sm:$0xff]
    %v1745 = vld [vmem:[%s0 + $0x190] sm:$0xff]
    %v1746 = vld [vmem:[%s0 + $0x198] sm:$0xff]
    %v1747 = vld [vmem:[%s0 + $0x1a0] sm:$0xff]
    %v1748 = vld [vmem:[%s0 + $0x1a8] sm:$0xff]
    %v1749 = vld [vmem:[%s0 + $0x1b0] sm:$0xff]
    %v1750 = vld [vmem:[%s0 + $0x1b8] sm:$0xff]
    %v1751 = vld [vmem:[%s0 + $0x1c0] sm:$0xff]
    %v1752 = vld [vmem:[%s0 + $0x1c8] sm:$0xff]
    %v1753 = vld [vmem:[%s0 + $0x1d0] sm:$0xff]
    %v1754 = vld [vmem:[%s0 + $0x1d8] sm:$0xff]
    %v1755 = vld [vmem:[%s0 + $0x1e0] sm:$0xff]
    %v1756 = vld [vmem:[%s0 + $0x1e8] sm:$0xff]
    %v1757 = vld [vmem:[%s0 + $0x1f0] sm:$0xff]
    %v1758 = vld [vmem:[%s0 + $0x1f8] sm:$0xff]
    %v1759 = vld [vmem:[%s0 + $0x200] sm:$0xff]
    %v1760 = vld [vmem:[%s0 + $0x208] sm:$0xff]
    %v1761 = vld [vmem:[%s0 + $0x210] sm:$0xff]
    %v1762 = vld [vmem:[%s0 + $0x218] sm:$0xff]
    %v1763 = vld [vmem:[%s0 + $0x220] sm:$0xff]
    %v1764 = vld [vmem:[%s0 + $0x228] sm:$0xff]
    %v1765 = vld [vmem:[%s0 + $0x230] sm:$0xff]
    %v1766 = vld [vmem:[%s0 + $0x238] sm:$0xff]
    %v1767 = vld [vmem:[%s0 + $0x240] sm:$0xff]
    %v1768 = vld [vmem:[%s0 + $0x248] sm:$0xff]
    %v1769 = vld [vmem:[%s0 + $0x250] sm:$0xff]
    %s1770 = scalar_lea.vmem %s1, 3
    %v1771 = vld [vmem:[%s1770] sm:$0x1]
    %1773 = vset.pattern.permute.xlu0 0
    %1774 = vperm.xlu0 %1773, %v1702
    %v1775 = vpop.permute.xlu0 %1774
    %1778 = vset.pattern.permute.xlu0 0
    %1779 = vperm.xlu0 %1778, %v1703
    %v1780 = vpop.permute.xlu0 %1779
    %1783 = vset.pattern.permute.xlu0 0
    %1784 = vperm.xlu0 %1783, %v1704
    %v1785 = vpop.permute.xlu0 %1784
    %1788 = vset.pattern.permute.xlu0 0
    %1789 = vperm.xlu0 %1788, %v1705
    %v1790 = vpop.permute.xlu0 %1789
    %1793 = vset.pattern.permute.xlu0 0
    %1794 = vperm.xlu0 %1793, %v1706
    %v1795 = vpop.permute.xlu0 %1794
    %1798 = vset.pattern.permute.xlu0 0
    %1799 = vperm.xlu0 %1798, %v1707
    %v1800 = vpop.permute.xlu0 %1799
    %1803 = vset.pattern.permute.xlu0 0
    %1804 = vperm.xlu0 %1803, %v1708
    %v1805 = vpop.permute.xlu0 %1804
    %1808 = vset.pattern.permute.xlu0 0
    %1809 = vperm.xlu0 %1808, %v1709
    %v1810 = vpop.permute.xlu0 %1809
    %1813 = vset.pattern.permute.xlu0 0
    %1814 = vperm.xlu0 %1813, %v1710
    %v1815 = vpop.permute.xlu0 %1814
    %1818 = vset.pattern.permute.xlu0 0
    %1819 = vperm.xlu0 %1818, %v1711
    %v1820 = vpop.permute.xlu0 %1819
    %1823 = vset.pattern.permute.xlu0 0
    %1824 = vperm.xlu0 %1823, %v1712
    %v1825 = vpop.permute.xlu0 %1824
    %1828 = vset.pattern.permute.xlu0 0
    %1829 = vperm.xlu0 %1828, %v1713
    %v1830 = vpop.permute.xlu0 %1829
    %1833 = vset.pattern.permute.xlu0 0
    %1834 = vperm.xlu0 %1833, %v1714
    %v1835 = vpop.permute.xlu0 %1834
    %1838 = vset.pattern.permute.xlu0 0
    %1839 = vperm.xlu0 %1838, %v1715
    %v1840 = vpop.permute.xlu0 %1839
    %1843 = vset.pattern.permute.xlu0 0
    %1844 = vperm.xlu0 %1843, %v1716
    %v1845 = vpop.permute.xlu0 %1844
    %1848 = vset.pattern.permute.xlu0 0
    %1849 = vperm.xlu0 %1848, %v1717
    %v1850 = vpop.permute.xlu0 %1849
    %1853 = vset.pattern.permute.xlu0 0
    %1854 = vperm.xlu0 %1853, %v1718
    %v1855 = vpop.permute.xlu0 %1854
    %1858 = vset.pattern.permute.xlu0 0
    %1859 = vperm.xlu0 %1858, %v1719
    %v1860 = vpop.permute.xlu0 %1859
    %1863 = vset.pattern.permute.xlu0 0
    %1864 = vperm.xlu0 %1863, %v1720
    %v1865 = vpop.permute.xlu0 %1864
    %1868 = vset.pattern.permute.xlu0 0
    %1869 = vperm.xlu0 %1868, %v1721
    %v1870 = vpop.permute.xlu0 %1869
    %1873 = vset.pattern.permute.xlu0 0
    %1874 = vperm.xlu0 %1873, %v1722
    %v1875 = vpop.permute.xlu0 %1874
    %1878 = vset.pattern.permute.xlu0 0
    %1879 = vperm.xlu0 %1878, %v1723
    %v1880 = vpop.permute.xlu0 %1879
    %1883 = vset.pattern.permute.xlu0 0
    %1884 = vperm.xlu0 %1883, %v1724
    %v1885 = vpop.permute.xlu0 %1884
    %1888 = vset.pattern.permute.xlu0 0
    %1889 = vperm.xlu0 %1888, %v1725
    %v1890 = vpop.permute.xlu0 %1889
    %1893 = vset.pattern.permute.xlu0 0
    %1894 = vperm.xlu0 %1893, %v1726
    %v1895 = vpop.permute.xlu0 %1894
    %1898 = vset.pattern.permute.xlu0 0
    %1899 = vperm.xlu0 %1898, %v1727
    %v1900 = vpop.permute.xlu0 %1899
    %1903 = vset.pattern.permute.xlu0 0
    %1904 = vperm.xlu0 %1903, %v1728
    %v1905 = vpop.permute.xlu0 %1904
    %1908 = vset.pattern.permute.xlu0 0
    %1909 = vperm.xlu0 %1908, %v1729
    %v1910 = vpop.permute.xlu0 %1909
    %1913 = vset.pattern.permute.xlu0 0
    %1914 = vperm.xlu0 %1913, %v1730
    %v1915 = vpop.permute.xlu0 %1914
    %1918 = vset.pattern.permute.xlu0 0
    %1919 = vperm.xlu0 %1918, %v1731
    %v1920 = vpop.permute.xlu0 %1919
    %1923 = vset.pattern.permute.xlu0 0
    %1924 = vperm.xlu0 %1923, %v1732
    %v1925 = vpop.permute.xlu0 %1924
    %1928 = vset.pattern.permute.xlu0 0
    %1929 = vperm.xlu0 %1928, %v1733
    %v1930 = vpop.permute.xlu0 %1929
    %1933 = vset.pattern.permute.xlu0 0
    %1934 = vperm.xlu0 %1933, %v1734
    %v1935 = vpop.permute.xlu0 %1934
    %1938 = vset.pattern.permute.xlu0 0
    %1939 = vperm.xlu0 %1938, %v1735
    %v1940 = vpop.permute.xlu0 %1939
    %1943 = vset.pattern.permute.xlu0 0
    %1944 = vperm.xlu0 %1943, %v1736
    %v1945 = vpop.permute.xlu0 %1944
    %1948 = vset.pattern.permute.xlu0 0
    %1949 = vperm.xlu0 %1948, %v1737
    %v1950 = vpop.permute.xlu0 %1949
    %1953 = vset.pattern.permute.xlu0 0
    %1954 = vperm.xlu0 %1953, %v1738
    %v1955 = vpop.permute.xlu0 %1954
    %1958 = vset.pattern.permute.xlu0 0
    %1959 = vperm.xlu0 %1958, %v1739
    %v1960 = vpop.permute.xlu0 %1959
    %1963 = vset.pattern.permute.xlu0 0
    %1964 = vperm.xlu0 %1963, %v1740
    %v1965 = vpop.permute.xlu0 %1964
    %1968 = vset.pattern.permute.xlu0 0
    %1969 = vperm.xlu0 %1968, %v1741
    %v1970 = vpop.permute.xlu0 %1969
    %1973 = vset.pattern.permute.xlu0 0
    %1974 = vperm.xlu0 %1973, %v1742
    %v1975 = vpop.permute.xlu0 %1974
    %1978 = vset.pattern.permute.xlu0 0
    %1979 = vperm.xlu0 %1978, %v1743
    %v1980 = vpop.permute.xlu0 %1979
    %1983 = vset.pattern.permute.xlu0 0
    %1984 = vperm.xlu0 %1983, %v1744
    %v1985 = vpop.permute.xlu0 %1984
    %1988 = vset.pattern.permute.xlu0 0
    %1989 = vperm.xlu0 %1988, %v1745
    %v1990 = vpop.permute.xlu0 %1989
    %1993 = vset.pattern.permute.xlu0 0
    %1994 = vperm.xlu0 %1993, %v1746
    %v1995 = vpop.permute.xlu0 %1994
    %1998 = vset.pattern.permute.xlu0 0
    %1999 = vperm.xlu0 %1998, %v1747
    %v2000 = vpop.permute.xlu0 %1999
    %2003 = vset.pattern.permute.xlu0 0
    %2004 = vperm.xlu0 %2003, %v1748
    %v2005 = vpop.permute.xlu0 %2004
    %2008 = vset.pattern.permute.xlu0 0
    %2009 = vperm.xlu0 %2008, %v1749
    %v2010 = vpop.permute.xlu0 %2009
    %2013 = vset.pattern.permute.xlu0 0
    %2014 = vperm.xlu0 %2013, %v1750
    %v2015 = vpop.permute.xlu0 %2014
    %2018 = vset.pattern.permute.xlu0 0
    %2019 = vperm.xlu0 %2018, %v1751
    %v2020 = vpop.permute.xlu0 %2019
    %2023 = vset.pattern.permute.xlu0 0
    %2024 = vperm.xlu0 %2023, %v1752
    %v2025 = vpop.permute.xlu0 %2024
    %2028 = vset.pattern.permute.xlu0 0
    %2029 = vperm.xlu0 %2028, %v1753
    %v2030 = vpop.permute.xlu0 %2029
    %2033 = vset.pattern.permute.xlu0 0
    %2034 = vperm.xlu0 %2033, %v1754
    %v2035 = vpop.permute.xlu0 %2034
    %2038 = vset.pattern.permute.xlu0 0
    %2039 = vperm.xlu0 %2038, %v1755
    %v2040 = vpop.permute.xlu0 %2039
    %2043 = vset.pattern.permute.xlu0 0
    %2044 = vperm.xlu0 %2043, %v1756
    %v2045 = vpop.permute.xlu0 %2044
    %2048 = vset.pattern.permute.xlu0 0
    %2049 = vperm.xlu0 %2048, %v1757
    %v2050 = vpop.permute.xlu0 %2049
    %2053 = vset.pattern.permute.xlu0 0
    %2054 = vperm.xlu0 %2053, %v1758
    %v2055 = vpop.permute.xlu0 %2054
    %2058 = vset.pattern.permute.xlu0 0
    %2059 = vperm.xlu0 %2058, %v1759
    %v2060 = vpop.permute.xlu0 %2059
    %2063 = vset.pattern.permute.xlu0 0
    %2064 = vperm.xlu0 %2063, %v1760
    %v2065 = vpop.permute.xlu0 %2064
    %2068 = vset.pattern.permute.xlu0 0
    %2069 = vperm.xlu0 %2068, %v1761
    %v2070 = vpop.permute.xlu0 %2069
    %2073 = vset.pattern.permute.xlu0 0
    %2074 = vperm.xlu0 %2073, %v1762
    %v2075 = vpop.permute.xlu0 %2074
    %2078 = vset.pattern.permute.xlu0 0
    %2079 = vperm.xlu0 %2078, %v1763
    %v2080 = vpop.permute.xlu0 %2079
    %2083 = vset.pattern.permute.xlu0 0
    %2084 = vperm.xlu0 %2083, %v1764
    %v2085 = vpop.permute.xlu0 %2084
    %2088 = vset.pattern.permute.xlu0 0
    %2089 = vperm.xlu0 %2088, %v1765
    %v2090 = vpop.permute.xlu0 %2089
    %2093 = vset.pattern.permute.xlu0 0
    %2094 = vperm.xlu0 %2093, %v1766
    %v2095 = vpop.permute.xlu0 %2094
    %2098 = vset.pattern.permute.xlu0 0
    %2099 = vperm.xlu0 %2098, %v1767
    %v2100 = vpop.permute.xlu0 %2099
    %2103 = vset.pattern.permute.xlu0 0
    %2104 = vperm.xlu0 %2103, %v1768
    %v2105 = vpop.permute.xlu0 %2104
    %2108 = vset.pattern.permute.xlu0 0
    %2109 = vperm.xlu0 %2108, %v1769
    %v2110 = vpop.permute.xlu0 %2109
    %v2113 = vlaneseq
    %v2114 = vshrl.u32 %v2113, 7
    %v2115 = vsub.s32 0, %v2114
    %v2116 = vrot.slane %v1771, %v2115
    %v2118 = vmul.f32 %v1775, %v2116
    %v2119 = vmul.f32 %v1780, %v2116
    %v2120 = vmul.f32 %v1785, %v2116
    %v2121 = vmul.f32 %v1790, %v2116
    %v2122 = vmul.f32 %v1795, %v2116
    %v2123 = vmul.f32 %v1800, %v2116
    %v2124 = vmul.f32 %v1805, %v2116
    %v2125 = vmul.f32 %v1810, %v2116
    %v2126 = vmul.f32 %v1815, %v2116
    %v2127 = vmul.f32 %v1820, %v2116
    %v2128 = vmul.f32 %v1825, %v2116
    %v2129 = vmul.f32 %v1830, %v2116
    %v2130 = vmul.f32 %v1835, %v2116
    %v2131 = vmul.f32 %v1840, %v2116
    %v2132 = vmul.f32 %v1845, %v2116
    %v2133 = vmul.f32 %v1850, %v2116
    %v2134 = vmul.f32 %v1855, %v2116
    %v2135 = vmul.f32 %v1860, %v2116
    %v2136 = vmul.f32 %v1865, %v2116
    %v2137 = vmul.f32 %v1870, %v2116
    %v2138 = vmul.f32 %v1875, %v2116
    %v2139 = vmul.f32 %v1880, %v2116
    %v2140 = vmul.f32 %v1885, %v2116
    %v2141 = vmul.f32 %v1890, %v2116
    %v2142 = vmul.f32 %v1895, %v2116
    %v2143 = vmul.f32 %v1900, %v2116
    %v2144 = vmul.f32 %v1905, %v2116
    %v2145 = vmul.f32 %v1910, %v2116
    %v2146 = vmul.f32 %v1915, %v2116
    %v2147 = vmul.f32 %v1920, %v2116
    %v2148 = vmul.f32 %v1925, %v2116
    %v2149 = vmul.f32 %v1930, %v2116
    %v2150 = vmul.f32 %v1935, %v2116
    %v2151 = vmul.f32 %v1940, %v2116
    %v2152 = vmul.f32 %v1945, %v2116
    %v2153 = vmul.f32 %v1950, %v2116
    %v2154 = vmul.f32 %v1955, %v2116
    %v2155 = vmul.f32 %v1960, %v2116
    %v2156 = vmul.f32 %v1965, %v2116
    %v2157 = vmul.f32 %v1970, %v2116
    %v2158 = vmul.f32 %v1975, %v2116
    %v2159 = vmul.f32 %v1980, %v2116
    %v2160 = vmul.f32 %v1985, %v2116
    %v2161 = vmul.f32 %v1990, %v2116
    %v2162 = vmul.f32 %v1995, %v2116
    %v2163 = vmul.f32 %v2000, %v2116
    %v2164 = vmul.f32 %v2005, %v2116
    %v2165 = vmul.f32 %v2010, %v2116
    %v2166 = vmul.f32 %v2015, %v2116
    %v2167 = vmul.f32 %v2020, %v2116
    %v2168 = vmul.f32 %v2025, %v2116
    %v2169 = vmul.f32 %v2030, %v2116
    %v2170 = vmul.f32 %v2035, %v2116
    %v2171 = vmul.f32 %v2040, %v2116
    %v2172 = vmul.f32 %v2045, %v2116
    %v2173 = vmul.f32 %v2050, %v2116
    %v2174 = vmul.f32 %v2055, %v2116
    %v2175 = vmul.f32 %v2060, %v2116
    %v2176 = vmul.f32 %v2065, %v2116
    %v2177 = vmul.f32 %v2070, %v2116
    %v2178 = vmul.f32 %v2075, %v2116
    %v2179 = vmul.f32 %v2080, %v2116
    %v2180 = vmul.f32 %v2085, %v2116
    %v2181 = vmul.f32 %v2090, %v2116
    %v2182 = vmul.f32 %v2095, %v2116
    %v2183 = vmul.f32 %v2100, %v2116
    %v2184 = vmul.f32 %v2105, %v2116
    %v2185 = vmul.f32 %v2110, %v2116
    %v2186 = vadd.f32 %v1634, %v2118
    %v2187 = vadd.f32 %v1635, %v2119
    %v2188 = vadd.f32 %v1636, %v2120
    %v2189 = vadd.f32 %v1637, %v2121
    %v2190 = vadd.f32 %v1638, %v2122
    %v2191 = vadd.f32 %v1639, %v2123
    %v2192 = vadd.f32 %v1640, %v2124
    %v2193 = vadd.f32 %v1641, %v2125
    %v2194 = vadd.f32 %v1642, %v2126
    %v2195 = vadd.f32 %v1643, %v2127
    %v2196 = vadd.f32 %v1644, %v2128
    %v2197 = vadd.f32 %v1645, %v2129
    %v2198 = vadd.f32 %v1646, %v2130
    %v2199 = vadd.f32 %v1647, %v2131
    %v2200 = vadd.f32 %v1648, %v2132
    %v2201 = vadd.f32 %v1649, %v2133
    %v2202 = vadd.f32 %v1650, %v2134
    %v2203 = vadd.f32 %v1651, %v2135
    %v2204 = vadd.f32 %v1652, %v2136
    %v2205 = vadd.f32 %v1653, %v2137
    %v2206 = vadd.f32 %v1654, %v2138
    %v2207 = vadd.f32 %v1655, %v2139
    %v2208 = vadd.f32 %v1656, %v2140
    %v2209 = vadd.f32 %v1657, %v2141
    %v2210 = vadd.f32 %v1658, %v2142
    %v2211 = vadd.f32 %v1659, %v2143
    %v2212 = vadd.f32 %v1660, %v2144
    %v2213 = vadd.f32 %v1661, %v2145
    %v2214 = vadd.f32 %v1662, %v2146
    %v2215 = vadd.f32 %v1663, %v2147
    %v2216 = vadd.f32 %v1664, %v2148
    %v2217 = vadd.f32 %v1665, %v2149
    %v2218 = vadd.f32 %v1666, %v2150
    %v2219 = vadd.f32 %v1667, %v2151
    %v2220 = vadd.f32 %v1668, %v2152
    %v2221 = vadd.f32 %v1669, %v2153
    %v2222 = vadd.f32 %v1670, %v2154
    %v2223 = vadd.f32 %v1671, %v2155
    %v2224 = vadd.f32 %v1672, %v2156
    %v2225 = vadd.f32 %v1673, %v2157
    %v2226 = vadd.f32 %v1674, %v2158
    %v2227 = vadd.f32 %v1675, %v2159
    %v2228 = vadd.f32 %v1676, %v2160
    %v2229 = vadd.f32 %v1677, %v2161
    %v2230 = vadd.f32 %v1678, %v2162
    %v2231 = vadd.f32 %v1679, %v2163
    %v2232 = vadd.f32 %v1680, %v2164
    %v2233 = vadd.f32 %v1681, %v2165
    %v2234 = vadd.f32 %v1682, %v2166
    %v2235 = vadd.f32 %v1683, %v2167
    %v2236 = vadd.f32 %v1684, %v2168
    %v2237 = vadd.f32 %v1685, %v2169
    %v2238 = vadd.f32 %v1686, %v2170
    %v2239 = vadd.f32 %v1687, %v2171
    %v2240 = vadd.f32 %v1688, %v2172
    %v2241 = vadd.f32 %v1689, %v2173
    %v2242 = vadd.f32 %v1690, %v2174
    %v2243 = vadd.f32 %v1691, %v2175
    %v2244 = vadd.f32 %v1692, %v2176
    %v2245 = vadd.f32 %v1693, %v2177
    %v2246 = vadd.f32 %v1694, %v2178
    %v2247 = vadd.f32 %v1695, %v2179
    %v2248 = vadd.f32 %v1696, %v2180
    %v2249 = vadd.f32 %v1697, %v2181
    %v2250 = vadd.f32 %v1698, %v2182
    %v2251 = vadd.f32 %v1699, %v2183
    %v2252 = vadd.f32 %v1700, %v2184
    %v2253 = vadd.f32 %v1701, %v2185
    %v2254 = vld [vmem:[%s0 + $0x40] sm:$0xff]
    %v2255 = vld [vmem:[%s0 + $0x48] sm:$0xff]
    %v2256 = vld [vmem:[%s0 + $0x50] sm:$0xff]
    %v2257 = vld [vmem:[%s0 + $0x58] sm:$0xff]
    %v2258 = vld [vmem:[%s0 + $0x60] sm:$0xff]
    %v2259 = vld [vmem:[%s0 + $0x68] sm:$0xff]
    %v2260 = vld [vmem:[%s0 + $0x70] sm:$0xff]
    %v2261 = vld [vmem:[%s0 + $0x78] sm:$0xff]
    %v2262 = vld [vmem:[%s0 + $0x80] sm:$0xff]
    %v2263 = vld [vmem:[%s0 + $0x88] sm:$0xff]
    %v2264 = vld [vmem:[%s0 + $0x90] sm:$0xff]
    %v2265 = vld [vmem:[%s0 + $0x98] sm:$0xff]
    %v2266 = vld [vmem:[%s0 + $0xa0] sm:$0xff]
    %v2267 = vld [vmem:[%s0 + $0xa8] sm:$0xff]
    %v2268 = vld [vmem:[%s0 + $0xb0] sm:$0xff]
    %v2269 = vld [vmem:[%s0 + $0xb8] sm:$0xff]
    %v2270 = vld [vmem:[%s0 + $0xc0] sm:$0xff]
    %v2271 = vld [vmem:[%s0 + $0xc8] sm:$0xff]
    %v2272 = vld [vmem:[%s0 + $0xd0] sm:$0xff]
    %v2273 = vld [vmem:[%s0 + $0xd8] sm:$0xff]
    %v2274 = vld [vmem:[%s0 + $0xe0] sm:$0xff]
    %v2275 = vld [vmem:[%s0 + $0xe8] sm:$0xff]
    %v2276 = vld [vmem:[%s0 + $0xf0] sm:$0xff]
    %v2277 = vld [vmem:[%s0 + $0xf8] sm:$0xff]
    %v2278 = vld [vmem:[%s0 + $0x100] sm:$0xff]
    %v2279 = vld [vmem:[%s0 + $0x108] sm:$0xff]
    %v2280 = vld [vmem:[%s0 + $0x110] sm:$0xff]
    %v2281 = vld [vmem:[%s0 + $0x118] sm:$0xff]
    %v2282 = vld [vmem:[%s0 + $0x120] sm:$0xff]
    %v2283 = vld [vmem:[%s0 + $0x128] sm:$0xff]
    %v2284 = vld [vmem:[%s0 + $0x130] sm:$0xff]
    %v2285 = vld [vmem:[%s0 + $0x138] sm:$0xff]
    %v2286 = vld [vmem:[%s0 + $0x140] sm:$0xff]
    %v2287 = vld [vmem:[%s0 + $0x148] sm:$0xff]
    %v2288 = vld [vmem:[%s0 + $0x150] sm:$0xff]
    %v2289 = vld [vmem:[%s0 + $0x158] sm:$0xff]
    %v2290 = vld [vmem:[%s0 + $0x160] sm:$0xff]
    %v2291 = vld [vmem:[%s0 + $0x168] sm:$0xff]
    %v2292 = vld [vmem:[%s0 + $0x170] sm:$0xff]
    %v2293 = vld [vmem:[%s0 + $0x178] sm:$0xff]
    %v2294 = vld [vmem:[%s0 + $0x180] sm:$0xff]
    %v2295 = vld [vmem:[%s0 + $0x188] sm:$0xff]
    %v2296 = vld [vmem:[%s0 + $0x190] sm:$0xff]
    %v2297 = vld [vmem:[%s0 + $0x198] sm:$0xff]
    %v2298 = vld [vmem:[%s0 + $0x1a0] sm:$0xff]
    %v2299 = vld [vmem:[%s0 + $0x1a8] sm:$0xff]
    %v2300 = vld [vmem:[%s0 + $0x1b0] sm:$0xff]
    %v2301 = vld [vmem:[%s0 + $0x1b8] sm:$0xff]
    %v2302 = vld [vmem:[%s0 + $0x1c0] sm:$0xff]
    %v2303 = vld [vmem:[%s0 + $0x1c8] sm:$0xff]
    %v2304 = vld [vmem:[%s0 + $0x1d0] sm:$0xff]
    %v2305 = vld [vmem:[%s0 + $0x1d8] sm:$0xff]
    %v2306 = vld [vmem:[%s0 + $0x1e0] sm:$0xff]
    %v2307 = vld [vmem:[%s0 + $0x1e8] sm:$0xff]
    %v2308 = vld [vmem:[%s0 + $0x1f0] sm:$0xff]
    %v2309 = vld [vmem:[%s0 + $0x1f8] sm:$0xff]
    %v2310 = vld [vmem:[%s0 + $0x200] sm:$0xff]
    %v2311 = vld [vmem:[%s0 + $0x208] sm:$0xff]
    %v2312 = vld [vmem:[%s0 + $0x210] sm:$0xff]
    %v2313 = vld [vmem:[%s0 + $0x218] sm:$0xff]
    %v2314 = vld [vmem:[%s0 + $0x220] sm:$0xff]
    %v2315 = vld [vmem:[%s0 + $0x228] sm:$0xff]
    %v2316 = vld [vmem:[%s0 + $0x230] sm:$0xff]
    %v2317 = vld [vmem:[%s0 + $0x238] sm:$0xff]
    %v2318 = vld [vmem:[%s0 + $0x240] sm:$0xff]
    %v2319 = vld [vmem:[%s0 + $0x248] sm:$0xff]
    %v2320 = vld [vmem:[%s0 + $0x250] sm:$0xff]
    %v2321 = vld [vmem:[%s0 + $0x258] sm:$0xff]
    %s2322 = scalar_lea.vmem %s1, 4
    %v2323 = vld [vmem:[%s2322] sm:$0x1]
    %2325 = vset.pattern.permute.xlu0 0
    %2326 = vperm.xlu0 %2325, %v2254
    %v2327 = vpop.permute.xlu0 %2326
    %2330 = vset.pattern.permute.xlu0 0
    %2331 = vperm.xlu0 %2330, %v2255
    %v2332 = vpop.permute.xlu0 %2331
    %2335 = vset.pattern.permute.xlu0 0
    %2336 = vperm.xlu0 %2335, %v2256
    %v2337 = vpop.permute.xlu0 %2336
    %2340 = vset.pattern.permute.xlu0 0
    %2341 = vperm.xlu0 %2340, %v2257
    %v2342 = vpop.permute.xlu0 %2341
    %2345 = vset.pattern.permute.xlu0 0
    %2346 = vperm.xlu0 %2345, %v2258
    %v2347 = vpop.permute.xlu0 %2346
    %2350 = vset.pattern.permute.xlu0 0
    %2351 = vperm.xlu0 %2350, %v2259
    %v2352 = vpop.permute.xlu0 %2351
    %2355 = vset.pattern.permute.xlu0 0
    %2356 = vperm.xlu0 %2355, %v2260
    %v2357 = vpop.permute.xlu0 %2356
    %2360 = vset.pattern.permute.xlu0 0
    %2361 = vperm.xlu0 %2360, %v2261
    %v2362 = vpop.permute.xlu0 %2361
    %2365 = vset.pattern.permute.xlu0 0
    %2366 = vperm.xlu0 %2365, %v2262
    %v2367 = vpop.permute.xlu0 %2366
    %2370 = vset.pattern.permute.xlu0 0
    %2371 = vperm.xlu0 %2370, %v2263
    %v2372 = vpop.permute.xlu0 %2371
    %2375 = vset.pattern.permute.xlu0 0
    %2376 = vperm.xlu0 %2375, %v2264
    %v2377 = vpop.permute.xlu0 %2376
    %2380 = vset.pattern.permute.xlu0 0
    %2381 = vperm.xlu0 %2380, %v2265
    %v2382 = vpop.permute.xlu0 %2381
    %2385 = vset.pattern.permute.xlu0 0
    %2386 = vperm.xlu0 %2385, %v2266
    %v2387 = vpop.permute.xlu0 %2386
    %2390 = vset.pattern.permute.xlu0 0
    %2391 = vperm.xlu0 %2390, %v2267
    %v2392 = vpop.permute.xlu0 %2391
    %2395 = vset.pattern.permute.xlu0 0
    %2396 = vperm.xlu0 %2395, %v2268
    %v2397 = vpop.permute.xlu0 %2396
    %2400 = vset.pattern.permute.xlu0 0
    %2401 = vperm.xlu0 %2400, %v2269
    %v2402 = vpop.permute.xlu0 %2401
    %2405 = vset.pattern.permute.xlu0 0
    %2406 = vperm.xlu0 %2405, %v2270
    %v2407 = vpop.permute.xlu0 %2406
    %2410 = vset.pattern.permute.xlu0 0
    %2411 = vperm.xlu0 %2410, %v2271
    %v2412 = vpop.permute.xlu0 %2411
    %2415 = vset.pattern.permute.xlu0 0
    %2416 = vperm.xlu0 %2415, %v2272
    %v2417 = vpop.permute.xlu0 %2416
    %2420 = vset.pattern.permute.xlu0 0
    %2421 = vperm.xlu0 %2420, %v2273
    %v2422 = vpop.permute.xlu0 %2421
    %2425 = vset.pattern.permute.xlu0 0
    %2426 = vperm.xlu0 %2425, %v2274
    %v2427 = vpop.permute.xlu0 %2426
    %2430 = vset.pattern.permute.xlu0 0
    %2431 = vperm.xlu0 %2430, %v2275
    %v2432 = vpop.permute.xlu0 %2431
    %2435 = vset.pattern.permute.xlu0 0
    %2436 = vperm.xlu0 %2435, %v2276
    %v2437 = vpop.permute.xlu0 %2436
    %2440 = vset.pattern.permute.xlu0 0
    %2441 = vperm.xlu0 %2440, %v2277
    %v2442 = vpop.permute.xlu0 %2441
    %2445 = vset.pattern.permute.xlu0 0
    %2446 = vperm.xlu0 %2445, %v2278
    %v2447 = vpop.permute.xlu0 %2446
    %2450 = vset.pattern.permute.xlu0 0
    %2451 = vperm.xlu0 %2450, %v2279
    %v2452 = vpop.permute.xlu0 %2451
    %2455 = vset.pattern.permute.xlu0 0
    %2456 = vperm.xlu0 %2455, %v2280
    %v2457 = vpop.permute.xlu0 %2456
    %2460 = vset.pattern.permute.xlu0 0
    %2461 = vperm.xlu0 %2460, %v2281
    %v2462 = vpop.permute.xlu0 %2461
    %2465 = vset.pattern.permute.xlu0 0
    %2466 = vperm.xlu0 %2465, %v2282
    %v2467 = vpop.permute.xlu0 %2466
    %2470 = vset.pattern.permute.xlu0 0
    %2471 = vperm.xlu0 %2470, %v2283
    %v2472 = vpop.permute.xlu0 %2471
    %2475 = vset.pattern.permute.xlu0 0
    %2476 = vperm.xlu0 %2475, %v2284
    %v2477 = vpop.permute.xlu0 %2476
    %2480 = vset.pattern.permute.xlu0 0
    %2481 = vperm.xlu0 %2480, %v2285
    %v2482 = vpop.permute.xlu0 %2481
    %2485 = vset.pattern.permute.xlu0 0
    %2486 = vperm.xlu0 %2485, %v2286
    %v2487 = vpop.permute.xlu0 %2486
    %2490 = vset.pattern.permute.xlu0 0
    %2491 = vperm.xlu0 %2490, %v2287
    %v2492 = vpop.permute.xlu0 %2491
    %2495 = vset.pattern.permute.xlu0 0
    %2496 = vperm.xlu0 %2495, %v2288
    %v2497 = vpop.permute.xlu0 %2496
    %2500 = vset.pattern.permute.xlu0 0
    %2501 = vperm.xlu0 %2500, %v2289
    %v2502 = vpop.permute.xlu0 %2501
    %2505 = vset.pattern.permute.xlu0 0
    %2506 = vperm.xlu0 %2505, %v2290
    %v2507 = vpop.permute.xlu0 %2506
    %2510 = vset.pattern.permute.xlu0 0
    %2511 = vperm.xlu0 %2510, %v2291
    %v2512 = vpop.permute.xlu0 %2511
    %2515 = vset.pattern.permute.xlu0 0
    %2516 = vperm.xlu0 %2515, %v2292
    %v2517 = vpop.permute.xlu0 %2516
    %2520 = vset.pattern.permute.xlu0 0
    %2521 = vperm.xlu0 %2520, %v2293
    %v2522 = vpop.permute.xlu0 %2521
    %2525 = vset.pattern.permute.xlu0 0
    %2526 = vperm.xlu0 %2525, %v2294
    %v2527 = vpop.permute.xlu0 %2526
    %2530 = vset.pattern.permute.xlu0 0
    %2531 = vperm.xlu0 %2530, %v2295
    %v2532 = vpop.permute.xlu0 %2531
    %2535 = vset.pattern.permute.xlu0 0
    %2536 = vperm.xlu0 %2535, %v2296
    %v2537 = vpop.permute.xlu0 %2536
    %2540 = vset.pattern.permute.xlu0 0
    %2541 = vperm.xlu0 %2540, %v2297
    %v2542 = vpop.permute.xlu0 %2541
    %2545 = vset.pattern.permute.xlu0 0
    %2546 = vperm.xlu0 %2545, %v2298
    %v2547 = vpop.permute.xlu0 %2546
    %2550 = vset.pattern.permute.xlu0 0
    %2551 = vperm.xlu0 %2550, %v2299
    %v2552 = vpop.permute.xlu0 %2551
    %2555 = vset.pattern.permute.xlu0 0
    %2556 = vperm.xlu0 %2555, %v2300
    %v2557 = vpop.permute.xlu0 %2556
    %2560 = vset.pattern.permute.xlu0 0
    %2561 = vperm.xlu0 %2560, %v2301
    %v2562 = vpop.permute.xlu0 %2561
    %2565 = vset.pattern.permute.xlu0 0
    %2566 = vperm.xlu0 %2565, %v2302
    %v2567 = vpop.permute.xlu0 %2566
    %2570 = vset.pattern.permute.xlu0 0
    %2571 = vperm.xlu0 %2570, %v2303
    %v2572 = vpop.permute.xlu0 %2571
    %2575 = vset.pattern.permute.xlu0 0
    %2576 = vperm.xlu0 %2575, %v2304
    %v2577 = vpop.permute.xlu0 %2576
    %2580 = vset.pattern.permute.xlu0 0
    %2581 = vperm.xlu0 %2580, %v2305
    %v2582 = vpop.permute.xlu0 %2581
    %2585 = vset.pattern.permute.xlu0 0
    %2586 = vperm.xlu0 %2585, %v2306
    %v2587 = vpop.permute.xlu0 %2586
    %2590 = vset.pattern.permute.xlu0 0
    %2591 = vperm.xlu0 %2590, %v2307
    %v2592 = vpop.permute.xlu0 %2591
    %2595 = vset.pattern.permute.xlu0 0
    %2596 = vperm.xlu0 %2595, %v2308
    %v2597 = vpop.permute.xlu0 %2596
    %2600 = vset.pattern.permute.xlu0 0
    %2601 = vperm.xlu0 %2600, %v2309
    %v2602 = vpop.permute.xlu0 %2601
    %2605 = vset.pattern.permute.xlu0 0
    %2606 = vperm.xlu0 %2605, %v2310
    %v2607 = vpop.permute.xlu0 %2606
    %2610 = vset.pattern.permute.xlu0 0
    %2611 = vperm.xlu0 %2610, %v2311
    %v2612 = vpop.permute.xlu0 %2611
    %2615 = vset.pattern.permute.xlu0 0
    %2616 = vperm.xlu0 %2615, %v2312
    %v2617 = vpop.permute.xlu0 %2616
    %2620 = vset.pattern.permute.xlu0 0
    %2621 = vperm.xlu0 %2620, %v2313
    %v2622 = vpop.permute.xlu0 %2621
    %2625 = vset.pattern.permute.xlu0 0
    %2626 = vperm.xlu0 %2625, %v2314
    %v2627 = vpop.permute.xlu0 %2626
    %2630 = vset.pattern.permute.xlu0 0
    %2631 = vperm.xlu0 %2630, %v2315
    %v2632 = vpop.permute.xlu0 %2631
    %2635 = vset.pattern.permute.xlu0 0
    %2636 = vperm.xlu0 %2635, %v2316
    %v2637 = vpop.permute.xlu0 %2636
    %2640 = vset.pattern.permute.xlu0 0
    %2641 = vperm.xlu0 %2640, %v2317
    %v2642 = vpop.permute.xlu0 %2641
    %2645 = vset.pattern.permute.xlu0 0
    %2646 = vperm.xlu0 %2645, %v2318
    %v2647 = vpop.permute.xlu0 %2646
    %2650 = vset.pattern.permute.xlu0 0
    %2651 = vperm.xlu0 %2650, %v2319
    %v2652 = vpop.permute.xlu0 %2651
    %2655 = vset.pattern.permute.xlu0 0
    %2656 = vperm.xlu0 %2655, %v2320
    %v2657 = vpop.permute.xlu0 %2656
    %2660 = vset.pattern.permute.xlu0 0
    %2661 = vperm.xlu0 %2660, %v2321
    %v2662 = vpop.permute.xlu0 %2661
    %v2665 = vlaneseq
    %v2666 = vshrl.u32 %v2665, 7
    %v2667 = vsub.s32 0, %v2666
    %v2668 = vrot.slane %v2323, %v2667
    %v2670 = vmul.f32 %v2327, %v2668
    %v2671 = vmul.f32 %v2332, %v2668
    %v2672 = vmul.f32 %v2337, %v2668
    %v2673 = vmul.f32 %v2342, %v2668
    %v2674 = vmul.f32 %v2347, %v2668
    %v2675 = vmul.f32 %v2352, %v2668
    %v2676 = vmul.f32 %v2357, %v2668
    %v2677 = vmul.f32 %v2362, %v2668
    %v2678 = vmul.f32 %v2367, %v2668
    %v2679 = vmul.f32 %v2372, %v2668
    %v2680 = vmul.f32 %v2377, %v2668
    %v2681 = vmul.f32 %v2382, %v2668
    %v2682 = vmul.f32 %v2387, %v2668
    %v2683 = vmul.f32 %v2392, %v2668
    %v2684 = vmul.f32 %v2397, %v2668
    %v2685 = vmul.f32 %v2402, %v2668
    %v2686 = vmul.f32 %v2407, %v2668
    %v2687 = vmul.f32 %v2412, %v2668
    %v2688 = vmul.f32 %v2417, %v2668
    %v2689 = vmul.f32 %v2422, %v2668
    %v2690 = vmul.f32 %v2427, %v2668
    %v2691 = vmul.f32 %v2432, %v2668
    %v2692 = vmul.f32 %v2437, %v2668
    %v2693 = vmul.f32 %v2442, %v2668
    %v2694 = vmul.f32 %v2447, %v2668
    %v2695 = vmul.f32 %v2452, %v2668
    %v2696 = vmul.f32 %v2457, %v2668
    %v2697 = vmul.f32 %v2462, %v2668
    %v2698 = vmul.f32 %v2467, %v2668
    %v2699 = vmul.f32 %v2472, %v2668
    %v2700 = vmul.f32 %v2477, %v2668
    %v2701 = vmul.f32 %v2482, %v2668
    %v2702 = vmul.f32 %v2487, %v2668
    %v2703 = vmul.f32 %v2492, %v2668
    %v2704 = vmul.f32 %v2497, %v2668
    %v2705 = vmul.f32 %v2502, %v2668
    %v2706 = vmul.f32 %v2507, %v2668
    %v2707 = vmul.f32 %v2512, %v2668
    %v2708 = vmul.f32 %v2517, %v2668
    %v2709 = vmul.f32 %v2522, %v2668
    %v2710 = vmul.f32 %v2527, %v2668
    %v2711 = vmul.f32 %v2532, %v2668
    %v2712 = vmul.f32 %v2537, %v2668
    %v2713 = vmul.f32 %v2542, %v2668
    %v2714 = vmul.f32 %v2547, %v2668
    %v2715 = vmul.f32 %v2552, %v2668
    %v2716 = vmul.f32 %v2557, %v2668
    %v2717 = vmul.f32 %v2562, %v2668
    %v2718 = vmul.f32 %v2567, %v2668
    %v2719 = vmul.f32 %v2572, %v2668
    %v2720 = vmul.f32 %v2577, %v2668
    %v2721 = vmul.f32 %v2582, %v2668
    %v2722 = vmul.f32 %v2587, %v2668
    %v2723 = vmul.f32 %v2592, %v2668
    %v2724 = vmul.f32 %v2597, %v2668
    %v2725 = vmul.f32 %v2602, %v2668
    %v2726 = vmul.f32 %v2607, %v2668
    %v2727 = vmul.f32 %v2612, %v2668
    %v2728 = vmul.f32 %v2617, %v2668
    %v2729 = vmul.f32 %v2622, %v2668
    %v2730 = vmul.f32 %v2627, %v2668
    %v2731 = vmul.f32 %v2632, %v2668
    %v2732 = vmul.f32 %v2637, %v2668
    %v2733 = vmul.f32 %v2642, %v2668
    %v2734 = vmul.f32 %v2647, %v2668
    %v2735 = vmul.f32 %v2652, %v2668
    %v2736 = vmul.f32 %v2657, %v2668
    %v2737 = vmul.f32 %v2662, %v2668
    %v2738 = vadd.f32 %v2186, %v2670
    %v2739 = vadd.f32 %v2187, %v2671
    %v2740 = vadd.f32 %v2188, %v2672
    %v2741 = vadd.f32 %v2189, %v2673
    %v2742 = vadd.f32 %v2190, %v2674
    %v2743 = vadd.f32 %v2191, %v2675
    %v2744 = vadd.f32 %v2192, %v2676
    %v2745 = vadd.f32 %v2193, %v2677
    %v2746 = vadd.f32 %v2194, %v2678
    %v2747 = vadd.f32 %v2195, %v2679
    %v2748 = vadd.f32 %v2196, %v2680
    %v2749 = vadd.f32 %v2197, %v2681
    %v2750 = vadd.f32 %v2198, %v2682
    %v2751 = vadd.f32 %v2199, %v2683
    %v2752 = vadd.f32 %v2200, %v2684
    %v2753 = vadd.f32 %v2201, %v2685
    %v2754 = vadd.f32 %v2202, %v2686
    %v2755 = vadd.f32 %v2203, %v2687
    %v2756 = vadd.f32 %v2204, %v2688
    %v2757 = vadd.f32 %v2205, %v2689
    %v2758 = vadd.f32 %v2206, %v2690
    %v2759 = vadd.f32 %v2207, %v2691
    %v2760 = vadd.f32 %v2208, %v2692
    %v2761 = vadd.f32 %v2209, %v2693
    %v2762 = vadd.f32 %v2210, %v2694
    %v2763 = vadd.f32 %v2211, %v2695
    %v2764 = vadd.f32 %v2212, %v2696
    %v2765 = vadd.f32 %v2213, %v2697
    %v2766 = vadd.f32 %v2214, %v2698
    %v2767 = vadd.f32 %v2215, %v2699
    %v2768 = vadd.f32 %v2216, %v2700
    %v2769 = vadd.f32 %v2217, %v2701
    %v2770 = vadd.f32 %v2218, %v2702
    %v2771 = vadd.f32 %v2219, %v2703
    %v2772 = vadd.f32 %v2220, %v2704
    %v2773 = vadd.f32 %v2221, %v2705
    %v2774 = vadd.f32 %v2222, %v2706
    %v2775 = vadd.f32 %v2223, %v2707
    %v2776 = vadd.f32 %v2224, %v2708
    %v2777 = vadd.f32 %v2225, %v2709
    %v2778 = vadd.f32 %v2226, %v2710
    %v2779 = vadd.f32 %v2227, %v2711
    %v2780 = vadd.f32 %v2228, %v2712
    %v2781 = vadd.f32 %v2229, %v2713
    %v2782 = vadd.f32 %v2230, %v2714
    %v2783 = vadd.f32 %v2231, %v2715
    %v2784 = vadd.f32 %v2232, %v2716
    %v2785 = vadd.f32 %v2233, %v2717
    %v2786 = vadd.f32 %v2234, %v2718
    %v2787 = vadd.f32 %v2235, %v2719
    %v2788 = vadd.f32 %v2236, %v2720
    %v2789 = vadd.f32 %v2237, %v2721
    %v2790 = vadd.f32 %v2238, %v2722
    %v2791 = vadd.f32 %v2239, %v2723
    %v2792 = vadd.f32 %v2240, %v2724
    %v2793 = vadd.f32 %v2241, %v2725
    %v2794 = vadd.f32 %v2242, %v2726
    %v2795 = vadd.f32 %v2243, %v2727
    %v2796 = vadd.f32 %v2244, %v2728
    %v2797 = vadd.f32 %v2245, %v2729
    %v2798 = vadd.f32 %v2246, %v2730
    %v2799 = vadd.f32 %v2247, %v2731
    %v2800 = vadd.f32 %v2248, %v2732
    %v2801 = vadd.f32 %v2249, %v2733
    %v2802 = vadd.f32 %v2250, %v2734
    %v2803 = vadd.f32 %v2251, %v2735
    %v2804 = vadd.f32 %v2252, %v2736
    %v2805 = vadd.f32 %v2253, %v2737
    %v2806 = vld [vmem:[%s0 + $0x48] sm:$0xff]
    %v2807 = vld [vmem:[%s0 + $0x50] sm:$0xff]
    %v2808 = vld [vmem:[%s0 + $0x58] sm:$0xff]
    %v2809 = vld [vmem:[%s0 + $0x60] sm:$0xff]
    %v2810 = vld [vmem:[%s0 + $0x68] sm:$0xff]
    %v2811 = vld [vmem:[%s0 + $0x70] sm:$0xff]
    %v2812 = vld [vmem:[%s0 + $0x78] sm:$0xff]
    %v2813 = vld [vmem:[%s0 + $0x80] sm:$0xff]
    %v2814 = vld [vmem:[%s0 + $0x88] sm:$0xff]
    %v2815 = vld [vmem:[%s0 + $0x90] sm:$0xff]
    %v2816 = vld [vmem:[%s0 + $0x98] sm:$0xff]
    %v2817 = vld [vmem:[%s0 + $0xa0] sm:$0xff]
    %v2818 = vld [vmem:[%s0 + $0xa8] sm:$0xff]
    %v2819 = vld [vmem:[%s0 + $0xb0] sm:$0xff]
    %v2820 = vld [vmem:[%s0 + $0xb8] sm:$0xff]
    %v2821 = vld [vmem:[%s0 + $0xc0] sm:$0xff]
    %v2822 = vld [vmem:[%s0 + $0xc8] sm:$0xff]
    %v2823 = vld [vmem:[%s0 + $0xd0] sm:$0xff]
    %v2824 = vld [vmem:[%s0 + $0xd8] sm:$0xff]
    %v2825 = vld [vmem:[%s0 + $0xe0] sm:$0xff]
    %v2826 = vld [vmem:[%s0 + $0xe8] sm:$0xff]
    %v2827 = vld [vmem:[%s0 + $0xf0] sm:$0xff]
    %v2828 = vld [vmem:[%s0 + $0xf8] sm:$0xff]
    %v2829 = vld [vmem:[%s0 + $0x100] sm:$0xff]
    %v2830 = vld [vmem:[%s0 + $0x108] sm:$0xff]
    %v2831 = vld [vmem:[%s0 + $0x110] sm:$0xff]
    %v2832 = vld [vmem:[%s0 + $0x118] sm:$0xff]
    %v2833 = vld [vmem:[%s0 + $0x120] sm:$0xff]
    %v2834 = vld [vmem:[%s0 + $0x128] sm:$0xff]
    %v2835 = vld [vmem:[%s0 + $0x130] sm:$0xff]
    %v2836 = vld [vmem:[%s0 + $0x138] sm:$0xff]
    %v2837 = vld [vmem:[%s0 + $0x140] sm:$0xff]
    %v2838 = vld [vmem:[%s0 + $0x148] sm:$0xff]
    %v2839 = vld [vmem:[%s0 + $0x150] sm:$0xff]
    %v2840 = vld [vmem:[%s0 + $0x158] sm:$0xff]
    %v2841 = vld [vmem:[%s0 + $0x160] sm:$0xff]
    %v2842 = vld [vmem:[%s0 + $0x168] sm:$0xff]
    %v2843 = vld [vmem:[%s0 + $0x170] sm:$0xff]
    %v2844 = vld [vmem:[%s0 + $0x178] sm:$0xff]
    %v2845 = vld [vmem:[%s0 + $0x180] sm:$0xff]
    %v2846 = vld [vmem:[%s0 + $0x188] sm:$0xff]
    %v2847 = vld [vmem:[%s0 + $0x190] sm:$0xff]
    %v2848 = vld [vmem:[%s0 + $0x198] sm:$0xff]
    %v2849 = vld [vmem:[%s0 + $0x1a0] sm:$0xff]
    %v2850 = vld [vmem:[%s0 + $0x1a8] sm:$0xff]
    %v2851 = vld [vmem:[%s0 + $0x1b0] sm:$0xff]
    %v2852 = vld [vmem:[%s0 + $0x1b8] sm:$0xff]
    %v2853 = vld [vmem:[%s0 + $0x1c0] sm:$0xff]
    %v2854 = vld [vmem:[%s0 + $0x1c8] sm:$0xff]
    %v2855 = vld [vmem:[%s0 + $0x1d0] sm:$0xff]
    %v2856 = vld [vmem:[%s0 + $0x1d8] sm:$0xff]
    %v2857 = vld [vmem:[%s0 + $0x1e0] sm:$0xff]
    %v2858 = vld [vmem:[%s0 + $0x1e8] sm:$0xff]
    %v2859 = vld [vmem:[%s0 + $0x1f0] sm:$0xff]
    %v2860 = vld [vmem:[%s0 + $0x1f8] sm:$0xff]
    %v2861 = vld [vmem:[%s0 + $0x200] sm:$0xff]
    %v2862 = vld [vmem:[%s0 + $0x208] sm:$0xff]
    %v2863 = vld [vmem:[%s0 + $0x210] sm:$0xff]
    %v2864 = vld [vmem:[%s0 + $0x218] sm:$0xff]
    %v2865 = vld [vmem:[%s0 + $0x220] sm:$0xff]
    %v2866 = vld [vmem:[%s0 + $0x228] sm:$0xff]
    %v2867 = vld [vmem:[%s0 + $0x230] sm:$0xff]
    %v2868 = vld [vmem:[%s0 + $0x238] sm:$0xff]
    %v2869 = vld [vmem:[%s0 + $0x240] sm:$0xff]
    %v2870 = vld [vmem:[%s0 + $0x248] sm:$0xff]
    %v2871 = vld [vmem:[%s0 + $0x250] sm:$0xff]
    %v2872 = vld [vmem:[%s0 + $0x258] sm:$0xff]
    %v2873 = vld [vmem:[%s0 + $0x260] sm:$0xff]
    %s2874 = scalar_lea.vmem %s1, 5
    %v2875 = vld [vmem:[%s2874] sm:$0x1]
    %2877 = vset.pattern.permute.xlu0 0
    %2878 = vperm.xlu0 %2877, %v2806
    %v2879 = vpop.permute.xlu0 %2878
    %2882 = vset.pattern.permute.xlu0 0
    %2883 = vperm.xlu0 %2882, %v2807
    %v2884 = vpop.permute.xlu0 %2883
    %2887 = vset.pattern.permute.xlu0 0
    %2888 = vperm.xlu0 %2887, %v2808
    %v2889 = vpop.permute.xlu0 %2888
    %2892 = vset.pattern.permute.xlu0 0
    %2893 = vperm.xlu0 %2892, %v2809
    %v2894 = vpop.permute.xlu0 %2893
    %2897 = vset.pattern.permute.xlu0 0
    %2898 = vperm.xlu0 %2897, %v2810
    %v2899 = vpop.permute.xlu0 %2898
    %2902 = vset.pattern.permute.xlu0 0
    %2903 = vperm.xlu0 %2902, %v2811
    %v2904 = vpop.permute.xlu0 %2903
    %2907 = vset.pattern.permute.xlu0 0
    %2908 = vperm.xlu0 %2907, %v2812
    %v2909 = vpop.permute.xlu0 %2908
    %2912 = vset.pattern.permute.xlu0 0
    %2913 = vperm.xlu0 %2912, %v2813
    %v2914 = vpop.permute.xlu0 %2913
    %2917 = vset.pattern.permute.xlu0 0
    %2918 = vperm.xlu0 %2917, %v2814
    %v2919 = vpop.permute.xlu0 %2918
    %2922 = vset.pattern.permute.xlu0 0
    %2923 = vperm.xlu0 %2922, %v2815
    %v2924 = vpop.permute.xlu0 %2923
    %2927 = vset.pattern.permute.xlu0 0
    %2928 = vperm.xlu0 %2927, %v2816
    %v2929 = vpop.permute.xlu0 %2928
    %2932 = vset.pattern.permute.xlu0 0
    %2933 = vperm.xlu0 %2932, %v2817
    %v2934 = vpop.permute.xlu0 %2933
    %2937 = vset.pattern.permute.xlu0 0
    %2938 = vperm.xlu0 %2937, %v2818
    %v2939 = vpop.permute.xlu0 %2938
    %2942 = vset.pattern.permute.xlu0 0
    %2943 = vperm.xlu0 %2942, %v2819
    %v2944 = vpop.permute.xlu0 %2943
    %2947 = vset.pattern.permute.xlu0 0
    %2948 = vperm.xlu0 %2947, %v2820
    %v2949 = vpop.permute.xlu0 %2948
    %2952 = vset.pattern.permute.xlu0 0
    %2953 = vperm.xlu0 %2952, %v2821
    %v2954 = vpop.permute.xlu0 %2953
    %2957 = vset.pattern.permute.xlu0 0
    %2958 = vperm.xlu0 %2957, %v2822
    %v2959 = vpop.permute.xlu0 %2958
    %2962 = vset.pattern.permute.xlu0 0
    %2963 = vperm.xlu0 %2962, %v2823
    %v2964 = vpop.permute.xlu0 %2963
    %2967 = vset.pattern.permute.xlu0 0
    %2968 = vperm.xlu0 %2967, %v2824
    %v2969 = vpop.permute.xlu0 %2968
    %2972 = vset.pattern.permute.xlu0 0
    %2973 = vperm.xlu0 %2972, %v2825
    %v2974 = vpop.permute.xlu0 %2973
    %2977 = vset.pattern.permute.xlu0 0
    %2978 = vperm.xlu0 %2977, %v2826
    %v2979 = vpop.permute.xlu0 %2978
    %2982 = vset.pattern.permute.xlu0 0
    %2983 = vperm.xlu0 %2982, %v2827
    %v2984 = vpop.permute.xlu0 %2983
    %2987 = vset.pattern.permute.xlu0 0
    %2988 = vperm.xlu0 %2987, %v2828
    %v2989 = vpop.permute.xlu0 %2988
    %2992 = vset.pattern.permute.xlu0 0
    %2993 = vperm.xlu0 %2992, %v2829
    %v2994 = vpop.permute.xlu0 %2993
    %2997 = vset.pattern.permute.xlu0 0
    %2998 = vperm.xlu0 %2997, %v2830
    %v2999 = vpop.permute.xlu0 %2998
    %3002 = vset.pattern.permute.xlu0 0
    %3003 = vperm.xlu0 %3002, %v2831
    %v3004 = vpop.permute.xlu0 %3003
    %3007 = vset.pattern.permute.xlu0 0
    %3008 = vperm.xlu0 %3007, %v2832
    %v3009 = vpop.permute.xlu0 %3008
    %3012 = vset.pattern.permute.xlu0 0
    %3013 = vperm.xlu0 %3012, %v2833
    %v3014 = vpop.permute.xlu0 %3013
    %3017 = vset.pattern.permute.xlu0 0
    %3018 = vperm.xlu0 %3017, %v2834
    %v3019 = vpop.permute.xlu0 %3018
    %3022 = vset.pattern.permute.xlu0 0
    %3023 = vperm.xlu0 %3022, %v2835
    %v3024 = vpop.permute.xlu0 %3023
    %3027 = vset.pattern.permute.xlu0 0
    %3028 = vperm.xlu0 %3027, %v2836
    %v3029 = vpop.permute.xlu0 %3028
    %3032 = vset.pattern.permute.xlu0 0
    %3033 = vperm.xlu0 %3032, %v2837
    %v3034 = vpop.permute.xlu0 %3033
    %3037 = vset.pattern.permute.xlu0 0
    %3038 = vperm.xlu0 %3037, %v2838
    %v3039 = vpop.permute.xlu0 %3038
    %3042 = vset.pattern.permute.xlu0 0
    %3043 = vperm.xlu0 %3042, %v2839
    %v3044 = vpop.permute.xlu0 %3043
    %3047 = vset.pattern.permute.xlu0 0
    %3048 = vperm.xlu0 %3047, %v2840
    %v3049 = vpop.permute.xlu0 %3048
    %3052 = vset.pattern.permute.xlu0 0
    %3053 = vperm.xlu0 %3052, %v2841
    %v3054 = vpop.permute.xlu0 %3053
    %3057 = vset.pattern.permute.xlu0 0
    %3058 = vperm.xlu0 %3057, %v2842
    %v3059 = vpop.permute.xlu0 %3058
    %3062 = vset.pattern.permute.xlu0 0
    %3063 = vperm.xlu0 %3062, %v2843
    %v3064 = vpop.permute.xlu0 %3063
    %3067 = vset.pattern.permute.xlu0 0
    %3068 = vperm.xlu0 %3067, %v2844
    %v3069 = vpop.permute.xlu0 %3068
    %3072 = vset.pattern.permute.xlu0 0
    %3073 = vperm.xlu0 %3072, %v2845
    %v3074 = vpop.permute.xlu0 %3073
    %3077 = vset.pattern.permute.xlu0 0
    %3078 = vperm.xlu0 %3077, %v2846
    %v3079 = vpop.permute.xlu0 %3078
    %3082 = vset.pattern.permute.xlu0 0
    %3083 = vperm.xlu0 %3082, %v2847
    %v3084 = vpop.permute.xlu0 %3083
    %3087 = vset.pattern.permute.xlu0 0
    %3088 = vperm.xlu0 %3087, %v2848
    %v3089 = vpop.permute.xlu0 %3088
    %3092 = vset.pattern.permute.xlu0 0
    %3093 = vperm.xlu0 %3092, %v2849
    %v3094 = vpop.permute.xlu0 %3093
    %3097 = vset.pattern.permute.xlu0 0
    %3098 = vperm.xlu0 %3097, %v2850
    %v3099 = vpop.permute.xlu0 %3098
    %3102 = vset.pattern.permute.xlu0 0
    %3103 = vperm.xlu0 %3102, %v2851
    %v3104 = vpop.permute.xlu0 %3103
    %3107 = vset.pattern.permute.xlu0 0
    %3108 = vperm.xlu0 %3107, %v2852
    %v3109 = vpop.permute.xlu0 %3108
    %3112 = vset.pattern.permute.xlu0 0
    %3113 = vperm.xlu0 %3112, %v2853
    %v3114 = vpop.permute.xlu0 %3113
    %3117 = vset.pattern.permute.xlu0 0
    %3118 = vperm.xlu0 %3117, %v2854
    %v3119 = vpop.permute.xlu0 %3118
    %3122 = vset.pattern.permute.xlu0 0
    %3123 = vperm.xlu0 %3122, %v2855
    %v3124 = vpop.permute.xlu0 %3123
    %3127 = vset.pattern.permute.xlu0 0
    %3128 = vperm.xlu0 %3127, %v2856
    %v3129 = vpop.permute.xlu0 %3128
    %3132 = vset.pattern.permute.xlu0 0
    %3133 = vperm.xlu0 %3132, %v2857
    %v3134 = vpop.permute.xlu0 %3133
    %3137 = vset.pattern.permute.xlu0 0
    %3138 = vperm.xlu0 %3137, %v2858
    %v3139 = vpop.permute.xlu0 %3138
    %3142 = vset.pattern.permute.xlu0 0
    %3143 = vperm.xlu0 %3142, %v2859
    %v3144 = vpop.permute.xlu0 %3143
    %3147 = vset.pattern.permute.xlu0 0
    %3148 = vperm.xlu0 %3147, %v2860
    %v3149 = vpop.permute.xlu0 %3148
    %3152 = vset.pattern.permute.xlu0 0
    %3153 = vperm.xlu0 %3152, %v2861
    %v3154 = vpop.permute.xlu0 %3153
    %3157 = vset.pattern.permute.xlu0 0
    %3158 = vperm.xlu0 %3157, %v2862
    %v3159 = vpop.permute.xlu0 %3158
    %3162 = vset.pattern.permute.xlu0 0
    %3163 = vperm.xlu0 %3162, %v2863
    %v3164 = vpop.permute.xlu0 %3163
    %3167 = vset.pattern.permute.xlu0 0
    %3168 = vperm.xlu0 %3167, %v2864
    %v3169 = vpop.permute.xlu0 %3168
    %3172 = vset.pattern.permute.xlu0 0
    %3173 = vperm.xlu0 %3172, %v2865
    %v3174 = vpop.permute.xlu0 %3173
    %3177 = vset.pattern.permute.xlu0 0
    %3178 = vperm.xlu0 %3177, %v2866
    %v3179 = vpop.permute.xlu0 %3178
    %3182 = vset.pattern.permute.xlu0 0
    %3183 = vperm.xlu0 %3182, %v2867
    %v3184 = vpop.permute.xlu0 %3183
    %3187 = vset.pattern.permute.xlu0 0
    %3188 = vperm.xlu0 %3187, %v2868
    %v3189 = vpop.permute.xlu0 %3188
    %3192 = vset.pattern.permute.xlu0 0
    %3193 = vperm.xlu0 %3192, %v2869
    %v3194 = vpop.permute.xlu0 %3193
    %3197 = vset.pattern.permute.xlu0 0
    %3198 = vperm.xlu0 %3197, %v2870
    %v3199 = vpop.permute.xlu0 %3198
    %3202 = vset.pattern.permute.xlu0 0
    %3203 = vperm.xlu0 %3202, %v2871
    %v3204 = vpop.permute.xlu0 %3203
    %3207 = vset.pattern.permute.xlu0 0
    %3208 = vperm.xlu0 %3207, %v2872
    %v3209 = vpop.permute.xlu0 %3208
    %3212 = vset.pattern.permute.xlu0 0
    %3213 = vperm.xlu0 %3212, %v2873
    %v3214 = vpop.permute.xlu0 %3213
    %v3217 = vlaneseq
    %v3218 = vshrl.u32 %v3217, 7
    %v3219 = vsub.s32 0, %v3218
    %v3220 = vrot.slane %v2875, %v3219
    %v3222 = vmul.f32 %v2879, %v3220
    %v3223 = vmul.f32 %v2884, %v3220
    %v3224 = vmul.f32 %v2889, %v3220
    %v3225 = vmul.f32 %v2894, %v3220
    %v3226 = vmul.f32 %v2899, %v3220
    %v3227 = vmul.f32 %v2904, %v3220
    %v3228 = vmul.f32 %v2909, %v3220
    %v3229 = vmul.f32 %v2914, %v3220
    %v3230 = vmul.f32 %v2919, %v3220
    %v3231 = vmul.f32 %v2924, %v3220
    %v3232 = vmul.f32 %v2929, %v3220
    %v3233 = vmul.f32 %v2934, %v3220
    %v3234 = vmul.f32 %v2939, %v3220
    %v3235 = vmul.f32 %v2944, %v3220
    %v3236 = vmul.f32 %v2949, %v3220
    %v3237 = vmul.f32 %v2954, %v3220
    %v3238 = vmul.f32 %v2959, %v3220
    %v3239 = vmul.f32 %v2964, %v3220
    %v3240 = vmul.f32 %v2969, %v3220
    %v3241 = vmul.f32 %v2974, %v3220
    %v3242 = vmul.f32 %v2979, %v3220
    %v3243 = vmul.f32 %v2984, %v3220
    %v3244 = vmul.f32 %v2989, %v3220
    %v3245 = vmul.f32 %v2994, %v3220
    %v3246 = vmul.f32 %v2999, %v3220
    %v3247 = vmul.f32 %v3004, %v3220
    %v3248 = vmul.f32 %v3009, %v3220
    %v3249 = vmul.f32 %v3014, %v3220
    %v3250 = vmul.f32 %v3019, %v3220
    %v3251 = vmul.f32 %v3024, %v3220
    %v3252 = vmul.f32 %v3029, %v3220
    %v3253 = vmul.f32 %v3034, %v3220
    %v3254 = vmul.f32 %v3039, %v3220
    %v3255 = vmul.f32 %v3044, %v3220
    %v3256 = vmul.f32 %v3049, %v3220
    %v3257 = vmul.f32 %v3054, %v3220
    %v3258 = vmul.f32 %v3059, %v3220
    %v3259 = vmul.f32 %v3064, %v3220
    %v3260 = vmul.f32 %v3069, %v3220
    %v3261 = vmul.f32 %v3074, %v3220
    %v3262 = vmul.f32 %v3079, %v3220
    %v3263 = vmul.f32 %v3084, %v3220
    %v3264 = vmul.f32 %v3089, %v3220
    %v3265 = vmul.f32 %v3094, %v3220
    %v3266 = vmul.f32 %v3099, %v3220
    %v3267 = vmul.f32 %v3104, %v3220
    %v3268 = vmul.f32 %v3109, %v3220
    %v3269 = vmul.f32 %v3114, %v3220
    %v3270 = vmul.f32 %v3119, %v3220
    %v3271 = vmul.f32 %v3124, %v3220
    %v3272 = vmul.f32 %v3129, %v3220
    %v3273 = vmul.f32 %v3134, %v3220
    %v3274 = vmul.f32 %v3139, %v3220
    %v3275 = vmul.f32 %v3144, %v3220
    %v3276 = vmul.f32 %v3149, %v3220
    %v3277 = vmul.f32 %v3154, %v3220
    %v3278 = vmul.f32 %v3159, %v3220
    %v3279 = vmul.f32 %v3164, %v3220
    %v3280 = vmul.f32 %v3169, %v3220
    %v3281 = vmul.f32 %v3174, %v3220
    %v3282 = vmul.f32 %v3179, %v3220
    %v3283 = vmul.f32 %v3184, %v3220
    %v3284 = vmul.f32 %v3189, %v3220
    %v3285 = vmul.f32 %v3194, %v3220
    %v3286 = vmul.f32 %v3199, %v3220
    %v3287 = vmul.f32 %v3204, %v3220
    %v3288 = vmul.f32 %v3209, %v3220
    %v3289 = vmul.f32 %v3214, %v3220
    %v3290 = vadd.f32 %v2738, %v3222
    %v3291 = vadd.f32 %v2739, %v3223
    %v3292 = vadd.f32 %v2740, %v3224
    %v3293 = vadd.f32 %v2741, %v3225
    %v3294 = vadd.f32 %v2742, %v3226
    %v3295 = vadd.f32 %v2743, %v3227
    %v3296 = vadd.f32 %v2744, %v3228
    %v3297 = vadd.f32 %v2745, %v3229
    %v3298 = vadd.f32 %v2746, %v3230
    %v3299 = vadd.f32 %v2747, %v3231
    %v3300 = vadd.f32 %v2748, %v3232
    %v3301 = vadd.f32 %v2749, %v3233
    %v3302 = vadd.f32 %v2750, %v3234
    %v3303 = vadd.f32 %v2751, %v3235
    %v3304 = vadd.f32 %v2752, %v3236
    %v3305 = vadd.f32 %v2753, %v3237
    %v3306 = vadd.f32 %v2754, %v3238
    %v3307 = vadd.f32 %v2755, %v3239
    %v3308 = vadd.f32 %v2756, %v3240
    %v3309 = vadd.f32 %v2757, %v3241
    %v3310 = vadd.f32 %v2758, %v3242
    %v3311 = vadd.f32 %v2759, %v3243
    %v3312 = vadd.f32 %v2760, %v3244
    %v3313 = vadd.f32 %v2761, %v3245
    %v3314 = vadd.f32 %v2762, %v3246
    %v3315 = vadd.f32 %v2763, %v3247
    %v3316 = vadd.f32 %v2764, %v3248
    %v3317 = vadd.f32 %v2765, %v3249
    %v3318 = vadd.f32 %v2766, %v3250
    %v3319 = vadd.f32 %v2767, %v3251
    %v3320 = vadd.f32 %v2768, %v3252
    %v3321 = vadd.f32 %v2769, %v3253
    %v3322 = vadd.f32 %v2770, %v3254
    %v3323 = vadd.f32 %v2771, %v3255
    %v3324 = vadd.f32 %v2772, %v3256
    %v3325 = vadd.f32 %v2773, %v3257
    %v3326 = vadd.f32 %v2774, %v3258
    %v3327 = vadd.f32 %v2775, %v3259
    %v3328 = vadd.f32 %v2776, %v3260
    %v3329 = vadd.f32 %v2777, %v3261
    %v3330 = vadd.f32 %v2778, %v3262
    %v3331 = vadd.f32 %v2779, %v3263
    %v3332 = vadd.f32 %v2780, %v3264
    %v3333 = vadd.f32 %v2781, %v3265
    %v3334 = vadd.f32 %v2782, %v3266
    %v3335 = vadd.f32 %v2783, %v3267
    %v3336 = vadd.f32 %v2784, %v3268
    %v3337 = vadd.f32 %v2785, %v3269
    %v3338 = vadd.f32 %v2786, %v3270
    %v3339 = vadd.f32 %v2787, %v3271
    %v3340 = vadd.f32 %v2788, %v3272
    %v3341 = vadd.f32 %v2789, %v3273
    %v3342 = vadd.f32 %v2790, %v3274
    %v3343 = vadd.f32 %v2791, %v3275
    %v3344 = vadd.f32 %v2792, %v3276
    %v3345 = vadd.f32 %v2793, %v3277
    %v3346 = vadd.f32 %v2794, %v3278
    %v3347 = vadd.f32 %v2795, %v3279
    %v3348 = vadd.f32 %v2796, %v3280
    %v3349 = vadd.f32 %v2797, %v3281
    %v3350 = vadd.f32 %v2798, %v3282
    %v3351 = vadd.f32 %v2799, %v3283
    %v3352 = vadd.f32 %v2800, %v3284
    %v3353 = vadd.f32 %v2801, %v3285
    %v3354 = vadd.f32 %v2802, %v3286
    %v3355 = vadd.f32 %v2803, %v3287
    %v3356 = vadd.f32 %v2804, %v3288
    %v3357 = vadd.f32 %v2805, %v3289
    %v3358 = vld [vmem:[%s0 + $0x70] sm:$0xff]
    %v3359 = vld [vmem:[%s0 + $0x78] sm:$0xff]
    %v3360 = vld [vmem:[%s0 + $0x80] sm:$0xff]
    %v3361 = vld [vmem:[%s0 + $0x88] sm:$0xff]
    %v3362 = vld [vmem:[%s0 + $0x90] sm:$0xff]
    %v3363 = vld [vmem:[%s0 + $0x98] sm:$0xff]
    %v3364 = vld [vmem:[%s0 + $0xa0] sm:$0xff]
    %v3365 = vld [vmem:[%s0 + $0xa8] sm:$0xff]
    %v3366 = vld [vmem:[%s0 + $0xb0] sm:$0xff]
    %v3367 = vld [vmem:[%s0 + $0xb8] sm:$0xff]
    %v3368 = vld [vmem:[%s0 + $0xc0] sm:$0xff]
    %v3369 = vld [vmem:[%s0 + $0xc8] sm:$0xff]
    %v3370 = vld [vmem:[%s0 + $0xd0] sm:$0xff]
    %v3371 = vld [vmem:[%s0 + $0xd8] sm:$0xff]
    %v3372 = vld [vmem:[%s0 + $0xe0] sm:$0xff]
    %v3373 = vld [vmem:[%s0 + $0xe8] sm:$0xff]
    %v3374 = vld [vmem:[%s0 + $0xf0] sm:$0xff]
    %v3375 = vld [vmem:[%s0 + $0xf8] sm:$0xff]
    %v3376 = vld [vmem:[%s0 + $0x100] sm:$0xff]
    %v3377 = vld [vmem:[%s0 + $0x108] sm:$0xff]
    %v3378 = vld [vmem:[%s0 + $0x110] sm:$0xff]
    %v3379 = vld [vmem:[%s0 + $0x118] sm:$0xff]
    %v3380 = vld [vmem:[%s0 + $0x120] sm:$0xff]
    %v3381 = vld [vmem:[%s0 + $0x128] sm:$0xff]
    %v3382 = vld [vmem:[%s0 + $0x130] sm:$0xff]
    %v3383 = vld [vmem:[%s0 + $0x138] sm:$0xff]
    %v3384 = vld [vmem:[%s0 + $0x140] sm:$0xff]
    %v3385 = vld [vmem:[%s0 + $0x148] sm:$0xff]
    %v3386 = vld [vmem:[%s0 + $0x150] sm:$0xff]
    %v3387 = vld [vmem:[%s0 + $0x158] sm:$0xff]
    %v3388 = vld [vmem:[%s0 + $0x160] sm:$0xff]
    %v3389 = vld [vmem:[%s0 + $0x168] sm:$0xff]
    %v3390 = vld [vmem:[%s0 + $0x170] sm:$0xff]
    %v3391 = vld [vmem:[%s0 + $0x178] sm:$0xff]
    %v3392 = vld [vmem:[%s0 + $0x180] sm:$0xff]
    %v3393 = vld [vmem:[%s0 + $0x188] sm:$0xff]
    %v3394 = vld [vmem:[%s0 + $0x190] sm:$0xff]
    %v3395 = vld [vmem:[%s0 + $0x198] sm:$0xff]
    %v3396 = vld [vmem:[%s0 + $0x1a0] sm:$0xff]
    %v3397 = vld [vmem:[%s0 + $0x1a8] sm:$0xff]
    %v3398 = vld [vmem:[%s0 + $0x1b0] sm:$0xff]
    %v3399 = vld [vmem:[%s0 + $0x1b8] sm:$0xff]
    %v3400 = vld [vmem:[%s0 + $0x1c0] sm:$0xff]
    %v3401 = vld [vmem:[%s0 + $0x1c8] sm:$0xff]
    %v3402 = vld [vmem:[%s0 + $0x1d0] sm:$0xff]
    %v3403 = vld [vmem:[%s0 + $0x1d8] sm:$0xff]
    %v3404 = vld [vmem:[%s0 + $0x1e0] sm:$0xff]
    %v3405 = vld [vmem:[%s0 + $0x1e8] sm:$0xff]
    %v3406 = vld [vmem:[%s0 + $0x1f0] sm:$0xff]
    %v3407 = vld [vmem:[%s0 + $0x1f8] sm:$0xff]
    %v3408 = vld [vmem:[%s0 + $0x200] sm:$0xff]
    %v3409 = vld [vmem:[%s0 + $0x208] sm:$0xff]
    %v3410 = vld [vmem:[%s0 + $0x210] sm:$0xff]
    %v3411 = vld [vmem:[%s0 + $0x218] sm:$0xff]
    %v3412 = vld [vmem:[%s0 + $0x220] sm:$0xff]
    %v3413 = vld [vmem:[%s0 + $0x228] sm:$0xff]
    %v3414 = vld [vmem:[%s0 + $0x230] sm:$0xff]
    %v3415 = vld [vmem:[%s0 + $0x238] sm:$0xff]
    %v3416 = vld [vmem:[%s0 + $0x240] sm:$0xff]
    %v3417 = vld [vmem:[%s0 + $0x248] sm:$0xff]
    %v3418 = vld [vmem:[%s0 + $0x250] sm:$0xff]
    %v3419 = vld [vmem:[%s0 + $0x258] sm:$0xff]
    %v3420 = vld [vmem:[%s0 + $0x260] sm:$0xff]
    %v3421 = vld [vmem:[%s0 + $0x268] sm:$0xff]
    %v3422 = vld [vmem:[%s0 + $0x270] sm:$0xff]
    %v3423 = vld [vmem:[%s0 + $0x278] sm:$0xff]
    %v3424 = vld [vmem:[%s0 + $0x280] sm:$0xff]
    %v3425 = vld [vmem:[%s0 + $0x288] sm:$0xff]
    %s3426 = scalar_lea.vmem %s1, 6
    %v3427 = vld [vmem:[%s3426] sm:$0x1]
    %3429 = vset.pattern.permute.xlu0 0
    %3430 = vperm.xlu0 %3429, %v3358
    %v3431 = vpop.permute.xlu0 %3430
    %3434 = vset.pattern.permute.xlu0 0
    %3435 = vperm.xlu0 %3434, %v3359
    %v3436 = vpop.permute.xlu0 %3435
    %3439 = vset.pattern.permute.xlu0 0
    %3440 = vperm.xlu0 %3439, %v3360
    %v3441 = vpop.permute.xlu0 %3440
    %3444 = vset.pattern.permute.xlu0 0
    %3445 = vperm.xlu0 %3444, %v3361
    %v3446 = vpop.permute.xlu0 %3445
    %3449 = vset.pattern.permute.xlu0 0
    %3450 = vperm.xlu0 %3449, %v3362
    %v3451 = vpop.permute.xlu0 %3450
    %3454 = vset.pattern.permute.xlu0 0
    %3455 = vperm.xlu0 %3454, %v3363
    %v3456 = vpop.permute.xlu0 %3455
    %3459 = vset.pattern.permute.xlu0 0
    %3460 = vperm.xlu0 %3459, %v3364
    %v3461 = vpop.permute.xlu0 %3460
    %3464 = vset.pattern.permute.xlu0 0
    %3465 = vperm.xlu0 %3464, %v3365
    %v3466 = vpop.permute.xlu0 %3465
    %3469 = vset.pattern.permute.xlu0 0
    %3470 = vperm.xlu0 %3469, %v3366
    %v3471 = vpop.permute.xlu0 %3470
    %3474 = vset.pattern.permute.xlu0 0
    %3475 = vperm.xlu0 %3474, %v3367
    %v3476 = vpop.permute.xlu0 %3475
    %3479 = vset.pattern.permute.xlu0 0
    %3480 = vperm.xlu0 %3479, %v3368
    %v3481 = vpop.permute.xlu0 %3480
    %3484 = vset.pattern.permute.xlu0 0
    %3485 = vperm.xlu0 %3484, %v3369
    %v3486 = vpop.permute.xlu0 %3485
    %3489 = vset.pattern.permute.xlu0 0
    %3490 = vperm.xlu0 %3489, %v3370
    %v3491 = vpop.permute.xlu0 %3490
    %3494 = vset.pattern.permute.xlu0 0
    %3495 = vperm.xlu0 %3494, %v3371
    %v3496 = vpop.permute.xlu0 %3495
    %3499 = vset.pattern.permute.xlu0 0
    %3500 = vperm.xlu0 %3499, %v3372
    %v3501 = vpop.permute.xlu0 %3500
    %3504 = vset.pattern.permute.xlu0 0
    %3505 = vperm.xlu0 %3504, %v3373
    %v3506 = vpop.permute.xlu0 %3505
    %3509 = vset.pattern.permute.xlu0 0
    %3510 = vperm.xlu0 %3509, %v3374
    %v3511 = vpop.permute.xlu0 %3510
    %3514 = vset.pattern.permute.xlu0 0
    %3515 = vperm.xlu0 %3514, %v3375
    %v3516 = vpop.permute.xlu0 %3515
    %3519 = vset.pattern.permute.xlu0 0
    %3520 = vperm.xlu0 %3519, %v3376
    %v3521 = vpop.permute.xlu0 %3520
    %3524 = vset.pattern.permute.xlu0 0
    %3525 = vperm.xlu0 %3524, %v3377
    %v3526 = vpop.permute.xlu0 %3525
    %3529 = vset.pattern.permute.xlu0 0
    %3530 = vperm.xlu0 %3529, %v3378
    %v3531 = vpop.permute.xlu0 %3530
    %3534 = vset.pattern.permute.xlu0 0
    %3535 = vperm.xlu0 %3534, %v3379
    %v3536 = vpop.permute.xlu0 %3535
    %3539 = vset.pattern.permute.xlu0 0
    %3540 = vperm.xlu0 %3539, %v3380
    %v3541 = vpop.permute.xlu0 %3540
    %3544 = vset.pattern.permute.xlu0 0
    %3545 = vperm.xlu0 %3544, %v3381
    %v3546 = vpop.permute.xlu0 %3545
    %3549 = vset.pattern.permute.xlu0 0
    %3550 = vperm.xlu0 %3549, %v3382
    %v3551 = vpop.permute.xlu0 %3550
    %3554 = vset.pattern.permute.xlu0 0
    %3555 = vperm.xlu0 %3554, %v3383
    %v3556 = vpop.permute.xlu0 %3555
    %3559 = vset.pattern.permute.xlu0 0
    %3560 = vperm.xlu0 %3559, %v3384
    %v3561 = vpop.permute.xlu0 %3560
    %3564 = vset.pattern.permute.xlu0 0
    %3565 = vperm.xlu0 %3564, %v3385
    %v3566 = vpop.permute.xlu0 %3565
    %3569 = vset.pattern.permute.xlu0 0
    %3570 = vperm.xlu0 %3569, %v3386
    %v3571 = vpop.permute.xlu0 %3570
    %3574 = vset.pattern.permute.xlu0 0
    %3575 = vperm.xlu0 %3574, %v3387
    %v3576 = vpop.permute.xlu0 %3575
    %3579 = vset.pattern.permute.xlu0 0
    %3580 = vperm.xlu0 %3579, %v3388
    %v3581 = vpop.permute.xlu0 %3580
    %3584 = vset.pattern.permute.xlu0 0
    %3585 = vperm.xlu0 %3584, %v3389
    %v3586 = vpop.permute.xlu0 %3585
    %3589 = vset.pattern.permute.xlu0 0
    %3590 = vperm.xlu0 %3589, %v3390
    %v3591 = vpop.permute.xlu0 %3590
    %3594 = vset.pattern.permute.xlu0 0
    %3595 = vperm.xlu0 %3594, %v3391
    %v3596 = vpop.permute.xlu0 %3595
    %3599 = vset.pattern.permute.xlu0 0
    %3600 = vperm.xlu0 %3599, %v3392
    %v3601 = vpop.permute.xlu0 %3600
    %3604 = vset.pattern.permute.xlu0 0
    %3605 = vperm.xlu0 %3604, %v3393
    %v3606 = vpop.permute.xlu0 %3605
    %3609 = vset.pattern.permute.xlu0 0
    %3610 = vperm.xlu0 %3609, %v3394
    %v3611 = vpop.permute.xlu0 %3610
    %3614 = vset.pattern.permute.xlu0 0
    %3615 = vperm.xlu0 %3614, %v3395
    %v3616 = vpop.permute.xlu0 %3615
    %3619 = vset.pattern.permute.xlu0 0
    %3620 = vperm.xlu0 %3619, %v3396
    %v3621 = vpop.permute.xlu0 %3620
    %3624 = vset.pattern.permute.xlu0 0
    %3625 = vperm.xlu0 %3624, %v3397
    %v3626 = vpop.permute.xlu0 %3625
    %3629 = vset.pattern.permute.xlu0 0
    %3630 = vperm.xlu0 %3629, %v3398
    %v3631 = vpop.permute.xlu0 %3630
    %3634 = vset.pattern.permute.xlu0 0
    %3635 = vperm.xlu0 %3634, %v3399
    %v3636 = vpop.permute.xlu0 %3635
    %3639 = vset.pattern.permute.xlu0 0
    %3640 = vperm.xlu0 %3639, %v3400
    %v3641 = vpop.permute.xlu0 %3640
    %3644 = vset.pattern.permute.xlu0 0
    %3645 = vperm.xlu0 %3644, %v3401
    %v3646 = vpop.permute.xlu0 %3645
    %3649 = vset.pattern.permute.xlu0 0
    %3650 = vperm.xlu0 %3649, %v3402
    %v3651 = vpop.permute.xlu0 %3650
    %3654 = vset.pattern.permute.xlu0 0
    %3655 = vperm.xlu0 %3654, %v3403
    %v3656 = vpop.permute.xlu0 %3655
    %3659 = vset.pattern.permute.xlu0 0
    %3660 = vperm.xlu0 %3659, %v3404
    %v3661 = vpop.permute.xlu0 %3660
    %3664 = vset.pattern.permute.xlu0 0
    %3665 = vperm.xlu0 %3664, %v3405
    %v3666 = vpop.permute.xlu0 %3665
    %3669 = vset.pattern.permute.xlu0 0
    %3670 = vperm.xlu0 %3669, %v3406
    %v3671 = vpop.permute.xlu0 %3670
    %3674 = vset.pattern.permute.xlu0 0
    %3675 = vperm.xlu0 %3674, %v3407
    %v3676 = vpop.permute.xlu0 %3675
    %3679 = vset.pattern.permute.xlu0 0
    %3680 = vperm.xlu0 %3679, %v3408
    %v3681 = vpop.permute.xlu0 %3680
    %3684 = vset.pattern.permute.xlu0 0
    %3685 = vperm.xlu0 %3684, %v3409
    %v3686 = vpop.permute.xlu0 %3685
    %3689 = vset.pattern.permute.xlu0 0
    %3690 = vperm.xlu0 %3689, %v3410
    %v3691 = vpop.permute.xlu0 %3690
    %3694 = vset.pattern.permute.xlu0 0
    %3695 = vperm.xlu0 %3694, %v3411
    %v3696 = vpop.permute.xlu0 %3695
    %3699 = vset.pattern.permute.xlu0 0
    %3700 = vperm.xlu0 %3699, %v3412
    %v3701 = vpop.permute.xlu0 %3700
    %3704 = vset.pattern.permute.xlu0 0
    %3705 = vperm.xlu0 %3704, %v3413
    %v3706 = vpop.permute.xlu0 %3705
    %3709 = vset.pattern.permute.xlu0 0
    %3710 = vperm.xlu0 %3709, %v3414
    %v3711 = vpop.permute.xlu0 %3710
    %3714 = vset.pattern.permute.xlu0 0
    %3715 = vperm.xlu0 %3714, %v3415
    %v3716 = vpop.permute.xlu0 %3715
    %3719 = vset.pattern.permute.xlu0 0
    %3720 = vperm.xlu0 %3719, %v3416
    %v3721 = vpop.permute.xlu0 %3720
    %3724 = vset.pattern.permute.xlu0 0
    %3725 = vperm.xlu0 %3724, %v3417
    %v3726 = vpop.permute.xlu0 %3725
    %3729 = vset.pattern.permute.xlu0 0
    %3730 = vperm.xlu0 %3729, %v3418
    %v3731 = vpop.permute.xlu0 %3730
    %3734 = vset.pattern.permute.xlu0 0
    %3735 = vperm.xlu0 %3734, %v3419
    %v3736 = vpop.permute.xlu0 %3735
    %3739 = vset.pattern.permute.xlu0 0
    %3740 = vperm.xlu0 %3739, %v3420
    %v3741 = vpop.permute.xlu0 %3740
    %3744 = vset.pattern.permute.xlu0 0
    %3745 = vperm.xlu0 %3744, %v3421
    %v3746 = vpop.permute.xlu0 %3745
    %3749 = vset.pattern.permute.xlu0 0
    %3750 = vperm.xlu0 %3749, %v3422
    %v3751 = vpop.permute.xlu0 %3750
    %3754 = vset.pattern.permute.xlu0 0
    %3755 = vperm.xlu0 %3754, %v3423
    %v3756 = vpop.permute.xlu0 %3755
    %3759 = vset.pattern.permute.xlu0 0
    %3760 = vperm.xlu0 %3759, %v3424
    %v3761 = vpop.permute.xlu0 %3760
    %3764 = vset.pattern.permute.xlu0 0
    %3765 = vperm.xlu0 %3764, %v3425
    %v3766 = vpop.permute.xlu0 %3765
    %v3769 = vlaneseq
    %v3770 = vshrl.u32 %v3769, 7
    %v3771 = vsub.s32 0, %v3770
    %v3772 = vrot.slane %v3427, %v3771
    %v3774 = vmul.f32 %v3431, %v3772
    %v3775 = vmul.f32 %v3436, %v3772
    %v3776 = vmul.f32 %v3441, %v3772
    %v3777 = vmul.f32 %v3446, %v3772
    %v3778 = vmul.f32 %v3451, %v3772
    %v3779 = vmul.f32 %v3456, %v3772
    %v3780 = vmul.f32 %v3461, %v3772
    %v3781 = vmul.f32 %v3466, %v3772
    %v3782 = vmul.f32 %v3471, %v3772
    %v3783 = vmul.f32 %v3476, %v3772
    %v3784 = vmul.f32 %v3481, %v3772
    %v3785 = vmul.f32 %v3486, %v3772
    %v3786 = vmul.f32 %v3491, %v3772
    %v3787 = vmul.f32 %v3496, %v3772
    %v3788 = vmul.f32 %v3501, %v3772
    %v3789 = vmul.f32 %v3506, %v3772
    %v3790 = vmul.f32 %v3511, %v3772
    %v3791 = vmul.f32 %v3516, %v3772
    %v3792 = vmul.f32 %v3521, %v3772
    %v3793 = vmul.f32 %v3526, %v3772
    %v3794 = vmul.f32 %v3531, %v3772
    %v3795 = vmul.f32 %v3536, %v3772
    %v3796 = vmul.f32 %v3541, %v3772
    %v3797 = vmul.f32 %v3546, %v3772
    %v3798 = vmul.f32 %v3551, %v3772
    %v3799 = vmul.f32 %v3556, %v3772
    %v3800 = vmul.f32 %v3561, %v3772
    %v3801 = vmul.f32 %v3566, %v3772
    %v3802 = vmul.f32 %v3571, %v3772
    %v3803 = vmul.f32 %v3576, %v3772
    %v3804 = vmul.f32 %v3581, %v3772
    %v3805 = vmul.f32 %v3586, %v3772
    %v3806 = vmul.f32 %v3591, %v3772
    %v3807 = vmul.f32 %v3596, %v3772
    %v3808 = vmul.f32 %v3601, %v3772
    %v3809 = vmul.f32 %v3606, %v3772
    %v3810 = vmul.f32 %v3611, %v3772
    %v3811 = vmul.f32 %v3616, %v3772
    %v3812 = vmul.f32 %v3621, %v3772
    %v3813 = vmul.f32 %v3626, %v3772
    %v3814 = vmul.f32 %v3631, %v3772
    %v3815 = vmul.f32 %v3636, %v3772
    %v3816 = vmul.f32 %v3641, %v3772
    %v3817 = vmul.f32 %v3646, %v3772
    %v3818 = vmul.f32 %v3651, %v3772
    %v3819 = vmul.f32 %v3656, %v3772
    %v3820 = vmul.f32 %v3661, %v3772
    %v3821 = vmul.f32 %v3666, %v3772
    %v3822 = vmul.f32 %v3671, %v3772
    %v3823 = vmul.f32 %v3676, %v3772
    %v3824 = vmul.f32 %v3681, %v3772
    %v3825 = vmul.f32 %v3686, %v3772
    %v3826 = vmul.f32 %v3691, %v3772
    %v3827 = vmul.f32 %v3696, %v3772
    %v3828 = vmul.f32 %v3701, %v3772
    %v3829 = vmul.f32 %v3706, %v3772
    %v3830 = vmul.f32 %v3711, %v3772
    %v3831 = vmul.f32 %v3716, %v3772
    %v3832 = vmul.f32 %v3721, %v3772
    %v3833 = vmul.f32 %v3726, %v3772
    %v3834 = vmul.f32 %v3731, %v3772
    %v3835 = vmul.f32 %v3736, %v3772
    %v3836 = vmul.f32 %v3741, %v3772
    %v3837 = vmul.f32 %v3746, %v3772
    %v3838 = vmul.f32 %v3751, %v3772
    %v3839 = vmul.f32 %v3756, %v3772
    %v3840 = vmul.f32 %v3761, %v3772
    %v3841 = vmul.f32 %v3766, %v3772
    %v3842 = vadd.f32 %v3290, %v3774
    %v3843 = vadd.f32 %v3291, %v3775
    %v3844 = vadd.f32 %v3292, %v3776
    %v3845 = vadd.f32 %v3293, %v3777
    %v3846 = vadd.f32 %v3294, %v3778
    %v3847 = vadd.f32 %v3295, %v3779
    %v3848 = vadd.f32 %v3296, %v3780
    %v3849 = vadd.f32 %v3297, %v3781
    %v3850 = vadd.f32 %v3298, %v3782
    %v3851 = vadd.f32 %v3299, %v3783
    %v3852 = vadd.f32 %v3300, %v3784
    %v3853 = vadd.f32 %v3301, %v3785
    %v3854 = vadd.f32 %v3302, %v3786
    %v3855 = vadd.f32 %v3303, %v3787
    %v3856 = vadd.f32 %v3304, %v3788
    %v3857 = vadd.f32 %v3305, %v3789
    %v3858 = vadd.f32 %v3306, %v3790
    %v3859 = vadd.f32 %v3307, %v3791
    %v3860 = vadd.f32 %v3308, %v3792
    %v3861 = vadd.f32 %v3309, %v3793
    %v3862 = vadd.f32 %v3310, %v3794
    %v3863 = vadd.f32 %v3311, %v3795
    %v3864 = vadd.f32 %v3312, %v3796
    %v3865 = vadd.f32 %v3313, %v3797
    %v3866 = vadd.f32 %v3314, %v3798
    %v3867 = vadd.f32 %v3315, %v3799
    %v3868 = vadd.f32 %v3316, %v3800
    %v3869 = vadd.f32 %v3317, %v3801
    %v3870 = vadd.f32 %v3318, %v3802
    %v3871 = vadd.f32 %v3319, %v3803
    %v3872 = vadd.f32 %v3320, %v3804
    %v3873 = vadd.f32 %v3321, %v3805
    %v3874 = vadd.f32 %v3322, %v3806
    %v3875 = vadd.f32 %v3323, %v3807
    %v3876 = vadd.f32 %v3324, %v3808
    %v3877 = vadd.f32 %v3325, %v3809
    %v3878 = vadd.f32 %v3326, %v3810
    %v3879 = vadd.f32 %v3327, %v3811
    %v3880 = vadd.f32 %v3328, %v3812
    %v3881 = vadd.f32 %v3329, %v3813
    %v3882 = vadd.f32 %v3330, %v3814
    %v3883 = vadd.f32 %v3331, %v3815
    %v3884 = vadd.f32 %v3332, %v3816
    %v3885 = vadd.f32 %v3333, %v3817
    %v3886 = vadd.f32 %v3334, %v3818
    %v3887 = vadd.f32 %v3335, %v3819
    %v3888 = vadd.f32 %v3336, %v3820
    %v3889 = vadd.f32 %v3337, %v3821
    %v3890 = vadd.f32 %v3338, %v3822
    %v3891 = vadd.f32 %v3339, %v3823
    %v3892 = vadd.f32 %v3340, %v3824
    %v3893 = vadd.f32 %v3341, %v3825
    %v3894 = vadd.f32 %v3342, %v3826
    %v3895 = vadd.f32 %v3343, %v3827
    %v3896 = vadd.f32 %v3344, %v3828
    %v3897 = vadd.f32 %v3345, %v3829
    %v3898 = vadd.f32 %v3346, %v3830
    %v3899 = vadd.f32 %v3347, %v3831
    %v3900 = vadd.f32 %v3348, %v3832
    %v3901 = vadd.f32 %v3349, %v3833
    %v3902 = vadd.f32 %v3350, %v3834
    %v3903 = vadd.f32 %v3351, %v3835
    %v3904 = vadd.f32 %v3352, %v3836
    %v3905 = vadd.f32 %v3353, %v3837
    %v3906 = vadd.f32 %v3354, %v3838
    %v3907 = vadd.f32 %v3355, %v3839
    %v3908 = vadd.f32 %v3356, %v3840
    %v3909 = vadd.f32 %v3357, %v3841
    %v3910 = vld [vmem:[%s0 + $0x78] sm:$0xff]
    %v3911 = vld [vmem:[%s0 + $0x80] sm:$0xff]
    %v3912 = vld [vmem:[%s0 + $0x88] sm:$0xff]
    %v3913 = vld [vmem:[%s0 + $0x90] sm:$0xff]
    %v3914 = vld [vmem:[%s0 + $0x98] sm:$0xff]
    %v3915 = vld [vmem:[%s0 + $0xa0] sm:$0xff]
    %v3916 = vld [vmem:[%s0 + $0xa8] sm:$0xff]
    %v3917 = vld [vmem:[%s0 + $0xb0] sm:$0xff]
    %v3918 = vld [vmem:[%s0 + $0xb8] sm:$0xff]
    %v3919 = vld [vmem:[%s0 + $0xc0] sm:$0xff]
    %v3920 = vld [vmem:[%s0 + $0xc8] sm:$0xff]
    %v3921 = vld [vmem:[%s0 + $0xd0] sm:$0xff]
    %v3922 = vld [vmem:[%s0 + $0xd8] sm:$0xff]
    %v3923 = vld [vmem:[%s0 + $0xe0] sm:$0xff]
    %v3924 = vld [vmem:[%s0 + $0xe8] sm:$0xff]
    %v3925 = vld [vmem:[%s0 + $0xf0] sm:$0xff]
    %v3926 = vld [vmem:[%s0 + $0xf8] sm:$0xff]
    %v3927 = vld [vmem:[%s0 + $0x100] sm:$0xff]
    %v3928 = vld [vmem:[%s0 + $0x108] sm:$0xff]
    %v3929 = vld [vmem:[%s0 + $0x110] sm:$0xff]
    %v3930 = vld [vmem:[%s0 + $0x118] sm:$0xff]
    %v3931 = vld [vmem:[%s0 + $0x120] sm:$0xff]
    %v3932 = vld [vmem:[%s0 + $0x128] sm:$0xff]
    %v3933 = vld [vmem:[%s0 + $0x130] sm:$0xff]
    %v3934 = vld [vmem:[%s0 + $0x138] sm:$0xff]
    %v3935 = vld [vmem:[%s0 + $0x140] sm:$0xff]
    %v3936 = vld [vmem:[%s0 + $0x148] sm:$0xff]
    %v3937 = vld [vmem:[%s0 + $0x150] sm:$0xff]
    %v3938 = vld [vmem:[%s0 + $0x158] sm:$0xff]
    %v3939 = vld [vmem:[%s0 + $0x160] sm:$0xff]
    %v3940 = vld [vmem:[%s0 + $0x168] sm:$0xff]
    %v3941 = vld [vmem:[%s0 + $0x170] sm:$0xff]
    %v3942 = vld [vmem:[%s0 + $0x178] sm:$0xff]
    %v3943 = vld [vmem:[%s0 + $0x180] sm:$0xff]
    %v3944 = vld [vmem:[%s0 + $0x188] sm:$0xff]
    %v3945 = vld [vmem:[%s0 + $0x190] sm:$0xff]
    %v3946 = vld [vmem:[%s0 + $0x198] sm:$0xff]
    %v3947 = vld [vmem:[%s0 + $0x1a0] sm:$0xff]
    %v3948 = vld [vmem:[%s0 + $0x1a8] sm:$0xff]
    %v3949 = vld [vmem:[%s0 + $0x1b0] sm:$0xff]
    %v3950 = vld [vmem:[%s0 + $0x1b8] sm:$0xff]
    %v3951 = vld [vmem:[%s0 + $0x1c0] sm:$0xff]
    %v3952 = vld [vmem:[%s0 + $0x1c8] sm:$0xff]
    %v3953 = vld [vmem:[%s0 + $0x1d0] sm:$0xff]
    %v3954 = vld [vmem:[%s0 + $0x1d8] sm:$0xff]
    %v3955 = vld [vmem:[%s0 + $0x1e0] sm:$0xff]
    %v3956 = vld [vmem:[%s0 + $0x1e8] sm:$0xff]
    %v3957 = vld [vmem:[%s0 + $0x1f0] sm:$0xff]
    %v3958 = vld [vmem:[%s0 + $0x1f8] sm:$0xff]
    %v3959 = vld [vmem:[%s0 + $0x200] sm:$0xff]
    %v3960 = vld [vmem:[%s0 + $0x208] sm:$0xff]
    %v3961 = vld [vmem:[%s0 + $0x210] sm:$0xff]
    %v3962 = vld [vmem:[%s0 + $0x218] sm:$0xff]
    %v3963 = vld [vmem:[%s0 + $0x220] sm:$0xff]
    %v3964 = vld [vmem:[%s0 + $0x228] sm:$0xff]
    %v3965 = vld [vmem:[%s0 + $0x230] sm:$0xff]
    %v3966 = vld [vmem:[%s0 + $0x238] sm:$0xff]
    %v3967 = vld [vmem:[%s0 + $0x240] sm:$0xff]
    %v3968 = vld [vmem:[%s0 + $0x248] sm:$0xff]
    %v3969 = vld [vmem:[%s0 + $0x250] sm:$0xff]
    %v3970 = vld [vmem:[%s0 + $0x258] sm:$0xff]
    %v3971 = vld [vmem:[%s0 + $0x260] sm:$0xff]
    %v3972 = vld [vmem:[%s0 + $0x268] sm:$0xff]
    %v3973 = vld [vmem:[%s0 + $0x270] sm:$0xff]
    %v3974 = vld [vmem:[%s0 + $0x278] sm:$0xff]
    %v3975 = vld [vmem:[%s0 + $0x280] sm:$0xff]
    %v3976 = vld [vmem:[%s0 + $0x288] sm:$0xff]
    %v3977 = vld [vmem:[%s0 + $0x290] sm:$0xff]
    %s3978 = scalar_lea.vmem %s1, 7
    %v3979 = vld [vmem:[%s3978] sm:$0x1]
    %3981 = vset.pattern.permute.xlu0 0
    %3982 = vperm.xlu0 %3981, %v3910
    %v3983 = vpop.permute.xlu0 %3982
    %3986 = vset.pattern.permute.xlu0 0
    %3987 = vperm.xlu0 %3986, %v3911
    %v3988 = vpop.permute.xlu0 %3987
    %3991 = vset.pattern.permute.xlu0 0
    %3992 = vperm.xlu0 %3991, %v3912
    %v3993 = vpop.permute.xlu0 %3992
    %3996 = vset.pattern.permute.xlu0 0
    %3997 = vperm.xlu0 %3996, %v3913
    %v3998 = vpop.permute.xlu0 %3997
    %4001 = vset.pattern.permute.xlu0 0
    %4002 = vperm.xlu0 %4001, %v3914
    %v4003 = vpop.permute.xlu0 %4002
    %4006 = vset.pattern.permute.xlu0 0
    %4007 = vperm.xlu0 %4006, %v3915
    %v4008 = vpop.permute.xlu0 %4007
    %4011 = vset.pattern.permute.xlu0 0
    %4012 = vperm.xlu0 %4011, %v3916
    %v4013 = vpop.permute.xlu0 %4012
    %4016 = vset.pattern.permute.xlu0 0
    %4017 = vperm.xlu0 %4016, %v3917
    %v4018 = vpop.permute.xlu0 %4017
    %4021 = vset.pattern.permute.xlu0 0
    %4022 = vperm.xlu0 %4021, %v3918
    %v4023 = vpop.permute.xlu0 %4022
    %4026 = vset.pattern.permute.xlu0 0
    %4027 = vperm.xlu0 %4026, %v3919
    %v4028 = vpop.permute.xlu0 %4027
    %4031 = vset.pattern.permute.xlu0 0
    %4032 = vperm.xlu0 %4031, %v3920
    %v4033 = vpop.permute.xlu0 %4032
    %4036 = vset.pattern.permute.xlu0 0
    %4037 = vperm.xlu0 %4036, %v3921
    %v4038 = vpop.permute.xlu0 %4037
    %4041 = vset.pattern.permute.xlu0 0
    %4042 = vperm.xlu0 %4041, %v3922
    %v4043 = vpop.permute.xlu0 %4042
    %4046 = vset.pattern.permute.xlu0 0
    %4047 = vperm.xlu0 %4046, %v3923
    %v4048 = vpop.permute.xlu0 %4047
    %4051 = vset.pattern.permute.xlu0 0
    %4052 = vperm.xlu0 %4051, %v3924
    %v4053 = vpop.permute.xlu0 %4052
    %4056 = vset.pattern.permute.xlu0 0
    %4057 = vperm.xlu0 %4056, %v3925
    %v4058 = vpop.permute.xlu0 %4057
    %4061 = vset.pattern.permute.xlu0 0
    %4062 = vperm.xlu0 %4061, %v3926
    %v4063 = vpop.permute.xlu0 %4062
    %4066 = vset.pattern.permute.xlu0 0
    %4067 = vperm.xlu0 %4066, %v3927
    %v4068 = vpop.permute.xlu0 %4067
    %4071 = vset.pattern.permute.xlu0 0
    %4072 = vperm.xlu0 %4071, %v3928
    %v4073 = vpop.permute.xlu0 %4072
    %4076 = vset.pattern.permute.xlu0 0
    %4077 = vperm.xlu0 %4076, %v3929
    %v4078 = vpop.permute.xlu0 %4077
    %4081 = vset.pattern.permute.xlu0 0
    %4082 = vperm.xlu0 %4081, %v3930
    %v4083 = vpop.permute.xlu0 %4082
    %4086 = vset.pattern.permute.xlu0 0
    %4087 = vperm.xlu0 %4086, %v3931
    %v4088 = vpop.permute.xlu0 %4087
    %4091 = vset.pattern.permute.xlu0 0
    %4092 = vperm.xlu0 %4091, %v3932
    %v4093 = vpop.permute.xlu0 %4092
    %4096 = vset.pattern.permute.xlu0 0
    %4097 = vperm.xlu0 %4096, %v3933
    %v4098 = vpop.permute.xlu0 %4097
    %4101 = vset.pattern.permute.xlu0 0
    %4102 = vperm.xlu0 %4101, %v3934
    %v4103 = vpop.permute.xlu0 %4102
    %4106 = vset.pattern.permute.xlu0 0
    %4107 = vperm.xlu0 %4106, %v3935
    %v4108 = vpop.permute.xlu0 %4107
    %4111 = vset.pattern.permute.xlu0 0
    %4112 = vperm.xlu0 %4111, %v3936
    %v4113 = vpop.permute.xlu0 %4112
    %4116 = vset.pattern.permute.xlu0 0
    %4117 = vperm.xlu0 %4116, %v3937
    %v4118 = vpop.permute.xlu0 %4117
    %4121 = vset.pattern.permute.xlu0 0
    %4122 = vperm.xlu0 %4121, %v3938
    %v4123 = vpop.permute.xlu0 %4122
    %4126 = vset.pattern.permute.xlu0 0
    %4127 = vperm.xlu0 %4126, %v3939
    %v4128 = vpop.permute.xlu0 %4127
    %4131 = vset.pattern.permute.xlu0 0
    %4132 = vperm.xlu0 %4131, %v3940
    %v4133 = vpop.permute.xlu0 %4132
    %4136 = vset.pattern.permute.xlu0 0
    %4137 = vperm.xlu0 %4136, %v3941
    %v4138 = vpop.permute.xlu0 %4137
    %4141 = vset.pattern.permute.xlu0 0
    %4142 = vperm.xlu0 %4141, %v3942
    %v4143 = vpop.permute.xlu0 %4142
    %4146 = vset.pattern.permute.xlu0 0
    %4147 = vperm.xlu0 %4146, %v3943
    %v4148 = vpop.permute.xlu0 %4147
    %4151 = vset.pattern.permute.xlu0 0
    %4152 = vperm.xlu0 %4151, %v3944
    %v4153 = vpop.permute.xlu0 %4152
    %4156 = vset.pattern.permute.xlu0 0
    %4157 = vperm.xlu0 %4156, %v3945
    %v4158 = vpop.permute.xlu0 %4157
    %4161 = vset.pattern.permute.xlu0 0
    %4162 = vperm.xlu0 %4161, %v3946
    %v4163 = vpop.permute.xlu0 %4162
    %4166 = vset.pattern.permute.xlu0 0
    %4167 = vperm.xlu0 %4166, %v3947
    %v4168 = vpop.permute.xlu0 %4167
    %4171 = vset.pattern.permute.xlu0 0
    %4172 = vperm.xlu0 %4171, %v3948
    %v4173 = vpop.permute.xlu0 %4172
    %4176 = vset.pattern.permute.xlu0 0
    %4177 = vperm.xlu0 %4176, %v3949
    %v4178 = vpop.permute.xlu0 %4177
    %4181 = vset.pattern.permute.xlu0 0
    %4182 = vperm.xlu0 %4181, %v3950
    %v4183 = vpop.permute.xlu0 %4182
    %4186 = vset.pattern.permute.xlu0 0
    %4187 = vperm.xlu0 %4186, %v3951
    %v4188 = vpop.permute.xlu0 %4187
    %4191 = vset.pattern.permute.xlu0 0
    %4192 = vperm.xlu0 %4191, %v3952
    %v4193 = vpop.permute.xlu0 %4192
    %4196 = vset.pattern.permute.xlu0 0
    %4197 = vperm.xlu0 %4196, %v3953
    %v4198 = vpop.permute.xlu0 %4197
    %4201 = vset.pattern.permute.xlu0 0
    %4202 = vperm.xlu0 %4201, %v3954
    %v4203 = vpop.permute.xlu0 %4202
    %4206 = vset.pattern.permute.xlu0 0
    %4207 = vperm.xlu0 %4206, %v3955
    %v4208 = vpop.permute.xlu0 %4207
    %4211 = vset.pattern.permute.xlu0 0
    %4212 = vperm.xlu0 %4211, %v3956
    %v4213 = vpop.permute.xlu0 %4212
    %4216 = vset.pattern.permute.xlu0 0
    %4217 = vperm.xlu0 %4216, %v3957
    %v4218 = vpop.permute.xlu0 %4217
    %4221 = vset.pattern.permute.xlu0 0
    %4222 = vperm.xlu0 %4221, %v3958
    %v4223 = vpop.permute.xlu0 %4222
    %4226 = vset.pattern.permute.xlu0 0
    %4227 = vperm.xlu0 %4226, %v3959
    %v4228 = vpop.permute.xlu0 %4227
    %4231 = vset.pattern.permute.xlu0 0
    %4232 = vperm.xlu0 %4231, %v3960
    %v4233 = vpop.permute.xlu0 %4232
    %4236 = vset.pattern.permute.xlu0 0
    %4237 = vperm.xlu0 %4236, %v3961
    %v4238 = vpop.permute.xlu0 %4237
    %4241 = vset.pattern.permute.xlu0 0
    %4242 = vperm.xlu0 %4241, %v3962
    %v4243 = vpop.permute.xlu0 %4242
    %4246 = vset.pattern.permute.xlu0 0
    %4247 = vperm.xlu0 %4246, %v3963
    %v4248 = vpop.permute.xlu0 %4247
    %4251 = vset.pattern.permute.xlu0 0
    %4252 = vperm.xlu0 %4251, %v3964
    %v4253 = vpop.permute.xlu0 %4252
    %4256 = vset.pattern.permute.xlu0 0
    %4257 = vperm.xlu0 %4256, %v3965
    %v4258 = vpop.permute.xlu0 %4257
    %4261 = vset.pattern.permute.xlu0 0
    %4262 = vperm.xlu0 %4261, %v3966
    %v4263 = vpop.permute.xlu0 %4262
    %4266 = vset.pattern.permute.xlu0 0
    %4267 = vperm.xlu0 %4266, %v3967
    %v4268 = vpop.permute.xlu0 %4267
    %4271 = vset.pattern.permute.xlu0 0
    %4272 = vperm.xlu0 %4271, %v3968
    %v4273 = vpop.permute.xlu0 %4272
    %4276 = vset.pattern.permute.xlu0 0
    %4277 = vperm.xlu0 %4276, %v3969
    %v4278 = vpop.permute.xlu0 %4277
    %4281 = vset.pattern.permute.xlu0 0
    %4282 = vperm.xlu0 %4281, %v3970
    %v4283 = vpop.permute.xlu0 %4282
    %4286 = vset.pattern.permute.xlu0 0
    %4287 = vperm.xlu0 %4286, %v3971
    %v4288 = vpop.permute.xlu0 %4287
    %4291 = vset.pattern.permute.xlu0 0
    %4292 = vperm.xlu0 %4291, %v3972
    %v4293 = vpop.permute.xlu0 %4292
    %4296 = vset.pattern.permute.xlu0 0
    %4297 = vperm.xlu0 %4296, %v3973
    %v4298 = vpop.permute.xlu0 %4297
    %4301 = vset.pattern.permute.xlu0 0
    %4302 = vperm.xlu0 %4301, %v3974
    %v4303 = vpop.permute.xlu0 %4302
    %4306 = vset.pattern.permute.xlu0 0
    %4307 = vperm.xlu0 %4306, %v3975
    %v4308 = vpop.permute.xlu0 %4307
    %4311 = vset.pattern.permute.xlu0 0
    %4312 = vperm.xlu0 %4311, %v3976
    %v4313 = vpop.permute.xlu0 %4312
    %4316 = vset.pattern.permute.xlu0 0
    %4317 = vperm.xlu0 %4316, %v3977
    %v4318 = vpop.permute.xlu0 %4317
    %v4321 = vlaneseq
    %v4322 = vshrl.u32 %v4321, 7
    %v4323 = vsub.s32 0, %v4322
    %v4324 = vrot.slane %v3979, %v4323
    %v4326 = vmul.f32 %v3983, %v4324
    %v4327 = vmul.f32 %v3988, %v4324
    %v4328 = vmul.f32 %v3993, %v4324
    %v4329 = vmul.f32 %v3998, %v4324
    %v4330 = vmul.f32 %v4003, %v4324
    %v4331 = vmul.f32 %v4008, %v4324
    %v4332 = vmul.f32 %v4013, %v4324
    %v4333 = vmul.f32 %v4018, %v4324
    %v4334 = vmul.f32 %v4023, %v4324
    %v4335 = vmul.f32 %v4028, %v4324
    %v4336 = vmul.f32 %v4033, %v4324
    %v4337 = vmul.f32 %v4038, %v4324
    %v4338 = vmul.f32 %v4043, %v4324
    %v4339 = vmul.f32 %v4048, %v4324
    %v4340 = vmul.f32 %v4053, %v4324
    %v4341 = vmul.f32 %v4058, %v4324
    %v4342 = vmul.f32 %v4063, %v4324
    %v4343 = vmul.f32 %v4068, %v4324
    %v4344 = vmul.f32 %v4073, %v4324
    %v4345 = vmul.f32 %v4078, %v4324
    %v4346 = vmul.f32 %v4083, %v4324
    %v4347 = vmul.f32 %v4088, %v4324
    %v4348 = vmul.f32 %v4093, %v4324
    %v4349 = vmul.f32 %v4098, %v4324
    %v4350 = vmul.f32 %v4103, %v4324
    %v4351 = vmul.f32 %v4108, %v4324
    %v4352 = vmul.f32 %v4113, %v4324
    %v4353 = vmul.f32 %v4118, %v4324
    %v4354 = vmul.f32 %v4123, %v4324
    %v4355 = vmul.f32 %v4128, %v4324
    %v4356 = vmul.f32 %v4133, %v4324
    %v4357 = vmul.f32 %v4138, %v4324
    %v4358 = vmul.f32 %v4143, %v4324
    %v4359 = vmul.f32 %v4148, %v4324
    %v4360 = vmul.f32 %v4153, %v4324
    %v4361 = vmul.f32 %v4158, %v4324
    %v4362 = vmul.f32 %v4163, %v4324
    %v4363 = vmul.f32 %v4168, %v4324
    %v4364 = vmul.f32 %v4173, %v4324
    %v4365 = vmul.f32 %v4178, %v4324
    %v4366 = vmul.f32 %v4183, %v4324
    %v4367 = vmul.f32 %v4188, %v4324
    %v4368 = vmul.f32 %v4193, %v4324
    %v4369 = vmul.f32 %v4198, %v4324
    %v4370 = vmul.f32 %v4203, %v4324
    %v4371 = vmul.f32 %v4208, %v4324
    %v4372 = vmul.f32 %v4213, %v4324
    %v4373 = vmul.f32 %v4218, %v4324
    %v4374 = vmul.f32 %v4223, %v4324
    %v4375 = vmul.f32 %v4228, %v4324
    %v4376 = vmul.f32 %v4233, %v4324
    %v4377 = vmul.f32 %v4238, %v4324
    %v4378 = vmul.f32 %v4243, %v4324
    %v4379 = vmul.f32 %v4248, %v4324
    %v4380 = vmul.f32 %v4253, %v4324
    %v4381 = vmul.f32 %v4258, %v4324
    %v4382 = vmul.f32 %v4263, %v4324
    %v4383 = vmul.f32 %v4268, %v4324
    %v4384 = vmul.f32 %v4273, %v4324
    %v4385 = vmul.f32 %v4278, %v4324
    %v4386 = vmul.f32 %v4283, %v4324
    %v4387 = vmul.f32 %v4288, %v4324
    %v4388 = vmul.f32 %v4293, %v4324
    %v4389 = vmul.f32 %v4298, %v4324
    %v4390 = vmul.f32 %v4303, %v4324
    %v4391 = vmul.f32 %v4308, %v4324
    %v4392 = vmul.f32 %v4313, %v4324
    %v4393 = vmul.f32 %v4318, %v4324
    %v4394 = vadd.f32 %v3842, %v4326
    %v4395 = vadd.f32 %v3843, %v4327
    %v4396 = vadd.f32 %v3844, %v4328
    %v4397 = vadd.f32 %v3845, %v4329
    %v4398 = vadd.f32 %v3846, %v4330
    %v4399 = vadd.f32 %v3847, %v4331
    %v4400 = vadd.f32 %v3848, %v4332
    %v4401 = vadd.f32 %v3849, %v4333
    %v4402 = vadd.f32 %v3850, %v4334
    %v4403 = vadd.f32 %v3851, %v4335
    %v4404 = vadd.f32 %v3852, %v4336
    %v4405 = vadd.f32 %v3853, %v4337
    %v4406 = vadd.f32 %v3854, %v4338
    %v4407 = vadd.f32 %v3855, %v4339
    %v4408 = vadd.f32 %v3856, %v4340
    %v4409 = vadd.f32 %v3857, %v4341
    %v4410 = vadd.f32 %v3858, %v4342
    %v4411 = vadd.f32 %v3859, %v4343
    %v4412 = vadd.f32 %v3860, %v4344
    %v4413 = vadd.f32 %v3861, %v4345
    %v4414 = vadd.f32 %v3862, %v4346
    %v4415 = vadd.f32 %v3863, %v4347
    %v4416 = vadd.f32 %v3864, %v4348
    %v4417 = vadd.f32 %v3865, %v4349
    %v4418 = vadd.f32 %v3866, %v4350
    %v4419 = vadd.f32 %v3867, %v4351
    %v4420 = vadd.f32 %v3868, %v4352
    %v4421 = vadd.f32 %v3869, %v4353
    %v4422 = vadd.f32 %v3870, %v4354
    %v4423 = vadd.f32 %v3871, %v4355
    %v4424 = vadd.f32 %v3872, %v4356
    %v4425 = vadd.f32 %v3873, %v4357
    %v4426 = vadd.f32 %v3874, %v4358
    %v4427 = vadd.f32 %v3875, %v4359
    %v4428 = vadd.f32 %v3876, %v4360
    %v4429 = vadd.f32 %v3877, %v4361
    %v4430 = vadd.f32 %v3878, %v4362
    %v4431 = vadd.f32 %v3879, %v4363
    %v4432 = vadd.f32 %v3880, %v4364
    %v4433 = vadd.f32 %v3881, %v4365
    %v4434 = vadd.f32 %v3882, %v4366
    %v4435 = vadd.f32 %v3883, %v4367
    %v4436 = vadd.f32 %v3884, %v4368
    %v4437 = vadd.f32 %v3885, %v4369
    %v4438 = vadd.f32 %v3886, %v4370
    %v4439 = vadd.f32 %v3887, %v4371
    %v4440 = vadd.f32 %v3888, %v4372
    %v4441 = vadd.f32 %v3889, %v4373
    %v4442 = vadd.f32 %v3890, %v4374
    %v4443 = vadd.f32 %v3891, %v4375
    %v4444 = vadd.f32 %v3892, %v4376
    %v4445 = vadd.f32 %v3893, %v4377
    %v4446 = vadd.f32 %v3894, %v4378
    %v4447 = vadd.f32 %v3895, %v4379
    %v4448 = vadd.f32 %v3896, %v4380
    %v4449 = vadd.f32 %v3897, %v4381
    %v4450 = vadd.f32 %v3898, %v4382
    %v4451 = vadd.f32 %v3899, %v4383
    %v4452 = vadd.f32 %v3900, %v4384
    %v4453 = vadd.f32 %v3901, %v4385
    %v4454 = vadd.f32 %v3902, %v4386
    %v4455 = vadd.f32 %v3903, %v4387
    %v4456 = vadd.f32 %v3904, %v4388
    %v4457 = vadd.f32 %v3905, %v4389
    %v4458 = vadd.f32 %v3906, %v4390
    %v4459 = vadd.f32 %v3907, %v4391
    %v4460 = vadd.f32 %v3908, %v4392
    %v4461 = vadd.f32 %v3909, %v4393
    %v4462 = vld [vmem:[%s0 + $0x80] sm:$0xff]
    %v4463 = vld [vmem:[%s0 + $0x88] sm:$0xff]
    %v4464 = vld [vmem:[%s0 + $0x90] sm:$0xff]
    %v4465 = vld [vmem:[%s0 + $0x98] sm:$0xff]
    %v4466 = vld [vmem:[%s0 + $0xa0] sm:$0xff]
    %v4467 = vld [vmem:[%s0 + $0xa8] sm:$0xff]
    %v4468 = vld [vmem:[%s0 + $0xb0] sm:$0xff]
    %v4469 = vld [vmem:[%s0 + $0xb8] sm:$0xff]
    %v4470 = vld [vmem:[%s0 + $0xc0] sm:$0xff]
    %v4471 = vld [vmem:[%s0 + $0xc8] sm:$0xff]
    %v4472 = vld [vmem:[%s0 + $0xd0] sm:$0xff]
    %v4473 = vld [vmem:[%s0 + $0xd8] sm:$0xff]
    %v4474 = vld [vmem:[%s0 + $0xe0] sm:$0xff]
    %v4475 = vld [vmem:[%s0 + $0xe8] sm:$0xff]
    %v4476 = vld [vmem:[%s0 + $0xf0] sm:$0xff]
    %v4477 = vld [vmem:[%s0 + $0xf8] sm:$0xff]
    %v4478 = vld [vmem:[%s0 + $0x100] sm:$0xff]
    %v4479 = vld [vmem:[%s0 + $0x108] sm:$0xff]
    %v4480 = vld [vmem:[%s0 + $0x110] sm:$0xff]
    %v4481 = vld [vmem:[%s0 + $0x118] sm:$0xff]
    %v4482 = vld [vmem:[%s0 + $0x120] sm:$0xff]
    %v4483 = vld [vmem:[%s0 + $0x128] sm:$0xff]
    %v4484 = vld [vmem:[%s0 + $0x130] sm:$0xff]
    %v4485 = vld [vmem:[%s0 + $0x138] sm:$0xff]
    %v4486 = vld [vmem:[%s0 + $0x140] sm:$0xff]
    %v4487 = vld [vmem:[%s0 + $0x148] sm:$0xff]
    %v4488 = vld [vmem:[%s0 + $0x150] sm:$0xff]
    %v4489 = vld [vmem:[%s0 + $0x158] sm:$0xff]
    %v4490 = vld [vmem:[%s0 + $0x160] sm:$0xff]
    %v4491 = vld [vmem:[%s0 + $0x168] sm:$0xff]
    %v4492 = vld [vmem:[%s0 + $0x170] sm:$0xff]
    %v4493 = vld [vmem:[%s0 + $0x178] sm:$0xff]
    %v4494 = vld [vmem:[%s0 + $0x180] sm:$0xff]
    %v4495 = vld [vmem:[%s0 + $0x188] sm:$0xff]
    %v4496 = vld [vmem:[%s0 + $0x190] sm:$0xff]
    %v4497 = vld [vmem:[%s0 + $0x198] sm:$0xff]
    %v4498 = vld [vmem:[%s0 + $0x1a0] sm:$0xff]
    %v4499 = vld [vmem:[%s0 + $0x1a8] sm:$0xff]
    %v4500 = vld [vmem:[%s0 + $0x1b0] sm:$0xff]
    %v4501 = vld [vmem:[%s0 + $0x1b8] sm:$0xff]
    %v4502 = vld [vmem:[%s0 + $0x1c0] sm:$0xff]
    %v4503 = vld [vmem:[%s0 + $0x1c8] sm:$0xff]
    %v4504 = vld [vmem:[%s0 + $0x1d0] sm:$0xff]
    %v4505 = vld [vmem:[%s0 + $0x1d8] sm:$0xff]
    %v4506 = vld [vmem:[%s0 + $0x1e0] sm:$0xff]
    %v4507 = vld [vmem:[%s0 + $0x1e8] sm:$0xff]
    %v4508 = vld [vmem:[%s0 + $0x1f0] sm:$0xff]
    %v4509 = vld [vmem:[%s0 + $0x1f8] sm:$0xff]
    %v4510 = vld [vmem:[%s0 + $0x200] sm:$0xff]
    %v4511 = vld [vmem:[%s0 + $0x208] sm:$0xff]
    %v4512 = vld [vmem:[%s0 + $0x210] sm:$0xff]
    %v4513 = vld [vmem:[%s0 + $0x218] sm:$0xff]
    %v4514 = vld [vmem:[%s0 + $0x220] sm:$0xff]
    %v4515 = vld [vmem:[%s0 + $0x228] sm:$0xff]
    %v4516 = vld [vmem:[%s0 + $0x230] sm:$0xff]
    %v4517 = vld [vmem:[%s0 + $0x238] sm:$0xff]
    %v4518 = vld [vmem:[%s0 + $0x240] sm:$0xff]
    %v4519 = vld [vmem:[%s0 + $0x248] sm:$0xff]
    %v4520 = vld [vmem:[%s0 + $0x250] sm:$0xff]
    %v4521 = vld [vmem:[%s0 + $0x258] sm:$0xff]
    %v4522 = vld [vmem:[%s0 + $0x260] sm:$0xff]
    %v4523 = vld [vmem:[%s0 + $0x268] sm:$0xff]
    %v4524 = vld [vmem:[%s0 + $0x270] sm:$0xff]
    %v4525 = vld [vmem:[%s0 + $0x278] sm:$0xff]
    %v4526 = vld [vmem:[%s0 + $0x280] sm:$0xff]
    %v4527 = vld [vmem:[%s0 + $0x288] sm:$0xff]
    %v4528 = vld [vmem:[%s0 + $0x290] sm:$0xff]
    %v4529 = vld [vmem:[%s0 + $0x298] sm:$0xff]
    %s4530 = scalar_lea.vmem %s1, 8
    %v4531 = vld [vmem:[%s4530] sm:$0x1]
    %4533 = vset.pattern.permute.xlu0 0
    %4534 = vperm.xlu0 %4533, %v4462
    %v4535 = vpop.permute.xlu0 %4534
    %4538 = vset.pattern.permute.xlu0 0
    %4539 = vperm.xlu0 %4538, %v4463
    %v4540 = vpop.permute.xlu0 %4539
    %4543 = vset.pattern.permute.xlu0 0
    %4544 = vperm.xlu0 %4543, %v4464
    %v4545 = vpop.permute.xlu0 %4544
    %4548 = vset.pattern.permute.xlu0 0
    %4549 = vperm.xlu0 %4548, %v4465
    %v4550 = vpop.permute.xlu0 %4549
    %4553 = vset.pattern.permute.xlu0 0
    %4554 = vperm.xlu0 %4553, %v4466
    %v4555 = vpop.permute.xlu0 %4554
    %4558 = vset.pattern.permute.xlu0 0
    %4559 = vperm.xlu0 %4558, %v4467
    %v4560 = vpop.permute.xlu0 %4559
    %4563 = vset.pattern.permute.xlu0 0
    %4564 = vperm.xlu0 %4563, %v4468
    %v4565 = vpop.permute.xlu0 %4564
    %4568 = vset.pattern.permute.xlu0 0
    %4569 = vperm.xlu0 %4568, %v4469
    %v4570 = vpop.permute.xlu0 %4569
    %4573 = vset.pattern.permute.xlu0 0
    %4574 = vperm.xlu0 %4573, %v4470
    %v4575 = vpop.permute.xlu0 %4574
    %4578 = vset.pattern.permute.xlu0 0
    %4579 = vperm.xlu0 %4578, %v4471
    %v4580 = vpop.permute.xlu0 %4579
    %4583 = vset.pattern.permute.xlu0 0
    %4584 = vperm.xlu0 %4583, %v4472
    %v4585 = vpop.permute.xlu0 %4584
    %4588 = vset.pattern.permute.xlu0 0
    %4589 = vperm.xlu0 %4588, %v4473
    %v4590 = vpop.permute.xlu0 %4589
    %4593 = vset.pattern.permute.xlu0 0
    %4594 = vperm.xlu0 %4593, %v4474
    %v4595 = vpop.permute.xlu0 %4594
    %4598 = vset.pattern.permute.xlu0 0
    %4599 = vperm.xlu0 %4598, %v4475
    %v4600 = vpop.permute.xlu0 %4599
    %4603 = vset.pattern.permute.xlu0 0
    %4604 = vperm.xlu0 %4603, %v4476
    %v4605 = vpop.permute.xlu0 %4604
    %4608 = vset.pattern.permute.xlu0 0
    %4609 = vperm.xlu0 %4608, %v4477
    %v4610 = vpop.permute.xlu0 %4609
    %4613 = vset.pattern.permute.xlu0 0
    %4614 = vperm.xlu0 %4613, %v4478
    %v4615 = vpop.permute.xlu0 %4614
    %4618 = vset.pattern.permute.xlu0 0
    %4619 = vperm.xlu0 %4618, %v4479
    %v4620 = vpop.permute.xlu0 %4619
    %4623 = vset.pattern.permute.xlu0 0
    %4624 = vperm.xlu0 %4623, %v4480
    %v4625 = vpop.permute.xlu0 %4624
    %4628 = vset.pattern.permute.xlu0 0
    %4629 = vperm.xlu0 %4628, %v4481
    %v4630 = vpop.permute.xlu0 %4629
    %4633 = vset.pattern.permute.xlu0 0
    %4634 = vperm.xlu0 %4633, %v4482
    %v4635 = vpop.permute.xlu0 %4634
    %4638 = vset.pattern.permute.xlu0 0
    %4639 = vperm.xlu0 %4638, %v4483
    %v4640 = vpop.permute.xlu0 %4639
    %4643 = vset.pattern.permute.xlu0 0
    %4644 = vperm.xlu0 %4643, %v4484
    %v4645 = vpop.permute.xlu0 %4644
    %4648 = vset.pattern.permute.xlu0 0
    %4649 = vperm.xlu0 %4648, %v4485
    %v4650 = vpop.permute.xlu0 %4649
    %4653 = vset.pattern.permute.xlu0 0
    %4654 = vperm.xlu0 %4653, %v4486
    %v4655 = vpop.permute.xlu0 %4654
    %4658 = vset.pattern.permute.xlu0 0
    %4659 = vperm.xlu0 %4658, %v4487
    %v4660 = vpop.permute.xlu0 %4659
    %4663 = vset.pattern.permute.xlu0 0
    %4664 = vperm.xlu0 %4663, %v4488
    %v4665 = vpop.permute.xlu0 %4664
    %4668 = vset.pattern.permute.xlu0 0
    %4669 = vperm.xlu0 %4668, %v4489
    %v4670 = vpop.permute.xlu0 %4669
    %4673 = vset.pattern.permute.xlu0 0
    %4674 = vperm.xlu0 %4673, %v4490
    %v4675 = vpop.permute.xlu0 %4674
    %4678 = vset.pattern.permute.xlu0 0
    %4679 = vperm.xlu0 %4678, %v4491
    %v4680 = vpop.permute.xlu0 %4679
    %4683 = vset.pattern.permute.xlu0 0
    %4684 = vperm.xlu0 %4683, %v4492
    %v4685 = vpop.permute.xlu0 %4684
    %4688 = vset.pattern.permute.xlu0 0
    %4689 = vperm.xlu0 %4688, %v4493
    %v4690 = vpop.permute.xlu0 %4689
    %4693 = vset.pattern.permute.xlu0 0
    %4694 = vperm.xlu0 %4693, %v4494
    %v4695 = vpop.permute.xlu0 %4694
    %4698 = vset.pattern.permute.xlu0 0
    %4699 = vperm.xlu0 %4698, %v4495
    %v4700 = vpop.permute.xlu0 %4699
    %4703 = vset.pattern.permute.xlu0 0
    %4704 = vperm.xlu0 %4703, %v4496
    %v4705 = vpop.permute.xlu0 %4704
    %4708 = vset.pattern.permute.xlu0 0
    %4709 = vperm.xlu0 %4708, %v4497
    %v4710 = vpop.permute.xlu0 %4709
    %4713 = vset.pattern.permute.xlu0 0
    %4714 = vperm.xlu0 %4713, %v4498
    %v4715 = vpop.permute.xlu0 %4714
    %4718 = vset.pattern.permute.xlu0 0
    %4719 = vperm.xlu0 %4718, %v4499
    %v4720 = vpop.permute.xlu0 %4719
    %4723 = vset.pattern.permute.xlu0 0
    %4724 = vperm.xlu0 %4723, %v4500
    %v4725 = vpop.permute.xlu0 %4724
    %4728 = vset.pattern.permute.xlu0 0
    %4729 = vperm.xlu0 %4728, %v4501
    %v4730 = vpop.permute.xlu0 %4729
    %4733 = vset.pattern.permute.xlu0 0
    %4734 = vperm.xlu0 %4733, %v4502
    %v4735 = vpop.permute.xlu0 %4734
    %4738 = vset.pattern.permute.xlu0 0
    %4739 = vperm.xlu0 %4738, %v4503
    %v4740 = vpop.permute.xlu0 %4739
    %4743 = vset.pattern.permute.xlu0 0
    %4744 = vperm.xlu0 %4743, %v4504
    %v4745 = vpop.permute.xlu0 %4744
    %4748 = vset.pattern.permute.xlu0 0
    %4749 = vperm.xlu0 %4748, %v4505
    %v4750 = vpop.permute.xlu0 %4749
    %4753 = vset.pattern.permute.xlu0 0
    %4754 = vperm.xlu0 %4753, %v4506
    %v4755 = vpop.permute.xlu0 %4754
    %4758 = vset.pattern.permute.xlu0 0
    %4759 = vperm.xlu0 %4758, %v4507
    %v4760 = vpop.permute.xlu0 %4759
    %4763 = vset.pattern.permute.xlu0 0
    %4764 = vperm.xlu0 %4763, %v4508
    %v4765 = vpop.permute.xlu0 %4764
    %4768 = vset.pattern.permute.xlu0 0
    %4769 = vperm.xlu0 %4768, %v4509
    %v4770 = vpop.permute.xlu0 %4769
    %4773 = vset.pattern.permute.xlu0 0
    %4774 = vperm.xlu0 %4773, %v4510
    %v4775 = vpop.permute.xlu0 %4774
    %4778 = vset.pattern.permute.xlu0 0
    %4779 = vperm.xlu0 %4778, %v4511
    %v4780 = vpop.permute.xlu0 %4779
    %4783 = vset.pattern.permute.xlu0 0
    %4784 = vperm.xlu0 %4783, %v4512
    %v4785 = vpop.permute.xlu0 %4784
    %4788 = vset.pattern.permute.xlu0 0
    %4789 = vperm.xlu0 %4788, %v4513
    %v4790 = vpop.permute.xlu0 %4789
    %4793 = vset.pattern.permute.xlu0 0
    %4794 = vperm.xlu0 %4793, %v4514
    %v4795 = vpop.permute.xlu0 %4794
    %4798 = vset.pattern.permute.xlu0 0
    %4799 = vperm.xlu0 %4798, %v4515
    %v4800 = vpop.permute.xlu0 %4799
    %4803 = vset.pattern.permute.xlu0 0
    %4804 = vperm.xlu0 %4803, %v4516
    %v4805 = vpop.permute.xlu0 %4804
    %4808 = vset.pattern.permute.xlu0 0
    %4809 = vperm.xlu0 %4808, %v4517
    %v4810 = vpop.permute.xlu0 %4809
    %4813 = vset.pattern.permute.xlu0 0
    %4814 = vperm.xlu0 %4813, %v4518
    %v4815 = vpop.permute.xlu0 %4814
    %4818 = vset.pattern.permute.xlu0 0
    %4819 = vperm.xlu0 %4818, %v4519
    %v4820 = vpop.permute.xlu0 %4819
    %4823 = vset.pattern.permute.xlu0 0
    %4824 = vperm.xlu0 %4823, %v4520
    %v4825 = vpop.permute.xlu0 %4824
    %4828 = vset.pattern.permute.xlu0 0
    %4829 = vperm.xlu0 %4828, %v4521
    %v4830 = vpop.permute.xlu0 %4829
    %4833 = vset.pattern.permute.xlu0 0
    %4834 = vperm.xlu0 %4833, %v4522
    %v4835 = vpop.permute.xlu0 %4834
    %4838 = vset.pattern.permute.xlu0 0
    %4839 = vperm.xlu0 %4838, %v4523
    %v4840 = vpop.permute.xlu0 %4839
    %4843 = vset.pattern.permute.xlu0 0
    %4844 = vperm.xlu0 %4843, %v4524
    %v4845 = vpop.permute.xlu0 %4844
    %4848 = vset.pattern.permute.xlu0 0
    %4849 = vperm.xlu0 %4848, %v4525
    %v4850 = vpop.permute.xlu0 %4849
    %4853 = vset.pattern.permute.xlu0 0
    %4854 = vperm.xlu0 %4853, %v4526
    %v4855 = vpop.permute.xlu0 %4854
    %4858 = vset.pattern.permute.xlu0 0
    %4859 = vperm.xlu0 %4858, %v4527
    %v4860 = vpop.permute.xlu0 %4859
    %4863 = vset.pattern.permute.xlu0 0
    %4864 = vperm.xlu0 %4863, %v4528
    %v4865 = vpop.permute.xlu0 %4864
    %4868 = vset.pattern.permute.xlu0 0
    %4869 = vperm.xlu0 %4868, %v4529
    %v4870 = vpop.permute.xlu0 %4869
    %v4873 = vlaneseq
    %v4874 = vshrl.u32 %v4873, 7
    %v4875 = vsub.s32 0, %v4874
    %v4876 = vrot.slane %v4531, %v4875
    %v4878 = vmul.f32 %v4535, %v4876
    %v4879 = vmul.f32 %v4540, %v4876
    %v4880 = vmul.f32 %v4545, %v4876
    %v4881 = vmul.f32 %v4550, %v4876
    %v4882 = vmul.f32 %v4555, %v4876
    %v4883 = vmul.f32 %v4560, %v4876
    %v4884 = vmul.f32 %v4565, %v4876
    %v4885 = vmul.f32 %v4570, %v4876
    %v4886 = vmul.f32 %v4575, %v4876
    %v4887 = vmul.f32 %v4580, %v4876
    %v4888 = vmul.f32 %v4585, %v4876
    %v4889 = vmul.f32 %v4590, %v4876
    %v4890 = vmul.f32 %v4595, %v4876
    %v4891 = vmul.f32 %v4600, %v4876
    %v4892 = vmul.f32 %v4605, %v4876
    %v4893 = vmul.f32 %v4610, %v4876
    %v4894 = vmul.f32 %v4615, %v4876
    %v4895 = vmul.f32 %v4620, %v4876
    %v4896 = vmul.f32 %v4625, %v4876
    %v4897 = vmul.f32 %v4630, %v4876
    %v4898 = vmul.f32 %v4635, %v4876
    %v4899 = vmul.f32 %v4640, %v4876
    %v4900 = vmul.f32 %v4645, %v4876
    %v4901 = vmul.f32 %v4650, %v4876
    %v4902 = vmul.f32 %v4655, %v4876
    %v4903 = vmul.f32 %v4660, %v4876
    %v4904 = vmul.f32 %v4665, %v4876
    %v4905 = vmul.f32 %v4670, %v4876
    %v4906 = vmul.f32 %v4675, %v4876
    %v4907 = vmul.f32 %v4680, %v4876
    %v4908 = vmul.f32 %v4685, %v4876
    %v4909 = vmul.f32 %v4690, %v4876
    %v4910 = vmul.f32 %v4695, %v4876
    %v4911 = vmul.f32 %v4700, %v4876
    %v4912 = vmul.f32 %v4705, %v4876
    %v4913 = vmul.f32 %v4710, %v4876
    %v4914 = vmul.f32 %v4715, %v4876
    %v4915 = vmul.f32 %v4720, %v4876
    %v4916 = vmul.f32 %v4725, %v4876
    %v4917 = vmul.f32 %v4730, %v4876
    %v4918 = vmul.f32 %v4735, %v4876
    %v4919 = vmul.f32 %v4740, %v4876
    %v4920 = vmul.f32 %v4745, %v4876
    %v4921 = vmul.f32 %v4750, %v4876
    %v4922 = vmul.f32 %v4755, %v4876
    %v4923 = vmul.f32 %v4760, %v4876
    %v4924 = vmul.f32 %v4765, %v4876
    %v4925 = vmul.f32 %v4770, %v4876
    %v4926 = vmul.f32 %v4775, %v4876
    %v4927 = vmul.f32 %v4780, %v4876
    %v4928 = vmul.f32 %v4785, %v4876
    %v4929 = vmul.f32 %v4790, %v4876
    %v4930 = vmul.f32 %v4795, %v4876
    %v4931 = vmul.f32 %v4800, %v4876
    %v4932 = vmul.f32 %v4805, %v4876
    %v4933 = vmul.f32 %v4810, %v4876
    %v4934 = vmul.f32 %v4815, %v4876
    %v4935 = vmul.f32 %v4820, %v4876
    %v4936 = vmul.f32 %v4825, %v4876
    %v4937 = vmul.f32 %v4830, %v4876
    %v4938 = vmul.f32 %v4835, %v4876
    %v4939 = vmul.f32 %v4840, %v4876
    %v4940 = vmul.f32 %v4845, %v4876
    %v4941 = vmul.f32 %v4850, %v4876
    %v4942 = vmul.f32 %v4855, %v4876
    %v4943 = vmul.f32 %v4860, %v4876
    %v4944 = vmul.f32 %v4865, %v4876
    %v4945 = vmul.f32 %v4870, %v4876
    %v4946 = vadd.f32 %v4394, %v4878
    %v4947 = vadd.f32 %v4395, %v4879
    %v4948 = vadd.f32 %v4396, %v4880
    %v4949 = vadd.f32 %v4397, %v4881
    %v4950 = vadd.f32 %v4398, %v4882
    %v4951 = vadd.f32 %v4399, %v4883
    %v4952 = vadd.f32 %v4400, %v4884
    %v4953 = vadd.f32 %v4401, %v4885
    %v4954 = vadd.f32 %v4402, %v4886
    %v4955 = vadd.f32 %v4403, %v4887
    %v4956 = vadd.f32 %v4404, %v4888
    %v4957 = vadd.f32 %v4405, %v4889
    %v4958 = vadd.f32 %v4406, %v4890
    %v4959 = vadd.f32 %v4407, %v4891
    %v4960 = vadd.f32 %v4408, %v4892
    %v4961 = vadd.f32 %v4409, %v4893
    %v4962 = vadd.f32 %v4410, %v4894
    %v4963 = vadd.f32 %v4411, %v4895
    %v4964 = vadd.f32 %v4412, %v4896
    %v4965 = vadd.f32 %v4413, %v4897
    %v4966 = vadd.f32 %v4414, %v4898
    %v4967 = vadd.f32 %v4415, %v4899
    %v4968 = vadd.f32 %v4416, %v4900
    %v4969 = vadd.f32 %v4417, %v4901
    %v4970 = vadd.f32 %v4418, %v4902
    %v4971 = vadd.f32 %v4419, %v4903
    %v4972 = vadd.f32 %v4420, %v4904
    %v4973 = vadd.f32 %v4421, %v4905
    %v4974 = vadd.f32 %v4422, %v4906
    %v4975 = vadd.f32 %v4423, %v4907
    %v4976 = vadd.f32 %v4424, %v4908
    %v4977 = vadd.f32 %v4425, %v4909
    %v4978 = vadd.f32 %v4426, %v4910
    %v4979 = vadd.f32 %v4427, %v4911
    %v4980 = vadd.f32 %v4428, %v4912
    %v4981 = vadd.f32 %v4429, %v4913
    %v4982 = vadd.f32 %v4430, %v4914
    %v4983 = vadd.f32 %v4431, %v4915
    %v4984 = vadd.f32 %v4432, %v4916
    %v4985 = vadd.f32 %v4433, %v4917
    %v4986 = vadd.f32 %v4434, %v4918
    %v4987 = vadd.f32 %v4435, %v4919
    %v4988 = vadd.f32 %v4436, %v4920
    %v4989 = vadd.f32 %v4437, %v4921
    %v4990 = vadd.f32 %v4438, %v4922
    %v4991 = vadd.f32 %v4439, %v4923
    %v4992 = vadd.f32 %v4440, %v4924
    %v4993 = vadd.f32 %v4441, %v4925
    %v4994 = vadd.f32 %v4442, %v4926
    %v4995 = vadd.f32 %v4443, %v4927
    %v4996 = vadd.f32 %v4444, %v4928
    %v4997 = vadd.f32 %v4445, %v4929
    %v4998 = vadd.f32 %v4446, %v4930
    %v4999 = vadd.f32 %v4447, %v4931
    %v5000 = vadd.f32 %v4448, %v4932
    %v5001 = vadd.f32 %v4449, %v4933
    %v5002 = vadd.f32 %v4450, %v4934
    %v5003 = vadd.f32 %v4451, %v4935
    %v5004 = vadd.f32 %v4452, %v4936
    %v5005 = vadd.f32 %v4453, %v4937
    %v5006 = vadd.f32 %v4454, %v4938
    %v5007 = vadd.f32 %v4455, %v4939
    %v5008 = vadd.f32 %v4456, %v4940
    %v5009 = vadd.f32 %v4457, %v4941
    %v5010 = vadd.f32 %v4458, %v4942
    %v5011 = vadd.f32 %v4459, %v4943
    %v5012 = vadd.f32 %v4460, %v4944
    %v5013 = vadd.f32 %v4461, %v4945
    %v5014 = vld [vmem:[%s2] sm:$0x1]
    %v5016 = vlaneseq
    %v5017 = vshrl.u32 %v5016, 7
    %v5018 = vsub.s32 0, %v5017
    %v5019 = vrot.slane %v5014, %v5018
    %v5021 = vadd.f32 %v4946, %v5019
    %v5022 = vadd.f32 %v4947, %v5019
    %v5023 = vadd.f32 %v4948, %v5019
    %v5024 = vadd.f32 %v4949, %v5019
    %v5025 = vadd.f32 %v4950, %v5019
    %v5026 = vadd.f32 %v4951, %v5019
    %v5027 = vadd.f32 %v4952, %v5019
    %v5028 = vadd.f32 %v4953, %v5019
    %v5029 = vadd.f32 %v4954, %v5019
    %v5030 = vadd.f32 %v4955, %v5019
    %v5031 = vadd.f32 %v4956, %v5019
    %v5032 = vadd.f32 %v4957, %v5019
    %v5033 = vadd.f32 %v4958, %v5019
    %v5034 = vadd.f32 %v4959, %v5019
    %v5035 = vadd.f32 %v4960, %v5019
    %v5036 = vadd.f32 %v4961, %v5019
    %v5037 = vadd.f32 %v4962, %v5019
    %v5038 = vadd.f32 %v4963, %v5019
    %v5039 = vadd.f32 %v4964, %v5019
    %v5040 = vadd.f32 %v4965, %v5019
    %v5041 = vadd.f32 %v4966, %v5019
    %v5042 = vadd.f32 %v4967, %v5019
    %v5043 = vadd.f32 %v4968, %v5019
    %v5044 = vadd.f32 %v4969, %v5019
    %v5045 = vadd.f32 %v4970, %v5019
    %v5046 = vadd.f32 %v4971, %v5019
    %v5047 = vadd.f32 %v4972, %v5019
    %v5048 = vadd.f32 %v4973, %v5019
    %v5049 = vadd.f32 %v4974, %v5019
    %v5050 = vadd.f32 %v4975, %v5019
    %v5051 = vadd.f32 %v4976, %v5019
    %v5052 = vadd.f32 %v4977, %v5019
    %v5053 = vadd.f32 %v4978, %v5019
    %v5054 = vadd.f32 %v4979, %v5019
    %v5055 = vadd.f32 %v4980, %v5019
    %v5056 = vadd.f32 %v4981, %v5019
    %v5057 = vadd.f32 %v4982, %v5019
    %v5058 = vadd.f32 %v4983, %v5019
    %v5059 = vadd.f32 %v4984, %v5019
    %v5060 = vadd.f32 %v4985, %v5019
    %v5061 = vadd.f32 %v4986, %v5019
    %v5062 = vadd.f32 %v4987, %v5019
    %v5063 = vadd.f32 %v4988, %v5019
    %v5064 = vadd.f32 %v4989, %v5019
    %v5065 = vadd.f32 %v4990, %v5019
    %v5066 = vadd.f32 %v4991, %v5019
    %v5067 = vadd.f32 %v4992, %v5019
    %v5068 = vadd.f32 %v4993, %v5019
    %v5069 = vadd.f32 %v4994, %v5019
    %v5070 = vadd.f32 %v4995, %v5019
    %v5071 = vadd.f32 %v4996, %v5019
    %v5072 = vadd.f32 %v4997, %v5019
    %v5073 = vadd.f32 %v4998, %v5019
    %v5074 = vadd.f32 %v4999, %v5019
    %v5075 = vadd.f32 %v5000, %v5019
    %v5076 = vadd.f32 %v5001, %v5019
    %v5077 = vadd.f32 %v5002, %v5019
    %v5078 = vadd.f32 %v5003, %v5019
    %v5079 = vadd.f32 %v5004, %v5019
    %v5080 = vadd.f32 %v5005, %v5019
    %v5081 = vadd.f32 %v5006, %v5019
    %v5082 = vadd.f32 %v5007, %v5019
    %v5083 = vadd.f32 %v5008, %v5019
    %v5084 = vadd.f32 %v5009, %v5019
    %v5085 = vadd.f32 %v5010, %v5019
    %v5086 = vadd.f32 %v5011, %v5019
    %v5087 = vadd.f32 %v5012, %v5019
    %v5088 = vadd.f32 %v5013, %v5019
    %v5089 = vmax.f32 %v5021, 0.0
    %v5090 = vmax.f32 %v5022, 0.0
    %v5091 = vmax.f32 %v5023, 0.0
    %v5092 = vmax.f32 %v5024, 0.0
    %v5093 = vmax.f32 %v5025, 0.0
    %v5094 = vmax.f32 %v5026, 0.0
    %v5095 = vmax.f32 %v5027, 0.0
    %v5096 = vmax.f32 %v5028, 0.0
    %v5097 = vmax.f32 %v5029, 0.0
    %v5098 = vmax.f32 %v5030, 0.0
    %v5099 = vmax.f32 %v5031, 0.0
    %v5100 = vmax.f32 %v5032, 0.0
    %v5101 = vmax.f32 %v5033, 0.0
    %v5102 = vmax.f32 %v5034, 0.0
    %v5103 = vmax.f32 %v5035, 0.0
    %v5104 = vmax.f32 %v5036, 0.0
    %v5105 = vmax.f32 %v5037, 0.0
    %v5106 = vmax.f32 %v5038, 0.0
    %v5107 = vmax.f32 %v5039, 0.0
    %v5108 = vmax.f32 %v5040, 0.0
    %v5109 = vmax.f32 %v5041, 0.0
    %v5110 = vmax.f32 %v5042, 0.0
    %v5111 = vmax.f32 %v5043, 0.0
    %v5112 = vmax.f32 %v5044, 0.0
    %v5113 = vmax.f32 %v5045, 0.0
    %v5114 = vmax.f32 %v5046, 0.0
    %v5115 = vmax.f32 %v5047, 0.0
    %v5116 = vmax.f32 %v5048, 0.0
    %v5117 = vmax.f32 %v5049, 0.0
    %v5118 = vmax.f32 %v5050, 0.0
    %v5119 = vmax.f32 %v5051, 0.0
    %v5120 = vmax.f32 %v5052, 0.0
    %v5121 = vmax.f32 %v5053, 0.0
    %v5122 = vmax.f32 %v5054, 0.0
    %v5123 = vmax.f32 %v5055, 0.0
    %v5124 = vmax.f32 %v5056, 0.0
    %v5125 = vmax.f32 %v5057, 0.0
    %v5126 = vmax.f32 %v5058, 0.0
    %v5127 = vmax.f32 %v5059, 0.0
    %v5128 = vmax.f32 %v5060, 0.0
    %v5129 = vmax.f32 %v5061, 0.0
    %v5130 = vmax.f32 %v5062, 0.0
    %v5131 = vmax.f32 %v5063, 0.0
    %v5132 = vmax.f32 %v5064, 0.0
    %v5133 = vmax.f32 %v5065, 0.0
    %v5134 = vmax.f32 %v5066, 0.0
    %v5135 = vmax.f32 %v5067, 0.0
    %v5136 = vmax.f32 %v5068, 0.0
    %v5137 = vmax.f32 %v5069, 0.0
    %v5138 = vmax.f32 %v5070, 0.0
    %v5139 = vmax.f32 %v5071, 0.0
    %v5140 = vmax.f32 %v5072, 0.0
    %v5141 = vmax.f32 %v5073, 0.0
    %v5142 = vmax.f32 %v5074, 0.0
    %v5143 = vmax.f32 %v5075, 0.0
    %v5144 = vmax.f32 %v5076, 0.0
    %v5145 = vmax.f32 %v5077, 0.0
    %v5146 = vmax.f32 %v5078, 0.0
    %v5147 = vmax.f32 %v5079, 0.0
    %v5148 = vmax.f32 %v5080, 0.0
    %v5149 = vmax.f32 %v5081, 0.0
    %v5150 = vmax.f32 %v5082, 0.0
    %v5151 = vmax.f32 %v5083, 0.0
    %v5152 = vmax.f32 %v5084, 0.0
    %v5153 = vmax.f32 %v5085, 0.0
    %v5154 = vmax.f32 %v5086, 0.0
    %v5155 = vmax.f32 %v5087, 0.0
    %v5156 = vmax.f32 %v5088, 0.0
    %v5157 = vpack.c.bf16 %v5090, %v5089
    %v5158 = vpack.c.bf16 %v5092, %v5091
    %v5159 = vpack.c.bf16 %v5094, %v5093
    %v5160 = vpack.c.bf16 %v5096, %v5095
    %v5161 = vpack.c.bf16 %v5098, %v5097
    %v5162 = vpack.c.bf16 %v5100, %v5099
    %v5163 = vpack.c.bf16 %v5102, %v5101
    %v5164 = vpack.c.bf16 %v5104, %v5103
    %v5165 = vpack.c.bf16 %v5106, %v5105
    %v5166 = vpack.c.bf16 %v5108, %v5107
    %v5167 = vpack.c.bf16 %v5110, %v5109
    %v5168 = vpack.c.bf16 %v5112, %v5111
    %v5169 = vpack.c.bf16 %v5114, %v5113
    %v5170 = vpack.c.bf16 %v5116, %v5115
    %v5171 = vpack.c.bf16 %v5118, %v5117
    %v5172 = vpack.c.bf16 %v5120, %v5119
    %v5173 = vpack.c.bf16 %v5122, %v5121
    %v5174 = vpack.c.bf16 %v5124, %v5123
    %v5175 = vpack.c.bf16 %v5126, %v5125
    %v5176 = vpack.c.bf16 %v5128, %v5127
    %v5177 = vpack.c.bf16 %v5130, %v5129
    %v5178 = vpack.c.bf16 %v5132, %v5131
    %v5179 = vpack.c.bf16 %v5134, %v5133
    %v5180 = vpack.c.bf16 %v5136, %v5135
    %v5181 = vpack.c.bf16 %v5138, %v5137
    %v5182 = vpack.c.bf16 %v5140, %v5139
    %v5183 = vpack.c.bf16 %v5142, %v5141
    %v5184 = vpack.c.bf16 %v5144, %v5143
    %v5185 = vpack.c.bf16 %v5146, %v5145
    %v5186 = vpack.c.bf16 %v5148, %v5147
    %v5187 = vpack.c.bf16 %v5150, %v5149
    %v5188 = vpack.c.bf16 %v5152, %v5151
    %v5189 = vpack.c.bf16 %v5154, %v5153
    %v5190 = vpack.c.bf16 %v5156, %v5155
    %vm5191 = vcmask 257024
    %5192 = vst.msk [vmem:[#allocation2] sm:$0xf] %vm5191, 0
    %5193 = vst.msk [vmem:[#allocation2 + $0x4] sm:$0xf] %vm5191, 0
    %5194 = vst.msk [vmem:[#allocation2 + $0x8] sm:$0xf] %vm5191, 0
    %5195 = vst.msk [vmem:[#allocation2 + $0xc] sm:$0xf] %vm5191, 0
    %5196 = vst.msk [vmem:[#allocation2 + $0x10] sm:$0xf] %vm5191, 0
    %5197 = vst.msk [vmem:[#allocation2 + $0x14] sm:$0xf] %vm5191, 0
    %5198 = vst.msk [vmem:[#allocation2 + $0x18] sm:$0xf] %vm5191, 0
    %5199 = vst.msk [vmem:[#allocation2 + $0x1c] sm:$0xf] %vm5191, 0
    %5200 = vst.msk [vmem:[#allocation2 + $0x130] sm:$0xf] %vm5191, 0
    %5201 = vst.msk [vmem:[#allocation2 + $0x134] sm:$0xf] %vm5191, 0
    %5202 = vst.msk [vmem:[#allocation2 + $0x138] sm:$0xf] %vm5191, 0
    %5203 = vst.msk [vmem:[#allocation2 + $0x13c] sm:$0xf] %vm5191, 0
    %5204 = vst.msk [vmem:[#allocation2 + $0x140] sm:$0xf] %vm5191, 0
    %5205 = vst.msk [vmem:[#allocation2 + $0x144] sm:$0xf] %vm5191, 0
    %5206 = vst.msk [vmem:[#allocation2 + $0x148] sm:$0xf] %vm5191, 0
    %5207 = vst.msk [vmem:[#allocation2 + $0x14c] sm:$0xf] %vm5191, 0
    %v5242 = vunpack.c.l.b16 %v5157
    %v5243 = vunpack.c.h.b16 %v5157
    %v5244 = vunpack.c.l.b16 %v5158
    %v5245 = vunpack.c.h.b16 %v5158
    %v5246 = vunpack.c.l.b16 %v5159
    %v5247 = vunpack.c.h.b16 %v5159
    %v5248 = vunpack.c.l.b16 %v5160
    %v5249 = vunpack.c.h.b16 %v5160
    %v5250 = vunpack.c.l.b16 %v5161
    %v5251 = vunpack.c.h.b16 %v5161
    %v5252 = vunpack.c.l.b16 %v5162
    %v5253 = vunpack.c.h.b16 %v5162
    %v5254 = vunpack.c.l.b16 %v5163
    %v5255 = vunpack.c.h.b16 %v5163
    %v5256 = vunpack.c.l.b16 %v5164
    %v5257 = vunpack.c.h.b16 %v5164
    %v5258 = vunpack.c.l.b16 %v5165
    %v5259 = vunpack.c.h.b16 %v5165
    %v5260 = vunpack.c.l.b16 %v5166
    %v5261 = vunpack.c.h.b16 %v5166
    %v5262 = vunpack.c.l.b16 %v5167
    %v5263 = vunpack.c.h.b16 %v5167
    %v5264 = vunpack.c.l.b16 %v5168
    %v5265 = vunpack.c.h.b16 %v5168
    %v5266 = vunpack.c.l.b16 %v5169
    %v5267 = vunpack.c.h.b16 %v5169
    %v5268 = vunpack.c.l.b16 %v5170
    %v5269 = vunpack.c.h.b16 %v5170
    %v5270 = vunpack.c.l.b16 %v5171
    %v5271 = vunpack.c.h.b16 %v5171
    %v5272 = vunpack.c.l.b16 %v5172
    %v5273 = vunpack.c.h.b16 %v5172
    %v5274 = vunpack.c.l.b16 %v5173
    %v5275 = vunpack.c.h.b16 %v5173
    %v5276 = vunpack.c.l.b16 %v5174
    %v5277 = vunpack.c.h.b16 %v5174
    %v5278 = vunpack.c.l.b16 %v5175
    %v5279 = vunpack.c.h.b16 %v5175
    %v5280 = vunpack.c.l.b16 %v5176
    %v5281 = vunpack.c.h.b16 %v5176
    %v5282 = vunpack.c.l.b16 %v5177
    %v5283 = vunpack.c.h.b16 %v5177
    %v5284 = vunpack.c.l.b16 %v5178
    %v5285 = vunpack.c.h.b16 %v5178
    %v5286 = vunpack.c.l.b16 %v5179
    %v5287 = vunpack.c.h.b16 %v5179
    %v5288 = vunpack.c.l.b16 %v5180
    %v5289 = vunpack.c.h.b16 %v5180
    %v5290 = vunpack.c.l.b16 %v5181
    %v5291 = vunpack.c.h.b16 %v5181
    %v5292 = vunpack.c.l.b16 %v5182
    %v5293 = vunpack.c.h.b16 %v5182
    %v5294 = vunpack.c.l.b16 %v5183
    %v5295 = vunpack.c.h.b16 %v5183
    %v5296 = vunpack.c.l.b16 %v5184
    %v5297 = vunpack.c.h.b16 %v5184
    %v5298 = vunpack.c.l.b16 %v5185
    %v5299 = vunpack.c.h.b16 %v5185
    %v5300 = vunpack.c.l.b16 %v5186
    %v5301 = vunpack.c.h.b16 %v5186
    %v5302 = vunpack.c.l.b16 %v5187
    %v5303 = vunpack.c.h.b16 %v5187
    %v5304 = vunpack.c.l.b16 %v5188
    %v5305 = vunpack.c.h.b16 %v5188
    %v5306 = vunpack.c.l.b16 %v5189
    %v5307 = vunpack.c.h.b16 %v5189
    %v5308 = vunpack.c.l.b16 %v5190
    %v5309 = vunpack.c.h.b16 %v5190
    %v5310 = vpack.c.b16 %v5242, %v5242
    %v5311 = vpack.c.b16 %v5243, %v5243
    %v5312 = vpack.c.b16 %v5244, %v5244
    %v5313 = vpack.c.b16 %v5245, %v5245
    %v5314 = vpack.c.b16 %v5246, %v5246
    %v5315 = vpack.c.b16 %v5247, %v5247
    %v5316 = vpack.c.b16 %v5248, %v5248
    %v5317 = vpack.c.b16 %v5249, %v5249
    %v5318 = vpack.c.b16 %v5250, %v5250
    %v5319 = vpack.c.b16 %v5251, %v5251
    %v5320 = vpack.c.b16 %v5252, %v5252
    %v5321 = vpack.c.b16 %v5253, %v5253
    %v5322 = vpack.c.b16 %v5254, %v5254
    %v5323 = vpack.c.b16 %v5255, %v5255
    %v5324 = vpack.c.b16 %v5256, %v5256
    %v5325 = vpack.c.b16 %v5257, %v5257
    %v5326 = vpack.c.b16 %v5258, %v5258
    %v5327 = vpack.c.b16 %v5259, %v5259
    %v5328 = vpack.c.b16 %v5260, %v5260
    %v5329 = vpack.c.b16 %v5261, %v5261
    %v5330 = vpack.c.b16 %v5262, %v5262
    %v5331 = vpack.c.b16 %v5263, %v5263
    %v5332 = vpack.c.b16 %v5264, %v5264
    %v5333 = vpack.c.b16 %v5265, %v5265
    %v5334 = vpack.c.b16 %v5266, %v5266
    %v5335 = vpack.c.b16 %v5267, %v5267
    %v5336 = vpack.c.b16 %v5268, %v5268
    %v5337 = vpack.c.b16 %v5269, %v5269
    %v5338 = vpack.c.b16 %v5270, %v5270
    %v5339 = vpack.c.b16 %v5271, %v5271
    %v5340 = vpack.c.b16 %v5272, %v5272
    %v5341 = vpack.c.b16 %v5273, %v5273
    %v5342 = vpack.c.b16 %v5274, %v5274
    %v5343 = vpack.c.b16 %v5275, %v5275
    %v5344 = vpack.c.b16 %v5276, %v5276
    %v5345 = vpack.c.b16 %v5277, %v5277
    %v5346 = vpack.c.b16 %v5278, %v5278
    %v5347 = vpack.c.b16 %v5279, %v5279
    %v5348 = vpack.c.b16 %v5280, %v5280
    %v5349 = vpack.c.b16 %v5281, %v5281
    %v5350 = vpack.c.b16 %v5282, %v5282
    %v5351 = vpack.c.b16 %v5283, %v5283
    %v5352 = vpack.c.b16 %v5284, %v5284
    %v5353 = vpack.c.b16 %v5285, %v5285
    %v5354 = vpack.c.b16 %v5286, %v5286
    %v5355 = vpack.c.b16 %v5287, %v5287
    %v5356 = vpack.c.b16 %v5288, %v5288
    %v5357 = vpack.c.b16 %v5289, %v5289
    %v5358 = vpack.c.b16 %v5290, %v5290
    %v5359 = vpack.c.b16 %v5291, %v5291
    %v5360 = vpack.c.b16 %v5292, %v5292
    %v5361 = vpack.c.b16 %v5293, %v5293
    %v5362 = vpack.c.b16 %v5294, %v5294
    %v5363 = vpack.c.b16 %v5295, %v5295
    %v5364 = vpack.c.b16 %v5296, %v5296
    %v5365 = vpack.c.b16 %v5297, %v5297
    %v5366 = vpack.c.b16 %v5298, %v5298
    %v5367 = vpack.c.b16 %v5299, %v5299
    %v5368 = vpack.c.b16 %v5300, %v5300
    %v5369 = vpack.c.b16 %v5301, %v5301
    %v5370 = vpack.c.b16 %v5302, %v5302
    %v5371 = vpack.c.b16 %v5303, %v5303
    %v5372 = vpack.c.b16 %v5304, %v5304
    %v5373 = vpack.c.b16 %v5305, %v5305
    %v5374 = vpack.c.b16 %v5306, %v5306
    %v5375 = vpack.c.b16 %v5307, %v5307
    %v5376 = vpack.c.b16 %v5308, %v5308
    %v5377 = vpack.c.b16 %v5309, %v5309
    %5446 = vst.msk [vmem:[#allocation2 + $0x20] sm:$0xf] %vm5191, %v5310
    %5447 = vst.msk [vmem:[#allocation2 + $0x24] sm:$0xf] %vm5191, %v5311
    %5448 = vst.msk [vmem:[#allocation2 + $0x28] sm:$0xf] %vm5191, %v5312
    %5449 = vst.msk [vmem:[#allocation2 + $0x2c] sm:$0xf] %vm5191, %v5313
    %5450 = vst.msk [vmem:[#allocation2 + $0x30] sm:$0xf] %vm5191, %v5314
    %5451 = vst.msk [vmem:[#allocation2 + $0x34] sm:$0xf] %vm5191, %v5315
    %5452 = vst.msk [vmem:[#allocation2 + $0x38] sm:$0xf] %vm5191, %v5316
    %5453 = vst.msk [vmem:[#allocation2 + $0x3c] sm:$0xf] %vm5191, %v5317
    %5454 = vst.msk [vmem:[#allocation2 + $0x40] sm:$0xf] %vm5191, %v5318
    %5455 = vst.msk [vmem:[#allocation2 + $0x44] sm:$0xf] %vm5191, %v5319
    %5456 = vst.msk [vmem:[#allocation2 + $0x48] sm:$0xf] %vm5191, %v5320
    %5457 = vst.msk [vmem:[#allocation2 + $0x4c] sm:$0xf] %vm5191, %v5321
    %5458 = vst.msk [vmem:[#allocation2 + $0x50] sm:$0xf] %vm5191, %v5322
    %5459 = vst.msk [vmem:[#allocation2 + $0x54] sm:$0xf] %vm5191, %v5323
    %5460 = vst.msk [vmem:[#allocation2 + $0x58] sm:$0xf] %vm5191, %v5324
    %5461 = vst.msk [vmem:[#allocation2 + $0x5c] sm:$0xf] %vm5191, %v5325
    %5462 = vst.msk [vmem:[#allocation2 + $0x60] sm:$0xf] %vm5191, %v5326
    %5463 = vst.msk [vmem:[#allocation2 + $0x64] sm:$0xf] %vm5191, %v5327
    %5464 = vst.msk [vmem:[#allocation2 + $0x68] sm:$0xf] %vm5191, %v5328
    %5465 = vst.msk [vmem:[#allocation2 + $0x6c] sm:$0xf] %vm5191, %v5329
    %5466 = vst.msk [vmem:[#allocation2 + $0x70] sm:$0xf] %vm5191, %v5330
    %5467 = vst.msk [vmem:[#allocation2 + $0x74] sm:$0xf] %vm5191, %v5331
    %5468 = vst.msk [vmem:[#allocation2 + $0x78] sm:$0xf] %vm5191, %v5332
    %5469 = vst.msk [vmem:[#allocation2 + $0x7c] sm:$0xf] %vm5191, %v5333
    %5470 = vst.msk [vmem:[#allocation2 + $0x80] sm:$0xf] %vm5191, %v5334
    %5471 = vst.msk [vmem:[#allocation2 + $0x84] sm:$0xf] %vm5191, %v5335
    %5472 = vst.msk [vmem:[#allocation2 + $0x88] sm:$0xf] %vm5191, %v5336
    %5473 = vst.msk [vmem:[#allocation2 + $0x8c] sm:$0xf] %vm5191, %v5337
    %5474 = vst.msk [vmem:[#allocation2 + $0x90] sm:$0xf] %vm5191, %v5338
    %5475 = vst.msk [vmem:[#allocation2 + $0x94] sm:$0xf] %vm5191, %v5339
    %5476 = vst.msk [vmem:[#allocation2 + $0x98] sm:$0xf] %vm5191, %v5340
    %5477 = vst.msk [vmem:[#allocation2 + $0x9c] sm:$0xf] %vm5191, %v5341
    %5478 = vst.msk [vmem:[#allocation2 + $0xa0] sm:$0xf] %vm5191, %v5342
    %5479 = vst.msk [vmem:[#allocation2 + $0xa4] sm:$0xf] %vm5191, %v5343
    %5480 = vst.msk [vmem:[#allocation2 + $0xa8] sm:$0xf] %vm5191, %v5344
    %5481 = vst.msk [vmem:[#allocation2 + $0xac] sm:$0xf] %vm5191, %v5345
    %5482 = vst.msk [vmem:[#allocation2 + $0xb0] sm:$0xf] %vm5191, %v5346
    %5483 = vst.msk [vmem:[#allocation2 + $0xb4] sm:$0xf] %vm5191, %v5347
    %5484 = vst.msk [vmem:[#allocation2 + $0xb8] sm:$0xf] %vm5191, %v5348
    %5485 = vst.msk [vmem:[#allocation2 + $0xbc] sm:$0xf] %vm5191, %v5349
    %5486 = vst.msk [vmem:[#allocation2 + $0xc0] sm:$0xf] %vm5191, %v5350
    %5487 = vst.msk [vmem:[#allocation2 + $0xc4] sm:$0xf] %vm5191, %v5351
    %5488 = vst.msk [vmem:[#allocation2 + $0xc8] sm:$0xf] %vm5191, %v5352
    %5489 = vst.msk [vmem:[#allocation2 + $0xcc] sm:$0xf] %vm5191, %v5353
    %5490 = vst.msk [vmem:[#allocation2 + $0xd0] sm:$0xf] %vm5191, %v5354
    %5491 = vst.msk [vmem:[#allocation2 + $0xd4] sm:$0xf] %vm5191, %v5355
    %5492 = vst.msk [vmem:[#allocation2 + $0xd8] sm:$0xf] %vm5191, %v5356
    %5493 = vst.msk [vmem:[#allocation2 + $0xdc] sm:$0xf] %vm5191, %v5357
    %5494 = vst.msk [vmem:[#allocation2 + $0xe0] sm:$0xf] %vm5191, %v5358
    %5495 = vst.msk [vmem:[#allocation2 + $0xe4] sm:$0xf] %vm5191, %v5359
    %5496 = vst.msk [vmem:[#allocation2 + $0xe8] sm:$0xf] %vm5191, %v5360
    %5497 = vst.msk [vmem:[#allocation2 + $0xec] sm:$0xf] %vm5191, %v5361
    %5498 = vst.msk [vmem:[#allocation2 + $0xf0] sm:$0xf] %vm5191, %v5362
    %5499 = vst.msk [vmem:[#allocation2 + $0xf4] sm:$0xf] %vm5191, %v5363
    %5500 = vst.msk [vmem:[#allocation2 + $0xf8] sm:$0xf] %vm5191, %v5364
    %5501 = vst.msk [vmem:[#allocation2 + $0xfc] sm:$0xf] %vm5191, %v5365
    %5502 = vst.msk [vmem:[#allocation2 + $0x100] sm:$0xf] %vm5191, %v5366
    %5503 = vst.msk [vmem:[#allocation2 + $0x104] sm:$0xf] %vm5191, %v5367
    %5504 = vst.msk [vmem:[#allocation2 + $0x108] sm:$0xf] %vm5191, %v5368
    %5505 = vst.msk [vmem:[#allocation2 + $0x10c] sm:$0xf] %vm5191, %v5369
    %5506 = vst.msk [vmem:[#allocation2 + $0x110] sm:$0xf] %vm5191, %v5370
    %5507 = vst.msk [vmem:[#allocation2 + $0x114] sm:$0xf] %vm5191, %v5371
    %5508 = vst.msk [vmem:[#allocation2 + $0x118] sm:$0xf] %vm5191, %v5372
    %5509 = vst.msk [vmem:[#allocation2 + $0x11c] sm:$0xf] %vm5191, %v5373
    %5510 = vst.msk [vmem:[#allocation2 + $0x120] sm:$0xf] %vm5191, %v5374
    %5511 = vst.msk [vmem:[#allocation2 + $0x124] sm:$0xf] %vm5191, %v5375
    %5512 = vst.msk [vmem:[#allocation2 + $0x128] sm:$0xf] %vm5191, %v5376
    %5513 = vst.msk [vmem:[#allocation2 + $0x12c] sm:$0xf] %vm5191, %v5377
    %5514 = vst.msk [vmem:[#allocation2 + $0x34] sm:$0xf] %vm5191, 0
    %5515 = vst.msk [vmem:[#allocation2 + $0x38] sm:$0xf] %vm5191, 0
    %5516 = vst.msk [vmem:[#allocation2 + $0x50] sm:$0xf] %vm5191, 0
    %5517 = vst.msk [vmem:[#allocation2 + $0x54] sm:$0xf] %vm5191, 0
    %5518 = vst.msk [vmem:[#allocation2 + $0x6c] sm:$0xf] %vm5191, 0
    %5519 = vst.msk [vmem:[#allocation2 + $0x70] sm:$0xf] %vm5191, 0
    %5520 = vst.msk [vmem:[#allocation2 + $0x88] sm:$0xf] %vm5191, 0
    %5521 = vst.msk [vmem:[#allocation2 + $0x8c] sm:$0xf] %vm5191, 0
    %5522 = vst.msk [vmem:[#allocation2 + $0xa4] sm:$0xf] %vm5191, 0
    %5523 = vst.msk [vmem:[#allocation2 + $0xa8] sm:$0xf] %vm5191, 0
    %5524 = vst.msk [vmem:[#allocation2 + $0xc0] sm:$0xf] %vm5191, 0
    %5525 = vst.msk [vmem:[#allocation2 + $0xc4] sm:$0xf] %vm5191, 0
    %5526 = vst.msk [vmem:[#allocation2 + $0xdc] sm:$0xf] %vm5191, 0
    %5527 = vst.msk [vmem:[#allocation2 + $0xe0] sm:$0xf] %vm5191, 0
    %5528 = vst.msk [vmem:[#allocation2 + $0xf8] sm:$0xf] %vm5191, 0
    %5529 = vst.msk [vmem:[#allocation2 + $0xfc] sm:$0xf] %vm5191, 0
    %5530 = vst.msk [vmem:[#allocation2 + $0x114] sm:$0xf] %vm5191, 0
    %5531 = vst.msk [vmem:[#allocation2 + $0x118] sm:$0xf] %vm5191, 0
    %v5532 = vld [vmem:[#allocation2] sm:$0xf]
    %v5533 = vld [vmem:[#allocation2 + $0x4] sm:$0xf]
    %v5534 = vld [vmem:[#allocation2 + $0x8] sm:$0xf]
    %v5535 = vld [vmem:[#allocation2 + $0xc] sm:$0xf]
    %v5536 = vld [vmem:[#allocation2 + $0x10] sm:$0xf]
    %v5537 = vld [vmem:[#allocation2 + $0x14] sm:$0xf]
    %v5538 = vld [vmem:[#allocation2 + $0x18] sm:$0xf]
    %v5539 = vld [vmem:[#allocation2 + $0x1c] sm:$0xf]
    %v5540 = vld [vmem:[#allocation2 + $0x20] sm:$0xf]
    %v5541 = vld [vmem:[#allocation2 + $0x24] sm:$0xf]
    %v5542 = vld [vmem:[#allocation2 + $0x28] sm:$0xf]
    %v5543 = vld [vmem:[#allocation2 + $0x2c] sm:$0xf]
    %v5544 = vld [vmem:[#allocation2 + $0x30] sm:$0xf]
    %v5545 = vld [vmem:[#allocation2 + $0x34] sm:$0xf]
    %v5546 = vld [vmem:[#allocation2 + $0x38] sm:$0xf]
    %v5547 = vld [vmem:[#allocation2 + $0x3c] sm:$0xf]
    %v5548 = vld [vmem:[#allocation2 + $0x40] sm:$0xf]
    %v5549 = vld [vmem:[#allocation2 + $0x44] sm:$0xf]
    %v5550 = vld [vmem:[#allocation2 + $0x48] sm:$0xf]
    %v5551 = vld [vmem:[#allocation2 + $0x4c] sm:$0xf]
    %v5552 = vld [vmem:[#allocation2 + $0x50] sm:$0xf]
    %v5553 = vld [vmem:[#allocation2 + $0x54] sm:$0xf]
    %v5554 = vld [vmem:[#allocation2 + $0x58] sm:$0xf]
    %v5555 = vld [vmem:[#allocation2 + $0x5c] sm:$0xf]
    %v5556 = vld [vmem:[#allocation2 + $0x60] sm:$0xf]
    %v5557 = vld [vmem:[#allocation2 + $0x64] sm:$0xf]
    %v5558 = vld [vmem:[#allocation2 + $0x68] sm:$0xf]
    %v5559 = vld [vmem:[#allocation2 + $0x6c] sm:$0xf]
    %v5560 = vld [vmem:[#allocation2 + $0x70] sm:$0xf]
    %v5561 = vld [vmem:[#allocation2 + $0x74] sm:$0xf]
    %v5562 = vld [vmem:[#allocation2 + $0x78] sm:$0xf]
    %v5563 = vld [vmem:[#allocation2 + $0x7c] sm:$0xf]
    %v5564 = vld [vmem:[#allocation2 + $0x80] sm:$0xf]
    %v5565 = vld [vmem:[#allocation2 + $0x84] sm:$0xf]
    %v5566 = vld [vmem:[#allocation2 + $0x88] sm:$0xf]
    %v5567 = vld [vmem:[#allocation2 + $0x8c] sm:$0xf]
    %v5568 = vld [vmem:[#allocation2 + $0x90] sm:$0xf]
    %v5569 = vld [vmem:[#allocation2 + $0x94] sm:$0xf]
    %v5570 = vld [vmem:[#allocation2 + $0x98] sm:$0xf]
    %v5571 = vld [vmem:[#allocation2 + $0x9c] sm:$0xf]
    %v5572 = vld [vmem:[#allocation2 + $0xa0] sm:$0xf]
    %v5573 = vld [vmem:[#allocation2 + $0xa4] sm:$0xf]
    %v5574 = vld [vmem:[#allocation2 + $0xa8] sm:$0xf]
    %v5575 = vld [vmem:[#allocation2 + $0xac] sm:$0xf]
    %v5576 = vld [vmem:[#allocation2 + $0xb0] sm:$0xf]
    %v5577 = vld [vmem:[#allocation2 + $0xb4] sm:$0xf]
    %v5578 = vld [vmem:[#allocation2 + $0xb8] sm:$0xf]
    %v5579 = vld [vmem:[#allocation2 + $0xbc] sm:$0xf]
    %v5580 = vld [vmem:[#allocation2 + $0xc0] sm:$0xf]
    %v5581 = vld [vmem:[#allocation2 + $0xc4] sm:$0xf]
    %v5582 = vld [vmem:[#allocation2 + $0xc8] sm:$0xf]
    %v5583 = vld [vmem:[#allocation2 + $0xcc] sm:$0xf]
    %v5584 = vld [vmem:[#allocation2 + $0xd0] sm:$0xf]
    %v5585 = vld [vmem:[#allocation2 + $0xd4] sm:$0xf]
    %v5586 = vld [vmem:[#allocation2 + $0xd8] sm:$0xf]
    %v5587 = vld [vmem:[#allocation2 + $0xdc] sm:$0xf]
    %v5588 = vld [vmem:[#allocation2 + $0xe0] sm:$0xf]
    %v5589 = vld [vmem:[#allocation2 + $0xe4] sm:$0xf]
    %v5590 = vld [vmem:[#allocation2 + $0xe8] sm:$0xf]
    %v5591 = vld [vmem:[#allocation2 + $0xec] sm:$0xf]
    %v5592 = vld [vmem:[#allocation2 + $0xf0] sm:$0xf]
    %v5593 = vld [vmem:[#allocation2 + $0xf4] sm:$0xf]
    %v5594 = vld [vmem:[#allocation2 + $0xf8] sm:$0xf]
    %v5595 = vld [vmem:[#allocation2 + $0xfc] sm:$0xf]
    %v5596 = vld [vmem:[#allocation2 + $0x100] sm:$0xf]
    %v5597 = vld [vmem:[#allocation2 + $0x104] sm:$0xf]
    %v5598 = vld [vmem:[#allocation2 + $0x108] sm:$0xf]
    %v5599 = vld [vmem:[#allocation2 + $0x10c] sm:$0xf]
    %5600 = vst.msk [vmem:[#allocation3] sm:$0xf] %vm5191, %v5532
    %5601 = vst.msk [vmem:[#allocation3 + $0xc] sm:$0xf] %vm5191, %v5533
    %5602 = vst.msk [vmem:[#allocation3 + $0x18] sm:$0xf] %vm5191, %v5534
    %5603 = vst.msk [vmem:[#allocation3 + $0x24] sm:$0xf] %vm5191, %v5535
    %5604 = vst.msk [vmem:[#allocation3 + $0x30] sm:$0xf] %vm5191, %v5536
    %5605 = vst.msk [vmem:[#allocation3 + $0x3c] sm:$0xf] %vm5191, %v5537
    %5606 = vst.msk [vmem:[#allocation3 + $0x48] sm:$0xf] %vm5191, %v5538
    %5607 = vst.msk [vmem:[#allocation3 + $0x54] sm:$0xf] %vm5191, %v5539
    %5608 = vst.msk [vmem:[#allocation3 + $0x60] sm:$0xf] %vm5191, %v5540
    %5609 = vst.msk [vmem:[#allocation3 + $0x6c] sm:$0xf] %vm5191, %v5541
    %5610 = vst.msk [vmem:[#allocation3 + $0x78] sm:$0xf] %vm5191, %v5542
    %5611 = vst.msk [vmem:[#allocation3 + $0x84] sm:$0xf] %vm5191, %v5543
    %5612 = vst.msk [vmem:[#allocation3 + $0x90] sm:$0xf] %vm5191, %v5544
    %5613 = vst.msk [vmem:[#allocation3 + $0x9c] sm:$0xf] %vm5191, %v5545
    %5614 = vst.msk [vmem:[#allocation3 + $0xa8] sm:$0xf] %vm5191, %v5546
    %5615 = vst.msk [vmem:[#allocation3 + $0xb4] sm:$0xf] %vm5191, %v5547
    %5616 = vst.msk [vmem:[#allocation3 + $0xc0] sm:$0xf] %vm5191, %v5548
    %5617 = vst.msk [vmem:[#allocation3 + $0xcc] sm:$0xf] %vm5191, %v5549
    %5618 = vst.msk [vmem:[#allocation3 + $0xd8] sm:$0xf] %vm5191, %v5550
    %5619 = vst.msk [vmem:[#allocation3 + $0xe4] sm:$0xf] %vm5191, %v5551
    %5620 = vst.msk [vmem:[#allocation3 + $0xf0] sm:$0xf] %vm5191, %v5552
    %5621 = vst.msk [vmem:[#allocation3 + $0xfc] sm:$0xf] %vm5191, %v5553
    %5622 = vst.msk [vmem:[#allocation3 + $0x108] sm:$0xf] %vm5191, %v5554
    %5623 = vst.msk [vmem:[#allocation3 + $0x114] sm:$0xf] %vm5191, %v5555
    %5624 = vst.msk [vmem:[#allocation3 + $0x120] sm:$0xf] %vm5191, %v5556
    %5625 = vst.msk [vmem:[#allocation3 + $0x12c] sm:$0xf] %vm5191, %v5557
    %5626 = vst.msk [vmem:[#allocation3 + $0x138] sm:$0xf] %vm5191, %v5558
    %5627 = vst.msk [vmem:[#allocation3 + $0x144] sm:$0xf] %vm5191, %v5559
    %5628 = vst.msk [vmem:[#allocation3 + $0x150] sm:$0xf] %vm5191, %v5560
    %5629 = vst.msk [vmem:[#allocation3 + $0x15c] sm:$0xf] %vm5191, %v5561
    %5630 = vst.msk [vmem:[#allocation3 + $0x168] sm:$0xf] %vm5191, %v5562
    %5631 = vst.msk [vmem:[#allocation3 + $0x174] sm:$0xf] %vm5191, %v5563
    %5632 = vst.msk [vmem:[#allocation3 + $0x180] sm:$0xf] %vm5191, %v5564
    %5633 = vst.msk [vmem:[#allocation3 + $0x18c] sm:$0xf] %vm5191, %v5565
    %5634 = vst.msk [vmem:[#allocation3 + $0x198] sm:$0xf] %vm5191, %v5566
    %5635 = vst.msk [vmem:[#allocation3 + $0x1a4] sm:$0xf] %vm5191, %v5567
    %5636 = vst.msk [vmem:[#allocation3 + $0x1b0] sm:$0xf] %vm5191, %v5568
    %5637 = vst.msk [vmem:[#allocation3 + $0x1bc] sm:$0xf] %vm5191, %v5569
    %5638 = vst.msk [vmem:[#allocation3 + $0x1c8] sm:$0xf] %vm5191, %v5570
    %5639 = vst.msk [vmem:[#allocation3 + $0x1d4] sm:$0xf] %vm5191, %v5571
    %5640 = vst.msk [vmem:[#allocation3 + $0x1e0] sm:$0xf] %vm5191, %v5572
    %5641 = vst.msk [vmem:[#allocation3 + $0x1ec] sm:$0xf] %vm5191, %v5573
    %5642 = vst.msk [vmem:[#allocation3 + $0x1f8] sm:$0xf] %vm5191, %v5574
    %5643 = vst.msk [vmem:[#allocation3 + $0x204] sm:$0xf] %vm5191, %v5575
    %5644 = vst.msk [vmem:[#allocation3 + $0x210] sm:$0xf] %vm5191, %v5576
    %5645 = vst.msk [vmem:[#allocation3 + $0x21c] sm:$0xf] %vm5191, %v5577
    %5646 = vst.msk [vmem:[#allocation3 + $0x228] sm:$0xf] %vm5191, %v5578
    %5647 = vst.msk [vmem:[#allocation3 + $0x234] sm:$0xf] %vm5191, %v5579
    %5648 = vst.msk [vmem:[#allocation3 + $0x240] sm:$0xf] %vm5191, %v5580
    %5649 = vst.msk [vmem:[#allocation3 + $0x24c] sm:$0xf] %vm5191, %v5581
    %5650 = vst.msk [vmem:[#allocation3 + $0x258] sm:$0xf] %vm5191, %v5582
    %5651 = vst.msk [vmem:[#allocation3 + $0x264] sm:$0xf] %vm5191, %v5583
    %5652 = vst.msk [vmem:[#allocation3 + $0x270] sm:$0xf] %vm5191, %v5584
    %5653 = vst.msk [vmem:[#allocation3 + $0x27c] sm:$0xf] %vm5191, %v5585
    %5654 = vst.msk [vmem:[#allocation3 + $0x288] sm:$0xf] %vm5191, %v5586
    %5655 = vst.msk [vmem:[#allocation3 + $0x294] sm:$0xf] %vm5191, %v5587
    %5656 = vst.msk [vmem:[#allocation3 + $0x2a0] sm:$0xf] %vm5191, %v5588
    %5657 = vst.msk [vmem:[#allocation3 + $0x2ac] sm:$0xf] %vm5191, %v5589
    %5658 = vst.msk [vmem:[#allocation3 + $0x2b8] sm:$0xf] %vm5191, %v5590
    %5659 = vst.msk [vmem:[#allocation3 + $0x2c4] sm:$0xf] %vm5191, %v5591
    %5660 = vst.msk [vmem:[#allocation3 + $0x2d0] sm:$0xf] %vm5191, %v5592
    %5661 = vst.msk [vmem:[#allocation3 + $0x2dc] sm:$0xf] %vm5191, %v5593
    %5662 = vst.msk [vmem:[#allocation3 + $0x2e8] sm:$0xf] %vm5191, %v5594
    %5663 = vst.msk [vmem:[#allocation3 + $0x2f4] sm:$0xf] %vm5191, %v5595
    %5664 = vst.msk [vmem:[#allocation3 + $0x300] sm:$0xf] %vm5191, %v5596
    %5665 = vst.msk [vmem:[#allocation3 + $0x30c] sm:$0xf] %vm5191, %v5597
    %5666 = vst.msk [vmem:[#allocation3 + $0x318] sm:$0xf] %vm5191, %v5598
    %5667 = vst.msk [vmem:[#allocation3 + $0x324] sm:$0xf] %vm5191, %v5599
    %v5668 = vld [vmem:[#allocation2 + $0x4] sm:$0xf]
    %v5669 = vld [vmem:[#allocation2 + $0x8] sm:$0xf]
    %v5670 = vld [vmem:[#allocation2 + $0xc] sm:$0xf]
    %v5671 = vld [vmem:[#allocation2 + $0x10] sm:$0xf]
    %v5672 = vld [vmem:[#allocation2 + $0x14] sm:$0xf]
    %v5673 = vld [vmem:[#allocation2 + $0x18] sm:$0xf]
    %v5674 = vld [vmem:[#allocation2 + $0x1c] sm:$0xf]
    %v5675 = vld [vmem:[#allocation2 + $0x20] sm:$0xf]
    %v5676 = vld [vmem:[#allocation2 + $0x24] sm:$0xf]
    %v5677 = vld [vmem:[#allocation2 + $0x28] sm:$0xf]
    %v5678 = vld [vmem:[#allocation2 + $0x2c] sm:$0xf]
    %v5679 = vld [vmem:[#allocation2 + $0x30] sm:$0xf]
    %v5680 = vld [vmem:[#allocation2 + $0x34] sm:$0xf]
    %v5681 = vld [vmem:[#allocation2 + $0x38] sm:$0xf]
    %v5682 = vld [vmem:[#allocation2 + $0x3c] sm:$0xf]
    %v5683 = vld [vmem:[#allocation2 + $0x40] sm:$0xf]
    %v5684 = vld [vmem:[#allocation2 + $0x44] sm:$0xf]
    %v5685 = vld [vmem:[#allocation2 + $0x48] sm:$0xf]
    %v5686 = vld [vmem:[#allocation2 + $0x4c] sm:$0xf]
    %v5687 = vld [vmem:[#allocation2 + $0x50] sm:$0xf]
    %v5688 = vld [vmem:[#allocation2 + $0x54] sm:$0xf]
    %v5689 = vld [vmem:[#allocation2 + $0x58] sm:$0xf]
    %v5690 = vld [vmem:[#allocation2 + $0x5c] sm:$0xf]
    %v5691 = vld [vmem:[#allocation2 + $0x60] sm:$0xf]
    %v5692 = vld [vmem:[#allocation2 + $0x64] sm:$0xf]
    %v5693 = vld [vmem:[#allocation2 + $0x68] sm:$0xf]
    %v5694 = vld [vmem:[#allocation2 + $0x6c] sm:$0xf]
    %v5695 = vld [vmem:[#allocation2 + $0x70] sm:$0xf]
    %v5696 = vld [vmem:[#allocation2 + $0x74] sm:$0xf]
    %v5697 = vld [vmem:[#allocation2 + $0x78] sm:$0xf]
    %v5698 = vld [vmem:[#allocation2 + $0x7c] sm:$0xf]
    %v5699 = vld [vmem:[#allocation2 + $0x80] sm:$0xf]
    %v5700 = vld [vmem:[#allocation2 + $0x84] sm:$0xf]
    %v5701 = vld [vmem:[#allocation2 + $0x88] sm:$0xf]
    %v5702 = vld [vmem:[#allocation2 + $0x8c] sm:$0xf]
    %v5703 = vld [vmem:[#allocation2 + $0x90] sm:$0xf]
    %v5704 = vld [vmem:[#allocation2 + $0x94] sm:$0xf]
    %v5705 = vld [vmem:[#allocation2 + $0x98] sm:$0xf]
    %v5706 = vld [vmem:[#allocation2 + $0x9c] sm:$0xf]
    %v5707 = vld [vmem:[#allocation2 + $0xa0] sm:$0xf]
    %v5708 = vld [vmem:[#allocation2 + $0xa4] sm:$0xf]
    %v5709 = vld [vmem:[#allocation2 + $0xa8] sm:$0xf]
    %v5710 = vld [vmem:[#allocation2 + $0xac] sm:$0xf]
    %v5711 = vld [vmem:[#allocation2 + $0xb0] sm:$0xf]
    %v5712 = vld [vmem:[#allocation2 + $0xb4] sm:$0xf]
    %v5713 = vld [vmem:[#allocation2 + $0xb8] sm:$0xf]
    %v5714 = vld [vmem:[#allocation2 + $0xbc] sm:$0xf]
    %v5715 = vld [vmem:[#allocation2 + $0xc0] sm:$0xf]
    %v5716 = vld [vmem:[#allocation2 + $0xc4] sm:$0xf]
    %v5717 = vld [vmem:[#allocation2 + $0xc8] sm:$0xf]
    %v5718 = vld [vmem:[#allocation2 + $0xcc] sm:$0xf]
    %v5719 = vld [vmem:[#allocation2 + $0xd0] sm:$0xf]
    %v5720 = vld [vmem:[#allocation2 + $0xd4] sm:$0xf]
    %v5721 = vld [vmem:[#allocation2 + $0xd8] sm:$0xf]
    %v5722 = vld [vmem:[#allocation2 + $0xdc] sm:$0xf]
    %v5723 = vld [vmem:[#allocation2 + $0xe0] sm:$0xf]
    %v5724 = vld [vmem:[#allocation2 + $0xe4] sm:$0xf]
    %v5725 = vld [vmem:[#allocation2 + $0xe8] sm:$0xf]
    %v5726 = vld [vmem:[#allocation2 + $0xec] sm:$0xf]
    %v5727 = vld [vmem:[#allocation2 + $0xf0] sm:$0xf]
    %v5728 = vld [vmem:[#allocation2 + $0xf4] sm:$0xf]
    %v5729 = vld [vmem:[#allocation2 + $0xf8] sm:$0xf]
    %v5730 = vld [vmem:[#allocation2 + $0xfc] sm:$0xf]
    %v5731 = vld [vmem:[#allocation2 + $0x100] sm:$0xf]
    %v5732 = vld [vmem:[#allocation2 + $0x104] sm:$0xf]
    %v5733 = vld [vmem:[#allocation2 + $0x108] sm:$0xf]
    %v5734 = vld [vmem:[#allocation2 + $0x10c] sm:$0xf]
    %v5735 = vld [vmem:[#allocation2 + $0x110] sm:$0xf]
    %5804 = vrot.lane.b32.xlu0 %v5668, 32
    %v5805 = vpop.permute.xlu0 %5804
    %5806 = vrot.lane.b32.xlu0 %v5669, 32
    %v5807 = vpop.permute.xlu0 %5806
    %5808 = vrot.lane.b32.xlu0 %v5670, 32
    %v5809 = vpop.permute.xlu0 %5808
    %5810 = vrot.lane.b32.xlu0 %v5671, 32
    %v5811 = vpop.permute.xlu0 %5810
    %5812 = vrot.lane.b32.xlu0 %v5672, 32
    %v5813 = vpop.permute.xlu0 %5812
    %5814 = vrot.lane.b32.xlu0 %v5673, 32
    %v5815 = vpop.permute.xlu0 %5814
    %5816 = vrot.lane.b32.xlu0 %v5674, 32
    %v5817 = vpop.permute.xlu0 %5816
    %5818 = vrot.lane.b32.xlu0 %v5675, 32
    %v5819 = vpop.permute.xlu0 %5818
    %5820 = vrot.lane.b32.xlu0 %v5676, 32
    %v5821 = vpop.permute.xlu0 %5820
    %5822 = vrot.lane.b32.xlu0 %v5677, 32
    %v5823 = vpop.permute.xlu0 %5822
    %5824 = vrot.lane.b32.xlu0 %v5678, 32
    %v5825 = vpop.permute.xlu0 %5824
    %5826 = vrot.lane.b32.xlu0 %v5679, 32
    %v5827 = vpop.permute.xlu0 %5826
    %5828 = vrot.lane.b32.xlu0 %v5680, 32
    %v5829 = vpop.permute.xlu0 %5828
    %5830 = vrot.lane.b32.xlu0 %v5681, 32
    %v5831 = vpop.permute.xlu0 %5830
    %5832 = vrot.lane.b32.xlu0 %v5682, 32
    %v5833 = vpop.permute.xlu0 %5832
    %5834 = vrot.lane.b32.xlu0 %v5683, 32
    %v5835 = vpop.permute.xlu0 %5834
    %5836 = vrot.lane.b32.xlu0 %v5684, 32
    %v5837 = vpop.permute.xlu0 %5836
    %5838 = vrot.lane.b32.xlu0 %v5685, 32
    %v5839 = vpop.permute.xlu0 %5838
    %5840 = vrot.lane.b32.xlu0 %v5686, 32
    %v5841 = vpop.permute.xlu0 %5840
    %5842 = vrot.lane.b32.xlu0 %v5687, 32
    %v5843 = vpop.permute.xlu0 %5842
    %5844 = vrot.lane.b32.xlu0 %v5688, 32
    %v5845 = vpop.permute.xlu0 %5844
    %5846 = vrot.lane.b32.xlu0 %v5689, 32
    %v5847 = vpop.permute.xlu0 %5846
    %5848 = vrot.lane.b32.xlu0 %v5690, 32
    %v5849 = vpop.permute.xlu0 %5848
    %5850 = vrot.lane.b32.xlu0 %v5691, 32
    %v5851 = vpop.permute.xlu0 %5850
    %5852 = vrot.lane.b32.xlu0 %v5692, 32
    %v5853 = vpop.permute.xlu0 %5852
    %5854 = vrot.lane.b32.xlu0 %v5693, 32
    %v5855 = vpop.permute.xlu0 %5854
    %5856 = vrot.lane.b32.xlu0 %v5694, 32
    %v5857 = vpop.permute.xlu0 %5856
    %5858 = vrot.lane.b32.xlu0 %v5695, 32
    %v5859 = vpop.permute.xlu0 %5858
    %5860 = vrot.lane.b32.xlu0 %v5696, 32
    %v5861 = vpop.permute.xlu0 %5860
    %5862 = vrot.lane.b32.xlu0 %v5697, 32
    %v5863 = vpop.permute.xlu0 %5862
    %5864 = vrot.lane.b32.xlu0 %v5698, 32
    %v5865 = vpop.permute.xlu0 %5864
    %5866 = vrot.lane.b32.xlu0 %v5699, 32
    %v5867 = vpop.permute.xlu0 %5866
    %5868 = vrot.lane.b32.xlu0 %v5700, 32
    %v5869 = vpop.permute.xlu0 %5868
    %5870 = vrot.lane.b32.xlu0 %v5701, 32
    %v5871 = vpop.permute.xlu0 %5870
    %5872 = vrot.lane.b32.xlu0 %v5702, 32
    %v5873 = vpop.permute.xlu0 %5872
    %5874 = vrot.lane.b32.xlu0 %v5703, 32
    %v5875 = vpop.permute.xlu0 %5874
    %5876 = vrot.lane.b32.xlu0 %v5704, 32
    %v5877 = vpop.permute.xlu0 %5876
    %5878 = vrot.lane.b32.xlu0 %v5705, 32
    %v5879 = vpop.permute.xlu0 %5878
    %5880 = vrot.lane.b32.xlu0 %v5706, 32
    %v5881 = vpop.permute.xlu0 %5880
    %5882 = vrot.lane.b32.xlu0 %v5707, 32
    %v5883 = vpop.permute.xlu0 %5882
    %5884 = vrot.lane.b32.xlu0 %v5708, 32
    %v5885 = vpop.permute.xlu0 %5884
    %5886 = vrot.lane.b32.xlu0 %v5709, 32
    %v5887 = vpop.permute.xlu0 %5886
    %5888 = vrot.lane.b32.xlu0 %v5710, 32
    %v5889 = vpop.permute.xlu0 %5888
    %5890 = vrot.lane.b32.xlu0 %v5711, 32
    %v5891 = vpop.permute.xlu0 %5890
    %5892 = vrot.lane.b32.xlu0 %v5712, 32
    %v5893 = vpop.permute.xlu0 %5892
    %5894 = vrot.lane.b32.xlu0 %v5713, 32
    %v5895 = vpop.permute.xlu0 %5894
    %5896 = vrot.lane.b32.xlu0 %v5714, 32
    %v5897 = vpop.permute.xlu0 %5896
    %5898 = vrot.lane.b32.xlu0 %v5715, 32
    %v5899 = vpop.permute.xlu0 %5898
    %5900 = vrot.lane.b32.xlu0 %v5716, 32
    %v5901 = vpop.permute.xlu0 %5900
    %5902 = vrot.lane.b32.xlu0 %v5717, 32
    %v5903 = vpop.permute.xlu0 %5902
    %5904 = vrot.lane.b32.xlu0 %v5718, 32
    %v5905 = vpop.permute.xlu0 %5904
    %5906 = vrot.lane.b32.xlu0 %v5719, 32
    %v5907 = vpop.permute.xlu0 %5906
    %5908 = vrot.lane.b32.xlu0 %v5720, 32
    %v5909 = vpop.permute.xlu0 %5908
    %5910 = vrot.lane.b32.xlu0 %v5721, 32
    %v5911 = vpop.permute.xlu0 %5910
    %5912 = vrot.lane.b32.xlu0 %v5722, 32
    %v5913 = vpop.permute.xlu0 %5912
    %5914 = vrot.lane.b32.xlu0 %v5723, 32
    %v5915 = vpop.permute.xlu0 %5914
    %5916 = vrot.lane.b32.xlu0 %v5724, 32
    %v5917 = vpop.permute.xlu0 %5916
    %5918 = vrot.lane.b32.xlu0 %v5725, 32
    %v5919 = vpop.permute.xlu0 %5918
    %5920 = vrot.lane.b32.xlu0 %v5726, 32
    %v5921 = vpop.permute.xlu0 %5920
    %5922 = vrot.lane.b32.xlu0 %v5727, 32
    %v5923 = vpop.permute.xlu0 %5922
    %5924 = vrot.lane.b32.xlu0 %v5728, 32
    %v5925 = vpop.permute.xlu0 %5924
    %5926 = vrot.lane.b32.xlu0 %v5729, 32
    %v5927 = vpop.permute.xlu0 %5926
    %5928 = vrot.lane.b32.xlu0 %v5730, 32
    %v5929 = vpop.permute.xlu0 %5928
    %5930 = vrot.lane.b32.xlu0 %v5731, 32
    %v5931 = vpop.permute.xlu0 %5930
    %5932 = vrot.lane.b32.xlu0 %v5732, 32
    %v5933 = vpop.permute.xlu0 %5932
    %5934 = vrot.lane.b32.xlu0 %v5733, 32
    %v5935 = vpop.permute.xlu0 %5934
    %5936 = vrot.lane.b32.xlu0 %v5734, 32
    %v5937 = vpop.permute.xlu0 %5936
    %5938 = vrot.lane.b32.xlu0 %v5735, 32
    %v5939 = vpop.permute.xlu0 %5938
    %vm6008 = vcmask 519424
    %6009 = vst.msk [vmem:[#allocation3] sm:$0xf] %vm6008, %v5805
    %6010 = vst.msk [vmem:[#allocation3 + $0xc] sm:$0xf] %vm6008, %v5807
    %6011 = vst.msk [vmem:[#allocation3 + $0x18] sm:$0xf] %vm6008, %v5809
    %6012 = vst.msk [vmem:[#allocation3 + $0x24] sm:$0xf] %vm6008, %v5811
    %6013 = vst.msk [vmem:[#allocation3 + $0x30] sm:$0xf] %vm6008, %v5813
    %6014 = vst.msk [vmem:[#allocation3 + $0x3c] sm:$0xf] %vm6008, %v5815
    %6015 = vst.msk [vmem:[#allocation3 + $0x48] sm:$0xf] %vm6008, %v5817
    %6016 = vst.msk [vmem:[#allocation3 + $0x54] sm:$0xf] %vm6008, %v5819
    %6017 = vst.msk [vmem:[#allocation3 + $0x60] sm:$0xf] %vm6008, %v5821
    %6018 = vst.msk [vmem:[#allocation3 + $0x6c] sm:$0xf] %vm6008, %v5823
    %6019 = vst.msk [vmem:[#allocation3 + $0x78] sm:$0xf] %vm6008, %v5825
    %6020 = vst.msk [vmem:[#allocation3 + $0x84] sm:$0xf] %vm6008, %v5827
    %6021 = vst.msk [vmem:[#allocation3 + $0x90] sm:$0xf] %vm6008, %v5829
    %6022 = vst.msk [vmem:[#allocation3 + $0x9c] sm:$0xf] %vm6008, %v5831
    %6023 = vst.msk [vmem:[#allocation3 + $0xa8] sm:$0xf] %vm6008, %v5833
    %6024 = vst.msk [vmem:[#allocation3 + $0xb4] sm:$0xf] %vm6008, %v5835
    %6025 = vst.msk [vmem:[#allocation3 + $0xc0] sm:$0xf] %vm6008, %v5837
    %6026 = vst.msk [vmem:[#allocation3 + $0xcc] sm:$0xf] %vm6008, %v5839
    %6027 = vst.msk [vmem:[#allocation3 + $0xd8] sm:$0xf] %vm6008, %v5841
    %6028 = vst.msk [vmem:[#allocation3 + $0xe4] sm:$0xf] %vm6008, %v5843
    %6029 = vst.msk [vmem:[#allocation3 + $0xf0] sm:$0xf] %vm6008, %v5845
    %6030 = vst.msk [vmem:[#allocation3 + $0xfc] sm:$0xf] %vm6008, %v5847
    %6031 = vst.msk [vmem:[#allocation3 + $0x108] sm:$0xf] %vm6008, %v5849
    %6032 = vst.msk [vmem:[#allocation3 + $0x114] sm:$0xf] %vm6008, %v5851
    %6033 = vst.msk [vmem:[#allocation3 + $0x120] sm:$0xf] %vm6008, %v5853
    %6034 = vst.msk [vmem:[#allocation3 + $0x12c] sm:$0xf] %vm6008, %v5855
    %6035 = vst.msk [vmem:[#allocation3 + $0x138] sm:$0xf] %vm6008, %v5857
    %6036 = vst.msk [vmem:[#allocation3 + $0x144] sm:$0xf] %vm6008, %v5859
    %6037 = vst.msk [vmem:[#allocation3 + $0x150] sm:$0xf] %vm6008, %v5861
    %6038 = vst.msk [vmem:[#allocation3 + $0x15c] sm:$0xf] %vm6008, %v5863
    %6039 = vst.msk [vmem:[#allocation3 + $0x168] sm:$0xf] %vm6008, %v5865
    %6040 = vst.msk [vmem:[#allocation3 + $0x174] sm:$0xf] %vm6008, %v5867
    %6041 = vst.msk [vmem:[#allocation3 + $0x180] sm:$0xf] %vm6008, %v5869
    %6042 = vst.msk [vmem:[#allocation3 + $0x18c] sm:$0xf] %vm6008, %v5871
    %6043 = vst.msk [vmem:[#allocation3 + $0x198] sm:$0xf] %vm6008, %v5873
    %6044 = vst.msk [vmem:[#allocation3 + $0x1a4] sm:$0xf] %vm6008, %v5875
    %6045 = vst.msk [vmem:[#allocation3 + $0x1b0] sm:$0xf] %vm6008, %v5877
    %6046 = vst.msk [vmem:[#allocation3 + $0x1bc] sm:$0xf] %vm6008, %v5879
    %6047 = vst.msk [vmem:[#allocation3 + $0x1c8] sm:$0xf] %vm6008, %v5881
    %6048 = vst.msk [vmem:[#allocation3 + $0x1d4] sm:$0xf] %vm6008, %v5883
    %6049 = vst.msk [vmem:[#allocation3 + $0x1e0] sm:$0xf] %vm6008, %v5885
    %6050 = vst.msk [vmem:[#allocation3 + $0x1ec] sm:$0xf] %vm6008, %v5887
    %6051 = vst.msk [vmem:[#allocation3 + $0x1f8] sm:$0xf] %vm6008, %v5889
    %6052 = vst.msk [vmem:[#allocation3 + $0x204] sm:$0xf] %vm6008, %v5891
    %6053 = vst.msk [vmem:[#allocation3 + $0x210] sm:$0xf] %vm6008, %v5893
    %6054 = vst.msk [vmem:[#allocation3 + $0x21c] sm:$0xf] %vm6008, %v5895
    %6055 = vst.msk [vmem:[#allocation3 + $0x228] sm:$0xf] %vm6008, %v5897
    %6056 = vst.msk [vmem:[#allocation3 + $0x234] sm:$0xf] %vm6008, %v5899
    %6057 = vst.msk [vmem:[#allocation3 + $0x240] sm:$0xf] %vm6008, %v5901
    %6058 = vst.msk [vmem:[#allocation3 + $0x24c] sm:$0xf] %vm6008, %v5903
    %6059 = vst.msk [vmem:[#allocation3 + $0x258] sm:$0xf] %vm6008, %v5905
    %6060 = vst.msk [vmem:[#allocation3 + $0x264] sm:$0xf] %vm6008, %v5907
    %6061 = vst.msk [vmem:[#allocation3 + $0x270] sm:$0xf] %vm6008, %v5909
    %6062 = vst.msk [vmem:[#allocation3 + $0x27c] sm:$0xf] %vm6008, %v5911
    %6063 = vst.msk [vmem:[#allocation3 + $0x288] sm:$0xf] %vm6008, %v5913
    %6064 = vst.msk [vmem:[#allocation3 + $0x294] sm:$0xf] %vm6008, %v5915
    %6065 = vst.msk [vmem:[#allocation3 + $0x2a0] sm:$0xf] %vm6008, %v5917
    %6066 = vst.msk [vmem:[#allocation3 + $0x2ac] sm:$0xf] %vm6008, %v5919
    %6067 = vst.msk [vmem:[#allocation3 + $0x2b8] sm:$0xf] %vm6008, %v5921
    %6068 = vst.msk [vmem:[#allocation3 + $0x2c4] sm:$0xf] %vm6008, %v5923
    %6069 = vst.msk [vmem:[#allocation3 + $0x2d0] sm:$0xf] %vm6008, %v5925
    %6070 = vst.msk [vmem:[#allocation3 + $0x2dc] sm:$0xf] %vm6008, %v5927
    %6071 = vst.msk [vmem:[#allocation3 + $0x2e8] sm:$0xf] %vm6008, %v5929
    %6072 = vst.msk [vmem:[#allocation3 + $0x2f4] sm:$0xf] %vm6008, %v5931
    %6073 = vst.msk [vmem:[#allocation3 + $0x300] sm:$0xf] %vm6008, %v5933
    %6074 = vst.msk [vmem:[#allocation3 + $0x30c] sm:$0xf] %vm6008, %v5935
    %6075 = vst.msk [vmem:[#allocation3 + $0x318] sm:$0xf] %vm6008, %v5937
    %6076 = vst.msk [vmem:[#allocation3 + $0x324] sm:$0xf] %vm6008, %v5939
    %v6077 = vld [vmem:[#allocation2 + $0x8] sm:$0xf]
    %v6078 = vld [vmem:[#allocation2 + $0xc] sm:$0xf]
    %v6079 = vld [vmem:[#allocation2 + $0x10] sm:$0xf]
    %v6080 = vld [vmem:[#allocation2 + $0x14] sm:$0xf]
    %v6081 = vld [vmem:[#allocation2 + $0x18] sm:$0xf]
    %v6082 = vld [vmem:[#allocation2 + $0x1c] sm:$0xf]
    %v6083 = vld [vmem:[#allocation2 + $0x20] sm:$0xf]
    %v6084 = vld [vmem:[#allocation2 + $0x24] sm:$0xf]
    %v6085 = vld [vmem:[#allocation2 + $0x28] sm:$0xf]
    %v6086 = vld [vmem:[#allocation2 + $0x2c] sm:$0xf]
    %v6087 = vld [vmem:[#allocation2 + $0x30] sm:$0xf]
    %v6088 = vld [vmem:[#allocation2 + $0x34] sm:$0xf]
    %v6089 = vld [vmem:[#allocation2 + $0x38] sm:$0xf]
    %v6090 = vld [vmem:[#allocation2 + $0x3c] sm:$0xf]
    %v6091 = vld [vmem:[#allocation2 + $0x40] sm:$0xf]
    %v6092 = vld [vmem:[#allocation2 + $0x44] sm:$0xf]
    %v6093 = vld [vmem:[#allocation2 + $0x48] sm:$0xf]
    %v6094 = vld [vmem:[#allocation2 + $0x4c] sm:$0xf]
    %v6095 = vld [vmem:[#allocation2 + $0x50] sm:$0xf]
    %v6096 = vld [vmem:[#allocation2 + $0x54] sm:$0xf]
    %v6097 = vld [vmem:[#allocation2 + $0x58] sm:$0xf]
    %v6098 = vld [vmem:[#allocation2 + $0x5c] sm:$0xf]
    %v6099 = vld [vmem:[#allocation2 + $0x60] sm:$0xf]
    %v6100 = vld [vmem:[#allocation2 + $0x64] sm:$0xf]
    %v6101 = vld [vmem:[#allocation2 + $0x68] sm:$0xf]
    %v6102 = vld [vmem:[#allocation2 + $0x6c] sm:$0xf]
    %v6103 = vld [vmem:[#allocation2 + $0x70] sm:$0xf]
    %v6104 = vld [vmem:[#allocation2 + $0x74] sm:$0xf]
    %v6105 = vld [vmem:[#allocation2 + $0x78] sm:$0xf]
    %v6106 = vld [vmem:[#allocation2 + $0x7c] sm:$0xf]
    %v6107 = vld [vmem:[#allocation2 + $0x80] sm:$0xf]
    %v6108 = vld [vmem:[#allocation2 + $0x84] sm:$0xf]
    %v6109 = vld [vmem:[#allocation2 + $0x88] sm:$0xf]
    %v6110 = vld [vmem:[#allocation2 + $0x8c] sm:$0xf]
    %v6111 = vld [vmem:[#allocation2 + $0x90] sm:$0xf]
    %v6112 = vld [vmem:[#allocation2 + $0x94] sm:$0xf]
    %v6113 = vld [vmem:[#allocation2 + $0x98] sm:$0xf]
    %v6114 = vld [vmem:[#allocation2 + $0x9c] sm:$0xf]
    %v6115 = vld [vmem:[#allocation2 + $0xa0] sm:$0xf]
    %v6116 = vld [vmem:[#allocation2 + $0xa4] sm:$0xf]
    %v6117 = vld [vmem:[#allocation2 + $0xa8] sm:$0xf]
    %v6118 = vld [vmem:[#allocation2 + $0xac] sm:$0xf]
    %v6119 = vld [vmem:[#allocation2 + $0xb0] sm:$0xf]
    %v6120 = vld [vmem:[#allocation2 + $0xb4] sm:$0xf]
    %v6121 = vld [vmem:[#allocation2 + $0xb8] sm:$0xf]
    %v6122 = vld [vmem:[#allocation2 + $0xbc] sm:$0xf]
    %v6123 = vld [vmem:[#allocation2 + $0xc0] sm:$0xf]
    %v6124 = vld [vmem:[#allocation2 + $0xc4] sm:$0xf]
    %v6125 = vld [vmem:[#allocation2 + $0xc8] sm:$0xf]
    %v6126 = vld [vmem:[#allocation2 + $0xcc] sm:$0xf]
    %v6127 = vld [vmem:[#allocation2 + $0xd0] sm:$0xf]
    %v6128 = vld [vmem:[#allocation2 + $0xd4] sm:$0xf]
    %v6129 = vld [vmem:[#allocation2 + $0xd8] sm:$0xf]
    %v6130 = vld [vmem:[#allocation2 + $0xdc] sm:$0xf]
    %v6131 = vld [vmem:[#allocation2 + $0xe0] sm:$0xf]
    %v6132 = vld [vmem:[#allocation2 + $0xe4] sm:$0xf]
    %v6133 = vld [vmem:[#allocation2 + $0xe8] sm:$0xf]
    %v6134 = vld [vmem:[#allocation2 + $0xec] sm:$0xf]
    %v6135 = vld [vmem:[#allocation2 + $0xf0] sm:$0xf]
    %v6136 = vld [vmem:[#allocation2 + $0xf4] sm:$0xf]
    %v6137 = vld [vmem:[#allocation2 + $0xf8] sm:$0xf]
    %v6138 = vld [vmem:[#allocation2 + $0xfc] sm:$0xf]
    %v6139 = vld [vmem:[#allocation2 + $0x100] sm:$0xf]
    %v6140 = vld [vmem:[#allocation2 + $0x104] sm:$0xf]
    %v6141 = vld [vmem:[#allocation2 + $0x108] sm:$0xf]
    %v6142 = vld [vmem:[#allocation2 + $0x10c] sm:$0xf]
    %v6143 = vld [vmem:[#allocation2 + $0x110] sm:$0xf]
    %v6144 = vld [vmem:[#allocation2 + $0x114] sm:$0xf]
    %6213 = vrot.lane.b32.xlu0 %v6077, 64
    %v6214 = vpop.permute.xlu0 %6213
    %6215 = vrot.lane.b32.xlu0 %v6078, 64
    %v6216 = vpop.permute.xlu0 %6215
    %6217 = vrot.lane.b32.xlu0 %v6079, 64
    %v6218 = vpop.permute.xlu0 %6217
    %6219 = vrot.lane.b32.xlu0 %v6080, 64
    %v6220 = vpop.permute.xlu0 %6219
    %6221 = vrot.lane.b32.xlu0 %v6081, 64
    %v6222 = vpop.permute.xlu0 %6221
    %6223 = vrot.lane.b32.xlu0 %v6082, 64
    %v6224 = vpop.permute.xlu0 %6223
    %6225 = vrot.lane.b32.xlu0 %v6083, 64
    %v6226 = vpop.permute.xlu0 %6225
    %6227 = vrot.lane.b32.xlu0 %v6084, 64
    %v6228 = vpop.permute.xlu0 %6227
    %6229 = vrot.lane.b32.xlu0 %v6085, 64
    %v6230 = vpop.permute.xlu0 %6229
    %6231 = vrot.lane.b32.xlu0 %v6086, 64
    %v6232 = vpop.permute.xlu0 %6231
    %6233 = vrot.lane.b32.xlu0 %v6087, 64
    %v6234 = vpop.permute.xlu0 %6233
    %6235 = vrot.lane.b32.xlu0 %v6088, 64
    %v6236 = vpop.permute.xlu0 %6235
    %6237 = vrot.lane.b32.xlu0 %v6089, 64
    %v6238 = vpop.permute.xlu0 %6237
    %6239 = vrot.lane.b32.xlu0 %v6090, 64
    %v6240 = vpop.permute.xlu0 %6239
    %6241 = vrot.lane.b32.xlu0 %v6091, 64
    %v6242 = vpop.permute.xlu0 %6241
    %6243 = vrot.lane.b32.xlu0 %v6092, 64
    %v6244 = vpop.permute.xlu0 %6243
    %6245 = vrot.lane.b32.xlu0 %v6093, 64
    %v6246 = vpop.permute.xlu0 %6245
    %6247 = vrot.lane.b32.xlu0 %v6094, 64
    %v6248 = vpop.permute.xlu0 %6247
    %6249 = vrot.lane.b32.xlu0 %v6095, 64
    %v6250 = vpop.permute.xlu0 %6249
    %6251 = vrot.lane.b32.xlu0 %v6096, 64
    %v6252 = vpop.permute.xlu0 %6251
    %6253 = vrot.lane.b32.xlu0 %v6097, 64
    %v6254 = vpop.permute.xlu0 %6253
    %6255 = vrot.lane.b32.xlu0 %v6098, 64
    %v6256 = vpop.permute.xlu0 %6255
    %6257 = vrot.lane.b32.xlu0 %v6099, 64
    %v6258 = vpop.permute.xlu0 %6257
    %6259 = vrot.lane.b32.xlu0 %v6100, 64
    %v6260 = vpop.permute.xlu0 %6259
    %6261 = vrot.lane.b32.xlu0 %v6101, 64
    %v6262 = vpop.permute.xlu0 %6261
    %6263 = vrot.lane.b32.xlu0 %v6102, 64
    %v6264 = vpop.permute.xlu0 %6263
    %6265 = vrot.lane.b32.xlu0 %v6103, 64
    %v6266 = vpop.permute.xlu0 %6265
    %6267 = vrot.lane.b32.xlu0 %v6104, 64
    %v6268 = vpop.permute.xlu0 %6267
    %6269 = vrot.lane.b32.xlu0 %v6105, 64
    %v6270 = vpop.permute.xlu0 %6269
    %6271 = vrot.lane.b32.xlu0 %v6106, 64
    %v6272 = vpop.permute.xlu0 %6271
    %6273 = vrot.lane.b32.xlu0 %v6107, 64
    %v6274 = vpop.permute.xlu0 %6273
    %6275 = vrot.lane.b32.xlu0 %v6108, 64
    %v6276 = vpop.permute.xlu0 %6275
    %6277 = vrot.lane.b32.xlu0 %v6109, 64
    %v6278 = vpop.permute.xlu0 %6277
    %6279 = vrot.lane.b32.xlu0 %v6110, 64
    %v6280 = vpop.permute.xlu0 %6279
    %6281 = vrot.lane.b32.xlu0 %v6111, 64
    %v6282 = vpop.permute.xlu0 %6281
    %6283 = vrot.lane.b32.xlu0 %v6112, 64
    %v6284 = vpop.permute.xlu0 %6283
    %6285 = vrot.lane.b32.xlu0 %v6113, 64
    %v6286 = vpop.permute.xlu0 %6285
    %6287 = vrot.lane.b32.xlu0 %v6114, 64
    %v6288 = vpop.permute.xlu0 %6287
    %6289 = vrot.lane.b32.xlu0 %v6115, 64
    %v6290 = vpop.permute.xlu0 %6289
    %6291 = vrot.lane.b32.xlu0 %v6116, 64
    %v6292 = vpop.permute.xlu0 %6291
    %6293 = vrot.lane.b32.xlu0 %v6117, 64
    %v6294 = vpop.permute.xlu0 %6293
    %6295 = vrot.lane.b32.xlu0 %v6118, 64
    %v6296 = vpop.permute.xlu0 %6295
    %6297 = vrot.lane.b32.xlu0 %v6119, 64
    %v6298 = vpop.permute.xlu0 %6297
    %6299 = vrot.lane.b32.xlu0 %v6120, 64
    %v6300 = vpop.permute.xlu0 %6299
    %6301 = vrot.lane.b32.xlu0 %v6121, 64
    %v6302 = vpop.permute.xlu0 %6301
    %6303 = vrot.lane.b32.xlu0 %v6122, 64
    %v6304 = vpop.permute.xlu0 %6303
    %6305 = vrot.lane.b32.xlu0 %v6123, 64
    %v6306 = vpop.permute.xlu0 %6305
    %6307 = vrot.lane.b32.xlu0 %v6124, 64
    %v6308 = vpop.permute.xlu0 %6307
    %6309 = vrot.lane.b32.xlu0 %v6125, 64
    %v6310 = vpop.permute.xlu0 %6309
    %6311 = vrot.lane.b32.xlu0 %v6126, 64
    %v6312 = vpop.permute.xlu0 %6311
    %6313 = vrot.lane.b32.xlu0 %v6127, 64
    %v6314 = vpop.permute.xlu0 %6313
    %6315 = vrot.lane.b32.xlu0 %v6128, 64
    %v6316 = vpop.permute.xlu0 %6315
    %6317 = vrot.lane.b32.xlu0 %v6129, 64
    %v6318 = vpop.permute.xlu0 %6317
    %6319 = vrot.lane.b32.xlu0 %v6130, 64
    %v6320 = vpop.permute.xlu0 %6319
    %6321 = vrot.lane.b32.xlu0 %v6131, 64
    %v6322 = vpop.permute.xlu0 %6321
    %6323 = vrot.lane.b32.xlu0 %v6132, 64
    %v6324 = vpop.permute.xlu0 %6323
    %6325 = vrot.lane.b32.xlu0 %v6133, 64
    %v6326 = vpop.permute.xlu0 %6325
    %6327 = vrot.lane.b32.xlu0 %v6134, 64
    %v6328 = vpop.permute.xlu0 %6327
    %6329 = vrot.lane.b32.xlu0 %v6135, 64
    %v6330 = vpop.permute.xlu0 %6329
    %6331 = vrot.lane.b32.xlu0 %v6136, 64
    %v6332 = vpop.permute.xlu0 %6331
    %6333 = vrot.lane.b32.xlu0 %v6137, 64
    %v6334 = vpop.permute.xlu0 %6333
    %6335 = vrot.lane.b32.xlu0 %v6138, 64
    %v6336 = vpop.permute.xlu0 %6335
    %6337 = vrot.lane.b32.xlu0 %v6139, 64
    %v6338 = vpop.permute.xlu0 %6337
    %6339 = vrot.lane.b32.xlu0 %v6140, 64
    %v6340 = vpop.permute.xlu0 %6339
    %6341 = vrot.lane.b32.xlu0 %v6141, 64
    %v6342 = vpop.permute.xlu0 %6341
    %6343 = vrot.lane.b32.xlu0 %v6142, 64
    %v6344 = vpop.permute.xlu0 %6343
    %6345 = vrot.lane.b32.xlu0 %v6143, 64
    %v6346 = vpop.permute.xlu0 %6345
    %6347 = vrot.lane.b32.xlu0 %v6144, 64
    %v6348 = vpop.permute.xlu0 %6347
    %vm6417 = vcmask 781824
    %6418 = vst.msk [vmem:[#allocation3] sm:$0xf] %vm6417, %v6214
    %6419 = vst.msk [vmem:[#allocation3 + $0xc] sm:$0xf] %vm6417, %v6216
    %6420 = vst.msk [vmem:[#allocation3 + $0x18] sm:$0xf] %vm6417, %v6218
    %6421 = vst.msk [vmem:[#allocation3 + $0x24] sm:$0xf] %vm6417, %v6220
    %6422 = vst.msk [vmem:[#allocation3 + $0x30] sm:$0xf] %vm6417, %v6222
    %6423 = vst.msk [vmem:[#allocation3 + $0x3c] sm:$0xf] %vm6417, %v6224
    %6424 = vst.msk [vmem:[#allocation3 + $0x48] sm:$0xf] %vm6417, %v6226
    %6425 = vst.msk [vmem:[#allocation3 + $0x54] sm:$0xf] %vm6417, %v6228
    %6426 = vst.msk [vmem:[#allocation3 + $0x60] sm:$0xf] %vm6417, %v6230
    %6427 = vst.msk [vmem:[#allocation3 + $0x6c] sm:$0xf] %vm6417, %v6232
    %6428 = vst.msk [vmem:[#allocation3 + $0x78] sm:$0xf] %vm6417, %v6234
    %6429 = vst.msk [vmem:[#allocation3 + $0x84] sm:$0xf] %vm6417, %v6236
    %6430 = vst.msk [vmem:[#allocation3 + $0x90] sm:$0xf] %vm6417, %v6238
    %6431 = vst.msk [vmem:[#allocation3 + $0x9c] sm:$0xf] %vm6417, %v6240
    %6432 = vst.msk [vmem:[#allocation3 + $0xa8] sm:$0xf] %vm6417, %v6242
    %6433 = vst.msk [vmem:[#allocation3 + $0xb4] sm:$0xf] %vm6417, %v6244
    %6434 = vst.msk [vmem:[#allocation3 + $0xc0] sm:$0xf] %vm6417, %v6246
    %6435 = vst.msk [vmem:[#allocation3 + $0xcc] sm:$0xf] %vm6417, %v6248
    %6436 = vst.msk [vmem:[#allocation3 + $0xd8] sm:$0xf] %vm6417, %v6250
    %6437 = vst.msk [vmem:[#allocation3 + $0xe4] sm:$0xf] %vm6417, %v6252
    %6438 = vst.msk [vmem:[#allocation3 + $0xf0] sm:$0xf] %vm6417, %v6254
    %6439 = vst.msk [vmem:[#allocation3 + $0xfc] sm:$0xf] %vm6417, %v6256
    %6440 = vst.msk [vmem:[#allocation3 + $0x108] sm:$0xf] %vm6417, %v6258
    %6441 = vst.msk [vmem:[#allocation3 + $0x114] sm:$0xf] %vm6417, %v6260
    %6442 = vst.msk [vmem:[#allocation3 + $0x120] sm:$0xf] %vm6417, %v6262
    %6443 = vst.msk [vmem:[#allocation3 + $0x12c] sm:$0xf] %vm6417, %v6264
    %6444 = vst.msk [vmem:[#allocation3 + $0x138] sm:$0xf] %vm6417, %v6266
    %6445 = vst.msk [vmem:[#allocation3 + $0x144] sm:$0xf] %vm6417, %v6268
    %6446 = vst.msk [vmem:[#allocation3 + $0x150] sm:$0xf] %vm6417, %v6270
    %6447 = vst.msk [vmem:[#allocation3 + $0x15c] sm:$0xf] %vm6417, %v6272
    %6448 = vst.msk [vmem:[#allocation3 + $0x168] sm:$0xf] %vm6417, %v6274
    %6449 = vst.msk [vmem:[#allocation3 + $0x174] sm:$0xf] %vm6417, %v6276
    %6450 = vst.msk [vmem:[#allocation3 + $0x180] sm:$0xf] %vm6417, %v6278
    %6451 = vst.msk [vmem:[#allocation3 + $0x18c] sm:$0xf] %vm6417, %v6280
    %6452 = vst.msk [vmem:[#allocation3 + $0x198] sm:$0xf] %vm6417, %v6282
    %6453 = vst.msk [vmem:[#allocation3 + $0x1a4] sm:$0xf] %vm6417, %v6284
    %6454 = vst.msk [vmem:[#allocation3 + $0x1b0] sm:$0xf] %vm6417, %v6286
    %6455 = vst.msk [vmem:[#allocation3 + $0x1bc] sm:$0xf] %vm6417, %v6288
    %6456 = vst.msk [vmem:[#allocation3 + $0x1c8] sm:$0xf] %vm6417, %v6290
    %6457 = vst.msk [vmem:[#allocation3 + $0x1d4] sm:$0xf] %vm6417, %v6292
    %6458 = vst.msk [vmem:[#allocation3 + $0x1e0] sm:$0xf] %vm6417, %v6294
    %6459 = vst.msk [vmem:[#allocation3 + $0x1ec] sm:$0xf] %vm6417, %v6296
    %6460 = vst.msk [vmem:[#allocation3 + $0x1f8] sm:$0xf] %vm6417, %v6298
    %6461 = vst.msk [vmem:[#allocation3 + $0x204] sm:$0xf] %vm6417, %v6300
    %6462 = vst.msk [vmem:[#allocation3 + $0x210] sm:$0xf] %vm6417, %v6302
    %6463 = vst.msk [vmem:[#allocation3 + $0x21c] sm:$0xf] %vm6417, %v6304
    %6464 = vst.msk [vmem:[#allocation3 + $0x228] sm:$0xf] %vm6417, %v6306
    %6465 = vst.msk [vmem:[#allocation3 + $0x234] sm:$0xf] %vm6417, %v6308
    %6466 = vst.msk [vmem:[#allocation3 + $0x240] sm:$0xf] %vm6417, %v6310
    %6467 = vst.msk [vmem:[#allocation3 + $0x24c] sm:$0xf] %vm6417, %v6312
    %6468 = vst.msk [vmem:[#allocation3 + $0x258] sm:$0xf] %vm6417, %v6314
    %6469 = vst.msk [vmem:[#allocation3 + $0x264] sm:$0xf] %vm6417, %v6316
    %6470 = vst.msk [vmem:[#allocation3 + $0x270] sm:$0xf] %vm6417, %v6318
    %6471 = vst.msk [vmem:[#allocation3 + $0x27c] sm:$0xf] %vm6417, %v6320
    %6472 = vst.msk [vmem:[#allocation3 + $0x288] sm:$0xf] %vm6417, %v6322
    %6473 = vst.msk [vmem:[#allocation3 + $0x294] sm:$0xf] %vm6417, %v6324
    %6474 = vst.msk [vmem:[#allocation3 + $0x2a0] sm:$0xf] %vm6417, %v6326
    %6475 = vst.msk [vmem:[#allocation3 + $0x2ac] sm:$0xf] %vm6417, %v6328
    %6476 = vst.msk [vmem:[#allocation3 + $0x2b8] sm:$0xf] %vm6417, %v6330
    %6477 = vst.msk [vmem:[#allocation3 + $0x2c4] sm:$0xf] %vm6417, %v6332
    %6478 = vst.msk [vmem:[#allocation3 + $0x2d0] sm:$0xf] %vm6417, %v6334
    %6479 = vst.msk [vmem:[#allocation3 + $0x2dc] sm:$0xf] %vm6417, %v6336
    %6480 = vst.msk [vmem:[#allocation3 + $0x2e8] sm:$0xf] %vm6417, %v6338
    %6481 = vst.msk [vmem:[#allocation3 + $0x2f4] sm:$0xf] %vm6417, %v6340
    %6482 = vst.msk [vmem:[#allocation3 + $0x300] sm:$0xf] %vm6417, %v6342
    %6483 = vst.msk [vmem:[#allocation3 + $0x30c] sm:$0xf] %vm6417, %v6344
    %6484 = vst.msk [vmem:[#allocation3 + $0x318] sm:$0xf] %vm6417, %v6346
    %6485 = vst.msk [vmem:[#allocation3 + $0x324] sm:$0xf] %vm6417, %v6348
    %v6486 = vld [vmem:[#allocation2 + $0x1c] sm:$0xf]
    %v6487 = vld [vmem:[#allocation2 + $0x20] sm:$0xf]
    %v6488 = vld [vmem:[#allocation2 + $0x24] sm:$0xf]
    %v6489 = vld [vmem:[#allocation2 + $0x28] sm:$0xf]
    %v6490 = vld [vmem:[#allocation2 + $0x2c] sm:$0xf]
    %v6491 = vld [vmem:[#allocation2 + $0x30] sm:$0xf]
    %v6492 = vld [vmem:[#allocation2 + $0x34] sm:$0xf]
    %v6493 = vld [vmem:[#allocation2 + $0x38] sm:$0xf]
    %v6494 = vld [vmem:[#allocation2 + $0x3c] sm:$0xf]
    %v6495 = vld [vmem:[#allocation2 + $0x40] sm:$0xf]
    %v6496 = vld [vmem:[#allocation2 + $0x44] sm:$0xf]
    %v6497 = vld [vmem:[#allocation2 + $0x48] sm:$0xf]
    %v6498 = vld [vmem:[#allocation2 + $0x4c] sm:$0xf]
    %v6499 = vld [vmem:[#allocation2 + $0x50] sm:$0xf]
    %v6500 = vld [vmem:[#allocation2 + $0x54] sm:$0xf]
    %v6501 = vld [vmem:[#allocation2 + $0x58] sm:$0xf]
    %v6502 = vld [vmem:[#allocation2 + $0x5c] sm:$0xf]
    %v6503 = vld [vmem:[#allocation2 + $0x60] sm:$0xf]
    %v6504 = vld [vmem:[#allocation2 + $0x64] sm:$0xf]
    %v6505 = vld [vmem:[#allocation2 + $0x68] sm:$0xf]
    %v6506 = vld [vmem:[#allocation2 + $0x6c] sm:$0xf]
    %v6507 = vld [vmem:[#allocation2 + $0x70] sm:$0xf]
    %v6508 = vld [vmem:[#allocation2 + $0x74] sm:$0xf]
    %v6509 = vld [vmem:[#allocation2 + $0x78] sm:$0xf]
    %v6510 = vld [vmem:[#allocation2 + $0x7c] sm:$0xf]
    %v6511 = vld [vmem:[#allocation2 + $0x80] sm:$0xf]
    %v6512 = vld [vmem:[#allocation2 + $0x84] sm:$0xf]
    %v6513 = vld [vmem:[#allocation2 + $0x88] sm:$0xf]
    %v6514 = vld [vmem:[#allocation2 + $0x8c] sm:$0xf]
    %v6515 = vld [vmem:[#allocation2 + $0x90] sm:$0xf]
    %v6516 = vld [vmem:[#allocation2 + $0x94] sm:$0xf]
    %v6517 = vld [vmem:[#allocation2 + $0x98] sm:$0xf]
    %v6518 = vld [vmem:[#allocation2 + $0x9c] sm:$0xf]
    %v6519 = vld [vmem:[#allocation2 + $0xa0] sm:$0xf]
    %v6520 = vld [vmem:[#allocation2 + $0xa4] sm:$0xf]
    %v6521 = vld [vmem:[#allocation2 + $0xa8] sm:$0xf]
    %v6522 = vld [vmem:[#allocation2 + $0xac] sm:$0xf]
    %v6523 = vld [vmem:[#allocation2 + $0xb0] sm:$0xf]
    %v6524 = vld [vmem:[#allocation2 + $0xb4] sm:$0xf]
    %v6525 = vld [vmem:[#allocation2 + $0xb8] sm:$0xf]
    %v6526 = vld [vmem:[#allocation2 + $0xbc] sm:$0xf]
    %v6527 = vld [vmem:[#allocation2 + $0xc0] sm:$0xf]
    %v6528 = vld [vmem:[#allocation2 + $0xc4] sm:$0xf]
    %v6529 = vld [vmem:[#allocation2 + $0xc8] sm:$0xf]
    %v6530 = vld [vmem:[#allocation2 + $0xcc] sm:$0xf]
    %v6531 = vld [vmem:[#allocation2 + $0xd0] sm:$0xf]
    %v6532 = vld [vmem:[#allocation2 + $0xd4] sm:$0xf]
    %v6533 = vld [vmem:[#allocation2 + $0xd8] sm:$0xf]
    %v6534 = vld [vmem:[#allocation2 + $0xdc] sm:$0xf]
    %v6535 = vld [vmem:[#allocation2 + $0xe0] sm:$0xf]
    %v6536 = vld [vmem:[#allocation2 + $0xe4] sm:$0xf]
    %v6537 = vld [vmem:[#allocation2 + $0xe8] sm:$0xf]
    %v6538 = vld [vmem:[#allocation2 + $0xec] sm:$0xf]
    %v6539 = vld [vmem:[#allocation2 + $0xf0] sm:$0xf]
    %v6540 = vld [vmem:[#allocation2 + $0xf4] sm:$0xf]
    %v6541 = vld [vmem:[#allocation2 + $0xf8] sm:$0xf]
    %v6542 = vld [vmem:[#allocation2 + $0xfc] sm:$0xf]
    %v6543 = vld [vmem:[#allocation2 + $0x100] sm:$0xf]
    %v6544 = vld [vmem:[#allocation2 + $0x104] sm:$0xf]
    %v6545 = vld [vmem:[#allocation2 + $0x108] sm:$0xf]
    %v6546 = vld [vmem:[#allocation2 + $0x10c] sm:$0xf]
    %v6547 = vld [vmem:[#allocation2 + $0x110] sm:$0xf]
    %v6548 = vld [vmem:[#allocation2 + $0x114] sm:$0xf]
    %v6549 = vld [vmem:[#allocation2 + $0x118] sm:$0xf]
    %v6550 = vld [vmem:[#allocation2 + $0x11c] sm:$0xf]
    %v6551 = vld [vmem:[#allocation2 + $0x120] sm:$0xf]
    %v6552 = vld [vmem:[#allocation2 + $0x124] sm:$0xf]
    %v6553 = vld [vmem:[#allocation2 + $0x128] sm:$0xf]
    %6622 = vrot.lane.b32.xlu0 %v6486, 96
    %v6623 = vpop.permute.xlu0 %6622
    %6624 = vrot.lane.b32.xlu0 %v6487, 96
    %v6625 = vpop.permute.xlu0 %6624
    %6626 = vrot.lane.b32.xlu0 %v6488, 96
    %v6627 = vpop.permute.xlu0 %6626
    %6628 = vrot.lane.b32.xlu0 %v6489, 96
    %v6629 = vpop.permute.xlu0 %6628
    %6630 = vrot.lane.b32.xlu0 %v6490, 96
    %v6631 = vpop.permute.xlu0 %6630
    %6632 = vrot.lane.b32.xlu0 %v6491, 96
    %v6633 = vpop.permute.xlu0 %6632
    %6634 = vrot.lane.b32.xlu0 %v6492, 96
    %v6635 = vpop.permute.xlu0 %6634
    %6636 = vrot.lane.b32.xlu0 %v6493, 96
    %v6637 = vpop.permute.xlu0 %6636
    %6638 = vrot.lane.b32.xlu0 %v6494, 96
    %v6639 = vpop.permute.xlu0 %6638
    %6640 = vrot.lane.b32.xlu0 %v6495, 96
    %v6641 = vpop.permute.xlu0 %6640
    %6642 = vrot.lane.b32.xlu0 %v6496, 96
    %v6643 = vpop.permute.xlu0 %6642
    %6644 = vrot.lane.b32.xlu0 %v6497, 96
    %v6645 = vpop.permute.xlu0 %6644
    %6646 = vrot.lane.b32.xlu0 %v6498, 96
    %v6647 = vpop.permute.xlu0 %6646
    %6648 = vrot.lane.b32.xlu0 %v6499, 96
    %v6649 = vpop.permute.xlu0 %6648
    %6650 = vrot.lane.b32.xlu0 %v6500, 96
    %v6651 = vpop.permute.xlu0 %6650
    %6652 = vrot.lane.b32.xlu0 %v6501, 96
    %v6653 = vpop.permute.xlu0 %6652
    %6654 = vrot.lane.b32.xlu0 %v6502, 96
    %v6655 = vpop.permute.xlu0 %6654
    %6656 = vrot.lane.b32.xlu0 %v6503, 96
    %v6657 = vpop.permute.xlu0 %6656
    %6658 = vrot.lane.b32.xlu0 %v6504, 96
    %v6659 = vpop.permute.xlu0 %6658
    %6660 = vrot.lane.b32.xlu0 %v6505, 96
    %v6661 = vpop.permute.xlu0 %6660
    %6662 = vrot.lane.b32.xlu0 %v6506, 96
    %v6663 = vpop.permute.xlu0 %6662
    %6664 = vrot.lane.b32.xlu0 %v6507, 96
    %v6665 = vpop.permute.xlu0 %6664
    %6666 = vrot.lane.b32.xlu0 %v6508, 96
    %v6667 = vpop.permute.xlu0 %6666
    %6668 = vrot.lane.b32.xlu0 %v6509, 96
    %v6669 = vpop.permute.xlu0 %6668
    %6670 = vrot.lane.b32.xlu0 %v6510, 96
    %v6671 = vpop.permute.xlu0 %6670
    %6672 = vrot.lane.b32.xlu0 %v6511, 96
    %v6673 = vpop.permute.xlu0 %6672
    %6674 = vrot.lane.b32.xlu0 %v6512, 96
    %v6675 = vpop.permute.xlu0 %6674
    %6676 = vrot.lane.b32.xlu0 %v6513, 96
    %v6677 = vpop.permute.xlu0 %6676
    %6678 = vrot.lane.b32.xlu0 %v6514, 96
    %v6679 = vpop.permute.xlu0 %6678
    %6680 = vrot.lane.b32.xlu0 %v6515, 96
    %v6681 = vpop.permute.xlu0 %6680
    %6682 = vrot.lane.b32.xlu0 %v6516, 96
    %v6683 = vpop.permute.xlu0 %6682
    %6684 = vrot.lane.b32.xlu0 %v6517, 96
    %v6685 = vpop.permute.xlu0 %6684
    %6686 = vrot.lane.b32.xlu0 %v6518, 96
    %v6687 = vpop.permute.xlu0 %6686
    %6688 = vrot.lane.b32.xlu0 %v6519, 96
    %v6689 = vpop.permute.xlu0 %6688
    %6690 = vrot.lane.b32.xlu0 %v6520, 96
    %v6691 = vpop.permute.xlu0 %6690
    %6692 = vrot.lane.b32.xlu0 %v6521, 96
    %v6693 = vpop.permute.xlu0 %6692
    %6694 = vrot.lane.b32.xlu0 %v6522, 96
    %v6695 = vpop.permute.xlu0 %6694
    %6696 = vrot.lane.b32.xlu0 %v6523, 96
    %v6697 = vpop.permute.xlu0 %6696
    %6698 = vrot.lane.b32.xlu0 %v6524, 96
    %v6699 = vpop.permute.xlu0 %6698
    %6700 = vrot.lane.b32.xlu0 %v6525, 96
    %v6701 = vpop.permute.xlu0 %6700
    %6702 = vrot.lane.b32.xlu0 %v6526, 96
    %v6703 = vpop.permute.xlu0 %6702
    %6704 = vrot.lane.b32.xlu0 %v6527, 96
    %v6705 = vpop.permute.xlu0 %6704
    %6706 = vrot.lane.b32.xlu0 %v6528, 96
    %v6707 = vpop.permute.xlu0 %6706
    %6708 = vrot.lane.b32.xlu0 %v6529, 96
    %v6709 = vpop.permute.xlu0 %6708
    %6710 = vrot.lane.b32.xlu0 %v6530, 96
    %v6711 = vpop.permute.xlu0 %6710
    %6712 = vrot.lane.b32.xlu0 %v6531, 96
    %v6713 = vpop.permute.xlu0 %6712
    %6714 = vrot.lane.b32.xlu0 %v6532, 96
    %v6715 = vpop.permute.xlu0 %6714
    %6716 = vrot.lane.b32.xlu0 %v6533, 96
    %v6717 = vpop.permute.xlu0 %6716
    %6718 = vrot.lane.b32.xlu0 %v6534, 96
    %v6719 = vpop.permute.xlu0 %6718
    %6720 = vrot.lane.b32.xlu0 %v6535, 96
    %v6721 = vpop.permute.xlu0 %6720
    %6722 = vrot.lane.b32.xlu0 %v6536, 96
    %v6723 = vpop.permute.xlu0 %6722
    %6724 = vrot.lane.b32.xlu0 %v6537, 96
    %v6725 = vpop.permute.xlu0 %6724
    %6726 = vrot.lane.b32.xlu0 %v6538, 96
    %v6727 = vpop.permute.xlu0 %6726
    %6728 = vrot.lane.b32.xlu0 %v6539, 96
    %v6729 = vpop.permute.xlu0 %6728
    %6730 = vrot.lane.b32.xlu0 %v6540, 96
    %v6731 = vpop.permute.xlu0 %6730
    %6732 = vrot.lane.b32.xlu0 %v6541, 96
    %v6733 = vpop.permute.xlu0 %6732
    %6734 = vrot.lane.b32.xlu0 %v6542, 96
    %v6735 = vpop.permute.xlu0 %6734
    %6736 = vrot.lane.b32.xlu0 %v6543, 96
    %v6737 = vpop.permute.xlu0 %6736
    %6738 = vrot.lane.b32.xlu0 %v6544, 96
    %v6739 = vpop.permute.xlu0 %6738
    %6740 = vrot.lane.b32.xlu0 %v6545, 96
    %v6741 = vpop.permute.xlu0 %6740
    %6742 = vrot.lane.b32.xlu0 %v6546, 96
    %v6743 = vpop.permute.xlu0 %6742
    %6744 = vrot.lane.b32.xlu0 %v6547, 96
    %v6745 = vpop.permute.xlu0 %6744
    %6746 = vrot.lane.b32.xlu0 %v6548, 96
    %v6747 = vpop.permute.xlu0 %6746
    %6748 = vrot.lane.b32.xlu0 %v6549, 96
    %v6749 = vpop.permute.xlu0 %6748
    %6750 = vrot.lane.b32.xlu0 %v6550, 96
    %v6751 = vpop.permute.xlu0 %6750
    %6752 = vrot.lane.b32.xlu0 %v6551, 96
    %v6753 = vpop.permute.xlu0 %6752
    %6754 = vrot.lane.b32.xlu0 %v6552, 96
    %v6755 = vpop.permute.xlu0 %6754
    %6756 = vrot.lane.b32.xlu0 %v6553, 96
    %v6757 = vpop.permute.xlu0 %6756
    %vm6826 = vcmask 1044224
    %6827 = vst.msk [vmem:[#allocation3] sm:$0xf] %vm6826, %v6623
    %6828 = vst.msk [vmem:[#allocation3 + $0xc] sm:$0xf] %vm6826, %v6625
    %6829 = vst.msk [vmem:[#allocation3 + $0x18] sm:$0xf] %vm6826, %v6627
    %6830 = vst.msk [vmem:[#allocation3 + $0x24] sm:$0xf] %vm6826, %v6629
    %6831 = vst.msk [vmem:[#allocation3 + $0x30] sm:$0xf] %vm6826, %v6631
    %6832 = vst.msk [vmem:[#allocation3 + $0x3c] sm:$0xf] %vm6826, %v6633
    %6833 = vst.msk [vmem:[#allocation3 + $0x48] sm:$0xf] %vm6826, %v6635
    %6834 = vst.msk [vmem:[#allocation3 + $0x54] sm:$0xf] %vm6826, %v6637
    %6835 = vst.msk [vmem:[#allocation3 + $0x60] sm:$0xf] %vm6826, %v6639
    %6836 = vst.msk [vmem:[#allocation3 + $0x6c] sm:$0xf] %vm6826, %v6641
    %6837 = vst.msk [vmem:[#allocation3 + $0x78] sm:$0xf] %vm6826, %v6643
    %6838 = vst.msk [vmem:[#allocation3 + $0x84] sm:$0xf] %vm6826, %v6645
    %6839 = vst.msk [vmem:[#allocation3 + $0x90] sm:$0xf] %vm6826, %v6647
    %6840 = vst.msk [vmem:[#allocation3 + $0x9c] sm:$0xf] %vm6826, %v6649
    %6841 = vst.msk [vmem:[#allocation3 + $0xa8] sm:$0xf] %vm6826, %v6651
    %6842 = vst.msk [vmem:[#allocation3 + $0xb4] sm:$0xf] %vm6826, %v6653
    %6843 = vst.msk [vmem:[#allocation3 + $0xc0] sm:$0xf] %vm6826, %v6655
    %6844 = vst.msk [vmem:[#allocation3 + $0xcc] sm:$0xf] %vm6826, %v6657
    %6845 = vst.msk [vmem:[#allocation3 + $0xd8] sm:$0xf] %vm6826, %v6659
    %6846 = vst.msk [vmem:[#allocation3 + $0xe4] sm:$0xf] %vm6826, %v6661
    %6847 = vst.msk [vmem:[#allocation3 + $0xf0] sm:$0xf] %vm6826, %v6663
    %6848 = vst.msk [vmem:[#allocation3 + $0xfc] sm:$0xf] %vm6826, %v6665
    %6849 = vst.msk [vmem:[#allocation3 + $0x108] sm:$0xf] %vm6826, %v6667
    %6850 = vst.msk [vmem:[#allocation3 + $0x114] sm:$0xf] %vm6826, %v6669
    %6851 = vst.msk [vmem:[#allocation3 + $0x120] sm:$0xf] %vm6826, %v6671
    %6852 = vst.msk [vmem:[#allocation3 + $0x12c] sm:$0xf] %vm6826, %v6673
    %6853 = vst.msk [vmem:[#allocation3 + $0x138] sm:$0xf] %vm6826, %v6675
    %6854 = vst.msk [vmem:[#allocation3 + $0x144] sm:$0xf] %vm6826, %v6677
    %6855 = vst.msk [vmem:[#allocation3 + $0x150] sm:$0xf] %vm6826, %v6679
    %6856 = vst.msk [vmem:[#allocation3 + $0x15c] sm:$0xf] %vm6826, %v6681
    %6857 = vst.msk [vmem:[#allocation3 + $0x168] sm:$0xf] %vm6826, %v6683
    %6858 = vst.msk [vmem:[#allocation3 + $0x174] sm:$0xf] %vm6826, %v6685
    %6859 = vst.msk [vmem:[#allocation3 + $0x180] sm:$0xf] %vm6826, %v6687
    %6860 = vst.msk [vmem:[#allocation3 + $0x18c] sm:$0xf] %vm6826, %v6689
    %6861 = vst.msk [vmem:[#allocation3 + $0x198] sm:$0xf] %vm6826, %v6691
    %6862 = vst.msk [vmem:[#allocation3 + $0x1a4] sm:$0xf] %vm6826, %v6693
    %6863 = vst.msk [vmem:[#allocation3 + $0x1b0] sm:$0xf] %vm6826, %v6695
    %6864 = vst.msk [vmem:[#allocation3 + $0x1bc] sm:$0xf] %vm6826, %v6697
    %6865 = vst.msk [vmem:[#allocation3 + $0x1c8] sm:$0xf] %vm6826, %v6699
    %6866 = vst.msk [vmem:[#allocation3 + $0x1d4] sm:$0xf] %vm6826, %v6701
    %6867 = vst.msk [vmem:[#allocation3 + $0x1e0] sm:$0xf] %vm6826, %v6703
    %6868 = vst.msk [vmem:[#allocation3 + $0x1ec] sm:$0xf] %vm6826, %v6705
    %6869 = vst.msk [vmem:[#allocation3 + $0x1f8] sm:$0xf] %vm6826, %v6707
    %6870 = vst.msk [vmem:[#allocation3 + $0x204] sm:$0xf] %vm6826, %v6709
    %6871 = vst.msk [vmem:[#allocation3 + $0x210] sm:$0xf] %vm6826, %v6711
    %6872 = vst.msk [vmem:[#allocation3 + $0x21c] sm:$0xf] %vm6826, %v6713
    %6873 = vst.msk [vmem:[#allocation3 + $0x228] sm:$0xf] %vm6826, %v6715
    %6874 = vst.msk [vmem:[#allocation3 + $0x234] sm:$0xf] %vm6826, %v6717
    %6875 = vst.msk [vmem:[#allocation3 + $0x240] sm:$0xf] %vm6826, %v6719
    %6876 = vst.msk [vmem:[#allocation3 + $0x24c] sm:$0xf] %vm6826, %v6721
    %6877 = vst.msk [vmem:[#allocation3 + $0x258] sm:$0xf] %vm6826, %v6723
    %6878 = vst.msk [vmem:[#allocation3 + $0x264] sm:$0xf] %vm6826, %v6725
    %6879 = vst.msk [vmem:[#allocation3 + $0x270] sm:$0xf] %vm6826, %v6727
    %6880 = vst.msk [vmem:[#allocation3 + $0x27c] sm:$0xf] %vm6826, %v6729
    %6881 = vst.msk [vmem:[#allocation3 + $0x288] sm:$0xf] %vm6826, %v6731
    %6882 = vst.msk [vmem:[#allocation3 + $0x294] sm:$0xf] %vm6826, %v6733
    %6883 = vst.msk [vmem:[#allocation3 + $0x2a0] sm:$0xf] %vm6826, %v6735
    %6884 = vst.msk [vmem:[#allocation3 + $0x2ac] sm:$0xf] %vm6826, %v6737
    %6885 = vst.msk [vmem:[#allocation3 + $0x2b8] sm:$0xf] %vm6826, %v6739
    %6886 = vst.msk [vmem:[#allocation3 + $0x2c4] sm:$0xf] %vm6826, %v6741
    %6887 = vst.msk [vmem:[#allocation3 + $0x2d0] sm:$0xf] %vm6826, %v6743
    %6888 = vst.msk [vmem:[#allocation3 + $0x2dc] sm:$0xf] %vm6826, %v6745
    %6889 = vst.msk [vmem:[#allocation3 + $0x2e8] sm:$0xf] %vm6826, %v6747
    %6890 = vst.msk [vmem:[#allocation3 + $0x2f4] sm:$0xf] %vm6826, %v6749
    %6891 = vst.msk [vmem:[#allocation3 + $0x300] sm:$0xf] %vm6826, %v6751
    %6892 = vst.msk [vmem:[#allocation3 + $0x30c] sm:$0xf] %vm6826, %v6753
    %6893 = vst.msk [vmem:[#allocation3 + $0x318] sm:$0xf] %vm6826, %v6755
    %6894 = vst.msk [vmem:[#allocation3 + $0x324] sm:$0xf] %vm6826, %v6757
    %v6895 = vld [vmem:[#allocation2 + $0x20] sm:$0xf]
    %v6896 = vld [vmem:[#allocation2 + $0x24] sm:$0xf]
    %v6897 = vld [vmem:[#allocation2 + $0x28] sm:$0xf]
    %v6898 = vld [vmem:[#allocation2 + $0x2c] sm:$0xf]
    %v6899 = vld [vmem:[#allocation2 + $0x30] sm:$0xf]
    %v6900 = vld [vmem:[#allocation2 + $0x34] sm:$0xf]
    %v6901 = vld [vmem:[#allocation2 + $0x38] sm:$0xf]
    %v6902 = vld [vmem:[#allocation2 + $0x3c] sm:$0xf]
    %v6903 = vld [vmem:[#allocation2 + $0x40] sm:$0xf]
    %v6904 = vld [vmem:[#allocation2 + $0x44] sm:$0xf]
    %v6905 = vld [vmem:[#allocation2 + $0x48] sm:$0xf]
    %v6906 = vld [vmem:[#allocation2 + $0x4c] sm:$0xf]
    %v6907 = vld [vmem:[#allocation2 + $0x50] sm:$0xf]
    %v6908 = vld [vmem:[#allocation2 + $0x54] sm:$0xf]
    %v6909 = vld [vmem:[#allocation2 + $0x58] sm:$0xf]
    %v6910 = vld [vmem:[#allocation2 + $0x5c] sm:$0xf]
    %v6911 = vld [vmem:[#allocation2 + $0x60] sm:$0xf]
    %v6912 = vld [vmem:[#allocation2 + $0x64] sm:$0xf]
    %v6913 = vld [vmem:[#allocation2 + $0x68] sm:$0xf]
    %v6914 = vld [vmem:[#allocation2 + $0x6c] sm:$0xf]
    %v6915 = vld [vmem:[#allocation2 + $0x70] sm:$0xf]
    %v6916 = vld [vmem:[#allocation2 + $0x74] sm:$0xf]
    %v6917 = vld [vmem:[#allocation2 + $0x78] sm:$0xf]
    %v6918 = vld [vmem:[#allocation2 + $0x7c] sm:$0xf]
    %v6919 = vld [vmem:[#allocation2 + $0x80] sm:$0xf]
    %v6920 = vld [vmem:[#allocation2 + $0x84] sm:$0xf]
    %v6921 = vld [vmem:[#allocation2 + $0x88] sm:$0xf]
    %v6922 = vld [vmem:[#allocation2 + $0x8c] sm:$0xf]
    %v6923 = vld [vmem:[#allocation2 + $0x90] sm:$0xf]
    %v6924 = vld [vmem:[#allocation2 + $0x94] sm:$0xf]
    %v6925 = vld [vmem:[#allocation2 + $0x98] sm:$0xf]
    %v6926 = vld [vmem:[#allocation2 + $0x9c] sm:$0xf]
    %v6927 = vld [vmem:[#allocation2 + $0xa0] sm:$0xf]
    %v6928 = vld [vmem:[#allocation2 + $0xa4] sm:$0xf]
    %v6929 = vld [vmem:[#allocation2 + $0xa8] sm:$0xf]
    %v6930 = vld [vmem:[#allocation2 + $0xac] sm:$0xf]
    %v6931 = vld [vmem:[#allocation2 + $0xb0] sm:$0xf]
    %v6932 = vld [vmem:[#allocation2 + $0xb4] sm:$0xf]
    %v6933 = vld [vmem:[#allocation2 + $0xb8] sm:$0xf]
    %v6934 = vld [vmem:[#allocation2 + $0xbc] sm:$0xf]
    %v6935 = vld [vmem:[#allocation2 + $0xc0] sm:$0xf]
    %v6936 = vld [vmem:[#allocation2 + $0xc4] sm:$0xf]
    %v6937 = vld [vmem:[#allocation2 + $0xc8] sm:$0xf]
    %v6938 = vld [vmem:[#allocation2 + $0xcc] sm:$0xf]
    %v6939 = vld [vmem:[#allocation2 + $0xd0] sm:$0xf]
    %v6940 = vld [vmem:[#allocation2 + $0xd4] sm:$0xf]
    %v6941 = vld [vmem:[#allocation2 + $0xd8] sm:$0xf]
    %v6942 = vld [vmem:[#allocation2 + $0xdc] sm:$0xf]
    %v6943 = vld [vmem:[#allocation2 + $0xe0] sm:$0xf]
    %v6944 = vld [vmem:[#allocation2 + $0xe4] sm:$0xf]
    %v6945 = vld [vmem:[#allocation2 + $0xe8] sm:$0xf]
    %v6946 = vld [vmem:[#allocation2 + $0xec] sm:$0xf]
    %v6947 = vld [vmem:[#allocation2 + $0xf0] sm:$0xf]
    %v6948 = vld [vmem:[#allocation2 + $0xf4] sm:$0xf]
    %v6949 = vld [vmem:[#allocation2 + $0xf8] sm:$0xf]
    %v6950 = vld [vmem:[#allocation2 + $0xfc] sm:$0xf]
    %v6951 = vld [vmem:[#allocation2 + $0x100] sm:$0xf]
    %v6952 = vld [vmem:[#allocation2 + $0x104] sm:$0xf]
    %v6953 = vld [vmem:[#allocation2 + $0x108] sm:$0xf]
    %v6954 = vld [vmem:[#allocation2 + $0x10c] sm:$0xf]
    %v6955 = vld [vmem:[#allocation2 + $0x110] sm:$0xf]
    %v6956 = vld [vmem:[#allocation2 + $0x114] sm:$0xf]
    %v6957 = vld [vmem:[#allocation2 + $0x118] sm:$0xf]
    %v6958 = vld [vmem:[#allocation2 + $0x11c] sm:$0xf]
    %v6959 = vld [vmem:[#allocation2 + $0x120] sm:$0xf]
    %v6960 = vld [vmem:[#allocation2 + $0x124] sm:$0xf]
    %v6961 = vld [vmem:[#allocation2 + $0x128] sm:$0xf]
    %v6962 = vld [vmem:[#allocation2 + $0x12c] sm:$0xf]
    %6963 = vst.msk [vmem:[#allocation3 + $0x4] sm:$0xf] %vm5191, %v6895
    %6964 = vst.msk [vmem:[#allocation3 + $0x10] sm:$0xf] %vm5191, %v6896
    %6965 = vst.msk [vmem:[#allocation3 + $0x1c] sm:$0xf] %vm5191, %v6897
    %6966 = vst.msk [vmem:[#allocation3 + $0x28] sm:$0xf] %vm5191, %v6898
    %6967 = vst.msk [vmem:[#allocation3 + $0x34] sm:$0xf] %vm5191, %v6899
    %6968 = vst.msk [vmem:[#allocation3 + $0x40] sm:$0xf] %vm5191, %v6900
    %6969 = vst.msk [vmem:[#allocation3 + $0x4c] sm:$0xf] %vm5191, %v6901
    %6970 = vst.msk [vmem:[#allocation3 + $0x58] sm:$0xf] %vm5191, %v6902
    %6971 = vst.msk [vmem:[#allocation3 + $0x64] sm:$0xf] %vm5191, %v6903
    %6972 = vst.msk [vmem:[#allocation3 + $0x70] sm:$0xf] %vm5191, %v6904
    %6973 = vst.msk [vmem:[#allocation3 + $0x7c] sm:$0xf] %vm5191, %v6905
    %6974 = vst.msk [vmem:[#allocation3 + $0x88] sm:$0xf] %vm5191, %v6906
    %6975 = vst.msk [vmem:[#allocation3 + $0x94] sm:$0xf] %vm5191, %v6907
    %6976 = vst.msk [vmem:[#allocation3 + $0xa0] sm:$0xf] %vm5191, %v6908
    %6977 = vst.msk [vmem:[#allocation3 + $0xac] sm:$0xf] %vm5191, %v6909
    %6978 = vst.msk [vmem:[#allocation3 + $0xb8] sm:$0xf] %vm5191, %v6910
    %6979 = vst.msk [vmem:[#allocation3 + $0xc4] sm:$0xf] %vm5191, %v6911
    %6980 = vst.msk [vmem:[#allocation3 + $0xd0] sm:$0xf] %vm5191, %v6912
    %6981 = vst.msk [vmem:[#allocation3 + $0xdc] sm:$0xf] %vm5191, %v6913
    %6982 = vst.msk [vmem:[#allocation3 + $0xe8] sm:$0xf] %vm5191, %v6914
    %6983 = vst.msk [vmem:[#allocation3 + $0xf4] sm:$0xf] %vm5191, %v6915
    %6984 = vst.msk [vmem:[#allocation3 + $0x100] sm:$0xf] %vm5191, %v6916
    %6985 = vst.msk [vmem:[#allocation3 + $0x10c] sm:$0xf] %vm5191, %v6917
    %6986 = vst.msk [vmem:[#allocation3 + $0x118] sm:$0xf] %vm5191, %v6918
    %6987 = vst.msk [vmem:[#allocation3 + $0x124] sm:$0xf] %vm5191, %v6919
    %6988 = vst.msk [vmem:[#allocation3 + $0x130] sm:$0xf] %vm5191, %v6920
    %6989 = vst.msk [vmem:[#allocation3 + $0x13c] sm:$0xf] %vm5191, %v6921
    %6990 = vst.msk [vmem:[#allocation3 + $0x148] sm:$0xf] %vm5191, %v6922
    %6991 = vst.msk [vmem:[#allocation3 + $0x154] sm:$0xf] %vm5191, %v6923
    %6992 = vst.msk [vmem:[#allocation3 + $0x160] sm:$0xf] %vm5191, %v6924
    %6993 = vst.msk [vmem:[#allocation3 + $0x16c] sm:$0xf] %vm5191, %v6925
    %6994 = vst.msk [vmem:[#allocation3 + $0x178] sm:$0xf] %vm5191, %v6926
    %6995 = vst.msk [vmem:[#allocation3 + $0x184] sm:$0xf] %vm5191, %v6927
    %6996 = vst.msk [vmem:[#allocation3 + $0x190] sm:$0xf] %vm5191, %v6928
    %6997 = vst.msk [vmem:[#allocation3 + $0x19c] sm:$0xf] %vm5191, %v6929
    %6998 = vst.msk [vmem:[#allocation3 + $0x1a8] sm:$0xf] %vm5191, %v6930
    %6999 = vst.msk [vmem:[#allocation3 + $0x1b4] sm:$0xf] %vm5191, %v6931
    %7000 = vst.msk [vmem:[#allocation3 + $0x1c0] sm:$0xf] %vm5191, %v6932
    %7001 = vst.msk [vmem:[#allocation3 + $0x1cc] sm:$0xf] %vm5191, %v6933
    %7002 = vst.msk [vmem:[#allocation3 + $0x1d8] sm:$0xf] %vm5191, %v6934
    %7003 = vst.msk [vmem:[#allocation3 + $0x1e4] sm:$0xf] %vm5191, %v6935
    %7004 = vst.msk [vmem:[#allocation3 + $0x1f0] sm:$0xf] %vm5191, %v6936
    %7005 = vst.msk [vmem:[#allocation3 + $0x1fc] sm:$0xf] %vm5191, %v6937
    %7006 = vst.msk [vmem:[#allocation3 + $0x208] sm:$0xf] %vm5191, %v6938
    %7007 = vst.msk [vmem:[#allocation3 + $0x214] sm:$0xf] %vm5191, %v6939
    %7008 = vst.msk [vmem:[#allocation3 + $0x220] sm:$0xf] %vm5191, %v6940
    %7009 = vst.msk [vmem:[#allocation3 + $0x22c] sm:$0xf] %vm5191, %v6941
    %7010 = vst.msk [vmem:[#allocation3 + $0x238] sm:$0xf] %vm5191, %v6942
    %7011 = vst.msk [vmem:[#allocation3 + $0x244] sm:$0xf] %vm5191, %v6943
    %7012 = vst.msk [vmem:[#allocation3 + $0x250] sm:$0xf] %vm5191, %v6944
    %7013 = vst.msk [vmem:[#allocation3 + $0x25c] sm:$0xf] %vm5191, %v6945
    %7014 = vst.msk [vmem:[#allocation3 + $0x268] sm:$0xf] %vm5191, %v6946
    %7015 = vst.msk [vmem:[#allocation3 + $0x274] sm:$0xf] %vm5191, %v6947
    %7016 = vst.msk [vmem:[#allocation3 + $0x280] sm:$0xf] %vm5191, %v6948
    %7017 = vst.msk [vmem:[#allocation3 + $0x28c] sm:$0xf] %vm5191, %v6949
    %7018 = vst.msk [vmem:[#allocation3 + $0x298] sm:$0xf] %vm5191, %v6950
    %7019 = vst.msk [vmem:[#allocation3 + $0x2a4] sm:$0xf] %vm5191, %v6951
    %7020 = vst.msk [vmem:[#allocation3 + $0x2b0] sm:$0xf] %vm5191, %v6952
    %7021 = vst.msk [vmem:[#allocation3 + $0x2bc] sm:$0xf] %vm5191, %v6953
    %7022 = vst.msk [vmem:[#allocation3 + $0x2c8] sm:$0xf] %vm5191, %v6954
    %7023 = vst.msk [vmem:[#allocation3 + $0x2d4] sm:$0xf] %vm5191, %v6955
    %7024 = vst.msk [vmem:[#allocation3 + $0x2e0] sm:$0xf] %vm5191, %v6956
    %7025 = vst.msk [vmem:[#allocation3 + $0x2ec] sm:$0xf] %vm5191, %v6957
    %7026 = vst.msk [vmem:[#allocation3 + $0x2f8] sm:$0xf] %vm5191, %v6958
    %7027 = vst.msk [vmem:[#allocation3 + $0x304] sm:$0xf] %vm5191, %v6959
    %7028 = vst.msk [vmem:[#allocation3 + $0x310] sm:$0xf] %vm5191, %v6960
    %7029 = vst.msk [vmem:[#allocation3 + $0x31c] sm:$0xf] %vm5191, %v6961
    %7030 = vst.msk [vmem:[#allocation3 + $0x328] sm:$0xf] %vm5191, %v6962
    %v7031 = vld [vmem:[#allocation2 + $0x24] sm:$0xf]
    %v7032 = vld [vmem:[#allocation2 + $0x28] sm:$0xf]
    %v7033 = vld [vmem:[#allocation2 + $0x2c] sm:$0xf]
    %v7034 = vld [vmem:[#allocation2 + $0x30] sm:$0xf]
    %v7035 = vld [vmem:[#allocation2 + $0x34] sm:$0xf]
    %v7036 = vld [vmem:[#allocation2 + $0x38] sm:$0xf]
    %v7037 = vld [vmem:[#allocation2 + $0x3c] sm:$0xf]
    %v7038 = vld [vmem:[#allocation2 + $0x40] sm:$0xf]
    %v7039 = vld [vmem:[#allocation2 + $0x44] sm:$0xf]
    %v7040 = vld [vmem:[#allocation2 + $0x48] sm:$0xf]
    %v7041 = vld [vmem:[#allocation2 + $0x4c] sm:$0xf]
    %v7042 = vld [vmem:[#allocation2 + $0x50] sm:$0xf]
    %v7043 = vld [vmem:[#allocation2 + $0x54] sm:$0xf]
    %v7044 = vld [vmem:[#allocation2 + $0x58] sm:$0xf]
    %v7045 = vld [vmem:[#allocation2 + $0x5c] sm:$0xf]
    %v7046 = vld [vmem:[#allocation2 + $0x60] sm:$0xf]
    %v7047 = vld [vmem:[#allocation2 + $0x64] sm:$0xf]
    %v7048 = vld [vmem:[#allocation2 + $0x68] sm:$0xf]
    %v7049 = vld [vmem:[#allocation2 + $0x6c] sm:$0xf]
    %v7050 = vld [vmem:[#allocation2 + $0x70] sm:$0xf]
    %v7051 = vld [vmem:[#allocation2 + $0x74] sm:$0xf]
    %v7052 = vld [vmem:[#allocation2 + $0x78] sm:$0xf]
    %v7053 = vld [vmem:[#allocation2 + $0x7c] sm:$0xf]
    %v7054 = vld [vmem:[#allocation2 + $0x80] sm:$0xf]
    %v7055 = vld [vmem:[#allocation2 + $0x84] sm:$0xf]
    %v7056 = vld [vmem:[#allocation2 + $0x88] sm:$0xf]
    %v7057 = vld [vmem:[#allocation2 + $0x8c] sm:$0xf]
    %v7058 = vld [vmem:[#allocation2 + $0x90] sm:$0xf]
    %v7059 = vld [vmem:[#allocation2 + $0x94] sm:$0xf]
    %v7060 = vld [vmem:[#allocation2 + $0x98] sm:$0xf]
    %v7061 = vld [vmem:[#allocation2 + $0x9c] sm:$0xf]
    %v7062 = vld [vmem:[#allocation2 + $0xa0] sm:$0xf]
    %v7063 = vld [vmem:[#allocation2 + $0xa4] sm:$0xf]
    %v7064 = vld [vmem:[#allocation2 + $0xa8] sm:$0xf]
    %v7065 = vld [vmem:[#allocation2 + $0xac] sm:$0xf]
    %v7066 = vld [vmem:[#allocation2 + $0xb0] sm:$0xf]
    %v7067 = vld [vmem:[#allocation2 + $0xb4] sm:$0xf]
    %v7068 = vld [vmem:[#allocation2 + $0xb8] sm:$0xf]
    %v7069 = vld [vmem:[#allocation2 + $0xbc] sm:$0xf]
    %v7070 = vld [vmem:[#allocation2 + $0xc0] sm:$0xf]
    %v7071 = vld [vmem:[#allocation2 + $0xc4] sm:$0xf]
    %v7072 = vld [vmem:[#allocation2 + $0xc8] sm:$0xf]
    %v7073 = vld [vmem:[#allocation2 + $0xcc] sm:$0xf]
    %v7074 = vld [vmem:[#allocation2 + $0xd0] sm:$0xf]
    %v7075 = vld [vmem:[#allocation2 + $0xd4] sm:$0xf]
    %v7076 = vld [vmem:[#allocation2 + $0xd8] sm:$0xf]
    %v7077 = vld [vmem:[#allocation2 + $0xdc] sm:$0xf]
    %v7078 = vld [vmem:[#allocation2 + $0xe0] sm:$0xf]
    %v7079 = vld [vmem:[#allocation2 + $0xe4] sm:$0xf]
    %v7080 = vld [vmem:[#allocation2 + $0xe8] sm:$0xf]
    %v7081 = vld [vmem:[#allocation2 + $0xec] sm:$0xf]
    %v7082 = vld [vmem:[#allocation2 + $0xf0] sm:$0xf]
    %v7083 = vld [vmem:[#allocation2 + $0xf4] sm:$0xf]
    %v7084 = vld [vmem:[#allocation2 + $0xf8] sm:$0xf]
    %v7085 = vld [vmem:[#allocation2 + $0xfc] sm:$0xf]
    %v7086 = vld [vmem:[#allocation2 + $0x100] sm:$0xf]
    %v7087 = vld [vmem:[#allocation2 + $0x104] sm:$0xf]
    %v7088 = vld [vmem:[#allocation2 + $0x108] sm:$0xf]
    %v7089 = vld [vmem:[#allocation2 + $0x10c] sm:$0xf]
    %v7090 = vld [vmem:[#allocation2 + $0x110] sm:$0xf]
    %v7091 = vld [vmem:[#allocation2 + $0x114] sm:$0xf]
    %v7092 = vld [vmem:[#allocation2 + $0x118] sm:$0xf]
    %v7093 = vld [vmem:[#allocation2 + $0x11c] sm:$0xf]
    %v7094 = vld [vmem:[#allocation2 + $0x120] sm:$0xf]
    %v7095 = vld [vmem:[#allocation2 + $0x124] sm:$0xf]
    %v7096 = vld [vmem:[#allocation2 + $0x128] sm:$0xf]
    %v7097 = vld [vmem:[#allocation2 + $0x12c] sm:$0xf]
    %v7098 = vld [vmem:[#allocation2 + $0x130] sm:$0xf]
    %7167 = vrot.lane.b32.xlu0 %v7031, 32
    %v7168 = vpop.permute.xlu0 %7167
    %7169 = vrot.lane.b32.xlu0 %v7032, 32
    %v7170 = vpop.permute.xlu0 %7169
    %7171 = vrot.lane.b32.xlu0 %v7033, 32
    %v7172 = vpop.permute.xlu0 %7171
    %7173 = vrot.lane.b32.xlu0 %v7034, 32
    %v7174 = vpop.permute.xlu0 %7173
    %7175 = vrot.lane.b32.xlu0 %v7035, 32
    %v7176 = vpop.permute.xlu0 %7175
    %7177 = vrot.lane.b32.xlu0 %v7036, 32
    %v7178 = vpop.permute.xlu0 %7177
    %7179 = vrot.lane.b32.xlu0 %v7037, 32
    %v7180 = vpop.permute.xlu0 %7179
    %7181 = vrot.lane.b32.xlu0 %v7038, 32
    %v7182 = vpop.permute.xlu0 %7181
    %7183 = vrot.lane.b32.xlu0 %v7039, 32
    %v7184 = vpop.permute.xlu0 %7183
    %7185 = vrot.lane.b32.xlu0 %v7040, 32
    %v7186 = vpop.permute.xlu0 %7185
    %7187 = vrot.lane.b32.xlu0 %v7041, 32
    %v7188 = vpop.permute.xlu0 %7187
    %7189 = vrot.lane.b32.xlu0 %v7042, 32
    %v7190 = vpop.permute.xlu0 %7189
    %7191 = vrot.lane.b32.xlu0 %v7043, 32
    %v7192 = vpop.permute.xlu0 %7191
    %7193 = vrot.lane.b32.xlu0 %v7044, 32
    %v7194 = vpop.permute.xlu0 %7193
    %7195 = vrot.lane.b32.xlu0 %v7045, 32
    %v7196 = vpop.permute.xlu0 %7195
    %7197 = vrot.lane.b32.xlu0 %v7046, 32
    %v7198 = vpop.permute.xlu0 %7197
    %7199 = vrot.lane.b32.xlu0 %v7047, 32
    %v7200 = vpop.permute.xlu0 %7199
    %7201 = vrot.lane.b32.xlu0 %v7048, 32
    %v7202 = vpop.permute.xlu0 %7201
    %7203 = vrot.lane.b32.xlu0 %v7049, 32
    %v7204 = vpop.permute.xlu0 %7203
    %7205 = vrot.lane.b32.xlu0 %v7050, 32
    %v7206 = vpop.permute.xlu0 %7205
    %7207 = vrot.lane.b32.xlu0 %v7051, 32
    %v7208 = vpop.permute.xlu0 %7207
    %7209 = vrot.lane.b32.xlu0 %v7052, 32
    %v7210 = vpop.permute.xlu0 %7209
    %7211 = vrot.lane.b32.xlu0 %v7053, 32
    %v7212 = vpop.permute.xlu0 %7211
    %7213 = vrot.lane.b32.xlu0 %v7054, 32
    %v7214 = vpop.permute.xlu0 %7213
    %7215 = vrot.lane.b32.xlu0 %v7055, 32
    %v7216 = vpop.permute.xlu0 %7215
    %7217 = vrot.lane.b32.xlu0 %v7056, 32
    %v7218 = vpop.permute.xlu0 %7217
    %7219 = vrot.lane.b32.xlu0 %v7057, 32
    %v7220 = vpop.permute.xlu0 %7219
    %7221 = vrot.lane.b32.xlu0 %v7058, 32
    %v7222 = vpop.permute.xlu0 %7221
    %7223 = vrot.lane.b32.xlu0 %v7059, 32
    %v7224 = vpop.permute.xlu0 %7223
    %7225 = vrot.lane.b32.xlu0 %v7060, 32
    %v7226 = vpop.permute.xlu0 %7225
    %7227 = vrot.lane.b32.xlu0 %v7061, 32
    %v7228 = vpop.permute.xlu0 %7227
    %7229 = vrot.lane.b32.xlu0 %v7062, 32
    %v7230 = vpop.permute.xlu0 %7229
    %7231 = vrot.lane.b32.xlu0 %v7063, 32
    %v7232 = vpop.permute.xlu0 %7231
    %7233 = vrot.lane.b32.xlu0 %v7064, 32
    %v7234 = vpop.permute.xlu0 %7233
    %7235 = vrot.lane.b32.xlu0 %v7065, 32
    %v7236 = vpop.permute.xlu0 %7235
    %7237 = vrot.lane.b32.xlu0 %v7066, 32
    %v7238 = vpop.permute.xlu0 %7237
    %7239 = vrot.lane.b32.xlu0 %v7067, 32
    %v7240 = vpop.permute.xlu0 %7239
    %7241 = vrot.lane.b32.xlu0 %v7068, 32
    %v7242 = vpop.permute.xlu0 %7241
    %7243 = vrot.lane.b32.xlu0 %v7069, 32
    %v7244 = vpop.permute.xlu0 %7243
    %7245 = vrot.lane.b32.xlu0 %v7070, 32
    %v7246 = vpop.permute.xlu0 %7245
    %7247 = vrot.lane.b32.xlu0 %v7071, 32
    %v7248 = vpop.permute.xlu0 %7247
    %7249 = vrot.lane.b32.xlu0 %v7072, 32
    %v7250 = vpop.permute.xlu0 %7249
    %7251 = vrot.lane.b32.xlu0 %v7073, 32
    %v7252 = vpop.permute.xlu0 %7251
    %7253 = vrot.lane.b32.xlu0 %v7074, 32
    %v7254 = vpop.permute.xlu0 %7253
    %7255 = vrot.lane.b32.xlu0 %v7075, 32
    %v7256 = vpop.permute.xlu0 %7255
    %7257 = vrot.lane.b32.xlu0 %v7076, 32
    %v7258 = vpop.permute.xlu0 %7257
    %7259 = vrot.lane.b32.xlu0 %v7077, 32
    %v7260 = vpop.permute.xlu0 %7259
    %7261 = vrot.lane.b32.xlu0 %v7078, 32
    %v7262 = vpop.permute.xlu0 %7261
    %7263 = vrot.lane.b32.xlu0 %v7079, 32
    %v7264 = vpop.permute.xlu0 %7263
    %7265 = vrot.lane.b32.xlu0 %v7080, 32
    %v7266 = vpop.permute.xlu0 %7265
    %7267 = vrot.lane.b32.xlu0 %v7081, 32
    %v7268 = vpop.permute.xlu0 %7267
    %7269 = vrot.lane.b32.xlu0 %v7082, 32
    %v7270 = vpop.permute.xlu0 %7269
    %7271 = vrot.lane.b32.xlu0 %v7083, 32
    %v7272 = vpop.permute.xlu0 %7271
    %7273 = vrot.lane.b32.xlu0 %v7084, 32
    %v7274 = vpop.permute.xlu0 %7273
    %7275 = vrot.lane.b32.xlu0 %v7085, 32
    %v7276 = vpop.permute.xlu0 %7275
    %7277 = vrot.lane.b32.xlu0 %v7086, 32
    %v7278 = vpop.permute.xlu0 %7277
    %7279 = vrot.lane.b32.xlu0 %v7087, 32
    %v7280 = vpop.permute.xlu0 %7279
    %7281 = vrot.lane.b32.xlu0 %v7088, 32
    %v7282 = vpop.permute.xlu0 %7281
    %7283 = vrot.lane.b32.xlu0 %v7089, 32
    %v7284 = vpop.permute.xlu0 %7283
    %7285 = vrot.lane.b32.xlu0 %v7090, 32
    %v7286 = vpop.permute.xlu0 %7285
    %7287 = vrot.lane.b32.xlu0 %v7091, 32
    %v7288 = vpop.permute.xlu0 %7287
    %7289 = vrot.lane.b32.xlu0 %v7092, 32
    %v7290 = vpop.permute.xlu0 %7289
    %7291 = vrot.lane.b32.xlu0 %v7093, 32
    %v7292 = vpop.permute.xlu0 %7291
    %7293 = vrot.lane.b32.xlu0 %v7094, 32
    %v7294 = vpop.permute.xlu0 %7293
    %7295 = vrot.lane.b32.xlu0 %v7095, 32
    %v7296 = vpop.permute.xlu0 %7295
    %7297 = vrot.lane.b32.xlu0 %v7096, 32
    %v7298 = vpop.permute.xlu0 %7297
    %7299 = vrot.lane.b32.xlu0 %v7097, 32
    %v7300 = vpop.permute.xlu0 %7299
    %7301 = vrot.lane.b32.xlu0 %v7098, 32
    %v7302 = vpop.permute.xlu0 %7301
    %7371 = vst.msk [vmem:[#allocation3 + $0x4] sm:$0xf] %vm6008, %v7168
    %7372 = vst.msk [vmem:[#allocation3 + $0x10] sm:$0xf] %vm6008, %v7170
    %7373 = vst.msk [vmem:[#allocation3 + $0x1c] sm:$0xf] %vm6008, %v7172
    %7374 = vst.msk [vmem:[#allocation3 + $0x28] sm:$0xf] %vm6008, %v7174
    %7375 = vst.msk [vmem:[#allocation3 + $0x34] sm:$0xf] %vm6008, %v7176
    %7376 = vst.msk [vmem:[#allocation3 + $0x40] sm:$0xf] %vm6008, %v7178
    %7377 = vst.msk [vmem:[#allocation3 + $0x4c] sm:$0xf] %vm6008, %v7180
    %7378 = vst.msk [vmem:[#allocation3 + $0x58] sm:$0xf] %vm6008, %v7182
    %7379 = vst.msk [vmem:[#allocation3 + $0x64] sm:$0xf] %vm6008, %v7184
    %7380 = vst.msk [vmem:[#allocation3 + $0x70] sm:$0xf] %vm6008, %v7186
    %7381 = vst.msk [vmem:[#allocation3 + $0x7c] sm:$0xf] %vm6008, %v7188
    %7382 = vst.msk [vmem:[#allocation3 + $0x88] sm:$0xf] %vm6008, %v7190
    %7383 = vst.msk [vmem:[#allocation3 + $0x94] sm:$0xf] %vm6008, %v7192
    %7384 = vst.msk [vmem:[#allocation3 + $0xa0] sm:$0xf] %vm6008, %v7194
    %7385 = vst.msk [vmem:[#allocation3 + $0xac] sm:$0xf] %vm6008, %v7196
    %7386 = vst.msk [vmem:[#allocation3 + $0xb8] sm:$0xf] %vm6008, %v7198
    %7387 = vst.msk [vmem:[#allocation3 + $0xc4] sm:$0xf] %vm6008, %v7200
    %7388 = vst.msk [vmem:[#allocation3 + $0xd0] sm:$0xf] %vm6008, %v7202
    %7389 = vst.msk [vmem:[#allocation3 + $0xdc] sm:$0xf] %vm6008, %v7204
    %7390 = vst.msk [vmem:[#allocation3 + $0xe8] sm:$0xf] %vm6008, %v7206
    %7391 = vst.msk [vmem:[#allocation3 + $0xf4] sm:$0xf] %vm6008, %v7208
    %7392 = vst.msk [vmem:[#allocation3 + $0x100] sm:$0xf] %vm6008, %v7210
    %7393 = vst.msk [vmem:[#allocation3 + $0x10c] sm:$0xf] %vm6008, %v7212
    %7394 = vst.msk [vmem:[#allocation3 + $0x118] sm:$0xf] %vm6008, %v7214
    %7395 = vst.msk [vmem:[#allocation3 + $0x124] sm:$0xf] %vm6008, %v7216
    %7396 = vst.msk [vmem:[#allocation3 + $0x130] sm:$0xf] %vm6008, %v7218
    %7397 = vst.msk [vmem:[#allocation3 + $0x13c] sm:$0xf] %vm6008, %v7220
    %7398 = vst.msk [vmem:[#allocation3 + $0x148] sm:$0xf] %vm6008, %v7222
    %7399 = vst.msk [vmem:[#allocation3 + $0x154] sm:$0xf] %vm6008, %v7224
    %7400 = vst.msk [vmem:[#allocation3 + $0x160] sm:$0xf] %vm6008, %v7226
    %7401 = vst.msk [vmem:[#allocation3 + $0x16c] sm:$0xf] %vm6008, %v7228
    %7402 = vst.msk [vmem:[#allocation3 + $0x178] sm:$0xf] %vm6008, %v7230
    %7403 = vst.msk [vmem:[#allocation3 + $0x184] sm:$0xf] %vm6008, %v7232
    %7404 = vst.msk [vmem:[#allocation3 + $0x190] sm:$0xf] %vm6008, %v7234
    %7405 = vst.msk [vmem:[#allocation3 + $0x19c] sm:$0xf] %vm6008, %v7236
    %7406 = vst.msk [vmem:[#allocation3 + $0x1a8] sm:$0xf] %vm6008, %v7238
    %7407 = vst.msk [vmem:[#allocation3 + $0x1b4] sm:$0xf] %vm6008, %v7240
    %7408 = vst.msk [vmem:[#allocation3 + $0x1c0] sm:$0xf] %vm6008, %v7242
    %7409 = vst.msk [vmem:[#allocation3 + $0x1cc] sm:$0xf] %vm6008, %v7244
    %7410 = vst.msk [vmem:[#allocation3 + $0x1d8] sm:$0xf] %vm6008, %v7246
    %7411 = vst.msk [vmem:[#allocation3 + $0x1e4] sm:$0xf] %vm6008, %v7248
    %7412 = vst.msk [vmem:[#allocation3 + $0x1f0] sm:$0xf] %vm6008, %v7250
    %7413 = vst.msk [vmem:[#allocation3 + $0x1fc] sm:$0xf] %vm6008, %v7252
    %7414 = vst.msk [vmem:[#allocation3 + $0x208] sm:$0xf] %vm6008, %v7254
    %7415 = vst.msk [vmem:[#allocation3 + $0x214] sm:$0xf] %vm6008, %v7256
    %7416 = vst.msk [vmem:[#allocation3 + $0x220] sm:$0xf] %vm6008, %v7258
    %7417 = vst.msk [vmem:[#allocation3 + $0x22c] sm:$0xf] %vm6008, %v7260
    %7418 = vst.msk [vmem:[#allocation3 + $0x238] sm:$0xf] %vm6008, %v7262
    %7419 = vst.msk [vmem:[#allocation3 + $0x244] sm:$0xf] %vm6008, %v7264
    %7420 = vst.msk [vmem:[#allocation3 + $0x250] sm:$0xf] %vm6008, %v7266
    %7421 = vst.msk [vmem:[#allocation3 + $0x25c] sm:$0xf] %vm6008, %v7268
    %7422 = vst.msk [vmem:[#allocation3 + $0x268] sm:$0xf] %vm6008, %v7270
    %7423 = vst.msk [vmem:[#allocation3 + $0x274] sm:$0xf] %vm6008, %v7272
    %7424 = vst.msk [vmem:[#allocation3 + $0x280] sm:$0xf] %vm6008, %v7274
    %7425 = vst.msk [vmem:[#allocation3 + $0x28c] sm:$0xf] %vm6008, %v7276
    %7426 = vst.msk [vmem:[#allocation3 + $0x298] sm:$0xf] %vm6008, %v7278
    %7427 = vst.msk [vmem:[#allocation3 + $0x2a4] sm:$0xf] %vm6008, %v7280
    %7428 = vst.msk [vmem:[#allocation3 + $0x2b0] sm:$0xf] %vm6008, %v7282
    %7429 = vst.msk [vmem:[#allocation3 + $0x2bc] sm:$0xf] %vm6008, %v7284
    %7430 = vst.msk [vmem:[#allocation3 + $0x2c8] sm:$0xf] %vm6008, %v7286
    %7431 = vst.msk [vmem:[#allocation3 + $0x2d4] sm:$0xf] %vm6008, %v7288
    %7432 = vst.msk [vmem:[#allocation3 + $0x2e0] sm:$0xf] %vm6008, %v7290
    %7433 = vst.msk [vmem:[#allocation3 + $0x2ec] sm:$0xf] %vm6008, %v7292
    %7434 = vst.msk [vmem:[#allocation3 + $0x2f8] sm:$0xf] %vm6008, %v7294
    %7435 = vst.msk [vmem:[#allocation3 + $0x304] sm:$0xf] %vm6008, %v7296
    %7436 = vst.msk [vmem:[#allocation3 + $0x310] sm:$0xf] %vm6008, %v7298
    %7437 = vst.msk [vmem:[#allocation3 + $0x31c] sm:$0xf] %vm6008, %v7300
    %7438 = vst.msk [vmem:[#allocation3 + $0x328] sm:$0xf] %vm6008, %v7302
    %v7439 = vld [vmem:[#allocation2 + $0x38] sm:$0xf]
    %v7440 = vld [vmem:[#allocation2 + $0x3c] sm:$0xf]
    %v7441 = vld [vmem:[#allocation2 + $0x40] sm:$0xf]
    %v7442 = vld [vmem:[#allocation2 + $0x44] sm:$0xf]
    %v7443 = vld [vmem:[#allocation2 + $0x48] sm:$0xf]
    %v7444 = vld [vmem:[#allocation2 + $0x4c] sm:$0xf]
    %v7445 = vld [vmem:[#allocation2 + $0x50] sm:$0xf]
    %v7446 = vld [vmem:[#allocation2 + $0x54] sm:$0xf]
    %v7447 = vld [vmem:[#allocation2 + $0x58] sm:$0xf]
    %v7448 = vld [vmem:[#allocation2 + $0x5c] sm:$0xf]
    %v7449 = vld [vmem:[#allocation2 + $0x60] sm:$0xf]
    %v7450 = vld [vmem:[#allocation2 + $0x64] sm:$0xf]
    %v7451 = vld [vmem:[#allocation2 + $0x68] sm:$0xf]
    %v7452 = vld [vmem:[#allocation2 + $0x6c] sm:$0xf]
    %v7453 = vld [vmem:[#allocation2 + $0x70] sm:$0xf]
    %v7454 = vld [vmem:[#allocation2 + $0x74] sm:$0xf]
    %v7455 = vld [vmem:[#allocation2 + $0x78] sm:$0xf]
    %v7456 = vld [vmem:[#allocation2 + $0x7c] sm:$0xf]
    %v7457 = vld [vmem:[#allocation2 + $0x80] sm:$0xf]
    %v7458 = vld [vmem:[#allocation2 + $0x84] sm:$0xf]
    %v7459 = vld [vmem:[#allocation2 + $0x88] sm:$0xf]
    %v7460 = vld [vmem:[#allocation2 + $0x8c] sm:$0xf]
    %v7461 = vld [vmem:[#allocation2 + $0x90] sm:$0xf]
    %v7462 = vld [vmem:[#allocation2 + $0x94] sm:$0xf]
    %v7463 = vld [vmem:[#allocation2 + $0x98] sm:$0xf]
    %v7464 = vld [vmem:[#allocation2 + $0x9c] sm:$0xf]
    %v7465 = vld [vmem:[#allocation2 + $0xa0] sm:$0xf]
    %v7466 = vld [vmem:[#allocation2 + $0xa4] sm:$0xf]
    %v7467 = vld [vmem:[#allocation2 + $0xa8] sm:$0xf]
    %v7468 = vld [vmem:[#allocation2 + $0xac] sm:$0xf]
    %v7469 = vld [vmem:[#allocation2 + $0xb0] sm:$0xf]
    %v7470 = vld [vmem:[#allocation2 + $0xb4] sm:$0xf]
    %v7471 = vld [vmem:[#allocation2 + $0xb8] sm:$0xf]
    %v7472 = vld [vmem:[#allocation2 + $0xbc] sm:$0xf]
    %v7473 = vld [vmem:[#allocation2 + $0xc0] sm:$0xf]
    %v7474 = vld [vmem:[#allocation2 + $0xc4] sm:$0xf]
    %v7475 = vld [vmem:[#allocation2 + $0xc8] sm:$0xf]
    %v7476 = vld [vmem:[#allocation2 + $0xcc] sm:$0xf]
    %v7477 = vld [vmem:[#allocation2 + $0xd0] sm:$0xf]
    %v7478 = vld [vmem:[#allocation2 + $0xd4] sm:$0xf]
    %v7479 = vld [vmem:[#allocation2 + $0xd8] sm:$0xf]
    %v7480 = vld [vmem:[#allocation2 + $0xdc] sm:$0xf]
    %v7481 = vld [vmem:[#allocation2 + $0xe0] sm:$0xf]
    %v7482 = vld [vmem:[#allocation2 + $0xe4] sm:$0xf]
    %v7483 = vld [vmem:[#allocation2 + $0xe8] sm:$0xf]
    %v7484 = vld [vmem:[#allocation2 + $0xec] sm:$0xf]
    %v7485 = vld [vmem:[#allocation2 + $0xf0] sm:$0xf]
    %v7486 = vld [vmem:[#allocation2 + $0xf4] sm:$0xf]
    %v7487 = vld [vmem:[#allocation2 + $0xf8] sm:$0xf]
    %v7488 = vld [vmem:[#allocation2 + $0xfc] sm:$0xf]
    %v7489 = vld [vmem:[#allocation2 + $0x100] sm:$0xf]
    %v7490 = vld [vmem:[#allocation2 + $0x104] sm:$0xf]
    %v7491 = vld [vmem:[#allocation2 + $0x108] sm:$0xf]
    %v7492 = vld [vmem:[#allocation2 + $0x10c] sm:$0xf]
    %v7493 = vld [vmem:[#allocation2 + $0x110] sm:$0xf]
    %v7494 = vld [vmem:[#allocation2 + $0x114] sm:$0xf]
    %v7495 = vld [vmem:[#allocation2 + $0x118] sm:$0xf]
    %v7496 = vld [vmem:[#allocation2 + $0x11c] sm:$0xf]
    %v7497 = vld [vmem:[#allocation2 + $0x120] sm:$0xf]
    %v7498 = vld [vmem:[#allocation2 + $0x124] sm:$0xf]
    %v7499 = vld [vmem:[#allocation2 + $0x128] sm:$0xf]
    %v7500 = vld [vmem:[#allocation2 + $0x12c] sm:$0xf]
    %v7501 = vld [vmem:[#allocation2 + $0x130] sm:$0xf]
    %v7502 = vld [vmem:[#allocation2 + $0x134] sm:$0xf]
    %v7503 = vld [vmem:[#allocation2 + $0x138] sm:$0xf]
    %v7504 = vld [vmem:[#allocation2 + $0x13c] sm:$0xf]
    %v7505 = vld [vmem:[#allocation2 + $0x140] sm:$0xf]
    %v7506 = vld [vmem:[#allocation2 + $0x144] sm:$0xf]
    %7575 = vrot.lane.b32.xlu0 %v7439, 64
    %v7576 = vpop.permute.xlu0 %7575
    %7577 = vrot.lane.b32.xlu0 %v7440, 64
    %v7578 = vpop.permute.xlu0 %7577
    %7579 = vrot.lane.b32.xlu0 %v7441, 64
    %v7580 = vpop.permute.xlu0 %7579
    %7581 = vrot.lane.b32.xlu0 %v7442, 64
    %v7582 = vpop.permute.xlu0 %7581
    %7583 = vrot.lane.b32.xlu0 %v7443, 64
    %v7584 = vpop.permute.xlu0 %7583
    %7585 = vrot.lane.b32.xlu0 %v7444, 64
    %v7586 = vpop.permute.xlu0 %7585
    %7587 = vrot.lane.b32.xlu0 %v7445, 64
    %v7588 = vpop.permute.xlu0 %7587
    %7589 = vrot.lane.b32.xlu0 %v7446, 64
    %v7590 = vpop.permute.xlu0 %7589
    %7591 = vrot.lane.b32.xlu0 %v7447, 64
    %v7592 = vpop.permute.xlu0 %7591
    %7593 = vrot.lane.b32.xlu0 %v7448, 64
    %v7594 = vpop.permute.xlu0 %7593
    %7595 = vrot.lane.b32.xlu0 %v7449, 64
    %v7596 = vpop.permute.xlu0 %7595
    %7597 = vrot.lane.b32.xlu0 %v7450, 64
    %v7598 = vpop.permute.xlu0 %7597
    %7599 = vrot.lane.b32.xlu0 %v7451, 64
    %v7600 = vpop.permute.xlu0 %7599
    %7601 = vrot.lane.b32.xlu0 %v7452, 64
    %v7602 = vpop.permute.xlu0 %7601
    %7603 = vrot.lane.b32.xlu0 %v7453, 64
    %v7604 = vpop.permute.xlu0 %7603
    %7605 = vrot.lane.b32.xlu0 %v7454, 64
    %v7606 = vpop.permute.xlu0 %7605
    %7607 = vrot.lane.b32.xlu0 %v7455, 64
    %v7608 = vpop.permute.xlu0 %7607
    %7609 = vrot.lane.b32.xlu0 %v7456, 64
    %v7610 = vpop.permute.xlu0 %7609
    %7611 = vrot.lane.b32.xlu0 %v7457, 64
    %v7612 = vpop.permute.xlu0 %7611
    %7613 = vrot.lane.b32.xlu0 %v7458, 64
    %v7614 = vpop.permute.xlu0 %7613
    %7615 = vrot.lane.b32.xlu0 %v7459, 64
    %v7616 = vpop.permute.xlu0 %7615
    %7617 = vrot.lane.b32.xlu0 %v7460, 64
    %v7618 = vpop.permute.xlu0 %7617
    %7619 = vrot.lane.b32.xlu0 %v7461, 64
    %v7620 = vpop.permute.xlu0 %7619
    %7621 = vrot.lane.b32.xlu0 %v7462, 64
    %v7622 = vpop.permute.xlu0 %7621
    %7623 = vrot.lane.b32.xlu0 %v7463, 64
    %v7624 = vpop.permute.xlu0 %7623
    %7625 = vrot.lane.b32.xlu0 %v7464, 64
    %v7626 = vpop.permute.xlu0 %7625
    %7627 = vrot.lane.b32.xlu0 %v7465, 64
    %v7628 = vpop.permute.xlu0 %7627
    %7629 = vrot.lane.b32.xlu0 %v7466, 64
    %v7630 = vpop.permute.xlu0 %7629
    %7631 = vrot.lane.b32.xlu0 %v7467, 64
    %v7632 = vpop.permute.xlu0 %7631
    %7633 = vrot.lane.b32.xlu0 %v7468, 64
    %v7634 = vpop.permute.xlu0 %7633
    %7635 = vrot.lane.b32.xlu0 %v7469, 64
    %v7636 = vpop.permute.xlu0 %7635
    %7637 = vrot.lane.b32.xlu0 %v7470, 64
    %v7638 = vpop.permute.xlu0 %7637
    %7639 = vrot.lane.b32.xlu0 %v7471, 64
    %v7640 = vpop.permute.xlu0 %7639
    %7641 = vrot.lane.b32.xlu0 %v7472, 64
    %v7642 = vpop.permute.xlu0 %7641
    %7643 = vrot.lane.b32.xlu0 %v7473, 64
    %v7644 = vpop.permute.xlu0 %7643
    %7645 = vrot.lane.b32.xlu0 %v7474, 64
    %v7646 = vpop.permute.xlu0 %7645
    %7647 = vrot.lane.b32.xlu0 %v7475, 64
    %v7648 = vpop.permute.xlu0 %7647
    %7649 = vrot.lane.b32.xlu0 %v7476, 64
    %v7650 = vpop.permute.xlu0 %7649
    %7651 = vrot.lane.b32.xlu0 %v7477, 64
    %v7652 = vpop.permute.xlu0 %7651
    %7653 = vrot.lane.b32.xlu0 %v7478, 64
    %v7654 = vpop.permute.xlu0 %7653
    %7655 = vrot.lane.b32.xlu0 %v7479, 64
    %v7656 = vpop.permute.xlu0 %7655
    %7657 = vrot.lane.b32.xlu0 %v7480, 64
    %v7658 = vpop.permute.xlu0 %7657
    %7659 = vrot.lane.b32.xlu0 %v7481, 64
    %v7660 = vpop.permute.xlu0 %7659
    %7661 = vrot.lane.b32.xlu0 %v7482, 64
    %v7662 = vpop.permute.xlu0 %7661
    %7663 = vrot.lane.b32.xlu0 %v7483, 64
    %v7664 = vpop.permute.xlu0 %7663
    %7665 = vrot.lane.b32.xlu0 %v7484, 64
    %v7666 = vpop.permute.xlu0 %7665
    %7667 = vrot.lane.b32.xlu0 %v7485, 64
    %v7668 = vpop.permute.xlu0 %7667
    %7669 = vrot.lane.b32.xlu0 %v7486, 64
    %v7670 = vpop.permute.xlu0 %7669
    %7671 = vrot.lane.b32.xlu0 %v7487, 64
    %v7672 = vpop.permute.xlu0 %7671
    %7673 = vrot.lane.b32.xlu0 %v7488, 64
    %v7674 = vpop.permute.xlu0 %7673
    %7675 = vrot.lane.b32.xlu0 %v7489, 64
    %v7676 = vpop.permute.xlu0 %7675
    %7677 = vrot.lane.b32.xlu0 %v7490, 64
    %v7678 = vpop.permute.xlu0 %7677
    %7679 = vrot.lane.b32.xlu0 %v7491, 64
    %v7680 = vpop.permute.xlu0 %7679
    %7681 = vrot.lane.b32.xlu0 %v7492, 64
    %v7682 = vpop.permute.xlu0 %7681
    %7683 = vrot.lane.b32.xlu0 %v7493, 64
    %v7684 = vpop.permute.xlu0 %7683
    %7685 = vrot.lane.b32.xlu0 %v7494, 64
    %v7686 = vpop.permute.xlu0 %7685
    %7687 = vrot.lane.b32.xlu0 %v7495, 64
    %v7688 = vpop.permute.xlu0 %7687
    %7689 = vrot.lane.b32.xlu0 %v7496, 64
    %v7690 = vpop.permute.xlu0 %7689
    %7691 = vrot.lane.b32.xlu0 %v7497, 64
    %v7692 = vpop.permute.xlu0 %7691
    %7693 = vrot.lane.b32.xlu0 %v7498, 64
    %v7694 = vpop.permute.xlu0 %7693
    %7695 = vrot.lane.b32.xlu0 %v7499, 64
    %v7696 = vpop.permute.xlu0 %7695
    %7697 = vrot.lane.b32.xlu0 %v7500, 64
    %v7698 = vpop.permute.xlu0 %7697
    %7699 = vrot.lane.b32.xlu0 %v7501, 64
    %v7700 = vpop.permute.xlu0 %7699
    %7701 = vrot.lane.b32.xlu0 %v7502, 64
    %v7702 = vpop.permute.xlu0 %7701
    %7703 = vrot.lane.b32.xlu0 %v7503, 64
    %v7704 = vpop.permute.xlu0 %7703
    %7705 = vrot.lane.b32.xlu0 %v7504, 64
    %v7706 = vpop.permute.xlu0 %7705
    %7707 = vrot.lane.b32.xlu0 %v7505, 64
    %v7708 = vpop.permute.xlu0 %7707
    %7709 = vrot.lane.b32.xlu0 %v7506, 64
    %v7710 = vpop.permute.xlu0 %7709
    %7779 = vst.msk [vmem:[#allocation3 + $0x4] sm:$0xf] %vm6417, %v7576
    %7780 = vst.msk [vmem:[#allocation3 + $0x10] sm:$0xf] %vm6417, %v7578
    %7781 = vst.msk [vmem:[#allocation3 + $0x1c] sm:$0xf] %vm6417, %v7580
    %7782 = vst.msk [vmem:[#allocation3 + $0x28] sm:$0xf] %vm6417, %v7582
    %7783 = vst.msk [vmem:[#allocation3 + $0x34] sm:$0xf] %vm6417, %v7584
    %7784 = vst.msk [vmem:[#allocation3 + $0x40] sm:$0xf] %vm6417, %v7586
    %7785 = vst.msk [vmem:[#allocation3 + $0x4c] sm:$0xf] %vm6417, %v7588
    %7786 = vst.msk [vmem:[#allocation3 + $0x58] sm:$0xf] %vm6417, %v7590
    %7787 = vst.msk [vmem:[#allocation3 + $0x64] sm:$0xf] %vm6417, %v7592
    %7788 = vst.msk [vmem:[#allocation3 + $0x70] sm:$0xf] %vm6417, %v7594
    %7789 = vst.msk [vmem:[#allocation3 + $0x7c] sm:$0xf] %vm6417, %v7596
    %7790 = vst.msk [vmem:[#allocation3 + $0x88] sm:$0xf] %vm6417, %v7598
    %7791 = vst.msk [vmem:[#allocation3 + $0x94] sm:$0xf] %vm6417, %v7600
    %7792 = vst.msk [vmem:[#allocation3 + $0xa0] sm:$0xf] %vm6417, %v7602
    %7793 = vst.msk [vmem:[#allocation3 + $0xac] sm:$0xf] %vm6417, %v7604
    %7794 = vst.msk [vmem:[#allocation3 + $0xb8] sm:$0xf] %vm6417, %v7606
    %7795 = vst.msk [vmem:[#allocation3 + $0xc4] sm:$0xf] %vm6417, %v7608
    %7796 = vst.msk [vmem:[#allocation3 + $0xd0] sm:$0xf] %vm6417, %v7610
    %7797 = vst.msk [vmem:[#allocation3 + $0xdc] sm:$0xf] %vm6417, %v7612
    %7798 = vst.msk [vmem:[#allocation3 + $0xe8] sm:$0xf] %vm6417, %v7614
    %7799 = vst.msk [vmem:[#allocation3 + $0xf4] sm:$0xf] %vm6417, %v7616
    %7800 = vst.msk [vmem:[#allocation3 + $0x100] sm:$0xf] %vm6417, %v7618
    %7801 = vst.msk [vmem:[#allocation3 + $0x10c] sm:$0xf] %vm6417, %v7620
    %7802 = vst.msk [vmem:[#allocation3 + $0x118] sm:$0xf] %vm6417, %v7622
    %7803 = vst.msk [vmem:[#allocation3 + $0x124] sm:$0xf] %vm6417, %v7624
    %7804 = vst.msk [vmem:[#allocation3 + $0x130] sm:$0xf] %vm6417, %v7626
    %7805 = vst.msk [vmem:[#allocation3 + $0x13c] sm:$0xf] %vm6417, %v7628
    %7806 = vst.msk [vmem:[#allocation3 + $0x148] sm:$0xf] %vm6417, %v7630
    %7807 = vst.msk [vmem:[#allocation3 + $0x154] sm:$0xf] %vm6417, %v7632
    %7808 = vst.msk [vmem:[#allocation3 + $0x160] sm:$0xf] %vm6417, %v7634
    %7809 = vst.msk [vmem:[#allocation3 + $0x16c] sm:$0xf] %vm6417, %v7636
    %7810 = vst.msk [vmem:[#allocation3 + $0x178] sm:$0xf] %vm6417, %v7638
    %7811 = vst.msk [vmem:[#allocation3 + $0x184] sm:$0xf] %vm6417, %v7640
    %7812 = vst.msk [vmem:[#allocation3 + $0x190] sm:$0xf] %vm6417, %v7642
    %7813 = vst.msk [vmem:[#allocation3 + $0x19c] sm:$0xf] %vm6417, %v7644
    %7814 = vst.msk [vmem:[#allocation3 + $0x1a8] sm:$0xf] %vm6417, %v7646
    %7815 = vst.msk [vmem:[#allocation3 + $0x1b4] sm:$0xf] %vm6417, %v7648
    %7816 = vst.msk [vmem:[#allocation3 + $0x1c0] sm:$0xf] %vm6417, %v7650
    %7817 = vst.msk [vmem:[#allocation3 + $0x1cc] sm:$0xf] %vm6417, %v7652
    %7818 = vst.msk [vmem:[#allocation3 + $0x1d8] sm:$0xf] %vm6417, %v7654
    %7819 = vst.msk [vmem:[#allocation3 + $0x1e4] sm:$0xf] %vm6417, %v7656
    %7820 = vst.msk [vmem:[#allocation3 + $0x1f0] sm:$0xf] %vm6417, %v7658
    %7821 = vst.msk [vmem:[#allocation3 + $0x1fc] sm:$0xf] %vm6417, %v7660
    %7822 = vst.msk [vmem:[#allocation3 + $0x208] sm:$0xf] %vm6417, %v7662
    %7823 = vst.msk [vmem:[#allocation3 + $0x214] sm:$0xf] %vm6417, %v7664
    %7824 = vst.msk [vmem:[#allocation3 + $0x220] sm:$0xf] %vm6417, %v7666
    %7825 = vst.msk [vmem:[#allocation3 + $0x22c] sm:$0xf] %vm6417, %v7668
    %7826 = vst.msk [vmem:[#allocation3 + $0x238] sm:$0xf] %vm6417, %v7670
    %7827 = vst.msk [vmem:[#allocation3 + $0x244] sm:$0xf] %vm6417, %v7672
    %7828 = vst.msk [vmem:[#allocation3 + $0x250] sm:$0xf] %vm6417, %v7674
    %7829 = vst.msk [vmem:[#allocation3 + $0x25c] sm:$0xf] %vm6417, %v7676
    %7830 = vst.msk [vmem:[#allocation3 + $0x268] sm:$0xf] %vm6417, %v7678
    %7831 = vst.msk [vmem:[#allocation3 + $0x274] sm:$0xf] %vm6417, %v7680
    %7832 = vst.msk [vmem:[#allocation3 + $0x280] sm:$0xf] %vm6417, %v7682
    %7833 = vst.msk [vmem:[#allocation3 + $0x28c] sm:$0xf] %vm6417, %v7684
    %7834 = vst.msk [vmem:[#allocation3 + $0x298] sm:$0xf] %vm6417, %v7686
    %7835 = vst.msk [vmem:[#allocation3 + $0x2a4] sm:$0xf] %vm6417, %v7688
    %7836 = vst.msk [vmem:[#allocation3 + $0x2b0] sm:$0xf] %vm6417, %v7690
    %7837 = vst.msk [vmem:[#allocation3 + $0x2bc] sm:$0xf] %vm6417, %v7692
    %7838 = vst.msk [vmem:[#allocation3 + $0x2c8] sm:$0xf] %vm6417, %v7694
    %7839 = vst.msk [vmem:[#allocation3 + $0x2d4] sm:$0xf] %vm6417, %v7696
    %7840 = vst.msk [vmem:[#allocation3 + $0x2e0] sm:$0xf] %vm6417, %v7698
    %7841 = vst.msk [vmem:[#allocation3 + $0x2ec] sm:$0xf] %vm6417, %v7700
    %7842 = vst.msk [vmem:[#allocation3 + $0x2f8] sm:$0xf] %vm6417, %v7702
    %7843 = vst.msk [vmem:[#allocation3 + $0x304] sm:$0xf] %vm6417, %v7704
    %7844 = vst.msk [vmem:[#allocation3 + $0x310] sm:$0xf] %vm6417, %v7706
    %7845 = vst.msk [vmem:[#allocation3 + $0x31c] sm:$0xf] %vm6417, %v7708
    %7846 = vst.msk [vmem:[#allocation3 + $0x328] sm:$0xf] %vm6417, %v7710
    %v7847 = vld [vmem:[#allocation2 + $0x3c] sm:$0xf]
    %v7848 = vld [vmem:[#allocation2 + $0x40] sm:$0xf]
    %v7849 = vld [vmem:[#allocation2 + $0x44] sm:$0xf]
    %v7850 = vld [vmem:[#allocation2 + $0x48] sm:$0xf]
    %v7851 = vld [vmem:[#allocation2 + $0x4c] sm:$0xf]
    %v7852 = vld [vmem:[#allocation2 + $0x50] sm:$0xf]
    %v7853 = vld [vmem:[#allocation2 + $0x54] sm:$0xf]
    %v7854 = vld [vmem:[#allocation2 + $0x58] sm:$0xf]
    %v7855 = vld [vmem:[#allocation2 + $0x5c] sm:$0xf]
    %v7856 = vld [vmem:[#allocation2 + $0x60] sm:$0xf]
    %v7857 = vld [vmem:[#allocation2 + $0x64] sm:$0xf]
    %v7858 = vld [vmem:[#allocation2 + $0x68] sm:$0xf]
    %v7859 = vld [vmem:[#allocation2 + $0x6c] sm:$0xf]
    %v7860 = vld [vmem:[#allocation2 + $0x70] sm:$0xf]
    %v7861 = vld [vmem:[#allocation2 + $0x74] sm:$0xf]
    %v7862 = vld [vmem:[#allocation2 + $0x78] sm:$0xf]
    %v7863 = vld [vmem:[#allocation2 + $0x7c] sm:$0xf]
    %v7864 = vld [vmem:[#allocation2 + $0x80] sm:$0xf]
    %v7865 = vld [vmem:[#allocation2 + $0x84] sm:$0xf]
    %v7866 = vld [vmem:[#allocation2 + $0x88] sm:$0xf]
    %v7867 = vld [vmem:[#allocation2 + $0x8c] sm:$0xf]
    %v7868 = vld [vmem:[#allocation2 + $0x90] sm:$0xf]
    %v7869 = vld [vmem:[#allocation2 + $0x94] sm:$0xf]
    %v7870 = vld [vmem:[#allocation2 + $0x98] sm:$0xf]
    %v7871 = vld [vmem:[#allocation2 + $0x9c] sm:$0xf]
    %v7872 = vld [vmem:[#allocation2 + $0xa0] sm:$0xf]
    %v7873 = vld [vmem:[#allocation2 + $0xa4] sm:$0xf]
    %v7874 = vld [vmem:[#allocation2 + $0xa8] sm:$0xf]
    %v7875 = vld [vmem:[#allocation2 + $0xac] sm:$0xf]
    %v7876 = vld [vmem:[#allocation2 + $0xb0] sm:$0xf]
    %v7877 = vld [vmem:[#allocation2 + $0xb4] sm:$0xf]
    %v7878 = vld [vmem:[#allocation2 + $0xb8] sm:$0xf]
    %v7879 = vld [vmem:[#allocation2 + $0xbc] sm:$0xf]
    %v7880 = vld [vmem:[#allocation2 + $0xc0] sm:$0xf]
    %v7881 = vld [vmem:[#allocation2 + $0xc4] sm:$0xf]
    %v7882 = vld [vmem:[#allocation2 + $0xc8] sm:$0xf]
    %v7883 = vld [vmem:[#allocation2 + $0xcc] sm:$0xf]
    %v7884 = vld [vmem:[#allocation2 + $0xd0] sm:$0xf]
    %v7885 = vld [vmem:[#allocation2 + $0xd4] sm:$0xf]
    %v7886 = vld [vmem:[#allocation2 + $0xd8] sm:$0xf]
    %v7887 = vld [vmem:[#allocation2 + $0xdc] sm:$0xf]
    %v7888 = vld [vmem:[#allocation2 + $0xe0] sm:$0xf]
    %v7889 = vld [vmem:[#allocation2 + $0xe4] sm:$0xf]
    %v7890 = vld [vmem:[#allocation2 + $0xe8] sm:$0xf]
    %v7891 = vld [vmem:[#allocation2 + $0xec] sm:$0xf]
    %v7892 = vld [vmem:[#allocation2 + $0xf0] sm:$0xf]
    %v7893 = vld [vmem:[#allocation2 + $0xf4] sm:$0xf]
    %v7894 = vld [vmem:[#allocation2 + $0xf8] sm:$0xf]
    %v7895 = vld [vmem:[#allocation2 + $0xfc] sm:$0xf]
    %v7896 = vld [vmem:[#allocation2 + $0x100] sm:$0xf]
    %v7897 = vld [vmem:[#allocation2 + $0x104] sm:$0xf]
    %v7898 = vld [vmem:[#allocation2 + $0x108] sm:$0xf]
    %v7899 = vld [vmem:[#allocation2 + $0x10c] sm:$0xf]
    %v7900 = vld [vmem:[#allocation2 + $0x110] sm:$0xf]
    %v7901 = vld [vmem:[#allocation2 + $0x114] sm:$0xf]
    %v7902 = vld [vmem:[#allocation2 + $0x118] sm:$0xf]
    %v7903 = vld [vmem:[#allocation2 + $0x11c] sm:$0xf]
    %v7904 = vld [vmem:[#allocation2 + $0x120] sm:$0xf]
    %v7905 = vld [vmem:[#allocation2 + $0x124] sm:$0xf]
    %v7906 = vld [vmem:[#allocation2 + $0x128] sm:$0xf]
    %v7907 = vld [vmem:[#allocation2 + $0x12c] sm:$0xf]
    %v7908 = vld [vmem:[#allocation2 + $0x130] sm:$0xf]
    %v7909 = vld [vmem:[#allocation2 + $0x134] sm:$0xf]
    %v7910 = vld [vmem:[#allocation2 + $0x138] sm:$0xf]
    %v7911 = vld [vmem:[#allocation2 + $0x13c] sm:$0xf]
    %v7912 = vld [vmem:[#allocation2 + $0x140] sm:$0xf]
    %v7913 = vld [vmem:[#allocation2 + $0x144] sm:$0xf]
    %v7914 = vld [vmem:[#allocation2 + $0x148] sm:$0xf]
    %7983 = vrot.lane.b32.xlu0 %v7847, 96
    %v7984 = vpop.permute.xlu0 %7983
    %7985 = vrot.lane.b32.xlu0 %v7848, 96
    %v7986 = vpop.permute.xlu0 %7985
    %7987 = vrot.lane.b32.xlu0 %v7849, 96
    %v7988 = vpop.permute.xlu0 %7987
    %7989 = vrot.lane.b32.xlu0 %v7850, 96
    %v7990 = vpop.permute.xlu0 %7989
    %7991 = vrot.lane.b32.xlu0 %v7851, 96
    %v7992 = vpop.permute.xlu0 %7991
    %7993 = vrot.lane.b32.xlu0 %v7852, 96
    %v7994 = vpop.permute.xlu0 %7993
    %7995 = vrot.lane.b32.xlu0 %v7853, 96
    %v7996 = vpop.permute.xlu0 %7995
    %7997 = vrot.lane.b32.xlu0 %v7854, 96
    %v7998 = vpop.permute.xlu0 %7997
    %7999 = vrot.lane.b32.xlu0 %v7855, 96
    %v8000 = vpop.permute.xlu0 %7999
    %8001 = vrot.lane.b32.xlu0 %v7856, 96
    %v8002 = vpop.permute.xlu0 %8001
    %8003 = vrot.lane.b32.xlu0 %v7857, 96
    %v8004 = vpop.permute.xlu0 %8003
    %8005 = vrot.lane.b32.xlu0 %v7858, 96
    %v8006 = vpop.permute.xlu0 %8005
    %8007 = vrot.lane.b32.xlu0 %v7859, 96
    %v8008 = vpop.permute.xlu0 %8007
    %8009 = vrot.lane.b32.xlu0 %v7860, 96
    %v8010 = vpop.permute.xlu0 %8009
    %8011 = vrot.lane.b32.xlu0 %v7861, 96
    %v8012 = vpop.permute.xlu0 %8011
    %8013 = vrot.lane.b32.xlu0 %v7862, 96
    %v8014 = vpop.permute.xlu0 %8013
    %8015 = vrot.lane.b32.xlu0 %v7863, 96
    %v8016 = vpop.permute.xlu0 %8015
    %8017 = vrot.lane.b32.xlu0 %v7864, 96
    %v8018 = vpop.permute.xlu0 %8017
    %8019 = vrot.lane.b32.xlu0 %v7865, 96
    %v8020 = vpop.permute.xlu0 %8019
    %8021 = vrot.lane.b32.xlu0 %v7866, 96
    %v8022 = vpop.permute.xlu0 %8021
    %8023 = vrot.lane.b32.xlu0 %v7867, 96
    %v8024 = vpop.permute.xlu0 %8023
    %8025 = vrot.lane.b32.xlu0 %v7868, 96
    %v8026 = vpop.permute.xlu0 %8025
    %8027 = vrot.lane.b32.xlu0 %v7869, 96
    %v8028 = vpop.permute.xlu0 %8027
    %8029 = vrot.lane.b32.xlu0 %v7870, 96
    %v8030 = vpop.permute.xlu0 %8029
    %8031 = vrot.lane.b32.xlu0 %v7871, 96
    %v8032 = vpop.permute.xlu0 %8031
    %8033 = vrot.lane.b32.xlu0 %v7872, 96
    %v8034 = vpop.permute.xlu0 %8033
    %8035 = vrot.lane.b32.xlu0 %v7873, 96
    %v8036 = vpop.permute.xlu0 %8035
    %8037 = vrot.lane.b32.xlu0 %v7874, 96
    %v8038 = vpop.permute.xlu0 %8037
    %8039 = vrot.lane.b32.xlu0 %v7875, 96
    %v8040 = vpop.permute.xlu0 %8039
    %8041 = vrot.lane.b32.xlu0 %v7876, 96
    %v8042 = vpop.permute.xlu0 %8041
    %8043 = vrot.lane.b32.xlu0 %v7877, 96
    %v8044 = vpop.permute.xlu0 %8043
    %8045 = vrot.lane.b32.xlu0 %v7878, 96
    %v8046 = vpop.permute.xlu0 %8045
    %8047 = vrot.lane.b32.xlu0 %v7879, 96
    %v8048 = vpop.permute.xlu0 %8047
    %8049 = vrot.lane.b32.xlu0 %v7880, 96
    %v8050 = vpop.permute.xlu0 %8049
    %8051 = vrot.lane.b32.xlu0 %v7881, 96
    %v8052 = vpop.permute.xlu0 %8051
    %8053 = vrot.lane.b32.xlu0 %v7882, 96
    %v8054 = vpop.permute.xlu0 %8053
    %8055 = vrot.lane.b32.xlu0 %v7883, 96
    %v8056 = vpop.permute.xlu0 %8055
    %8057 = vrot.lane.b32.xlu0 %v7884, 96
    %v8058 = vpop.permute.xlu0 %8057
    %8059 = vrot.lane.b32.xlu0 %v7885, 96
    %v8060 = vpop.permute.xlu0 %8059
    %8061 = vrot.lane.b32.xlu0 %v7886, 96
    %v8062 = vpop.permute.xlu0 %8061
    %8063 = vrot.lane.b32.xlu0 %v7887, 96
    %v8064 = vpop.permute.xlu0 %8063
    %8065 = vrot.lane.b32.xlu0 %v7888, 96
    %v8066 = vpop.permute.xlu0 %8065
    %8067 = vrot.lane.b32.xlu0 %v7889, 96
    %v8068 = vpop.permute.xlu0 %8067
    %8069 = vrot.lane.b32.xlu0 %v7890, 96
    %v8070 = vpop.permute.xlu0 %8069
    %8071 = vrot.lane.b32.xlu0 %v7891, 96
    %v8072 = vpop.permute.xlu0 %8071
    %8073 = vrot.lane.b32.xlu0 %v7892, 96
    %v8074 = vpop.permute.xlu0 %8073
    %8075 = vrot.lane.b32.xlu0 %v7893, 96
    %v8076 = vpop.permute.xlu0 %8075
    %8077 = vrot.lane.b32.xlu0 %v7894, 96
    %v8078 = vpop.permute.xlu0 %8077
    %8079 = vrot.lane.b32.xlu0 %v7895, 96
    %v8080 = vpop.permute.xlu0 %8079
    %8081 = vrot.lane.b32.xlu0 %v7896, 96
    %v8082 = vpop.permute.xlu0 %8081
    %8083 = vrot.lane.b32.xlu0 %v7897, 96
    %v8084 = vpop.permute.xlu0 %8083
    %8085 = vrot.lane.b32.xlu0 %v7898, 96
    %v8086 = vpop.permute.xlu0 %8085
    %8087 = vrot.lane.b32.xlu0 %v7899, 96
    %v8088 = vpop.permute.xlu0 %8087
    %8089 = vrot.lane.b32.xlu0 %v7900, 96
    %v8090 = vpop.permute.xlu0 %8089
    %8091 = vrot.lane.b32.xlu0 %v7901, 96
    %v8092 = vpop.permute.xlu0 %8091
    %8093 = vrot.lane.b32.xlu0 %v7902, 96
    %v8094 = vpop.permute.xlu0 %8093
    %8095 = vrot.lane.b32.xlu0 %v7903, 96
    %v8096 = vpop.permute.xlu0 %8095
    %8097 = vrot.lane.b32.xlu0 %v7904, 96
    %v8098 = vpop.permute.xlu0 %8097
    %8099 = vrot.lane.b32.xlu0 %v7905, 96
    %v8100 = vpop.permute.xlu0 %8099
    %8101 = vrot.lane.b32.xlu0 %v7906, 96
    %v8102 = vpop.permute.xlu0 %8101
    %8103 = vrot.lane.b32.xlu0 %v7907, 96
    %v8104 = vpop.permute.xlu0 %8103
    %8105 = vrot.lane.b32.xlu0 %v7908, 96
    %v8106 = vpop.permute.xlu0 %8105
    %8107 = vrot.lane.b32.xlu0 %v7909, 96
    %v8108 = vpop.permute.xlu0 %8107
    %8109 = vrot.lane.b32.xlu0 %v7910, 96
    %v8110 = vpop.permute.xlu0 %8109
    %8111 = vrot.lane.b32.xlu0 %v7911, 96
    %v8112 = vpop.permute.xlu0 %8111
    %8113 = vrot.lane.b32.xlu0 %v7912, 96
    %v8114 = vpop.permute.xlu0 %8113
    %8115 = vrot.lane.b32.xlu0 %v7913, 96
    %v8116 = vpop.permute.xlu0 %8115
    %8117 = vrot.lane.b32.xlu0 %v7914, 96
    %v8118 = vpop.permute.xlu0 %8117
    %8187 = vst.msk [vmem:[#allocation3 + $0x4] sm:$0xf] %vm6826, %v7984
    %8188 = vst.msk [vmem:[#allocation3 + $0x10] sm:$0xf] %vm6826, %v7986
    %8189 = vst.msk [vmem:[#allocation3 + $0x1c] sm:$0xf] %vm6826, %v7988
    %8190 = vst.msk [vmem:[#allocation3 + $0x28] sm:$0xf] %vm6826, %v7990
    %8191 = vst.msk [vmem:[#allocation3 + $0x34] sm:$0xf] %vm6826, %v7992
    %8192 = vst.msk [vmem:[#allocation3 + $0x40] sm:$0xf] %vm6826, %v7994
    %8193 = vst.msk [vmem:[#allocation3 + $0x4c] sm:$0xf] %vm6826, %v7996
    %8194 = vst.msk [vmem:[#allocation3 + $0x58] sm:$0xf] %vm6826, %v7998
    %8195 = vst.msk [vmem:[#allocation3 + $0x64] sm:$0xf] %vm6826, %v8000
    %8196 = vst.msk [vmem:[#allocation3 + $0x70] sm:$0xf] %vm6826, %v8002
    %8197 = vst.msk [vmem:[#allocation3 + $0x7c] sm:$0xf] %vm6826, %v8004
    %8198 = vst.msk [vmem:[#allocation3 + $0x88] sm:$0xf] %vm6826, %v8006
    %8199 = vst.msk [vmem:[#allocation3 + $0x94] sm:$0xf] %vm6826, %v8008
    %8200 = vst.msk [vmem:[#allocation3 + $0xa0] sm:$0xf] %vm6826, %v8010
    %8201 = vst.msk [vmem:[#allocation3 + $0xac] sm:$0xf] %vm6826, %v8012
    %8202 = vst.msk [vmem:[#allocation3 + $0xb8] sm:$0xf] %vm6826, %v8014
    %8203 = vst.msk [vmem:[#allocation3 + $0xc4] sm:$0xf] %vm6826, %v8016
    %8204 = vst.msk [vmem:[#allocation3 + $0xd0] sm:$0xf] %vm6826, %v8018
    %8205 = vst.msk [vmem:[#allocation3 + $0xdc] sm:$0xf] %vm6826, %v8020
    %8206 = vst.msk [vmem:[#allocation3 + $0xe8] sm:$0xf] %vm6826, %v8022
    %8207 = vst.msk [vmem:[#allocation3 + $0xf4] sm:$0xf] %vm6826, %v8024
    %8208 = vst.msk [vmem:[#allocation3 + $0x100] sm:$0xf] %vm6826, %v8026
    %8209 = vst.msk [vmem:[#allocation3 + $0x10c] sm:$0xf] %vm6826, %v8028
    %8210 = vst.msk [vmem:[#allocation3 + $0x118] sm:$0xf] %vm6826, %v8030
    %8211 = vst.msk [vmem:[#allocation3 + $0x124] sm:$0xf] %vm6826, %v8032
    %8212 = vst.msk [vmem:[#allocation3 + $0x130] sm:$0xf] %vm6826, %v8034
    %8213 = vst.msk [vmem:[#allocation3 + $0x13c] sm:$0xf] %vm6826, %v8036
    %8214 = vst.msk [vmem:[#allocation3 + $0x148] sm:$0xf] %vm6826, %v8038
    %8215 = vst.msk [vmem:[#allocation3 + $0x154] sm:$0xf] %vm6826, %v8040
    %8216 = vst.msk [vmem:[#allocation3 + $0x160] sm:$0xf] %vm6826, %v8042
    %8217 = vst.msk [vmem:[#allocation3 + $0x16c] sm:$0xf] %vm6826, %v8044
    %8218 = vst.msk [vmem:[#allocation3 + $0x178] sm:$0xf] %vm6826, %v8046
    %8219 = vst.msk [vmem:[#allocation3 + $0x184] sm:$0xf] %vm6826, %v8048
    %8220 = vst.msk [vmem:[#allocation3 + $0x190] sm:$0xf] %vm6826, %v8050
    %8221 = vst.msk [vmem:[#allocation3 + $0x19c] sm:$0xf] %vm6826, %v8052
    %8222 = vst.msk [vmem:[#allocation3 + $0x1a8] sm:$0xf] %vm6826, %v8054
    %8223 = vst.msk [vmem:[#allocation3 + $0x1b4] sm:$0xf] %vm6826, %v8056
    %8224 = vst.msk [vmem:[#allocation3 + $0x1c0] sm:$0xf] %vm6826, %v8058
    %8225 = vst.msk [vmem:[#allocation3 + $0x1cc] sm:$0xf] %vm6826, %v8060
    %8226 = vst.msk [vmem:[#allocation3 + $0x1d8] sm:$0xf] %vm6826, %v8062
    %8227 = vst.msk [vmem:[#allocation3 + $0x1e4] sm:$0xf] %vm6826, %v8064
    %8228 = vst.msk [vmem:[#allocation3 + $0x1f0] sm:$0xf] %vm6826, %v8066
    %8229 = vst.msk [vmem:[#allocation3 + $0x1fc] sm:$0xf] %vm6826, %v8068
    %8230 = vst.msk [vmem:[#allocation3 + $0x208] sm:$0xf] %vm6826, %v8070
    %8231 = vst.msk [vmem:[#allocation3 + $0x214] sm:$0xf] %vm6826, %v8072
    %8232 = vst.msk [vmem:[#allocation3 + $0x220] sm:$0xf] %vm6826, %v8074
    %8233 = vst.msk [vmem:[#allocation3 + $0x22c] sm:$0xf] %vm6826, %v8076
    %8234 = vst.msk [vmem:[#allocation3 + $0x238] sm:$0xf] %vm6826, %v8078
    %8235 = vst.msk [vmem:[#allocation3 + $0x244] sm:$0xf] %vm6826, %v8080
    %8236 = vst.msk [vmem:[#allocation3 + $0x250] sm:$0xf] %vm6826, %v8082
    %8237 = vst.msk [vmem:[#allocation3 + $0x25c] sm:$0xf] %vm6826, %v8084
    %8238 = vst.msk [vmem:[#allocation3 + $0x268] sm:$0xf] %vm6826, %v8086
    %8239 = vst.msk [vmem:[#allocation3 + $0x274] sm:$0xf] %vm6826, %v8088
    %8240 = vst.msk [vmem:[#allocation3 + $0x280] sm:$0xf] %vm6826, %v8090
    %8241 = vst.msk [vmem:[#allocation3 + $0x28c] sm:$0xf] %vm6826, %v8092
    %8242 = vst.msk [vmem:[#allocation3 + $0x298] sm:$0xf] %vm6826, %v8094
    %8243 = vst.msk [vmem:[#allocation3 + $0x2a4] sm:$0xf] %vm6826, %v8096
    %8244 = vst.msk [vmem:[#allocation3 + $0x2b0] sm:$0xf] %vm6826, %v8098
    %8245 = vst.msk [vmem:[#allocation3 + $0x2bc] sm:$0xf] %vm6826, %v8100
    %8246 = vst.msk [vmem:[#allocation3 + $0x2c8] sm:$0xf] %vm6826, %v8102
    %8247 = vst.msk [vmem:[#allocation3 + $0x2d4] sm:$0xf] %vm6826, %v8104
    %8248 = vst.msk [vmem:[#allocation3 + $0x2e0] sm:$0xf] %vm6826, %v8106
    %8249 = vst.msk [vmem:[#allocation3 + $0x2ec] sm:$0xf] %vm6826, %v8108
    %8250 = vst.msk [vmem:[#allocation3 + $0x2f8] sm:$0xf] %vm6826, %v8110
    %8251 = vst.msk [vmem:[#allocation3 + $0x304] sm:$0xf] %vm6826, %v8112
    %8252 = vst.msk [vmem:[#allocation3 + $0x310] sm:$0xf] %vm6826, %v8114
    %8253 = vst.msk [vmem:[#allocation3 + $0x31c] sm:$0xf] %vm6826, %v8116
    %8254 = vst.msk [vmem:[#allocation3 + $0x328] sm:$0xf] %vm6826, %v8118
    %v8255 = vld [vmem:[#allocation2 + $0x40] sm:$0xf]
    %v8256 = vld [vmem:[#allocation2 + $0x44] sm:$0xf]
    %v8257 = vld [vmem:[#allocation2 + $0x48] sm:$0xf]
    %v8258 = vld [vmem:[#allocation2 + $0x4c] sm:$0xf]
    %v8259 = vld [vmem:[#allocation2 + $0x50] sm:$0xf]
    %v8260 = vld [vmem:[#allocation2 + $0x54] sm:$0xf]
    %v8261 = vld [vmem:[#allocation2 + $0x58] sm:$0xf]
    %v8262 = vld [vmem:[#allocation2 + $0x5c] sm:$0xf]
    %v8263 = vld [vmem:[#allocation2 + $0x60] sm:$0xf]
    %v8264 = vld [vmem:[#allocation2 + $0x64] sm:$0xf]
    %v8265 = vld [vmem:[#allocation2 + $0x68] sm:$0xf]
    %v8266 = vld [vmem:[#allocation2 + $0x6c] sm:$0xf]
    %v8267 = vld [vmem:[#allocation2 + $0x70] sm:$0xf]
    %v8268 = vld [vmem:[#allocation2 + $0x74] sm:$0xf]
    %v8269 = vld [vmem:[#allocation2 + $0x78] sm:$0xf]
    %v8270 = vld [vmem:[#allocation2 + $0x7c] sm:$0xf]
    %v8271 = vld [vmem:[#allocation2 + $0x80] sm:$0xf]
    %v8272 = vld [vmem:[#allocation2 + $0x84] sm:$0xf]
    %v8273 = vld [vmem:[#allocation2 + $0x88] sm:$0xf]
    %v8274 = vld [vmem:[#allocation2 + $0x8c] sm:$0xf]
    %v8275 = vld [vmem:[#allocation2 + $0x90] sm:$0xf]
    %v8276 = vld [vmem:[#allocation2 + $0x94] sm:$0xf]
    %v8277 = vld [vmem:[#allocation2 + $0x98] sm:$0xf]
    %v8278 = vld [vmem:[#allocation2 + $0x9c] sm:$0xf]
    %v8279 = vld [vmem:[#allocation2 + $0xa0] sm:$0xf]
    %v8280 = vld [vmem:[#allocation2 + $0xa4] sm:$0xf]
    %v8281 = vld [vmem:[#allocation2 + $0xa8] sm:$0xf]
    %v8282 = vld [vmem:[#allocation2 + $0xac] sm:$0xf]
    %v8283 = vld [vmem:[#allocation2 + $0xb0] sm:$0xf]
    %v8284 = vld [vmem:[#allocation2 + $0xb4] sm:$0xf]
    %v8285 = vld [vmem:[#allocation2 + $0xb8] sm:$0xf]
    %v8286 = vld [vmem:[#allocation2 + $0xbc] sm:$0xf]
    %v8287 = vld [vmem:[#allocation2 + $0xc0] sm:$0xf]
    %v8288 = vld [vmem:[#allocation2 + $0xc4] sm:$0xf]
    %v8289 = vld [vmem:[#allocation2 + $0xc8] sm:$0xf]
    %v8290 = vld [vmem:[#allocation2 + $0xcc] sm:$0xf]
    %v8291 = vld [vmem:[#allocation2 + $0xd0] sm:$0xf]
    %v8292 = vld [vmem:[#allocation2 + $0xd4] sm:$0xf]
    %v8293 = vld [vmem:[#allocation2 + $0xd8] sm:$0xf]
    %v8294 = vld [vmem:[#allocation2 + $0xdc] sm:$0xf]
    %v8295 = vld [vmem:[#allocation2 + $0xe0] sm:$0xf]
    %v8296 = vld [vmem:[#allocation2 + $0xe4] sm:$0xf]
    %v8297 = vld [vmem:[#allocation2 + $0xe8] sm:$0xf]
    %v8298 = vld [vmem:[#allocation2 + $0xec] sm:$0xf]
    %v8299 = vld [vmem:[#allocation2 + $0xf0] sm:$0xf]
    %v8300 = vld [vmem:[#allocation2 + $0xf4] sm:$0xf]
    %v8301 = vld [vmem:[#allocation2 + $0xf8] sm:$0xf]
    %v8302 = vld [vmem:[#allocation2 + $0xfc] sm:$0xf]
    %v8303 = vld [vmem:[#allocation2 + $0x100] sm:$0xf]
    %v8304 = vld [vmem:[#allocation2 + $0x104] sm:$0xf]
    %v8305 = vld [vmem:[#allocation2 + $0x108] sm:$0xf]
    %v8306 = vld [vmem:[#allocation2 + $0x10c] sm:$0xf]
    %v8307 = vld [vmem:[#allocation2 + $0x110] sm:$0xf]
    %v8308 = vld [vmem:[#allocation2 + $0x114] sm:$0xf]
    %v8309 = vld [vmem:[#allocation2 + $0x118] sm:$0xf]
    %v8310 = vld [vmem:[#allocation2 + $0x11c] sm:$0xf]
    %v8311 = vld [vmem:[#allocation2 + $0x120] sm:$0xf]
    %v8312 = vld [vmem:[#allocation2 + $0x124] sm:$0xf]
    %v8313 = vld [vmem:[#allocation2 + $0x128] sm:$0xf]
    %v8314 = vld [vmem:[#allocation2 + $0x12c] sm:$0xf]
    %v8315 = vld [vmem:[#allocation2 + $0x130] sm:$0xf]
    %v8316 = vld [vmem:[#allocation2 + $0x134] sm:$0xf]
    %v8317 = vld [vmem:[#allocation2 + $0x138] sm:$0xf]
    %v8318 = vld [vmem:[#allocation2 + $0x13c] sm:$0xf]
    %v8319 = vld [vmem:[#allocation2 + $0x140] sm:$0xf]
    %v8320 = vld [vmem:[#allocation2 + $0x144] sm:$0xf]
    %v8321 = vld [vmem:[#allocation2 + $0x148] sm:$0xf]
    %v8322 = vld [vmem:[#allocation2 + $0x14c] sm:$0xf]
    %8323 = vst.msk [vmem:[#allocation3 + $0x8] sm:$0xf] %vm5191, %v8255
    %8324 = vst.msk [vmem:[#allocation3 + $0x14] sm:$0xf] %vm5191, %v8256
    %8325 = vst.msk [vmem:[#allocation3 + $0x20] sm:$0xf] %vm5191, %v8257
    %8326 = vst.msk [vmem:[#allocation3 + $0x2c] sm:$0xf] %vm5191, %v8258
    %8327 = vst.msk [vmem:[#allocation3 + $0x38] sm:$0xf] %vm5191, %v8259
    %8328 = vst.msk [vmem:[#allocation3 + $0x44] sm:$0xf] %vm5191, %v8260
    %8329 = vst.msk [vmem:[#allocation3 + $0x50] sm:$0xf] %vm5191, %v8261
    %8330 = vst.msk [vmem:[#allocation3 + $0x5c] sm:$0xf] %vm5191, %v8262
    %8331 = vst.msk [vmem:[#allocation3 + $0x68] sm:$0xf] %vm5191, %v8263
    %8332 = vst.msk [vmem:[#allocation3 + $0x74] sm:$0xf] %vm5191, %v8264
    %8333 = vst.msk [vmem:[#allocation3 + $0x80] sm:$0xf] %vm5191, %v8265
    %8334 = vst.msk [vmem:[#allocation3 + $0x8c] sm:$0xf] %vm5191, %v8266
    %8335 = vst.msk [vmem:[#allocation3 + $0x98] sm:$0xf] %vm5191, %v8267
    %8336 = vst.msk [vmem:[#allocation3 + $0xa4] sm:$0xf] %vm5191, %v8268
    %8337 = vst.msk [vmem:[#allocation3 + $0xb0] sm:$0xf] %vm5191, %v8269
    %8338 = vst.msk [vmem:[#allocation3 + $0xbc] sm:$0xf] %vm5191, %v8270
    %8339 = vst.msk [vmem:[#allocation3 + $0xc8] sm:$0xf] %vm5191, %v8271
    %8340 = vst.msk [vmem:[#allocation3 + $0xd4] sm:$0xf] %vm5191, %v8272
    %8341 = vst.msk [vmem:[#allocation3 + $0xe0] sm:$0xf] %vm5191, %v8273
    %8342 = vst.msk [vmem:[#allocation3 + $0xec] sm:$0xf] %vm5191, %v8274
    %8343 = vst.msk [vmem:[#allocation3 + $0xf8] sm:$0xf] %vm5191, %v8275
    %8344 = vst.msk [vmem:[#allocation3 + $0x104] sm:$0xf] %vm5191, %v8276
    %8345 = vst.msk [vmem:[#allocation3 + $0x110] sm:$0xf] %vm5191, %v8277
    %8346 = vst.msk [vmem:[#allocation3 + $0x11c] sm:$0xf] %vm5191, %v8278
    %8347 = vst.msk [vmem:[#allocation3 + $0x128] sm:$0xf] %vm5191, %v8279
    %8348 = vst.msk [vmem:[#allocation3 + $0x134] sm:$0xf] %vm5191, %v8280
    %8349 = vst.msk [vmem:[#allocation3 + $0x140] sm:$0xf] %vm5191, %v8281
    %8350 = vst.msk [vmem:[#allocation3 + $0x14c] sm:$0xf] %vm5191, %v8282
    %8351 = vst.msk [vmem:[#allocation3 + $0x158] sm:$0xf] %vm5191, %v8283
    %8352 = vst.msk [vmem:[#allocation3 + $0x164] sm:$0xf] %vm5191, %v8284
    %8353 = vst.msk [vmem:[#allocation3 + $0x170] sm:$0xf] %vm5191, %v8285
    %8354 = vst.msk [vmem:[#allocation3 + $0x17c] sm:$0xf] %vm5191, %v8286
    %8355 = vst.msk [vmem:[#allocation3 + $0x188] sm:$0xf] %vm5191, %v8287
    %8356 = vst.msk [vmem:[#allocation3 + $0x194] sm:$0xf] %vm5191, %v8288
    %8357 = vst.msk [vmem:[#allocation3 + $0x1a0] sm:$0xf] %vm5191, %v8289
    %8358 = vst.msk [vmem:[#allocation3 + $0x1ac] sm:$0xf] %vm5191, %v8290
    %8359 = vst.msk [vmem:[#allocation3 + $0x1b8] sm:$0xf] %vm5191, %v8291
    %8360 = vst.msk [vmem:[#allocation3 + $0x1c4] sm:$0xf] %vm5191, %v8292
    %8361 = vst.msk [vmem:[#allocation3 + $0x1d0] sm:$0xf] %vm5191, %v8293
    %8362 = vst.msk [vmem:[#allocation3 + $0x1dc] sm:$0xf] %vm5191, %v8294
    %8363 = vst.msk [vmem:[#allocation3 + $0x1e8] sm:$0xf] %vm5191, %v8295
    %8364 = vst.msk [vmem:[#allocation3 + $0x1f4] sm:$0xf] %vm5191, %v8296
    %8365 = vst.msk [vmem:[#allocation3 + $0x200] sm:$0xf] %vm5191, %v8297
    %8366 = vst.msk [vmem:[#allocation3 + $0x20c] sm:$0xf] %vm5191, %v8298
    %8367 = vst.msk [vmem:[#allocation3 + $0x218] sm:$0xf] %vm5191, %v8299
    %8368 = vst.msk [vmem:[#allocation3 + $0x224] sm:$0xf] %vm5191, %v8300
    %8369 = vst.msk [vmem:[#allocation3 + $0x230] sm:$0xf] %vm5191, %v8301
    %8370 = vst.msk [vmem:[#allocation3 + $0x23c] sm:$0xf] %vm5191, %v8302
    %8371 = vst.msk [vmem:[#allocation3 + $0x248] sm:$0xf] %vm5191, %v8303
    %8372 = vst.msk [vmem:[#allocation3 + $0x254] sm:$0xf] %vm5191, %v8304
    %8373 = vst.msk [vmem:[#allocation3 + $0x260] sm:$0xf] %vm5191, %v8305
    %8374 = vst.msk [vmem:[#allocation3 + $0x26c] sm:$0xf] %vm5191, %v8306
    %8375 = vst.msk [vmem:[#allocation3 + $0x278] sm:$0xf] %vm5191, %v8307
    %8376 = vst.msk [vmem:[#allocation3 + $0x284] sm:$0xf] %vm5191, %v8308
    %8377 = vst.msk [vmem:[#allocation3 + $0x290] sm:$0xf] %vm5191, %v8309
    %8378 = vst.msk [vmem:[#allocation3 + $0x29c] sm:$0xf] %vm5191, %v8310
    %8379 = vst.msk [vmem:[#allocation3 + $0x2a8] sm:$0xf] %vm5191, %v8311
    %8380 = vst.msk [vmem:[#allocation3 + $0x2b4] sm:$0xf] %vm5191, %v8312
    %8381 = vst.msk [vmem:[#allocation3 + $0x2c0] sm:$0xf] %vm5191, %v8313
    %8382 = vst.msk [vmem:[#allocation3 + $0x2cc] sm:$0xf] %vm5191, %v8314
    %8383 = vst.msk [vmem:[#allocation3 + $0x2d8] sm:$0xf] %vm5191, %v8315
    %8384 = vst.msk [vmem:[#allocation3 + $0x2e4] sm:$0xf] %vm5191, %v8316
    %8385 = vst.msk [vmem:[#allocation3 + $0x2f0] sm:$0xf] %vm5191, %v8317
    %8386 = vst.msk [vmem:[#allocation3 + $0x2fc] sm:$0xf] %vm5191, %v8318
    %8387 = vst.msk [vmem:[#allocation3 + $0x308] sm:$0xf] %vm5191, %v8319
    %8388 = vst.msk [vmem:[#allocation3 + $0x314] sm:$0xf] %vm5191, %v8320
    %8389 = vst.msk [vmem:[#allocation3 + $0x320] sm:$0xf] %vm5191, %v8321
    %8390 = vst.msk [vmem:[#allocation3 + $0x32c] sm:$0xf] %vm5191, %v8322
    %v8391 = vld [vmem:[#allocation3] sm:$0xff]
    %v8392 = vld [vmem:[#allocation3 + $0x8] sm:$0xf]
    %v8393 = vld [vmem:[#allocation3 + $0xc] sm:$0xff]
    %v8394 = vld [vmem:[#allocation3 + $0x14] sm:$0xf]
    %v8395 = vld [vmem:[#allocation3 + $0x18] sm:$0xff]
    %v8396 = vld [vmem:[#allocation3 + $0x20] sm:$0xf]
    %v8397 = vld [vmem:[#allocation3 + $0x24] sm:$0xff]
    %v8398 = vld [vmem:[#allocation3 + $0x2c] sm:$0xf]
    %v8399 = vld [vmem:[#allocation3 + $0x30] sm:$0xff]
    %v8400 = vld [vmem:[#allocation3 + $0x38] sm:$0xf]
    %v8401 = vld [vmem:[#allocation3 + $0x3c] sm:$0xff]
    %v8402 = vld [vmem:[#allocation3 + $0x44] sm:$0xf]
    %v8403 = vld [vmem:[#allocation3 + $0x48] sm:$0xff]
    %v8404 = vld [vmem:[#allocation3 + $0x50] sm:$0xf]
    %v8405 = vld [vmem:[#allocation3 + $0x54] sm:$0xff]
    %v8406 = vld [vmem:[#allocation3 + $0x5c] sm:$0xf]
    %v8407 = vld [vmem:[#allocation3 + $0x60] sm:$0xff]
    %v8408 = vld [vmem:[#allocation3 + $0x68] sm:$0xf]
    %v8409 = vld [vmem:[#allocation3 + $0x6c] sm:$0xff]
    %v8410 = vld [vmem:[#allocation3 + $0x74] sm:$0xf]
    %v8411 = vld [vmem:[#allocation3 + $0x78] sm:$0xff]
    %v8412 = vld [vmem:[#allocation3 + $0x80] sm:$0xf]
    %v8413 = vld [vmem:[#allocation3 + $0x84] sm:$0xff]
    %v8414 = vld [vmem:[#allocation3 + $0x8c] sm:$0xf]
    %v8415 = vld [vmem:[#allocation3 + $0x90] sm:$0xff]
    %v8416 = vld [vmem:[#allocation3 + $0x98] sm:$0xf]
    %v8417 = vld [vmem:[#allocation3 + $0x9c] sm:$0xff]
    %v8418 = vld [vmem:[#allocation3 + $0xa4] sm:$0xf]
    %v8419 = vld [vmem:[#allocation3 + $0xa8] sm:$0xff]
    %v8420 = vld [vmem:[#allocation3 + $0xb0] sm:$0xf]
    %v8421 = vld [vmem:[#allocation3 + $0xb4] sm:$0xff]
    %v8422 = vld [vmem:[#allocation3 + $0xbc] sm:$0xf]
    %v8423 = vld [vmem:[#allocation3 + $0xc0] sm:$0xff]
    %v8424 = vld [vmem:[#allocation3 + $0xc8] sm:$0xf]
    %v8425 = vld [vmem:[#allocation3 + $0xcc] sm:$0xff]
    %v8426 = vld [vmem:[#allocation3 + $0xd4] sm:$0xf]
    %v8427 = vld [vmem:[#allocation3 + $0xd8] sm:$0xff]
    %v8428 = vld [vmem:[#allocation3 + $0xe0] sm:$0xf]
    %v8429 = vld [vmem:[#allocation3 + $0xe4] sm:$0xff]
    %v8430 = vld [vmem:[#allocation3 + $0xec] sm:$0xf]
    %v8431 = vld [vmem:[#allocation3 + $0xf0] sm:$0xff]
    %v8432 = vld [vmem:[#allocation3 + $0xf8] sm:$0xf]
    %v8433 = vld [vmem:[#allocation3 + $0xfc] sm:$0xff]
    %v8434 = vld [vmem:[#allocation3 + $0x104] sm:$0xf]
    %v8435 = vld [vmem:[#allocation3 + $0x108] sm:$0xff]
    %v8436 = vld [vmem:[#allocation3 + $0x110] sm:$0xf]
    %v8437 = vld [vmem:[#allocation3 + $0x114] sm:$0xff]
    %v8438 = vld [vmem:[#allocation3 + $0x11c] sm:$0xf]
    %v8439 = vld [vmem:[#allocation3 + $0x120] sm:$0xff]
    %v8440 = vld [vmem:[#allocation3 + $0x128] sm:$0xf]
    %v8441 = vld [vmem:[#allocation3 + $0x12c] sm:$0xff]
    %v8442 = vld [vmem:[#allocation3 + $0x134] sm:$0xf]
    %v8443 = vld [vmem:[#allocation3 + $0x138] sm:$0xff]
    %v8444 = vld [vmem:[#allocation3 + $0x140] sm:$0xf]
    %v8445 = vld [vmem:[#allocation3 + $0x144] sm:$0xff]
    %v8446 = vld [vmem:[#allocation3 + $0x14c] sm:$0xf]
    %v8447 = vld [vmem:[#allocation3 + $0x150] sm:$0xff]
    %v8448 = vld [vmem:[#allocation3 + $0x158] sm:$0xf]
    %v8449 = vld [vmem:[#allocation3 + $0x15c] sm:$0xff]
    %v8450 = vld [vmem:[#allocation3 + $0x164] sm:$0xf]
    %v8451 = vld [vmem:[#allocation3 + $0x168] sm:$0xff]
    %v8452 = vld [vmem:[#allocation3 + $0x170] sm:$0xf]
    %v8453 = vld [vmem:[#allocation3 + $0x174] sm:$0xff]
    %v8454 = vld [vmem:[#allocation3 + $0x17c] sm:$0xf]
    %v8455 = vld [vmem:[#allocation3 + $0x180] sm:$0xff]
    %v8456 = vld [vmem:[#allocation3 + $0x188] sm:$0xf]
    %v8457 = vld [vmem:[#allocation3 + $0x18c] sm:$0xff]
    %v8458 = vld [vmem:[#allocation3 + $0x194] sm:$0xf]
    %v8459 = vld [vmem:[#allocation3 + $0x198] sm:$0xff]
    %v8460 = vld [vmem:[#allocation3 + $0x1a0] sm:$0xf]
    %v8461 = vld [vmem:[#allocation3 + $0x1a4] sm:$0xff]
    %v8462 = vld [vmem:[#allocation3 + $0x1ac] sm:$0xf]
    %v8463 = vld [vmem:[#allocation3 + $0x1b0] sm:$0xff]
    %v8464 = vld [vmem:[#allocation3 + $0x1b8] sm:$0xf]
    %v8465 = vld [vmem:[#allocation3 + $0x1bc] sm:$0xff]
    %v8466 = vld [vmem:[#allocation3 + $0x1c4] sm:$0xf]
    %v8467 = vld [vmem:[#allocation3 + $0x1c8] sm:$0xff]
    %v8468 = vld [vmem:[#allocation3 + $0x1d0] sm:$0xf]
    %v8469 = vld [vmem:[#allocation3 + $0x1d4] sm:$0xff]
    %v8470 = vld [vmem:[#allocation3 + $0x1dc] sm:$0xf]
    %v8471 = vld [vmem:[#allocation3 + $0x1e0] sm:$0xff]
    %v8472 = vld [vmem:[#allocation3 + $0x1e8] sm:$0xf]
    %v8473 = vld [vmem:[#allocation3 + $0x1ec] sm:$0xff]
    %v8474 = vld [vmem:[#allocation3 + $0x1f4] sm:$0xf]
    %v8475 = vld [vmem:[#allocation3 + $0x1f8] sm:$0xff]
    %v8476 = vld [vmem:[#allocation3 + $0x200] sm:$0xf]
    %v8477 = vld [vmem:[#allocation3 + $0x204] sm:$0xff]
    %v8478 = vld [vmem:[#allocation3 + $0x20c] sm:$0xf]
    %v8479 = vld [vmem:[#allocation3 + $0x210] sm:$0xff]
    %v8480 = vld [vmem:[#allocation3 + $0x218] sm:$0xf]
    %v8481 = vld [vmem:[#allocation3 + $0x21c] sm:$0xff]
    %v8482 = vld [vmem:[#allocation3 + $0x224] sm:$0xf]
    %v8483 = vld [vmem:[#allocation3 + $0x228] sm:$0xff]
    %v8484 = vld [vmem:[#allocation3 + $0x230] sm:$0xf]
    %v8485 = vld [vmem:[#allocation3 + $0x234] sm:$0xff]
    %v8486 = vld [vmem:[#allocation3 + $0x23c] sm:$0xf]
    %v8487 = vld [vmem:[#allocation3 + $0x240] sm:$0xff]
    %v8488 = vld [vmem:[#allocation3 + $0x248] sm:$0xf]
    %v8489 = vld [vmem:[#allocation3 + $0x24c] sm:$0xff]
    %v8490 = vld [vmem:[#allocation3 + $0x254] sm:$0xf]
    %v8491 = vld [vmem:[#allocation3 + $0x258] sm:$0xff]
    %v8492 = vld [vmem:[#allocation3 + $0x260] sm:$0xf]
    %v8493 = vld [vmem:[#allocation3 + $0x264] sm:$0xff]
    %v8494 = vld [vmem:[#allocation3 + $0x26c] sm:$0xf]
    %v8495 = vld [vmem:[#allocation3 + $0x270] sm:$0xff]
    %v8496 = vld [vmem:[#allocation3 + $0x278] sm:$0xf]
    %v8497 = vld [vmem:[#allocation3 + $0x27c] sm:$0xff]
    %v8498 = vld [vmem:[#allocation3 + $0x284] sm:$0xf]
    %v8499 = vld [vmem:[#allocation3 + $0x288] sm:$0xff]
    %v8500 = vld [vmem:[#allocation3 + $0x290] sm:$0xf]
    %v8501 = vld [vmem:[#allocation3 + $0x294] sm:$0xff]
    %v8502 = vld [vmem:[#allocation3 + $0x29c] sm:$0xf]
    %v8503 = vld [vmem:[#allocation3 + $0x2a0] sm:$0xff]
    %v8504 = vld [vmem:[#allocation3 + $0x2a8] sm:$0xf]
    %v8505 = vld [vmem:[#allocation3 + $0x2ac] sm:$0xff]
    %v8506 = vld [vmem:[#allocation3 + $0x2b4] sm:$0xf]
    %v8507 = vld [vmem:[#allocation3 + $0x2b8] sm:$0xff]
    %v8508 = vld [vmem:[#allocation3 + $0x2c0] sm:$0xf]
    %v8509 = vld [vmem:[#allocation3 + $0x2c4] sm:$0xff]
    %v8510 = vld [vmem:[#allocation3 + $0x2cc] sm:$0xf]
    %v8511 = vld [vmem:[#allocation3 + $0x2d0] sm:$0xff]
    %v8512 = vld [vmem:[#allocation3 + $0x2d8] sm:$0xf]
    %v8513 = vld [vmem:[#allocation3 + $0x2dc] sm:$0xff]
    %v8514 = vld [vmem:[#allocation3 + $0x2e4] sm:$0xf]
    %v8515 = vld [vmem:[#allocation3 + $0x2e8] sm:$0xff]
    %v8516 = vld [vmem:[#allocation3 + $0x2f0] sm:$0xf]
    %v8517 = vld [vmem:[#allocation3 + $0x2f4] sm:$0xff]
    %v8518 = vld [vmem:[#allocation3 + $0x2fc] sm:$0xf]
    %v8519 = vld [vmem:[#allocation3 + $0x300] sm:$0xff]
    %v8520 = vld [vmem:[#allocation3 + $0x308] sm:$0xf]
    %v8521 = vld [vmem:[#allocation3 + $0x30c] sm:$0xff]
    %v8522 = vld [vmem:[#allocation3 + $0x314] sm:$0xf]
    %v8523 = vld [vmem:[#allocation3 + $0x318] sm:$0xff]
    %v8524 = vld [vmem:[#allocation3 + $0x320] sm:$0xf]
    %v8525 = vld [vmem:[#allocation3 + $0x324] sm:$0xff]
    %v8526 = vld [vmem:[#allocation3 + $0x32c] sm:$0xf]
    %v8527 = vld [vmem:[%s3] sm:$0xf]
    %v8528 = vld [vmem:[%s3 + $0x4] sm:$0xf]
    %v8529 = vld [vmem:[%s3 + $0x8] sm:$0xf]
    %v8530 = vld [vmem:[%s3 + $0xc] sm:$0xf]
    %v8531 = vld [vmem:[%s3 + $0x10] sm:$0xf]
    %v8532 = vld [vmem:[%s3 + $0x14] sm:$0xf]
    %v8533 = vld [vmem:[%s3 + $0x18] sm:$0xf]
    %v8534 = vld [vmem:[%s3 + $0x1c] sm:$0xf]
    %v8535 = vld [vmem:[%s3 + $0x20] sm:$0xf]
    %v8536 = vld [vmem:[%s3 + $0x24] sm:$0xf]
    %v8537 = vld [vmem:[%s3 + $0x28] sm:$0xf]
    %v8538 = vld [vmem:[%s3 + $0x2c] sm:$0xf]
    %v8539 = vld [vmem:[%s3 + $0x30] sm:$0xf]
    %v8540 = vld [vmem:[%s3 + $0x34] sm:$0xf]
    %v8541 = vld [vmem:[%s3 + $0x38] sm:$0xf]
    %v8542 = vld [vmem:[%s3 + $0x3c] sm:$0xf]
    %v8543 = vld [vmem:[%s3 + $0x40] sm:$0xf]
    %v8544 = vld [vmem:[%s3 + $0x44] sm:$0xf]
    %v8545 = vld [vmem:[%s3 + $0x48] sm:$0xf]
    %v8546 = vld [vmem:[%s3 + $0x4c] sm:$0xf]
    %v8547 = vld [vmem:[%s3 + $0x50] sm:$0xf]
    %v8548 = vld [vmem:[%s3 + $0x54] sm:$0xf]
    %v8549 = vld [vmem:[%s3 + $0x58] sm:$0xf]
    %v8550 = vld [vmem:[%s3 + $0x5c] sm:$0xf]
    %v8551 = vld [vmem:[%s3 + $0x60] sm:$0xf]
    %v8552 = vld [vmem:[%s3 + $0x64] sm:$0xf]
    %v8553 = vld [vmem:[%s3 + $0x68] sm:$0xf]
    %v8554 = vld [vmem:[%s3 + $0x6c] sm:$0xf]
    %v8555 = vld [vmem:[%s3 + $0x70] sm:$0xf]
    %v8556 = vld [vmem:[%s3 + $0x74] sm:$0xf]
    %v8557 = vld [vmem:[%s3 + $0x78] sm:$0xf]
    %v8558 = vld [vmem:[%s3 + $0x7c] sm:$0xf]
    %v8559 = vld [vmem:[%s3 + $0x80] sm:$0xf]
    %v8560 = vld [vmem:[%s3 + $0x84] sm:$0xf]
    %v8561 = vld [vmem:[%s3 + $0x88] sm:$0xf]
    %v8562 = vld [vmem:[%s3 + $0x8c] sm:$0xf]
    %v8563 = vld [vmem:[%s4] sm:$0x1]
    %v8565 = vlaneseq
    %v8566 = vshrl.u32 %v8565, 7
    %v8567 = vsub.s32 0, %v8566
    %v8568 = vrot.slane %v8563, %v8567
    %v8706 = vunpack.c.l.b16 %v8391
    %v8707 = vunpack.c.h.b16 %v8391
    %v8708 = vunpack.c.l.b16 %v8392
    %v8709 = vunpack.c.l.b16 %v8393
    %v8710 = vunpack.c.h.b16 %v8393
    %v8711 = vunpack.c.l.b16 %v8394
    %v8712 = vunpack.c.l.b16 %v8395
    %v8713 = vunpack.c.h.b16 %v8395
    %v8714 = vunpack.c.l.b16 %v8396
    %v8715 = vunpack.c.l.b16 %v8397
    %v8716 = vunpack.c.h.b16 %v8397
    %v8717 = vunpack.c.l.b16 %v8398
    %v8718 = vunpack.c.l.b16 %v8399
    %v8719 = vunpack.c.h.b16 %v8399
    %v8720 = vunpack.c.l.b16 %v8400
    %v8721 = vunpack.c.l.b16 %v8401
    %v8722 = vunpack.c.h.b16 %v8401
    %v8723 = vunpack.c.l.b16 %v8402
    %v8724 = vunpack.c.l.b16 %v8403
    %v8725 = vunpack.c.h.b16 %v8403
    %v8726 = vunpack.c.l.b16 %v8404
    %v8727 = vunpack.c.l.b16 %v8405
    %v8728 = vunpack.c.h.b16 %v8405
    %v8729 = vunpack.c.l.b16 %v8406
    %v8730 = vunpack.c.l.b16 %v8407
    %v8731 = vunpack.c.h.b16 %v8407
    %v8732 = vunpack.c.l.b16 %v8408
    %v8733 = vunpack.c.l.b16 %v8409
    %v8734 = vunpack.c.h.b16 %v8409
    %v8735 = vunpack.c.l.b16 %v8410
    %v8736 = vunpack.c.l.b16 %v8411
    %v8737 = vunpack.c.h.b16 %v8411
    %v8738 = vunpack.c.l.b16 %v8412
    %v8739 = vunpack.c.l.b16 %v8413
    %v8740 = vunpack.c.h.b16 %v8413
    %v8741 = vunpack.c.l.b16 %v8414
    %v8742 = vunpack.c.l.b16 %v8415
    %v8743 = vunpack.c.h.b16 %v8415
    %v8744 = vunpack.c.l.b16 %v8416
    %v8745 = vunpack.c.l.b16 %v8417
    %v8746 = vunpack.c.h.b16 %v8417
    %v8747 = vunpack.c.l.b16 %v8418
    %v8748 = vunpack.c.l.b16 %v8419
    %v8749 = vunpack.c.h.b16 %v8419
    %v8750 = vunpack.c.l.b16 %v8420
    %v8751 = vunpack.c.l.b16 %v8421
    %v8752 = vunpack.c.h.b16 %v8421
    %v8753 = vunpack.c.l.b16 %v8422
    %v8754 = vunpack.c.l.b16 %v8423
    %v8755 = vunpack.c.h.b16 %v8423
    %v8756 = vunpack.c.l.b16 %v8424
    %v8757 = vunpack.c.l.b16 %v8425
    %v8758 = vunpack.c.h.b16 %v8425
    %v8759 = vunpack.c.l.b16 %v8426
    %v8760 = vunpack.c.l.b16 %v8427
    %v8761 = vunpack.c.h.b16 %v8427
    %v8762 = vunpack.c.l.b16 %v8428
    %v8763 = vunpack.c.l.b16 %v8429
    %v8764 = vunpack.c.h.b16 %v8429
    %v8765 = vunpack.c.l.b16 %v8430
    %v8766 = vunpack.c.l.b16 %v8431
    %v8767 = vunpack.c.h.b16 %v8431
    %v8768 = vunpack.c.l.b16 %v8432
    %v8769 = vunpack.c.l.b16 %v8433
    %v8770 = vunpack.c.h.b16 %v8433
    %v8771 = vunpack.c.l.b16 %v8434
    %v8772 = vunpack.c.l.b16 %v8435
    %v8773 = vunpack.c.h.b16 %v8435
    %v8774 = vunpack.c.l.b16 %v8436
    %v8775 = vunpack.c.l.b16 %v8437
    %v8776 = vunpack.c.h.b16 %v8437
    %v8777 = vunpack.c.l.b16 %v8438
    %v8778 = vunpack.c.l.b16 %v8439
    %v8779 = vunpack.c.h.b16 %v8439
    %v8780 = vunpack.c.l.b16 %v8440
    %v8781 = vunpack.c.l.b16 %v8441
    %v8782 = vunpack.c.h.b16 %v8441
    %v8783 = vunpack.c.l.b16 %v8442
    %v8784 = vunpack.c.l.b16 %v8443
    %v8785 = vunpack.c.h.b16 %v8443
    %v8786 = vunpack.c.l.b16 %v8444
    %v8787 = vunpack.c.l.b16 %v8445
    %v8788 = vunpack.c.h.b16 %v8445
    %v8789 = vunpack.c.l.b16 %v8446
    %v8790 = vunpack.c.l.b16 %v8447
    %v8791 = vunpack.c.h.b16 %v8447
    %v8792 = vunpack.c.l.b16 %v8448
    %v8793 = vunpack.c.l.b16 %v8449
    %v8794 = vunpack.c.h.b16 %v8449
    %v8795 = vunpack.c.l.b16 %v8450
    %v8796 = vunpack.c.l.b16 %v8451
    %v8797 = vunpack.c.h.b16 %v8451
    %v8798 = vunpack.c.l.b16 %v8452
    %v8799 = vunpack.c.l.b16 %v8453
    %v8800 = vunpack.c.h.b16 %v8453
    %v8801 = vunpack.c.l.b16 %v8454
    %v8802 = vunpack.c.l.b16 %v8455
    %v8803 = vunpack.c.h.b16 %v8455
    %v8804 = vunpack.c.l.b16 %v8456
    %v8805 = vunpack.c.l.b16 %v8457
    %v8806 = vunpack.c.h.b16 %v8457
    %v8807 = vunpack.c.l.b16 %v8458
    %v8808 = vunpack.c.l.b16 %v8459
    %v8809 = vunpack.c.h.b16 %v8459
    %v8810 = vunpack.c.l.b16 %v8460
    %v8811 = vunpack.c.l.b16 %v8461
    %v8812 = vunpack.c.h.b16 %v8461
    %v8813 = vunpack.c.l.b16 %v8462
    %v8814 = vunpack.c.l.b16 %v8463
    %v8815 = vunpack.c.h.b16 %v8463
    %v8816 = vunpack.c.l.b16 %v8464
    %v8817 = vunpack.c.l.b16 %v8465
    %v8818 = vunpack.c.h.b16 %v8465
    %v8819 = vunpack.c.l.b16 %v8466
    %v8820 = vunpack.c.l.b16 %v8467
    %v8821 = vunpack.c.h.b16 %v8467
    %v8822 = vunpack.c.l.b16 %v8468
    %v8823 = vunpack.c.l.b16 %v8469
    %v8824 = vunpack.c.h.b16 %v8469
    %v8825 = vunpack.c.l.b16 %v8470
    %v8826 = vunpack.c.l.b16 %v8471
    %v8827 = vunpack.c.h.b16 %v8471
    %v8828 = vunpack.c.l.b16 %v8472
    %v8829 = vunpack.c.l.b16 %v8473
    %v8830 = vunpack.c.h.b16 %v8473
    %v8831 = vunpack.c.l.b16 %v8474
    %v8832 = vunpack.c.l.b16 %v8475
    %v8833 = vunpack.c.h.b16 %v8475
    %v8834 = vunpack.c.l.b16 %v8476
    %v8835 = vunpack.c.l.b16 %v8477
    %v8836 = vunpack.c.h.b16 %v8477
    %v8837 = vunpack.c.l.b16 %v8478
    %v8838 = vunpack.c.l.b16 %v8479
    %v8839 = vunpack.c.h.b16 %v8479
    %v8840 = vunpack.c.l.b16 %v8480
    %v8841 = vunpack.c.l.b16 %v8481
    %v8842 = vunpack.c.h.b16 %v8481
    %v8843 = vunpack.c.l.b16 %v8482
    %v8844 = vunpack.c.l.b16 %v8483
    %v8845 = vunpack.c.h.b16 %v8483
    %v8846 = vunpack.c.l.b16 %v8484
    %v8847 = vunpack.c.l.b16 %v8485
    %v8848 = vunpack.c.h.b16 %v8485
    %v8849 = vunpack.c.l.b16 %v8486
    %v8850 = vunpack.c.l.b16 %v8487
    %v8851 = vunpack.c.h.b16 %v8487
    %v8852 = vunpack.c.l.b16 %v8488
    %v8853 = vunpack.c.l.b16 %v8489
    %v8854 = vunpack.c.h.b16 %v8489
    %v8855 = vunpack.c.l.b16 %v8490
    %v8856 = vunpack.c.l.b16 %v8491
    %v8857 = vunpack.c.h.b16 %v8491
    %v8858 = vunpack.c.l.b16 %v8492
    %v8859 = vunpack.c.l.b16 %v8493
    %v8860 = vunpack.c.h.b16 %v8493
    %v8861 = vunpack.c.l.b16 %v8494
    %v8862 = vunpack.c.l.b16 %v8495
    %v8863 = vunpack.c.h.b16 %v8495
    %v8864 = vunpack.c.l.b16 %v8496
    %v8865 = vunpack.c.l.b16 %v8497
    %v8866 = vunpack.c.h.b16 %v8497
    %v8867 = vunpack.c.l.b16 %v8498
    %v8868 = vunpack.c.l.b16 %v8499
    %v8869 = vunpack.c.h.b16 %v8499
    %v8870 = vunpack.c.l.b16 %v8500
    %v8871 = vunpack.c.l.b16 %v8501
    %v8872 = vunpack.c.h.b16 %v8501
    %v8873 = vunpack.c.l.b16 %v8502
    %v8874 = vunpack.c.l.b16 %v8503
    %v8875 = vunpack.c.h.b16 %v8503
    %v8876 = vunpack.c.l.b16 %v8504
    %v8877 = vunpack.c.l.b16 %v8505
    %v8878 = vunpack.c.h.b16 %v8505
    %v8879 = vunpack.c.l.b16 %v8506
    %v8880 = vunpack.c.l.b16 %v8507
    %v8881 = vunpack.c.h.b16 %v8507
    %v8882 = vunpack.c.l.b16 %v8508
    %v8883 = vunpack.c.l.b16 %v8509
    %v8884 = vunpack.c.h.b16 %v8509
    %v8885 = vunpack.c.l.b16 %v8510
    %v8886 = vunpack.c.l.b16 %v8511
    %v8887 = vunpack.c.h.b16 %v8511
    %v8888 = vunpack.c.l.b16 %v8512
    %v8889 = vunpack.c.l.b16 %v8513
    %v8890 = vunpack.c.h.b16 %v8513
    %v8891 = vunpack.c.l.b16 %v8514
    %v8892 = vunpack.c.l.b16 %v8515
    %v8893 = vunpack.c.h.b16 %v8515
    %v8894 = vunpack.c.l.b16 %v8516
    %v8895 = vunpack.c.l.b16 %v8517
    %v8896 = vunpack.c.h.b16 %v8517
    %v8897 = vunpack.c.l.b16 %v8518
    %v8898 = vunpack.c.l.b16 %v8519
    %v8899 = vunpack.c.h.b16 %v8519
    %v8900 = vunpack.c.l.b16 %v8520
    %v8901 = vunpack.c.l.b16 %v8521
    %v8902 = vunpack.c.h.b16 %v8521
    %v8903 = vunpack.c.l.b16 %v8522
    %v8904 = vunpack.c.l.b16 %v8523
    %v8905 = vunpack.c.h.b16 %v8523
    %v8906 = vunpack.c.l.b16 %v8524
    %v8907 = vunpack.c.l.b16 %v8525
    %v8908 = vunpack.c.h.b16 %v8525
    %v8909 = vunpack.c.l.b16 %v8526
    %v8910 = vpack.c.b16 %v8709, %v8706
    %v8911 = vpack.c.b16 %v8710, %v8707
    %v8912 = vpack.c.b16 %v8711, %v8708
    %v8913 = vpack.c.b16 %v8715, %v8712
    %v8914 = vpack.c.b16 %v8716, %v8713
    %v8915 = vpack.c.b16 %v8717, %v8714
    %v8916 = vpack.c.b16 %v8721, %v8718
    %v8917 = vpack.c.b16 %v8722, %v8719
    %v8918 = vpack.c.b16 %v8723, %v8720
    %v8919 = vpack.c.b16 %v8727, %v8724
    %v8920 = vpack.c.b16 %v8728, %v8725
    %v8921 = vpack.c.b16 %v8729, %v8726
    %v8922 = vpack.c.b16 %v8733, %v8730
    %v8923 = vpack.c.b16 %v8734, %v8731
    %v8924 = vpack.c.b16 %v8735, %v8732
    %v8925 = vpack.c.b16 %v8739, %v8736
    %v8926 = vpack.c.b16 %v8740, %v8737
    %v8927 = vpack.c.b16 %v8741, %v8738
    %v8928 = vpack.c.b16 %v8745, %v8742
    %v8929 = vpack.c.b16 %v8746, %v8743
    %v8930 = vpack.c.b16 %v8747, %v8744
    %v8931 = vpack.c.b16 %v8751, %v8748
    %v8932 = vpack.c.b16 %v8752, %v8749
    %v8933 = vpack.c.b16 %v8753, %v8750
    %v8934 = vpack.c.b16 %v8757, %v8754
    %v8935 = vpack.c.b16 %v8758, %v8755
    %v8936 = vpack.c.b16 %v8759, %v8756
    %v8937 = vpack.c.b16 %v8763, %v8760
    %v8938 = vpack.c.b16 %v8764, %v8761
    %v8939 = vpack.c.b16 %v8765, %v8762
    %v8940 = vpack.c.b16 %v8769, %v8766
    %v8941 = vpack.c.b16 %v8770, %v8767
    %v8942 = vpack.c.b16 %v8771, %v8768
    %v8943 = vpack.c.b16 %v8775, %v8772
    %v8944 = vpack.c.b16 %v8776, %v8773
    %v8945 = vpack.c.b16 %v8777, %v8774
    %v8946 = vpack.c.b16 %v8781, %v8778
    %v8947 = vpack.c.b16 %v8782, %v8779
    %v8948 = vpack.c.b16 %v8783, %v8780
    %v8949 = vpack.c.b16 %v8787, %v8784
    %v8950 = vpack.c.b16 %v8788, %v8785
    %v8951 = vpack.c.b16 %v8789, %v8786
    %v8952 = vpack.c.b16 %v8793, %v8790
    %v8953 = vpack.c.b16 %v8794, %v8791
    %v8954 = vpack.c.b16 %v8795, %v8792
    %v8955 = vpack.c.b16 %v8799, %v8796
    %v8956 = vpack.c.b16 %v8800, %v8797
    %v8957 = vpack.c.b16 %v8801, %v8798
    %v8958 = vpack.c.b16 %v8805, %v8802
    %v8959 = vpack.c.b16 %v8806, %v8803
    %v8960 = vpack.c.b16 %v8807, %v8804
    %v8961 = vpack.c.b16 %v8811, %v8808
    %v8962 = vpack.c.b16 %v8812, %v8809
    %v8963 = vpack.c.b16 %v8813, %v8810
    %v8964 = vpack.c.b16 %v8817, %v8814
    %v8965 = vpack.c.b16 %v8818, %v8815
    %v8966 = vpack.c.b16 %v8819, %v8816
    %v8967 = vpack.c.b16 %v8823, %v8820
    %v8968 = vpack.c.b16 %v8824, %v8821
    %v8969 = vpack.c.b16 %v8825, %v8822
    %v8970 = vpack.c.b16 %v8829, %v8826
    %v8971 = vpack.c.b16 %v8830, %v8827
    %v8972 = vpack.c.b16 %v8831, %v8828
    %v8973 = vpack.c.b16 %v8835, %v8832
    %v8974 = vpack.c.b16 %v8836, %v8833
    %v8975 = vpack.c.b16 %v8837, %v8834
    %v8976 = vpack.c.b16 %v8841, %v8838
    %v8977 = vpack.c.b16 %v8842, %v8839
    %v8978 = vpack.c.b16 %v8843, %v8840
    %v8979 = vpack.c.b16 %v8847, %v8844
    %v8980 = vpack.c.b16 %v8848, %v8845
    %v8981 = vpack.c.b16 %v8849, %v8846
    %v8982 = vpack.c.b16 %v8853, %v8850
    %v8983 = vpack.c.b16 %v8854, %v8851
    %v8984 = vpack.c.b16 %v8855, %v8852
    %v8985 = vpack.c.b16 %v8859, %v8856
    %v8986 = vpack.c.b16 %v8860, %v8857
    %v8987 = vpack.c.b16 %v8861, %v8858
    %v8988 = vpack.c.b16 %v8865, %v8862
    %v8989 = vpack.c.b16 %v8866, %v8863
    %v8990 = vpack.c.b16 %v8867, %v8864
    %v8991 = vpack.c.b16 %v8871, %v8868
    %v8992 = vpack.c.b16 %v8872, %v8869
    %v8993 = vpack.c.b16 %v8873, %v8870
    %v8994 = vpack.c.b16 %v8877, %v8874
    %v8995 = vpack.c.b16 %v8878, %v8875
    %v8996 = vpack.c.b16 %v8879, %v8876
    %v8997 = vpack.c.b16 %v8883, %v8880
    %v8998 = vpack.c.b16 %v8884, %v8881
    %v8999 = vpack.c.b16 %v8885, %v8882
    %v9000 = vpack.c.b16 %v8889, %v8886
    %v9001 = vpack.c.b16 %v8890, %v8887
    %v9002 = vpack.c.b16 %v8891, %v8888
    %v9003 = vpack.c.b16 %v8895, %v8892
    %v9004 = vpack.c.b16 %v8896, %v8893
    %v9005 = vpack.c.b16 %v8897, %v8894
    %v9006 = vpack.c.b16 %v8901, %v8898
    %v9007 = vpack.c.b16 %v8902, %v8899
    %v9008 = vpack.c.b16 %v8903, %v8900
    %v9009 = vpack.c.b16 %v8907, %v8904
    %v9010 = vpack.c.b16 %v8908, %v8905
    %v9011 = vpack.c.b16 %v8909, %v8906
    %v9116 = vunpack.c.l.b16 %v8527
    %v9117 = vunpack.c.l.b16 %v8528
    %v9118 = vunpack.c.l.b16 %v8529
    %v9119 = vunpack.c.l.b16 %v8530
    %v9120 = vunpack.c.l.b16 %v8531
    %v9121 = vunpack.c.l.b16 %v8532
    %v9122 = vunpack.c.l.b16 %v8533
    %v9123 = vunpack.c.l.b16 %v8534
    %v9124 = vunpack.c.l.b16 %v8535
    %v9125 = vunpack.c.l.b16 %v8536
    %v9126 = vunpack.c.l.b16 %v8537
    %v9127 = vunpack.c.l.b16 %v8538
    %v9128 = vunpack.c.l.b16 %v8539
    %v9129 = vunpack.c.l.b16 %v8540
    %v9130 = vunpack.c.l.b16 %v8541
    %v9131 = vunpack.c.l.b16 %v8542
    %v9132 = vunpack.c.l.b16 %v8543
    %v9133 = vunpack.c.l.b16 %v8544
    %v9134 = vunpack.c.l.b16 %v8545
    %v9135 = vunpack.c.l.b16 %v8546
    %v9136 = vunpack.c.l.b16 %v8547
    %v9137 = vunpack.c.l.b16 %v8548
    %v9138 = vunpack.c.l.b16 %v8549
    %v9139 = vunpack.c.l.b16 %v8550
    %v9140 = vunpack.c.l.b16 %v8551
    %v9141 = vunpack.c.l.b16 %v8552
    %v9142 = vunpack.c.l.b16 %v8553
    %v9143 = vunpack.c.l.b16 %v8554
    %v9144 = vunpack.c.l.b16 %v8555
    %v9145 = vunpack.c.l.b16 %v8556
    %v9146 = vunpack.c.l.b16 %v8557
    %v9147 = vunpack.c.l.b16 %v8558
    %v9148 = vunpack.c.l.b16 %v8559
    %v9149 = vunpack.c.l.b16 %v8560
    %v9150 = vunpack.c.l.b16 %v8561
    %v9151 = vunpack.c.l.b16 %v8562
    %v9152 = vpack.c.b16 %v9117, %v9116
    %v9153 = vpack.c.b16 %v9119, %v9118
    %v9154 = vpack.c.b16 %v9121, %v9120
    %v9155 = vpack.c.b16 %v9123, %v9122
    %v9156 = vpack.c.b16 %v9125, %v9124
    %v9157 = vpack.c.b16 %v9127, %v9126
    %v9158 = vpack.c.b16 %v9129, %v9128
    %v9159 = vpack.c.b16 %v9131, %v9130
    %v9160 = vpack.c.b16 %v9133, %v9132
    %v9161 = vpack.c.b16 %v9135, %v9134
    %v9162 = vpack.c.b16 %v9137, %v9136
    %v9163 = vpack.c.b16 %v9139, %v9138
    %v9164 = vpack.c.b16 %v9141, %v9140
    %v9165 = vpack.c.b16 %v9143, %v9142
    %v9166 = vpack.c.b16 %v9145, %v9144
    %v9167 = vpack.c.b16 %v9147, %v9146
    %v9168 = vpack.c.b16 %v9149, %v9148
    %v9169 = vpack.c.b16 %v9151, %v9150
    %vm9188 = vcmask 261120
    %v9190 = vsel %vm9188, %v8912, 0
    %v9193 = vsel %vm9188, %v8915, 0
    %v9196 = vsel %vm9188, %v8918, 0
    %v9199 = vsel %vm9188, %v8921, 0
    %v9202 = vsel %vm9188, %v8924, 0
    %v9205 = vsel %vm9188, %v8927, 0
    %v9208 = vsel %vm9188, %v8930, 0
    %v9211 = vsel %vm9188, %v8933, 0
    %v9214 = vsel %vm9188, %v8936, 0
    %v9217 = vsel %vm9188, %v8939, 0
    %v9220 = vsel %vm9188, %v8942, 0
    %v9223 = vsel %vm9188, %v8945, 0
    %v9226 = vsel %vm9188, %v8948, 0
    %v9229 = vsel %vm9188, %v8951, 0
    %v9232 = vsel %vm9188, %v8954, 0
    %v9235 = vsel %vm9188, %v8957, 0
    %v9238 = vsel %vm9188, %v8960, 0
    %v9241 = vsel %vm9188, %v8963, 0
    %v9244 = vsel %vm9188, %v8966, 0
    %v9247 = vsel %vm9188, %v8969, 0
    %v9250 = vsel %vm9188, %v8972, 0
    %v9253 = vsel %vm9188, %v8975, 0
    %v9256 = vsel %vm9188, %v8978, 0
    %v9259 = vsel %vm9188, %v8981, 0
    %v9262 = vsel %vm9188, %v8984, 0
    %v9265 = vsel %vm9188, %v8987, 0
    %v9268 = vsel %vm9188, %v8990, 0
    %v9271 = vsel %vm9188, %v8993, 0
    %v9274 = vsel %vm9188, %v8996, 0
    %v9277 = vsel %vm9188, %v8999, 0
    %v9280 = vsel %vm9188, %v9002, 0
    %v9283 = vsel %vm9188, %v9005, 0
    %v9286 = vsel %vm9188, %v9008, 0
    %v9289 = vsel %vm9188, %v9011, 0
    %9291 = vmatprep.subr.bf16.mxu0 0
    %9292 = vmatpush1.bf16.msra.mxu0 %v9159
    %9293 = vmatprep.subr.bf16.mxu0 0
    %9294 = vmatpush1.bf16.msra.mxu0 %v9158
    %9295 = vmatprep.subr.bf16.mxu0 0
    %9296 = vmatpush1.bf16.msra.mxu0 %v9157
    %9297 = vmatprep.subr.bf16.mxu0 0
    %9298 = vmatpush1.bf16.msra.mxu0 %v9156
    %9299 = vmatprep.subr.bf16.mxu0 0
    %9300 = vmatpush1.bf16.msra.mxu0 %v9155
    %9301 = vmatprep.subr.bf16.mxu0 0
    %9302 = vmatpush1.bf16.msra.mxu0 %v9154
    %9303 = vmatprep.subr.bf16.mxu0 0
    %9304 = vmatpush1.bf16.msra.mxu0 %v9153
    %9305 = vmatprep.subr.bf16.mxu0 0
    %9306 = vmatpush1.bf16.msra.mxu0 %v9152
    %9307 = vmatprep.subr.bf16.mxu0 0
    %9308 = vmatpush2.bf16.msra.mxu0 %v9167
    %9309 = vmatprep.subr.bf16.mxu0 0
    %9310 = vmatpush2.bf16.msra.mxu0 %v9166
    %9311 = vmatprep.subr.bf16.mxu0 0
    %9312 = vmatpush2.bf16.msra.mxu0 %v9165
    %9313 = vmatprep.subr.bf16.mxu0 0
    %9314 = vmatpush2.bf16.msra.mxu0 %v9164
    %9315 = vmatprep.subr.bf16.mxu0 0
    %9316 = vmatpush2.bf16.msra.mxu0 %v9163
    %9317 = vmatprep.subr.bf16.mxu0 0
    %9318 = vmatpush2.bf16.msra.mxu0 %v9162
    %9319 = vmatprep.subr.bf16.mxu0 0
    %9320 = vmatpush2.bf16.msra.mxu0 %v9161
    %9321 = vmatprep.subr.bf16.mxu0 0
    %9322 = vmatpush2.bf16.msra.mxu0 %v9160
    %9323 = vmatprep.mubr.bf16.mxu0 %v8911
    %9324 = vmatmul.mubr.bf16.gmra.mxu0 %v8910
    %v9325 = vpop.f32.mrf.mxu0
    %v9326 = vadd.f32 %v8568, %v9325
    %v9327 = vpop.f32.mrf.mxu0
    %v9328 = vpop.f32.mrf.mxu0
    %v9329 = vadd.f32 %v8568, %v9328
    %v9330 = vpop.f32.mrf.mxu0
    %9331 = vmatprep.mubr.bf16.mxu0 %v8914
    %9332 = vmatmul.mubr.bf16.gmra.mxu0 %v8913
    %v9333 = vpop.f32.mrf.mxu0
    %v9334 = vadd.f32 %v8568, %v9333
    %v9335 = vpop.f32.mrf.mxu0
    %v9336 = vpop.f32.mrf.mxu0
    %v9337 = vadd.f32 %v8568, %v9336
    %v9338 = vpop.f32.mrf.mxu0
    %9339 = vmatprep.mubr.bf16.mxu0 %v8917
    %9340 = vmatmul.mubr.bf16.gmra.mxu0 %v8916
    %v9341 = vpop.f32.mrf.mxu0
    %v9342 = vadd.f32 %v8568, %v9341
    %v9343 = vpop.f32.mrf.mxu0
    %v9344 = vpop.f32.mrf.mxu0
    %v9345 = vadd.f32 %v8568, %v9344
    %v9346 = vpop.f32.mrf.mxu0
    %9347 = vmatprep.mubr.bf16.mxu0 %v8920
    %9348 = vmatmul.mubr.bf16.gmra.mxu0 %v8919
    %v9349 = vpop.f32.mrf.mxu0
    %v9350 = vadd.f32 %v8568, %v9349
    %v9351 = vpop.f32.mrf.mxu0
    %v9352 = vpop.f32.mrf.mxu0
    %v9353 = vadd.f32 %v8568, %v9352
    %v9354 = vpop.f32.mrf.mxu0
    %9355 = vmatprep.mubr.bf16.mxu0 %v8923
    %9356 = vmatmul.mubr.bf16.gmra.mxu0 %v8922
    %v9357 = vpop.f32.mrf.mxu0
    %v9358 = vadd.f32 %v8568, %v9357
    %v9359 = vpop.f32.mrf.mxu0
    %v9360 = vpop.f32.mrf.mxu0
    %v9361 = vadd.f32 %v8568, %v9360
    %v9362 = vpop.f32.mrf.mxu0
    %9363 = vmatprep.mubr.bf16.mxu0 %v8926
    %9364 = vmatmul.mubr.bf16.gmra.mxu0 %v8925
    %v9365 = vpop.f32.mrf.mxu0
    %v9366 = vadd.f32 %v8568, %v9365
    %v9367 = vpop.f32.mrf.mxu0
    %v9368 = vpop.f32.mrf.mxu0
    %v9369 = vadd.f32 %v8568, %v9368
    %v9370 = vpop.f32.mrf.mxu0
    %9371 = vmatprep.mubr.bf16.mxu0 %v8929
    %9372 = vmatmul.mubr.bf16.gmra.mxu0 %v8928
    %v9373 = vpop.f32.mrf.mxu0
    %v9374 = vadd.f32 %v8568, %v9373
    %v9375 = vpop.f32.mrf.mxu0
    %v9376 = vpop.f32.mrf.mxu0
    %v9377 = vadd.f32 %v8568, %v9376
    %v9378 = vpop.f32.mrf.mxu0
    %9379 = vmatprep.mubr.bf16.mxu0 %v8932
    %9380 = vmatmul.mubr.bf16.gmra.mxu0 %v8931
    %v9381 = vpop.f32.mrf.mxu0
    %v9382 = vadd.f32 %v8568, %v9381
    %v9383 = vpop.f32.mrf.mxu0
    %v9384 = vpop.f32.mrf.mxu0
    %v9385 = vadd.f32 %v8568, %v9384
    %v9386 = vpop.f32.mrf.mxu0
    %9387 = vmatprep.mubr.bf16.mxu0 %v8935
    %9388 = vmatmul.mubr.bf16.gmra.mxu0 %v8934
    %v9389 = vpop.f32.mrf.mxu0
    %v9390 = vadd.f32 %v8568, %v9389
    %v9391 = vpop.f32.mrf.mxu0
    %v9392 = vpop.f32.mrf.mxu0
    %v9393 = vadd.f32 %v8568, %v9392
    %v9394 = vpop.f32.mrf.mxu0
    %9395 = vmatprep.mubr.bf16.mxu0 %v8938
    %9396 = vmatmul.mubr.bf16.gmra.mxu0 %v8937
    %v9397 = vpop.f32.mrf.mxu0
    %v9398 = vadd.f32 %v8568, %v9397
    %v9399 = vpop.f32.mrf.mxu0
    %v9400 = vpop.f32.mrf.mxu0
    %v9401 = vadd.f32 %v8568, %v9400
    %v9402 = vpop.f32.mrf.mxu0
    %9403 = vmatprep.mubr.bf16.mxu0 %v8941
    %9404 = vmatmul.mubr.bf16.gmra.mxu0 %v8940
    %v9405 = vpop.f32.mrf.mxu0
    %v9406 = vadd.f32 %v8568, %v9405
    %v9407 = vpop.f32.mrf.mxu0
    %v9408 = vpop.f32.mrf.mxu0
    %v9409 = vadd.f32 %v8568, %v9408
    %v9410 = vpop.f32.mrf.mxu0
    %9411 = vmatprep.mubr.bf16.mxu0 %v8944
    %9412 = vmatmul.mubr.bf16.gmra.mxu0 %v8943
    %v9413 = vpop.f32.mrf.mxu0
    %v9414 = vadd.f32 %v8568, %v9413
    %v9415 = vpop.f32.mrf.mxu0
    %v9416 = vpop.f32.mrf.mxu0
    %v9417 = vadd.f32 %v8568, %v9416
    %v9418 = vpop.f32.mrf.mxu0
    %9419 = vmatprep.mubr.bf16.mxu0 %v8947
    %9420 = vmatmul.mubr.bf16.gmra.mxu0 %v8946
    %v9421 = vpop.f32.mrf.mxu0
    %v9422 = vadd.f32 %v8568, %v9421
    %v9423 = vpop.f32.mrf.mxu0
    %v9424 = vpop.f32.mrf.mxu0
    %v9425 = vadd.f32 %v8568, %v9424
    %v9426 = vpop.f32.mrf.mxu0
    %9427 = vmatprep.mubr.bf16.mxu0 %v8950
    %9428 = vmatmul.mubr.bf16.gmra.mxu0 %v8949
    %v9429 = vpop.f32.mrf.mxu0
    %v9430 = vadd.f32 %v8568, %v9429
    %v9431 = vpop.f32.mrf.mxu0
    %v9432 = vpop.f32.mrf.mxu0
    %v9433 = vadd.f32 %v8568, %v9432
    %v9434 = vpop.f32.mrf.mxu0
    %9435 = vmatprep.mubr.bf16.mxu0 %v8953
    %9436 = vmatmul.mubr.bf16.gmra.mxu0 %v8952
    %v9437 = vpop.f32.mrf.mxu0
    %v9438 = vadd.f32 %v8568, %v9437
    %v9439 = vpop.f32.mrf.mxu0
    %v9440 = vpop.f32.mrf.mxu0
    %v9441 = vadd.f32 %v8568, %v9440
    %v9442 = vpop.f32.mrf.mxu0
    %9443 = vmatprep.mubr.bf16.mxu0 %v8956
    %9444 = vmatmul.mubr.bf16.gmra.mxu0 %v8955
    %v9445 = vpop.f32.mrf.mxu0
    %v9446 = vadd.f32 %v8568, %v9445
    %v9447 = vpop.f32.mrf.mxu0
    %v9448 = vpop.f32.mrf.mxu0
    %v9449 = vadd.f32 %v8568, %v9448
    %v9450 = vpop.f32.mrf.mxu0
    %9451 = vmatprep.mubr.bf16.mxu0 %v8959
    %9452 = vmatmul.mubr.bf16.gmra.mxu0 %v8958
    %v9453 = vpop.f32.mrf.mxu0
    %v9454 = vadd.f32 %v8568, %v9453
    %v9455 = vpop.f32.mrf.mxu0
    %v9456 = vpop.f32.mrf.mxu0
    %v9457 = vadd.f32 %v8568, %v9456
    %v9458 = vpop.f32.mrf.mxu0
    %9459 = vmatprep.mubr.bf16.mxu0 %v8962
    %9460 = vmatmul.mubr.bf16.gmra.mxu0 %v8961
    %v9461 = vpop.f32.mrf.mxu0
    %v9462 = vadd.f32 %v8568, %v9461
    %v9463 = vpop.f32.mrf.mxu0
    %v9464 = vpop.f32.mrf.mxu0
    %v9465 = vadd.f32 %v8568, %v9464
    %v9466 = vpop.f32.mrf.mxu0
    %9467 = vmatprep.mubr.bf16.mxu0 %v8965
    %9468 = vmatmul.mubr.bf16.gmra.mxu0 %v8964
    %v9469 = vpop.f32.mrf.mxu0
    %v9470 = vadd.f32 %v8568, %v9469
    %v9471 = vpop.f32.mrf.mxu0
    %v9472 = vpop.f32.mrf.mxu0
    %v9473 = vadd.f32 %v8568, %v9472
    %v9474 = vpop.f32.mrf.mxu0
    %9475 = vmatprep.mubr.bf16.mxu0 %v8968
    %9476 = vmatmul.mubr.bf16.gmra.mxu0 %v8967
    %v9477 = vpop.f32.mrf.mxu0
    %v9478 = vadd.f32 %v8568, %v9477
    %v9479 = vpop.f32.mrf.mxu0
    %v9480 = vpop.f32.mrf.mxu0
    %v9481 = vadd.f32 %v8568, %v9480
    %v9482 = vpop.f32.mrf.mxu0
    %9483 = vmatprep.mubr.bf16.mxu0 %v8971
    %9484 = vmatmul.mubr.bf16.gmra.mxu0 %v8970
    %v9485 = vpop.f32.mrf.mxu0
    %v9486 = vadd.f32 %v8568, %v9485
    %v9487 = vpop.f32.mrf.mxu0
    %v9488 = vpop.f32.mrf.mxu0
    %v9489 = vadd.f32 %v8568, %v9488
    %v9490 = vpop.f32.mrf.mxu0
    %9491 = vmatprep.mubr.bf16.mxu0 %v8974
    %9492 = vmatmul.mubr.bf16.gmra.mxu0 %v8973
    %v9493 = vpop.f32.mrf.mxu0
    %v9494 = vadd.f32 %v8568, %v9493
    %v9495 = vpop.f32.mrf.mxu0
    %v9496 = vpop.f32.mrf.mxu0
    %v9497 = vadd.f32 %v8568, %v9496
    %v9498 = vpop.f32.mrf.mxu0
    %9499 = vmatprep.mubr.bf16.mxu0 %v8977
    %9500 = vmatmul.mubr.bf16.gmra.mxu0 %v8976
    %v9501 = vpop.f32.mrf.mxu0
    %v9502 = vadd.f32 %v8568, %v9501
    %v9503 = vpop.f32.mrf.mxu0
    %v9504 = vpop.f32.mrf.mxu0
    %v9505 = vadd.f32 %v8568, %v9504
    %v9506 = vpop.f32.mrf.mxu0
    %9507 = vmatprep.mubr.bf16.mxu0 %v8980
    %9508 = vmatmul.mubr.bf16.gmra.mxu0 %v8979
    %v9509 = vpop.f32.mrf.mxu0
    %v9510 = vadd.f32 %v8568, %v9509
    %v9511 = vpop.f32.mrf.mxu0
    %v9512 = vpop.f32.mrf.mxu0
    %v9513 = vadd.f32 %v8568, %v9512
    %v9514 = vpop.f32.mrf.mxu0
    %9515 = vmatprep.mubr.bf16.mxu0 %v8983
    %9516 = vmatmul.mubr.bf16.gmra.mxu0 %v8982
    %v9517 = vpop.f32.mrf.mxu0
    %v9518 = vadd.f32 %v8568, %v9517
    %v9519 = vpop.f32.mrf.mxu0
    %v9520 = vpop.f32.mrf.mxu0
    %v9521 = vadd.f32 %v8568, %v9520
    %v9522 = vpop.f32.mrf.mxu0
    %9523 = vmatprep.mubr.bf16.mxu0 %v8986
    %9524 = vmatmul.mubr.bf16.gmra.mxu0 %v8985
    %v9525 = vpop.f32.mrf.mxu0
    %v9526 = vadd.f32 %v8568, %v9525
    %v9527 = vpop.f32.mrf.mxu0
    %v9528 = vpop.f32.mrf.mxu0
    %v9529 = vadd.f32 %v8568, %v9528
    %v9530 = vpop.f32.mrf.mxu0
    %9531 = vmatprep.mubr.bf16.mxu0 %v8989
    %9532 = vmatmul.mubr.bf16.gmra.mxu0 %v8988
    %v9533 = vpop.f32.mrf.mxu0
    %v9534 = vadd.f32 %v8568, %v9533
    %v9535 = vpop.f32.mrf.mxu0
    %v9536 = vpop.f32.mrf.mxu0
    %v9537 = vadd.f32 %v8568, %v9536
    %v9538 = vpop.f32.mrf.mxu0
    %9539 = vmatprep.mubr.bf16.mxu0 %v8992
    %9540 = vmatmul.mubr.bf16.gmra.mxu0 %v8991
    %v9541 = vpop.f32.mrf.mxu0
    %v9542 = vadd.f32 %v8568, %v9541
    %v9543 = vpop.f32.mrf.mxu0
    %v9544 = vpop.f32.mrf.mxu0
    %v9545 = vadd.f32 %v8568, %v9544
    %v9546 = vpop.f32.mrf.mxu0
    %9547 = vmatprep.mubr.bf16.mxu0 %v8995
    %9548 = vmatmul.mubr.bf16.gmra.mxu0 %v8994
    %v9549 = vpop.f32.mrf.mxu0
    %v9550 = vadd.f32 %v8568, %v9549
    %v9551 = vpop.f32.mrf.mxu0
    %v9552 = vpop.f32.mrf.mxu0
    %v9553 = vadd.f32 %v8568, %v9552
    %v9554 = vpop.f32.mrf.mxu0
    %9555 = vmatprep.mubr.bf16.mxu0 %v8998
    %9556 = vmatmul.mubr.bf16.gmra.mxu0 %v8997
    %v9557 = vpop.f32.mrf.mxu0
    %v9558 = vadd.f32 %v8568, %v9557
    %v9559 = vpop.f32.mrf.mxu0
    %v9560 = vpop.f32.mrf.mxu0
    %v9561 = vadd.f32 %v8568, %v9560
    %v9562 = vpop.f32.mrf.mxu0
    %9563 = vmatprep.mubr.bf16.mxu0 %v9001
    %9564 = vmatmul.mubr.bf16.gmra.mxu0 %v9000
    %v9565 = vpop.f32.mrf.mxu0
    %v9566 = vadd.f32 %v8568, %v9565
    %v9567 = vpop.f32.mrf.mxu0
    %v9568 = vpop.f32.mrf.mxu0
    %v9569 = vadd.f32 %v8568, %v9568
    %v9570 = vpop.f32.mrf.mxu0
    %9571 = vmatprep.mubr.bf16.mxu0 %v9004
    %9572 = vmatmul.mubr.bf16.gmra.mxu0 %v9003
    %v9573 = vpop.f32.mrf.mxu0
    %v9574 = vadd.f32 %v8568, %v9573
    %v9575 = vpop.f32.mrf.mxu0
    %v9576 = vpop.f32.mrf.mxu0
    %v9577 = vadd.f32 %v8568, %v9576
    %v9578 = vpop.f32.mrf.mxu0
    %9579 = vmatprep.mubr.bf16.mxu0 %v9007
    %9580 = vmatmul.mubr.bf16.gmra.mxu0 %v9006
    %v9581 = vpop.f32.mrf.mxu0
    %v9582 = vadd.f32 %v8568, %v9581
    %v9583 = vpop.f32.mrf.mxu0
    %v9584 = vpop.f32.mrf.mxu0
    %v9585 = vadd.f32 %v8568, %v9584
    %v9586 = vpop.f32.mrf.mxu0
    %9587 = vmatprep.mubr.bf16.mxu0 %v9010
    %9588 = vmatmul.mubr.bf16.gmra.mxu0 %v9009
    %v9589 = vpop.f32.mrf.mxu0
    %v9590 = vadd.f32 %v8568, %v9589
    %v9591 = vpop.f32.mrf.mxu0
    %v9592 = vpop.f32.mrf.mxu0
    %v9593 = vadd.f32 %v8568, %v9592
    %v9594 = vpop.f32.mrf.mxu0
    %9595 = vdwg.mxu0
    %9596 = vmatprep.subr.bf16.mxu0 0
    %9597 = vmatpush1.bf16.msra.mxu0 0
    %9598 = vmatprep.subr.bf16.mxu0 0
    %9599 = vmatpush1.bf16.msra.mxu0 0
    %9600 = vmatprep.subr.bf16.mxu0 0
    %9601 = vmatpush1.bf16.msra.mxu0 0
    %9602 = vmatprep.subr.bf16.mxu0 0
    %9603 = vmatpush1.bf16.msra.mxu0 0
    %9604 = vmatprep.subr.bf16.mxu0 0
    %9605 = vmatpush1.bf16.msra.mxu0 0
    %9606 = vmatprep.subr.bf16.mxu0 0
    %9607 = vmatpush1.bf16.msra.mxu0 0
    %9608 = vmatprep.subr.bf16.mxu0 0
    %9609 = vmatpush1.bf16.msra.mxu0 %v9169
    %9610 = vmatprep.subr.bf16.mxu0 0
    %9611 = vmatpush1.bf16.msra.mxu0 %v9168
    %9612 = vmatprep.subr.bf16.mxu0 0
    %9613 = vmatpush2.bf16.msra.mxu0 0
    %9614 = vmatprep.subr.bf16.mxu0 0
    %9615 = vmatpush2.bf16.msra.mxu0 0
    %9616 = vmatprep.subr.bf16.mxu0 0
    %9617 = vmatpush2.bf16.msra.mxu0 0
    %9618 = vmatprep.subr.bf16.mxu0 0
    %9619 = vmatpush2.bf16.msra.mxu0 0
    %9620 = vmatprep.subr.bf16.mxu0 0
    %9621 = vmatpush2.bf16.msra.mxu0 0
    %9622 = vmatprep.subr.bf16.mxu0 0
    %9623 = vmatpush2.bf16.msra.mxu0 0
    %9624 = vmatprep.subr.bf16.mxu0 0
    %9625 = vmatpush2.bf16.msra.mxu0 0
    %9626 = vmatprep.subr.bf16.mxu0 0
    %9627 = vmatpush2.bf16.msra.mxu0 0
    %9628 = vmatprep.mubr.bf16.mxu0 0
    %9629 = vmatmul.mubr.bf16.gmra.mxu0 %v9190
    %v9630 = vpop.f32.mrf.mxu0
    %v9631 = vadd.f32 %v9326, %v9630
    %v9632 = vpop.f32.mrf.mxu0
    %v9633 = vpop.f32.mrf.mxu0
    %v9634 = vadd.f32 %v9329, %v9633
    %v9635 = vpop.f32.mrf.mxu0
    %9636 = vmatprep.mubr.bf16.mxu0 0
    %9637 = vmatmul.mubr.bf16.gmra.mxu0 %v9193
    %v9638 = vpop.f32.mrf.mxu0
    %v9639 = vadd.f32 %v9334, %v9638
    %v9640 = vpop.f32.mrf.mxu0
    %v9641 = vpop.f32.mrf.mxu0
    %v9642 = vadd.f32 %v9337, %v9641
    %v9643 = vpop.f32.mrf.mxu0
    %9644 = vmatprep.mubr.bf16.mxu0 0
    %9645 = vmatmul.mubr.bf16.gmra.mxu0 %v9196
    %v9646 = vpop.f32.mrf.mxu0
    %v9647 = vadd.f32 %v9342, %v9646
    %v9648 = vpop.f32.mrf.mxu0
    %v9649 = vpop.f32.mrf.mxu0
    %v9650 = vadd.f32 %v9345, %v9649
    %v9651 = vpop.f32.mrf.mxu0
    %9652 = vmatprep.mubr.bf16.mxu0 0
    %9653 = vmatmul.mubr.bf16.gmra.mxu0 %v9199
    %v9654 = vpop.f32.mrf.mxu0
    %v9655 = vadd.f32 %v9350, %v9654
    %v9656 = vpop.f32.mrf.mxu0
    %v9657 = vpop.f32.mrf.mxu0
    %v9658 = vadd.f32 %v9353, %v9657
    %v9659 = vpop.f32.mrf.mxu0
    %9660 = vmatprep.mubr.bf16.mxu0 0
    %9661 = vmatmul.mubr.bf16.gmra.mxu0 %v9202
    %v9662 = vpop.f32.mrf.mxu0
    %v9663 = vadd.f32 %v9358, %v9662
    %v9664 = vpop.f32.mrf.mxu0
    %v9665 = vpop.f32.mrf.mxu0
    %v9666 = vadd.f32 %v9361, %v9665
    %v9667 = vpop.f32.mrf.mxu0
    %9668 = vmatprep.mubr.bf16.mxu0 0
    %9669 = vmatmul.mubr.bf16.gmra.mxu0 %v9205
    %v9670 = vpop.f32.mrf.mxu0
    %v9671 = vadd.f32 %v9366, %v9670
    %v9672 = vpop.f32.mrf.mxu0
    %v9673 = vpop.f32.mrf.mxu0
    %v9674 = vadd.f32 %v9369, %v9673
    %v9675 = vpop.f32.mrf.mxu0
    %9676 = vmatprep.mubr.bf16.mxu0 0
    %9677 = vmatmul.mubr.bf16.gmra.mxu0 %v9208
    %v9678 = vpop.f32.mrf.mxu0
    %v9679 = vadd.f32 %v9374, %v9678
    %v9680 = vpop.f32.mrf.mxu0
    %v9681 = vpop.f32.mrf.mxu0
    %v9682 = vadd.f32 %v9377, %v9681
    %v9683 = vpop.f32.mrf.mxu0
    %9684 = vmatprep.mubr.bf16.mxu0 0
    %9685 = vmatmul.mubr.bf16.gmra.mxu0 %v9211
    %v9686 = vpop.f32.mrf.mxu0
    %v9687 = vadd.f32 %v9382, %v9686
    %v9688 = vpop.f32.mrf.mxu0
    %v9689 = vpop.f32.mrf.mxu0
    %v9690 = vadd.f32 %v9385, %v9689
    %v9691 = vpop.f32.mrf.mxu0
    %9692 = vmatprep.mubr.bf16.mxu0 0
    %9693 = vmatmul.mubr.bf16.gmra.mxu0 %v9214
    %v9694 = vpop.f32.mrf.mxu0
    %v9695 = vadd.f32 %v9390, %v9694
    %v9696 = vpop.f32.mrf.mxu0
    %v9697 = vpop.f32.mrf.mxu0
    %v9698 = vadd.f32 %v9393, %v9697
    %v9699 = vpop.f32.mrf.mxu0
    %9700 = vmatprep.mubr.bf16.mxu0 0
    %9701 = vmatmul.mubr.bf16.gmra.mxu0 %v9217
    %v9702 = vpop.f32.mrf.mxu0
    %v9703 = vadd.f32 %v9398, %v9702
    %v9704 = vpop.f32.mrf.mxu0
    %v9705 = vpop.f32.mrf.mxu0
    %v9706 = vadd.f32 %v9401, %v9705
    %v9707 = vpop.f32.mrf.mxu0
    %9708 = vmatprep.mubr.bf16.mxu0 0
    %9709 = vmatmul.mubr.bf16.gmra.mxu0 %v9220
    %v9710 = vpop.f32.mrf.mxu0
    %v9711 = vadd.f32 %v9406, %v9710
    %v9712 = vpop.f32.mrf.mxu0
    %v9713 = vpop.f32.mrf.mxu0
    %v9714 = vadd.f32 %v9409, %v9713
    %v9715 = vpop.f32.mrf.mxu0
    %9716 = vmatprep.mubr.bf16.mxu0 0
    %9717 = vmatmul.mubr.bf16.gmra.mxu0 %v9223
    %v9718 = vpop.f32.mrf.mxu0
    %v9719 = vadd.f32 %v9414, %v9718
    %v9720 = vpop.f32.mrf.mxu0
    %v9721 = vpop.f32.mrf.mxu0
    %v9722 = vadd.f32 %v9417, %v9721
    %v9723 = vpop.f32.mrf.mxu0
    %9724 = vmatprep.mubr.bf16.mxu0 0
    %9725 = vmatmul.mubr.bf16.gmra.mxu0 %v9226
    %v9726 = vpop.f32.mrf.mxu0
    %v9727 = vadd.f32 %v9422, %v9726
    %v9728 = vpop.f32.mrf.mxu0
    %v9729 = vpop.f32.mrf.mxu0
    %v9730 = vadd.f32 %v9425, %v9729
    %v9731 = vpop.f32.mrf.mxu0
    %9732 = vmatprep.mubr.bf16.mxu0 0
    %9733 = vmatmul.mubr.bf16.gmra.mxu0 %v9229
    %v9734 = vpop.f32.mrf.mxu0
    %v9735 = vadd.f32 %v9430, %v9734
    %v9736 = vpop.f32.mrf.mxu0
    %v9737 = vpop.f32.mrf.mxu0
    %v9738 = vadd.f32 %v9433, %v9737
    %v9739 = vpop.f32.mrf.mxu0
    %9740 = vmatprep.mubr.bf16.mxu0 0
    %9741 = vmatmul.mubr.bf16.gmra.mxu0 %v9232
    %v9742 = vpop.f32.mrf.mxu0
    %v9743 = vadd.f32 %v9438, %v9742
    %v9744 = vpop.f32.mrf.mxu0
    %v9745 = vpop.f32.mrf.mxu0
    %v9746 = vadd.f32 %v9441, %v9745
    %v9747 = vpop.f32.mrf.mxu0
    %9748 = vmatprep.mubr.bf16.mxu0 0
    %9749 = vmatmul.mubr.bf16.gmra.mxu0 %v9235
    %v9750 = vpop.f32.mrf.mxu0
    %v9751 = vadd.f32 %v9446, %v9750
    %v9752 = vpop.f32.mrf.mxu0
    %v9753 = vpop.f32.mrf.mxu0
    %v9754 = vadd.f32 %v9449, %v9753
    %v9755 = vpop.f32.mrf.mxu0
    %9756 = vmatprep.mubr.bf16.mxu0 0
    %9757 = vmatmul.mubr.bf16.gmra.mxu0 %v9238
    %v9758 = vpop.f32.mrf.mxu0
    %v9759 = vadd.f32 %v9454, %v9758
    %v9760 = vpop.f32.mrf.mxu0
    %v9761 = vpop.f32.mrf.mxu0
    %v9762 = vadd.f32 %v9457, %v9761
    %v9763 = vpop.f32.mrf.mxu0
    %9764 = vmatprep.mubr.bf16.mxu0 0
    %9765 = vmatmul.mubr.bf16.gmra.mxu0 %v9241
    %v9766 = vpop.f32.mrf.mxu0
    %v9767 = vadd.f32 %v9462, %v9766
    %v9768 = vpop.f32.mrf.mxu0
    %v9769 = vpop.f32.mrf.mxu0
    %v9770 = vadd.f32 %v9465, %v9769
    %v9771 = vpop.f32.mrf.mxu0
    %9772 = vmatprep.mubr.bf16.mxu0 0
    %9773 = vmatmul.mubr.bf16.gmra.mxu0 %v9244
    %v9774 = vpop.f32.mrf.mxu0
    %v9775 = vadd.f32 %v9470, %v9774
    %v9776 = vpop.f32.mrf.mxu0
    %v9777 = vpop.f32.mrf.mxu0
    %v9778 = vadd.f32 %v9473, %v9777
    %v9779 = vpop.f32.mrf.mxu0
    %9780 = vmatprep.mubr.bf16.mxu0 0
    %9781 = vmatmul.mubr.bf16.gmra.mxu0 %v9247
    %v9782 = vpop.f32.mrf.mxu0
    %v9783 = vadd.f32 %v9478, %v9782
    %v9784 = vpop.f32.mrf.mxu0
    %v9785 = vpop.f32.mrf.mxu0
    %v9786 = vadd.f32 %v9481, %v9785
    %v9787 = vpop.f32.mrf.mxu0
    %9788 = vmatprep.mubr.bf16.mxu0 0
    %9789 = vmatmul.mubr.bf16.gmra.mxu0 %v9250
    %v9790 = vpop.f32.mrf.mxu0
    %v9791 = vadd.f32 %v9486, %v9790
    %v9792 = vpop.f32.mrf.mxu0
    %v9793 = vpop.f32.mrf.mxu0
    %v9794 = vadd.f32 %v9489, %v9793
    %v9795 = vpop.f32.mrf.mxu0
    %9796 = vmatprep.mubr.bf16.mxu0 0
    %9797 = vmatmul.mubr.bf16.gmra.mxu0 %v9253
    %v9798 = vpop.f32.mrf.mxu0
    %v9799 = vadd.f32 %v9494, %v9798
    %v9800 = vpop.f32.mrf.mxu0
    %v9801 = vpop.f32.mrf.mxu0
    %v9802 = vadd.f32 %v9497, %v9801
    %v9803 = vpop.f32.mrf.mxu0
    %9804 = vmatprep.mubr.bf16.mxu0 0
    %9805 = vmatmul.mubr.bf16.gmra.mxu0 %v9256
    %v9806 = vpop.f32.mrf.mxu0
    %v9807 = vadd.f32 %v9502, %v9806
    %v9808 = vpop.f32.mrf.mxu0
    %v9809 = vpop.f32.mrf.mxu0
    %v9810 = vadd.f32 %v9505, %v9809
    %v9811 = vpop.f32.mrf.mxu0
    %9812 = vmatprep.mubr.bf16.mxu0 0
    %9813 = vmatmul.mubr.bf16.gmra.mxu0 %v9259
    %v9814 = vpop.f32.mrf.mxu0
    %v9815 = vadd.f32 %v9510, %v9814
    %v9816 = vpop.f32.mrf.mxu0
    %v9817 = vpop.f32.mrf.mxu0
    %v9818 = vadd.f32 %v9513, %v9817
    %v9819 = vpop.f32.mrf.mxu0
    %9820 = vmatprep.mubr.bf16.mxu0 0
    %9821 = vmatmul.mubr.bf16.gmra.mxu0 %v9262
    %v9822 = vpop.f32.mrf.mxu0
    %v9823 = vadd.f32 %v9518, %v9822
    %v9824 = vpop.f32.mrf.mxu0
    %v9825 = vpop.f32.mrf.mxu0
    %v9826 = vadd.f32 %v9521, %v9825
    %v9827 = vpop.f32.mrf.mxu0
    %9828 = vmatprep.mubr.bf16.mxu0 0
    %9829 = vmatmul.mubr.bf16.gmra.mxu0 %v9265
    %v9830 = vpop.f32.mrf.mxu0
    %v9831 = vadd.f32 %v9526, %v9830
    %v9832 = vpop.f32.mrf.mxu0
    %v9833 = vpop.f32.mrf.mxu0
    %v9834 = vadd.f32 %v9529, %v9833
    %v9835 = vpop.f32.mrf.mxu0
    %9836 = vmatprep.mubr.bf16.mxu0 0
    %9837 = vmatmul.mubr.bf16.gmra.mxu0 %v9268
    %v9838 = vpop.f32.mrf.mxu0
    %v9839 = vadd.f32 %v9534, %v9838
    %v9840 = vpop.f32.mrf.mxu0
    %v9841 = vpop.f32.mrf.mxu0
    %v9842 = vadd.f32 %v9537, %v9841
    %v9843 = vpop.f32.mrf.mxu0
    %9844 = vmatprep.mubr.bf16.mxu0 0
    %9845 = vmatmul.mubr.bf16.gmra.mxu0 %v9271
    %v9846 = vpop.f32.mrf.mxu0
    %v9847 = vadd.f32 %v9542, %v9846
    %v9848 = vpop.f32.mrf.mxu0
    %v9849 = vpop.f32.mrf.mxu0
    %v9850 = vadd.f32 %v9545, %v9849
    %v9851 = vpop.f32.mrf.mxu0
    %9852 = vmatprep.mubr.bf16.mxu0 0
    %9853 = vmatmul.mubr.bf16.gmra.mxu0 %v9274
    %v9854 = vpop.f32.mrf.mxu0
    %v9855 = vadd.f32 %v9550, %v9854
    %v9856 = vpop.f32.mrf.mxu0
    %v9857 = vpop.f32.mrf.mxu0
    %v9858 = vadd.f32 %v9553, %v9857
    %v9859 = vpop.f32.mrf.mxu0
    %9860 = vmatprep.mubr.bf16.mxu0 0
    %9861 = vmatmul.mubr.bf16.gmra.mxu0 %v9277
    %v9862 = vpop.f32.mrf.mxu0
    %v9863 = vadd.f32 %v9558, %v9862
    %v9864 = vpop.f32.mrf.mxu0
    %v9865 = vpop.f32.mrf.mxu0
    %v9866 = vadd.f32 %v9561, %v9865
    %v9867 = vpop.f32.mrf.mxu0
    %9868 = vmatprep.mubr.bf16.mxu0 0
    %9869 = vmatmul.mubr.bf16.gmra.mxu0 %v9280
    %v9870 = vpop.f32.mrf.mxu0
    %v9871 = vadd.f32 %v9566, %v9870
    %v9872 = vpop.f32.mrf.mxu0
    %v9873 = vpop.f32.mrf.mxu0
    %v9874 = vadd.f32 %v9569, %v9873
    %v9875 = vpop.f32.mrf.mxu0
    %9876 = vmatprep.mubr.bf16.mxu0 0
    %9877 = vmatmul.mubr.bf16.gmra.mxu0 %v9283
    %v9878 = vpop.f32.mrf.mxu0
    %v9879 = vadd.f32 %v9574, %v9878
    %v9880 = vpop.f32.mrf.mxu0
    %v9881 = vpop.f32.mrf.mxu0
    %v9882 = vadd.f32 %v9577, %v9881
    %v9883 = vpop.f32.mrf.mxu0
    %9884 = vmatprep.mubr.bf16.mxu0 0
    %9885 = vmatmul.mubr.bf16.gmra.mxu0 %v9286
    %v9886 = vpop.f32.mrf.mxu0
    %v9887 = vadd.f32 %v9582, %v9886
    %v9888 = vpop.f32.mrf.mxu0
    %v9889 = vpop.f32.mrf.mxu0
    %v9890 = vadd.f32 %v9585, %v9889
    %v9891 = vpop.f32.mrf.mxu0
    %9892 = vmatprep.mubr.bf16.mxu0 0
    %9893 = vmatmul.mubr.bf16.gmra.mxu0 %v9289
    %v9894 = vpop.f32.mrf.mxu0
    %v9895 = vadd.f32 %v9590, %v9894
    %v9896 = vpop.f32.mrf.mxu0
    %v9897 = vpop.f32.mrf.mxu0
    %v9898 = vadd.f32 %v9593, %v9897
    %v9899 = vpop.f32.mrf.mxu0
    %9900 = vdwg.mxu0
    %v9901 = vmax.f32 %v9631, 0.0
    %v9902 = vmax.f32 %v9634, 0.0
    %v9903 = vmax.f32 %v9639, 0.0
    %v9904 = vmax.f32 %v9642, 0.0
    %v9905 = vmax.f32 %v9647, 0.0
    %v9906 = vmax.f32 %v9650, 0.0
    %v9907 = vmax.f32 %v9655, 0.0
    %v9908 = vmax.f32 %v9658, 0.0
    %v9909 = vmax.f32 %v9663, 0.0
    %v9910 = vmax.f32 %v9666, 0.0
    %v9911 = vmax.f32 %v9671, 0.0
    %v9912 = vmax.f32 %v9674, 0.0
    %v9913 = vmax.f32 %v9679, 0.0
    %v9914 = vmax.f32 %v9682, 0.0
    %v9915 = vmax.f32 %v9687, 0.0
    %v9916 = vmax.f32 %v9690, 0.0
    %v9917 = vmax.f32 %v9695, 0.0
    %v9918 = vmax.f32 %v9698, 0.0
    %v9919 = vmax.f32 %v9703, 0.0
    %v9920 = vmax.f32 %v9706, 0.0
    %v9921 = vmax.f32 %v9711, 0.0
    %v9922 = vmax.f32 %v9714, 0.0
    %v9923 = vmax.f32 %v9719, 0.0
    %v9924 = vmax.f32 %v9722, 0.0
    %v9925 = vmax.f32 %v9727, 0.0
    %v9926 = vmax.f32 %v9730, 0.0
    %v9927 = vmax.f32 %v9735, 0.0
    %v9928 = vmax.f32 %v9738, 0.0
    %v9929 = vmax.f32 %v9743, 0.0
    %v9930 = vmax.f32 %v9746, 0.0
    %v9931 = vmax.f32 %v9751, 0.0
    %v9932 = vmax.f32 %v9754, 0.0
    %v9933 = vmax.f32 %v9759, 0.0
    %v9934 = vmax.f32 %v9762, 0.0
    %v9935 = vmax.f32 %v9767, 0.0
    %v9936 = vmax.f32 %v9770, 0.0
    %v9937 = vmax.f32 %v9775, 0.0
    %v9938 = vmax.f32 %v9778, 0.0
    %v9939 = vmax.f32 %v9783, 0.0
    %v9940 = vmax.f32 %v9786, 0.0
    %v9941 = vmax.f32 %v9791, 0.0
    %v9942 = vmax.f32 %v9794, 0.0
    %v9943 = vmax.f32 %v9799, 0.0
    %v9944 = vmax.f32 %v9802, 0.0
    %v9945 = vmax.f32 %v9807, 0.0
    %v9946 = vmax.f32 %v9810, 0.0
    %v9947 = vmax.f32 %v9815, 0.0
    %v9948 = vmax.f32 %v9818, 0.0
    %v9949 = vmax.f32 %v9823, 0.0
    %v9950 = vmax.f32 %v9826, 0.0
    %v9951 = vmax.f32 %v9831, 0.0
    %v9952 = vmax.f32 %v9834, 0.0
    %v9953 = vmax.f32 %v9839, 0.0
    %v9954 = vmax.f32 %v9842, 0.0
    %v9955 = vmax.f32 %v9847, 0.0
    %v9956 = vmax.f32 %v9850, 0.0
    %v9957 = vmax.f32 %v9855, 0.0
    %v9958 = vmax.f32 %v9858, 0.0
    %v9959 = vmax.f32 %v9863, 0.0
    %v9960 = vmax.f32 %v9866, 0.0
    %v9961 = vmax.f32 %v9871, 0.0
    %v9962 = vmax.f32 %v9874, 0.0
    %v9963 = vmax.f32 %v9879, 0.0
    %v9964 = vmax.f32 %v9882, 0.0
    %v9965 = vmax.f32 %v9887, 0.0
    %v9966 = vmax.f32 %v9890, 0.0
    %v9967 = vmax.f32 %v9895, 0.0
    %v9968 = vmax.f32 %v9898, 0.0
    %v9969 = vpack.c.bf16 %v9902, %v9901
    %v9970 = vpack.c.bf16 %v9904, %v9903
    %v9971 = vpack.c.bf16 %v9906, %v9905
    %v9972 = vpack.c.bf16 %v9908, %v9907
    %v9973 = vpack.c.bf16 %v9910, %v9909
    %v9974 = vpack.c.bf16 %v9912, %v9911
    %v9975 = vpack.c.bf16 %v9914, %v9913
    %v9976 = vpack.c.bf16 %v9916, %v9915
    %v9977 = vpack.c.bf16 %v9918, %v9917
    %v9978 = vpack.c.bf16 %v9920, %v9919
    %v9979 = vpack.c.bf16 %v9922, %v9921
    %v9980 = vpack.c.bf16 %v9924, %v9923
    %v9981 = vpack.c.bf16 %v9926, %v9925
    %v9982 = vpack.c.bf16 %v9928, %v9927
    %v9983 = vpack.c.bf16 %v9930, %v9929
    %v9984 = vpack.c.bf16 %v9932, %v9931
    %v9985 = vpack.c.bf16 %v9934, %v9933
    %v9986 = vpack.c.bf16 %v9936, %v9935
    %v9987 = vpack.c.bf16 %v9938, %v9937
    %v9988 = vpack.c.bf16 %v9940, %v9939
    %v9989 = vpack.c.bf16 %v9942, %v9941
    %v9990 = vpack.c.bf16 %v9944, %v9943
    %v9991 = vpack.c.bf16 %v9946, %v9945
    %v9992 = vpack.c.bf16 %v9948, %v9947
    %v9993 = vpack.c.bf16 %v9950, %v9949
    %v9994 = vpack.c.bf16 %v9952, %v9951
    %v9995 = vpack.c.bf16 %v9954, %v9953
    %v9996 = vpack.c.bf16 %v9956, %v9955
    %v9997 = vpack.c.bf16 %v9958, %v9957
    %v9998 = vpack.c.bf16 %v9960, %v9959
    %v9999 = vpack.c.bf16 %v9962, %v9961
    %v10000 = vpack.c.bf16 %v9964, %v9963
    %v10001 = vpack.c.bf16 %v9966, %v9965
    %v10002 = vpack.c.bf16 %v9968, %v9967
    %v10037 = vunpack.c.l.b16 %v9969
    %v10038 = vunpack.c.h.b16 %v9969
    %v10039 = vunpack.c.l.b16 %v9970
    %v10040 = vunpack.c.h.b16 %v9970
    %v10041 = vunpack.c.l.b16 %v9971
    %v10042 = vunpack.c.h.b16 %v9971
    %v10043 = vunpack.c.l.b16 %v9972
    %v10044 = vunpack.c.h.b16 %v9972
    %v10045 = vunpack.c.l.b16 %v9973
    %v10046 = vunpack.c.h.b16 %v9973
    %v10047 = vunpack.c.l.b16 %v9974
    %v10048 = vunpack.c.h.b16 %v9974
    %v10049 = vunpack.c.l.b16 %v9975
    %v10050 = vunpack.c.h.b16 %v9975
    %v10051 = vunpack.c.l.b16 %v9976
    %v10052 = vunpack.c.h.b16 %v9976
    %v10053 = vunpack.c.l.b16 %v9977
    %v10054 = vunpack.c.h.b16 %v9977
    %v10055 = vunpack.c.l.b16 %v9978
    %v10056 = vunpack.c.h.b16 %v9978
    %v10057 = vunpack.c.l.b16 %v9979
    %v10058 = vunpack.c.h.b16 %v9979
    %v10059 = vunpack.c.l.b16 %v9980
    %v10060 = vunpack.c.h.b16 %v9980
    %v10061 = vunpack.c.l.b16 %v9981
    %v10062 = vunpack.c.h.b16 %v9981
    %v10063 = vunpack.c.l.b16 %v9982
    %v10064 = vunpack.c.h.b16 %v9982
    %v10065 = vunpack.c.l.b16 %v9983
    %v10066 = vunpack.c.h.b16 %v9983
    %v10067 = vunpack.c.l.b16 %v9984
    %v10068 = vunpack.c.h.b16 %v9984
    %v10069 = vunpack.c.l.b16 %v9985
    %v10070 = vunpack.c.h.b16 %v9985
    %v10071 = vunpack.c.l.b16 %v9986
    %v10072 = vunpack.c.h.b16 %v9986
    %v10073 = vunpack.c.l.b16 %v9987
    %v10074 = vunpack.c.h.b16 %v9987
    %v10075 = vunpack.c.l.b16 %v9988
    %v10076 = vunpack.c.h.b16 %v9988
    %v10077 = vunpack.c.l.b16 %v9989
    %v10078 = vunpack.c.h.b16 %v9989
    %v10079 = vunpack.c.l.b16 %v9990
    %v10080 = vunpack.c.h.b16 %v9990
    %v10081 = vunpack.c.l.b16 %v9991
    %v10082 = vunpack.c.h.b16 %v9991
    %v10083 = vunpack.c.l.b16 %v9992
    %v10084 = vunpack.c.h.b16 %v9992
    %v10085 = vunpack.c.l.b16 %v9993
    %v10086 = vunpack.c.h.b16 %v9993
    %v10087 = vunpack.c.l.b16 %v9994
    %v10088 = vunpack.c.h.b16 %v9994
    %v10089 = vunpack.c.l.b16 %v9995
    %v10090 = vunpack.c.h.b16 %v9995
    %v10091 = vunpack.c.l.b16 %v9996
    %v10092 = vunpack.c.h.b16 %v9996
    %v10093 = vunpack.c.l.b16 %v9997
    %v10094 = vunpack.c.h.b16 %v9997
    %v10095 = vunpack.c.l.b16 %v9998
    %v10096 = vunpack.c.h.b16 %v9998
    %v10097 = vunpack.c.l.b16 %v9999
    %v10098 = vunpack.c.h.b16 %v9999
    %v10099 = vunpack.c.l.b16 %v10000
    %v10100 = vunpack.c.h.b16 %v10000
    %v10101 = vunpack.c.l.b16 %v10001
    %v10102 = vunpack.c.h.b16 %v10001
    %v10103 = vunpack.c.l.b16 %v10002
    %v10104 = vunpack.c.h.b16 %v10002
    %v10105 = vpack.c.b16 %v10037, %v10037
    %v10106 = vpack.c.b16 %v10038, %v10038
    %v10107 = vpack.c.b16 %v10039, %v10039
    %v10108 = vpack.c.b16 %v10040, %v10040
    %v10109 = vpack.c.b16 %v10041, %v10041
    %v10110 = vpack.c.b16 %v10042, %v10042
    %v10111 = vpack.c.b16 %v10043, %v10043
    %v10112 = vpack.c.b16 %v10044, %v10044
    %v10113 = vpack.c.b16 %v10045, %v10045
    %v10114 = vpack.c.b16 %v10046, %v10046
    %v10115 = vpack.c.b16 %v10047, %v10047
    %v10116 = vpack.c.b16 %v10048, %v10048
    %v10117 = vpack.c.b16 %v10049, %v10049
    %v10118 = vpack.c.b16 %v10050, %v10050
    %v10119 = vpack.c.b16 %v10051, %v10051
    %v10120 = vpack.c.b16 %v10052, %v10052
    %v10121 = vpack.c.b16 %v10053, %v10053
    %v10122 = vpack.c.b16 %v10054, %v10054
    %v10123 = vpack.c.b16 %v10055, %v10055
    %v10124 = vpack.c.b16 %v10056, %v10056
    %v10125 = vpack.c.b16 %v10057, %v10057
    %v10126 = vpack.c.b16 %v10058, %v10058
    %v10127 = vpack.c.b16 %v10059, %v10059
    %v10128 = vpack.c.b16 %v10060, %v10060
    %v10129 = vpack.c.b16 %v10061, %v10061
    %v10130 = vpack.c.b16 %v10062, %v10062
    %v10131 = vpack.c.b16 %v10063, %v10063
    %v10132 = vpack.c.b16 %v10064, %v10064
    %v10133 = vpack.c.b16 %v10065, %v10065
    %v10134 = vpack.c.b16 %v10066, %v10066
    %v10135 = vpack.c.b16 %v10067, %v10067
    %v10136 = vpack.c.b16 %v10068, %v10068
    %v10137 = vpack.c.b16 %v10069, %v10069
    %v10138 = vpack.c.b16 %v10070, %v10070
    %v10139 = vpack.c.b16 %v10071, %v10071
    %v10140 = vpack.c.b16 %v10072, %v10072
    %v10141 = vpack.c.b16 %v10073, %v10073
    %v10142 = vpack.c.b16 %v10074, %v10074
    %v10143 = vpack.c.b16 %v10075, %v10075
    %v10144 = vpack.c.b16 %v10076, %v10076
    %v10145 = vpack.c.b16 %v10077, %v10077
    %v10146 = vpack.c.b16 %v10078, %v10078
    %v10147 = vpack.c.b16 %v10079, %v10079
    %v10148 = vpack.c.b16 %v10080, %v10080
    %v10149 = vpack.c.b16 %v10081, %v10081
    %v10150 = vpack.c.b16 %v10082, %v10082
    %v10151 = vpack.c.b16 %v10083, %v10083
    %v10152 = vpack.c.b16 %v10084, %v10084
    %v10153 = vpack.c.b16 %v10085, %v10085
    %v10154 = vpack.c.b16 %v10086, %v10086
    %v10155 = vpack.c.b16 %v10087, %v10087
    %v10156 = vpack.c.b16 %v10088, %v10088
    %v10157 = vpack.c.b16 %v10089, %v10089
    %v10158 = vpack.c.b16 %v10090, %v10090
    %v10159 = vpack.c.b16 %v10091, %v10091
    %v10160 = vpack.c.b16 %v10092, %v10092
    %v10161 = vpack.c.b16 %v10093, %v10093
    %v10162 = vpack.c.b16 %v10094, %v10094
    %v10163 = vpack.c.b16 %v10095, %v10095
    %v10164 = vpack.c.b16 %v10096, %v10096
    %v10165 = vpack.c.b16 %v10097, %v10097
    %v10166 = vpack.c.b16 %v10098, %v10098
    %v10167 = vpack.c.b16 %v10099, %v10099
    %v10168 = vpack.c.b16 %v10100, %v10100
    %v10169 = vpack.c.b16 %v10101, %v10101
    %v10170 = vpack.c.b16 %v10102, %v10102
    %v10171 = vpack.c.b16 %v10103, %v10103
    %v10172 = vpack.c.b16 %v10104, %v10104
    %vm10241 = vcmask 519168
    %10242 = vst.msk [vmem:[#allocation4] sm:$0xf] %vm10241, %v10105
    %10243 = vst.msk [vmem:[#allocation4 + $0x4] sm:$0xf] %vm10241, %v10106
    %10244 = vst.msk [vmem:[#allocation4 + $0x8] sm:$0xf] %vm10241, %v10107
    %10245 = vst.msk [vmem:[#allocation4 + $0xc] sm:$0xf] %vm10241, %v10108
    %10246 = vst.msk [vmem:[#allocation4 + $0x10] sm:$0xf] %vm10241, %v10109
    %10247 = vst.msk [vmem:[#allocation4 + $0x14] sm:$0xf] %vm10241, %v10110
    %10248 = vst.msk [vmem:[#allocation4 + $0x18] sm:$0xf] %vm10241, %v10111
    %10249 = vst.msk [vmem:[#allocation4 + $0x1c] sm:$0xf] %vm10241, %v10112
    %10250 = vst.msk [vmem:[#allocation4 + $0x20] sm:$0xf] %vm10241, %v10113
    %10251 = vst.msk [vmem:[#allocation4 + $0x24] sm:$0xf] %vm10241, %v10114
    %10252 = vst.msk [vmem:[#allocation4 + $0x28] sm:$0xf] %vm10241, %v10115
    %10253 = vst.msk [vmem:[#allocation4 + $0x2c] sm:$0xf] %vm10241, %v10116
    %10254 = vst.msk [vmem:[#allocation4 + $0x30] sm:$0xf] %vm10241, %v10117
    %10255 = vst.msk [vmem:[#allocation4 + $0x34] sm:$0xf] %vm10241, %v10118
    %10256 = vst.msk [vmem:[#allocation4 + $0x38] sm:$0xf] %vm10241, %v10119
    %10257 = vst.msk [vmem:[#allocation4 + $0x3c] sm:$0xf] %vm10241, %v10120
    %10258 = vst.msk [vmem:[#allocation4 + $0x40] sm:$0xf] %vm10241, %v10121
    %10259 = vst.msk [vmem:[#allocation4 + $0x44] sm:$0xf] %vm10241, %v10122
    %10260 = vst.msk [vmem:[#allocation4 + $0x48] sm:$0xf] %vm10241, %v10123
    %10261 = vst.msk [vmem:[#allocation4 + $0x4c] sm:$0xf] %vm10241, %v10124
    %10262 = vst.msk [vmem:[#allocation4 + $0x50] sm:$0xf] %vm10241, %v10125
    %10263 = vst.msk [vmem:[#allocation4 + $0x54] sm:$0xf] %vm10241, %v10126
    %10264 = vst.msk [vmem:[#allocation4 + $0x58] sm:$0xf] %vm10241, %v10127
    %10265 = vst.msk [vmem:[#allocation4 + $0x5c] sm:$0xf] %vm10241, %v10128
    %10266 = vst.msk [vmem:[#allocation4 + $0x60] sm:$0xf] %vm10241, %v10129
    %10267 = vst.msk [vmem:[#allocation4 + $0x64] sm:$0xf] %vm10241, %v10130
    %10268 = vst.msk [vmem:[#allocation4 + $0x68] sm:$0xf] %vm10241, %v10131
    %10269 = vst.msk [vmem:[#allocation4 + $0x6c] sm:$0xf] %vm10241, %v10132
    %10270 = vst.msk [vmem:[#allocation4 + $0x70] sm:$0xf] %vm10241, %v10133
    %10271 = vst.msk [vmem:[#allocation4 + $0x74] sm:$0xf] %vm10241, %v10134
    %10272 = vst.msk [vmem:[#allocation4 + $0x78] sm:$0xf] %vm10241, %v10135
    %10273 = vst.msk [vmem:[#allocation4 + $0x7c] sm:$0xf] %vm10241, %v10136
    %10274 = vst.msk [vmem:[#allocation4 + $0x80] sm:$0xf] %vm10241, %v10137
    %10275 = vst.msk [vmem:[#allocation4 + $0x84] sm:$0xf] %vm10241, %v10138
    %10276 = vst.msk [vmem:[#allocation4 + $0x88] sm:$0xf] %vm10241, %v10139
    %10277 = vst.msk [vmem:[#allocation4 + $0x8c] sm:$0xf] %vm10241, %v10140
    %10278 = vst.msk [vmem:[#allocation4 + $0x90] sm:$0xf] %vm10241, %v10141
    %10279 = vst.msk [vmem:[#allocation4 + $0x94] sm:$0xf] %vm10241, %v10142
    %10280 = vst.msk [vmem:[#allocation4 + $0x98] sm:$0xf] %vm10241, %v10143
    %10281 = vst.msk [vmem:[#allocation4 + $0x9c] sm:$0xf] %vm10241, %v10144
    %10282 = vst.msk [vmem:[#allocation4 + $0xa0] sm:$0xf] %vm10241, %v10145
    %10283 = vst.msk [vmem:[#allocation4 + $0xa4] sm:$0xf] %vm10241, %v10146
    %10284 = vst.msk [vmem:[#allocation4 + $0xa8] sm:$0xf] %vm10241, %v10147
    %10285 = vst.msk [vmem:[#allocation4 + $0xac] sm:$0xf] %vm10241, %v10148
    %10286 = vst.msk [vmem:[#allocation4 + $0xb0] sm:$0xf] %vm10241, %v10149
    %10287 = vst.msk [vmem:[#allocation4 + $0xb4] sm:$0xf] %vm10241, %v10150
    %10288 = vst.msk [vmem:[#allocation4 + $0xb8] sm:$0xf] %vm10241, %v10151
    %10289 = vst.msk [vmem:[#allocation4 + $0xbc] sm:$0xf] %vm10241, %v10152
    %10290 = vst.msk [vmem:[#allocation4 + $0xc0] sm:$0xf] %vm10241, %v10153
    %10291 = vst.msk [vmem:[#allocation4 + $0xc4] sm:$0xf] %vm10241, %v10154
    %10292 = vst.msk [vmem:[#allocation4 + $0xc8] sm:$0xf] %vm10241, %v10155
    %10293 = vst.msk [vmem:[#allocation4 + $0xcc] sm:$0xf] %vm10241, %v10156
    %10294 = vst.msk [vmem:[#allocation4 + $0xd0] sm:$0xf] %vm10241, %v10157
    %10295 = vst.msk [vmem:[#allocation4 + $0xd4] sm:$0xf] %vm10241, %v10158
    %10296 = vst.msk [vmem:[#allocation4 + $0xd8] sm:$0xf] %vm10241, %v10159
    %10297 = vst.msk [vmem:[#allocation4 + $0xdc] sm:$0xf] %vm10241, %v10160
    %10298 = vst.msk [vmem:[#allocation4 + $0xe0] sm:$0xf] %vm10241, %v10161
    %10299 = vst.msk [vmem:[#allocation4 + $0xe4] sm:$0xf] %vm10241, %v10162
    %10300 = vst.msk [vmem:[#allocation4 + $0xe8] sm:$0xf] %vm10241, %v10163
    %10301 = vst.msk [vmem:[#allocation4 + $0xec] sm:$0xf] %vm10241, %v10164
    %10302 = vst.msk [vmem:[#allocation4 + $0xf0] sm:$0xf] %vm10241, %v10165
    %10303 = vst.msk [vmem:[#allocation4 + $0xf4] sm:$0xf] %vm10241, %v10166
    %10304 = vst.msk [vmem:[#allocation4 + $0xf8] sm:$0xf] %vm10241, %v10167
    %10305 = vst.msk [vmem:[#allocation4 + $0xfc] sm:$0xf] %vm10241, %v10168
    %10306 = vst.msk [vmem:[#allocation4 + $0x100] sm:$0xf] %vm10241, %v10169
    %10307 = vst.msk [vmem:[#allocation4 + $0x104] sm:$0xf] %vm10241, %v10170
    %10308 = vst.msk [vmem:[#allocation4 + $0x108] sm:$0xf] %vm10241, %v10171
    %10309 = vst.msk [vmem:[#allocation4 + $0x10c] sm:$0xf] %vm10241, %v10172
    %v10310 = vld [vmem:[#allocation4] sm:$0xf]
    %10311 = vst.msk [vmem:[#allocation5] sm:$0xf] %vm10241, %v10310
    %v10312 = vld [vmem:[#allocation4 + $0x4] sm:$0xf]
    %10314 = vrot.lane.b32.xlu0 %v10312, 64
    %v10315 = vpop.permute.xlu0 %10314
    %vm10317 = vcmask 1043968
    %10318 = vst.msk [vmem:[#allocation5] sm:$0xf] %vm10317, %v10315
    %v10319 = vld [vmem:[#allocation4 + $0x8] sm:$0xf]
    %10320 = vst.msk [vmem:[#allocation5 + $0x4] sm:$0xf] %vm10241, %v10319
    %v10321 = vld [vmem:[#allocation4 + $0xc] sm:$0xf]
    %10323 = vrot.lane.b32.xlu0 %v10321, 64
    %v10324 = vpop.permute.xlu0 %10323
    %10326 = vst.msk [vmem:[#allocation5 + $0x4] sm:$0xf] %vm10317, %v10324
    %v10327 = vld [vmem:[#allocation4 + $0x10] sm:$0xf]
    %10328 = vst.msk [vmem:[#allocation5 + $0x8] sm:$0xf] %vm10241, %v10327
    %v10329 = vld [vmem:[#allocation4 + $0x1c] sm:$0xf]
    %10331 = vrot.lane.b32.xlu0 %v10329, 64
    %v10332 = vpop.permute.xlu0 %10331
    %10334 = vst.msk [vmem:[#allocation5 + $0x8] sm:$0xf] %vm10317, %v10332
    %v10335 = vld [vmem:[#allocation4 + $0x20] sm:$0xf]
    %10336 = vst.msk [vmem:[#allocation5 + $0xc] sm:$0xf] %vm10241, %v10335
    %v10337 = vld [vmem:[#allocation4 + $0x24] sm:$0xf]
    %10339 = vrot.lane.b32.xlu0 %v10337, 64
    %v10340 = vpop.permute.xlu0 %10339
    %10342 = vst.msk [vmem:[#allocation5 + $0xc] sm:$0xf] %vm10317, %v10340
    %v10343 = vld [vmem:[#allocation4 + $0x28] sm:$0xf]
    %10344 = vst.msk [vmem:[#allocation5 + $0x10] sm:$0xf] %vm10241, %v10343
    %v10345 = vld [vmem:[#allocation4 + $0x2c] sm:$0xf]
    %10347 = vrot.lane.b32.xlu0 %v10345, 64
    %v10348 = vpop.permute.xlu0 %10347
    %10350 = vst.msk [vmem:[#allocation5 + $0x10] sm:$0xf] %vm10317, %v10348
    %v10351 = vld [vmem:[#allocation4 + $0x38] sm:$0xf]
    %10352 = vst.msk [vmem:[#allocation5 + $0x14] sm:$0xf] %vm10241, %v10351
    %v10353 = vld [vmem:[#allocation4 + $0x3c] sm:$0xf]
    %10355 = vrot.lane.b32.xlu0 %v10353, 64
    %v10356 = vpop.permute.xlu0 %10355
    %10358 = vst.msk [vmem:[#allocation5 + $0x14] sm:$0xf] %vm10317, %v10356
    %v10359 = vld [vmem:[#allocation4 + $0x40] sm:$0xf]
    %10360 = vst.msk [vmem:[#allocation5 + $0x18] sm:$0xf] %vm10241, %v10359
    %v10361 = vld [vmem:[#allocation4 + $0x44] sm:$0xf]
    %10363 = vrot.lane.b32.xlu0 %v10361, 64
    %v10364 = vpop.permute.xlu0 %10363
    %10366 = vst.msk [vmem:[#allocation5 + $0x18] sm:$0xf] %vm10317, %v10364
    %v10367 = vld [vmem:[#allocation4 + $0x48] sm:$0xf]
    %10368 = vst.msk [vmem:[#allocation5 + $0x1c] sm:$0xf] %vm10241, %v10367
    %v10369 = vld [vmem:[#allocation4 + $0x54] sm:$0xf]
    %10371 = vrot.lane.b32.xlu0 %v10369, 64
    %v10372 = vpop.permute.xlu0 %10371
    %10374 = vst.msk [vmem:[#allocation5 + $0x1c] sm:$0xf] %vm10317, %v10372
    %v10375 = vld [vmem:[#allocation4 + $0x58] sm:$0xf]
    %10376 = vst.msk [vmem:[#allocation5 + $0x20] sm:$0xf] %vm10241, %v10375
    %v10377 = vld [vmem:[#allocation4 + $0x5c] sm:$0xf]
    %10379 = vrot.lane.b32.xlu0 %v10377, 64
    %v10380 = vpop.permute.xlu0 %10379
    %10382 = vst.msk [vmem:[#allocation5 + $0x20] sm:$0xf] %vm10317, %v10380
    %v10383 = vld [vmem:[#allocation4 + $0x60] sm:$0xf]
    %10384 = vst.msk [vmem:[#allocation5 + $0x24] sm:$0xf] %vm10241, %v10383
    %v10385 = vld [vmem:[#allocation4 + $0x64] sm:$0xf]
    %10387 = vrot.lane.b32.xlu0 %v10385, 64
    %v10388 = vpop.permute.xlu0 %10387
    %10390 = vst.msk [vmem:[#allocation5 + $0x24] sm:$0xf] %vm10317, %v10388
    %v10391 = vld [vmem:[#allocation4 + $0x70] sm:$0xf]
    %10392 = vst.msk [vmem:[#allocation5 + $0x28] sm:$0xf] %vm10241, %v10391
    %v10393 = vld [vmem:[#allocation4 + $0x74] sm:$0xf]
    %10395 = vrot.lane.b32.xlu0 %v10393, 64
    %v10396 = vpop.permute.xlu0 %10395
    %10398 = vst.msk [vmem:[#allocation5 + $0x28] sm:$0xf] %vm10317, %v10396
    %v10399 = vld [vmem:[#allocation4 + $0x78] sm:$0xf]
    %10400 = vst.msk [vmem:[#allocation5 + $0x2c] sm:$0xf] %vm10241, %v10399
    %v10401 = vld [vmem:[#allocation4 + $0x7c] sm:$0xf]
    %10403 = vrot.lane.b32.xlu0 %v10401, 64
    %v10404 = vpop.permute.xlu0 %10403
    %10406 = vst.msk [vmem:[#allocation5 + $0x2c] sm:$0xf] %vm10317, %v10404
    %v10407 = vld [vmem:[#allocation4 + $0x80] sm:$0xf]
    %10408 = vst.msk [vmem:[#allocation5 + $0x30] sm:$0xf] %vm10241, %v10407
    %v10409 = vld [vmem:[#allocation4 + $0x8c] sm:$0xf]
    %10411 = vrot.lane.b32.xlu0 %v10409, 64
    %v10412 = vpop.permute.xlu0 %10411
    %10414 = vst.msk [vmem:[#allocation5 + $0x30] sm:$0xf] %vm10317, %v10412
    %v10415 = vld [vmem:[#allocation4 + $0x90] sm:$0xf]
    %10416 = vst.msk [vmem:[#allocation5 + $0x34] sm:$0xf] %vm10241, %v10415
    %v10417 = vld [vmem:[#allocation4 + $0x94] sm:$0xf]
    %10419 = vrot.lane.b32.xlu0 %v10417, 64
    %v10420 = vpop.permute.xlu0 %10419
    %10422 = vst.msk [vmem:[#allocation5 + $0x34] sm:$0xf] %vm10317, %v10420
    %v10423 = vld [vmem:[#allocation4 + $0x98] sm:$0xf]
    %10424 = vst.msk [vmem:[#allocation5 + $0x38] sm:$0xf] %vm10241, %v10423
    %v10425 = vld [vmem:[#allocation4 + $0x9c] sm:$0xf]
    %10427 = vrot.lane.b32.xlu0 %v10425, 64
    %v10428 = vpop.permute.xlu0 %10427
    %10430 = vst.msk [vmem:[#allocation5 + $0x38] sm:$0xf] %vm10317, %v10428
    %v10431 = vld [vmem:[#allocation4 + $0xa8] sm:$0xf]
    %10432 = vst.msk [vmem:[#allocation5 + $0x3c] sm:$0xf] %vm10241, %v10431
    %v10433 = vld [vmem:[#allocation4 + $0xac] sm:$0xf]
    %10435 = vrot.lane.b32.xlu0 %v10433, 64
    %v10436 = vpop.permute.xlu0 %10435
    %10438 = vst.msk [vmem:[#allocation5 + $0x3c] sm:$0xf] %vm10317, %v10436
    %v10439 = vld [vmem:[#allocation4 + $0xb0] sm:$0xf]
    %10440 = vst.msk [vmem:[#allocation5 + $0x40] sm:$0xf] %vm10241, %v10439
    %v10441 = vld [vmem:[#allocation4 + $0xb4] sm:$0xf]
    %10443 = vrot.lane.b32.xlu0 %v10441, 64
    %v10444 = vpop.permute.xlu0 %10443
    %10446 = vst.msk [vmem:[#allocation5 + $0x40] sm:$0xf] %vm10317, %v10444
    %v10447 = vld [vmem:[#allocation4 + $0xb8] sm:$0xf]
    %10448 = vst.msk [vmem:[#allocation5 + $0x44] sm:$0xf] %vm10241, %v10447
    %v10449 = vld [vmem:[#allocation4 + $0xc4] sm:$0xf]
    %10451 = vrot.lane.b32.xlu0 %v10449, 64
    %v10452 = vpop.permute.xlu0 %10451
    %10454 = vst.msk [vmem:[#allocation5 + $0x44] sm:$0xf] %vm10317, %v10452
    %v10455 = vld [vmem:[#allocation4 + $0xc8] sm:$0xf]
    %10456 = vst.msk [vmem:[#allocation5 + $0x48] sm:$0xf] %vm10241, %v10455
    %v10457 = vld [vmem:[#allocation4 + $0xcc] sm:$0xf]
    %10459 = vrot.lane.b32.xlu0 %v10457, 64
    %v10460 = vpop.permute.xlu0 %10459
    %10462 = vst.msk [vmem:[#allocation5 + $0x48] sm:$0xf] %vm10317, %v10460
    %v10463 = vld [vmem:[#allocation4 + $0xd0] sm:$0xf]
    %10464 = vst.msk [vmem:[#allocation5 + $0x4c] sm:$0xf] %vm10241, %v10463
    %v10465 = vld [vmem:[#allocation4 + $0xd4] sm:$0xf]
    %10467 = vrot.lane.b32.xlu0 %v10465, 64
    %v10468 = vpop.permute.xlu0 %10467
    %10470 = vst.msk [vmem:[#allocation5 + $0x4c] sm:$0xf] %vm10317, %v10468
    %v10471 = vld [vmem:[#allocation4 + $0xe0] sm:$0xf]
    %10472 = vst.msk [vmem:[#allocation5 + $0x50] sm:$0xf] %vm10241, %v10471
    %v10473 = vld [vmem:[#allocation4 + $0xe4] sm:$0xf]
    %10475 = vrot.lane.b32.xlu0 %v10473, 64
    %v10476 = vpop.permute.xlu0 %10475
    %10478 = vst.msk [vmem:[#allocation5 + $0x50] sm:$0xf] %vm10317, %v10476
    %v10479 = vld [vmem:[#allocation4 + $0xe8] sm:$0xf]
    %10480 = vst.msk [vmem:[#allocation5 + $0x54] sm:$0xf] %vm10241, %v10479
    %v10481 = vld [vmem:[#allocation4 + $0xec] sm:$0xf]
    %10483 = vrot.lane.b32.xlu0 %v10481, 64
    %v10484 = vpop.permute.xlu0 %10483
    %10486 = vst.msk [vmem:[#allocation5 + $0x54] sm:$0xf] %vm10317, %v10484
    %v10487 = vld [vmem:[#allocation4 + $0xf0] sm:$0xf]
    %10488 = vst.msk [vmem:[#allocation5 + $0x58] sm:$0xf] %vm10241, %v10487
    %v10489 = vld [vmem:[#allocation4 + $0xfc] sm:$0xf]
    %10491 = vrot.lane.b32.xlu0 %v10489, 64
    %v10492 = vpop.permute.xlu0 %10491
    %10494 = vst.msk [vmem:[#allocation5 + $0x58] sm:$0xf] %vm10317, %v10492
    %v10495 = vld [vmem:[#allocation4 + $0x100] sm:$0xf]
    %10496 = vst.msk [vmem:[#allocation5 + $0x5c] sm:$0xf] %vm10241, %v10495
    %v10497 = vld [vmem:[#allocation4 + $0x104] sm:$0xf]
    %10499 = vrot.lane.b32.xlu0 %v10497, 64
    %v10500 = vpop.permute.xlu0 %10499
    %10502 = vst.msk [vmem:[#allocation5 + $0x5c] sm:$0xf] %vm10317, %v10500
    %v10503 = vld [vmem:[#allocation4 + $0x108] sm:$0xf]
    %10504 = vst.msk [vmem:[#allocation5 + $0x60] sm:$0xf] %vm10241, %v10503
    %v10505 = vld [vmem:[#allocation4 + $0x10c] sm:$0xf]
    %10507 = vrot.lane.b32.xlu0 %v10505, 64
    %v10508 = vpop.permute.xlu0 %10507
    %10510 = vst.msk [vmem:[#allocation5 + $0x60] sm:$0xf] %vm10317, %v10508
    %v10511 = vld [vmem:[#allocation5] sm:$0xff]
    %v10512 = vld [vmem:[#allocation5 + $0x8] sm:$0xff]
    %v10513 = vld [vmem:[#allocation5 + $0x10] sm:$0xff]
    %v10514 = vld [vmem:[#allocation5 + $0x18] sm:$0xff]
    %v10515 = vld [vmem:[#allocation5 + $0x20] sm:$0xff]
    %v10516 = vld [vmem:[#allocation5 + $0x28] sm:$0xff]
    %v10517 = vld [vmem:[#allocation5 + $0x30] sm:$0xff]
    %v10518 = vld [vmem:[#allocation5 + $0x38] sm:$0xff]
    %v10519 = vld [vmem:[#allocation5 + $0x40] sm:$0xff]
    %v10520 = vld [vmem:[#allocation5 + $0x48] sm:$0xff]
    %v10521 = vld [vmem:[#allocation5 + $0x50] sm:$0xff]
    %v10522 = vld [vmem:[#allocation5 + $0x58] sm:$0xff]
    %v10523 = vld [vmem:[#allocation5 + $0x60] sm:$0xf]
    %v10524 = vld [vmem:[#allocation6] sm:$0xf]
    %v10525 = vld [vmem:[#allocation6 + $0x4] sm:$0xf]
    %v10526 = vld [vmem:[#allocation6 + $0x8] sm:$0xf]
    %v10527 = vld [vmem:[#allocation6 + $0xc] sm:$0xf]
    %v10528 = vld [vmem:[#allocation6 + $0x10] sm:$0xf]
    %v10529 = vld [vmem:[#allocation6 + $0x14] sm:$0xf]
    %v10530 = vld [vmem:[#allocation6 + $0x18] sm:$0xf]
    %v10531 = vld [vmem:[#allocation6 + $0x1c] sm:$0xf]
    %v10532 = vld [vmem:[#allocation6 + $0x20] sm:$0xf]
    %v10533 = vld [vmem:[#allocation6 + $0x24] sm:$0xf]
    %v10534 = vld [vmem:[#allocation6 + $0x28] sm:$0xf]
    %v10535 = vld [vmem:[#allocation6 + $0x2c] sm:$0xf]
    %v10536 = vld [vmem:[#allocation6 + $0x30] sm:$0xf]
    %v10537 = vld [vmem:[#allocation6 + $0x34] sm:$0xf]
    %v10538 = vld [vmem:[#allocation6 + $0x38] sm:$0xf]
    %v10539 = vld [vmem:[#allocation6 + $0x3c] sm:$0xf]
    %v10540 = vld [vmem:[#allocation6 + $0x40] sm:$0xf]
    %v10541 = vld [vmem:[#allocation6 + $0x44] sm:$0xf]
    %v10542 = vld [vmem:[#allocation6 + $0x48] sm:$0xf]
    %v10543 = vld [vmem:[#allocation6 + $0x4c] sm:$0xf]
    %v10544 = vld [vmem:[#allocation6 + $0x50] sm:$0xf]
    %v10545 = vld [vmem:[#allocation6 + $0x54] sm:$0xf]
    %v10546 = vld [vmem:[#allocation6 + $0x58] sm:$0xf]
    %v10547 = vld [vmem:[#allocation6 + $0x5c] sm:$0xf]
    %v10548 = vld [vmem:[#allocation6 + $0x60] sm:$0xf]
    %v10549 = vld [vmem:[#allocation6 + $0x64] sm:$0xf]
    %v10550 = vld [vmem:[#allocation6 + $0x68] sm:$0xf]
    %v10551 = vld [vmem:[#allocation6 + $0x6c] sm:$0xf]
    %v10552 = vld [vmem:[#allocation6 + $0x70] sm:$0xf]
    %v10553 = vld [vmem:[#allocation6 + $0x74] sm:$0xf]
    %v10554 = vld [vmem:[#allocation6 + $0x78] sm:$0xf]
    %v10555 = vld [vmem:[#allocation6 + $0x7c] sm:$0xf]
    %v10556 = vld [vmem:[#allocation6 + $0x80] sm:$0xf]
    %v10557 = vld [vmem:[#allocation6 + $0x84] sm:$0xf]
    %v10558 = vld [vmem:[#allocation6 + $0x88] sm:$0xf]
    %v10559 = vld [vmem:[#allocation6 + $0x8c] sm:$0xf]
    %v10560 = vld [vmem:[#allocation6 + $0x90] sm:$0xf]
    %v10561 = vld [vmem:[#allocation6 + $0x94] sm:$0xf]
    %v10562 = vld [vmem:[#allocation6 + $0x98] sm:$0xf]
    %v10563 = vld [vmem:[#allocation6 + $0x9c] sm:$0xf]
    %v10564 = vld [vmem:[#allocation6 + $0xa0] sm:$0xf]
    %v10565 = vld [vmem:[#allocation6 + $0xa4] sm:$0xf]
    %v10566 = vld [vmem:[#allocation6 + $0xa8] sm:$0xf]
    %v10567 = vld [vmem:[#allocation6 + $0xac] sm:$0xf]
    %v10568 = vld [vmem:[#allocation6 + $0xb0] sm:$0xf]
    %v10569 = vld [vmem:[#allocation6 + $0xb4] sm:$0xf]
    %v10570 = vld [vmem:[#allocation6 + $0xb8] sm:$0xf]
    %v10571 = vld [vmem:[#allocation6 + $0xbc] sm:$0xf]
    %v10572 = vld [vmem:[#allocation6 + $0xc0] sm:$0xf]
    %v10573 = vld [vmem:[#allocation6 + $0xc4] sm:$0xf]
    %v10574 = vld [vmem:[#allocation6 + $0xc8] sm:$0xf]
    %v10575 = vld [vmem:[#allocation6 + $0xcc] sm:$0xf]
    %v10576 = vld [vmem:[#allocation6 + $0xd0] sm:$0xf]
    %v10577 = vld [vmem:[#allocation6 + $0xd4] sm:$0xf]
    %v10578 = vld [vmem:[#allocation6 + $0xd8] sm:$0xf]
    %v10579 = vld [vmem:[#allocation6 + $0xdc] sm:$0xf]
    %v10580 = vld [vmem:[#allocation6 + $0xe0] sm:$0xf]
    %v10581 = vld [vmem:[#allocation6 + $0xe4] sm:$0xf]
    %v10582 = vld [vmem:[#allocation6 + $0xe8] sm:$0xf]
    %v10583 = vld [vmem:[#allocation6 + $0xec] sm:$0xf]
    %v10584 = vld [vmem:[#allocation6 + $0xf0] sm:$0xf]
    %v10585 = vld [vmem:[#allocation6 + $0xf4] sm:$0xf]
    %v10586 = vld [vmem:[#allocation6 + $0xf8] sm:$0xf]
    %v10587 = vld [vmem:[#allocation6 + $0xfc] sm:$0xf]
    %v10588 = vld [vmem:[#allocation6 + $0x100] sm:$0xf]
    %v10589 = vld [vmem:[#allocation6 + $0x104] sm:$0xf]
    %v10590 = vld [vmem:[#allocation6 + $0x108] sm:$0xf]
    %v10591 = vld [vmem:[#allocation6 + $0x10c] sm:$0xf]
    %v10592 = vld [vmem:[#allocation6 + $0x110] sm:$0xf]
    %v10593 = vld [vmem:[#allocation6 + $0x114] sm:$0xf]
    %v10594 = vld [vmem:[#allocation6 + $0x118] sm:$0xf]
    %v10595 = vld [vmem:[#allocation6 + $0x11c] sm:$0xf]
    %v10596 = vld [vmem:[#allocation6 + $0x120] sm:$0xf]
    %v10597 = vld [vmem:[#allocation6 + $0x124] sm:$0xf]
    %v10598 = vld [vmem:[#allocation6 + $0x128] sm:$0xf]
    %v10599 = vld [vmem:[#allocation6 + $0x12c] sm:$0xf]
    %v10600 = vld [vmem:[#allocation6 + $0x130] sm:$0xf]
    %v10601 = vld [vmem:[#allocation6 + $0x134] sm:$0xf]
    %v10602 = vld [vmem:[#allocation6 + $0x138] sm:$0xf]
    %v10603 = vld [vmem:[#allocation6 + $0x13c] sm:$0xf]
    %v10604 = vld [vmem:[#allocation6 + $0x140] sm:$0xf]
    %v10605 = vld [vmem:[#allocation6 + $0x144] sm:$0xf]
    %v10606 = vld [vmem:[#allocation6 + $0x148] sm:$0xf]
    %v10607 = vld [vmem:[#allocation6 + $0x14c] sm:$0xf]
    %v10608 = vld [vmem:[#allocation6 + $0x150] sm:$0xf]
    %v10609 = vld [vmem:[#allocation6 + $0x154] sm:$0xf]
    %v10610 = vld [vmem:[#allocation6 + $0x158] sm:$0xf]
    %v10611 = vld [vmem:[#allocation6 + $0x15c] sm:$0xf]
    %v10612 = vld [vmem:[#allocation6 + $0x160] sm:$0xf]
    %v10613 = vld [vmem:[#allocation6 + $0x164] sm:$0xf]
    %v10614 = vld [vmem:[#allocation6 + $0x168] sm:$0xf]
    %v10615 = vld [vmem:[#allocation6 + $0x16c] sm:$0xf]
    %v10616 = vld [vmem:[#allocation6 + $0x170] sm:$0xf]
    %v10617 = vld [vmem:[#allocation6 + $0x174] sm:$0xf]
    %v10618 = vld [vmem:[#allocation6 + $0x178] sm:$0xf]
    %v10619 = vld [vmem:[#allocation6 + $0x17c] sm:$0xf]
    %v10620 = vld [vmem:[#allocation6 + $0x180] sm:$0xf]
    %v10621 = vld [vmem:[#allocation6 + $0x184] sm:$0xf]
    %v10622 = vld [vmem:[#allocation6 + $0x188] sm:$0xf]
    %v10623 = vld [vmem:[#allocation6 + $0x18c] sm:$0xf]
    %v10624 = vld [vmem:[#allocation6 + $0x190] sm:$0xf]
    %v10625 = vld [vmem:[#allocation6 + $0x194] sm:$0xf]
    %v10626 = vld [vmem:[#allocation6 + $0x198] sm:$0xf]
    %v10627 = vld [vmem:[#allocation6 + $0x19c] sm:$0xf]
    %v10628 = vld [vmem:[#allocation6 + $0x1a0] sm:$0xf]
    %v10629 = vld [vmem:[#allocation6 + $0x1a4] sm:$0xf]
    %v10630 = vld [vmem:[#allocation6 + $0x1a8] sm:$0xf]
    %v10631 = vld [vmem:[#allocation6 + $0x1ac] sm:$0xf]
    %v10632 = vld [vmem:[#allocation6 + $0x1b0] sm:$0xf]
    %v10633 = vld [vmem:[#allocation6 + $0x1b4] sm:$0xf]
    %v10634 = vld [vmem:[#allocation6 + $0x1b8] sm:$0xf]
    %v10635 = vld [vmem:[#allocation6 + $0x1bc] sm:$0xf]
    %v10636 = vld [vmem:[#allocation6 + $0x1c0] sm:$0xf]
    %v10637 = vld [vmem:[#allocation6 + $0x1c4] sm:$0xf]
    %v10638 = vld [vmem:[#allocation6 + $0x1c8] sm:$0xf]
    %v10639 = vld [vmem:[#allocation6 + $0x1cc] sm:$0xf]
    %v10640 = vld [vmem:[#allocation6 + $0x1d0] sm:$0xf]
    %v10641 = vld [vmem:[#allocation6 + $0x1d4] sm:$0xf]
    %v10642 = vld [vmem:[#allocation6 + $0x1d8] sm:$0xf]
    %v10643 = vld [vmem:[#allocation6 + $0x1dc] sm:$0xf]
    %v10644 = vld [vmem:[#allocation6 + $0x1e0] sm:$0xf]
    %v10645 = vld [vmem:[#allocation6 + $0x1e4] sm:$0xf]
    %v10646 = vld [vmem:[#allocation6 + $0x1e8] sm:$0xf]
    %v10647 = vld [vmem:[#allocation6 + $0x1ec] sm:$0xf]
    %v10648 = vld [vmem:[#allocation6 + $0x1f0] sm:$0xf]
    %v10649 = vld [vmem:[#allocation6 + $0x1f4] sm:$0xf]
    %v10650 = vld [vmem:[#allocation6 + $0x1f8] sm:$0xf]
    %v10651 = vld [vmem:[#allocation6 + $0x1fc] sm:$0xf]
    %v10652 = vld [vmem:[#allocation6 + $0x200] sm:$0xf]
    %v10653 = vld [vmem:[#allocation6 + $0x204] sm:$0xf]
    %v10654 = vld [vmem:[#allocation6 + $0x208] sm:$0xf]
    %v10655 = vld [vmem:[#allocation6 + $0x20c] sm:$0xf]
    %v10656 = vld [vmem:[#allocation6 + $0x210] sm:$0xf]
    %v10657 = vld [vmem:[#allocation6 + $0x214] sm:$0xf]
    %v10658 = vld [vmem:[#allocation6 + $0x218] sm:$0xf]
    %v10659 = vld [vmem:[#allocation6 + $0x21c] sm:$0xf]
    %v10660 = vld [vmem:[#allocation6 + $0x220] sm:$0xf]
    %v10661 = vld [vmem:[#allocation6 + $0x224] sm:$0xf]
    %v10662 = vld [vmem:[#allocation6 + $0x228] sm:$0xf]
    %v10663 = vld [vmem:[#allocation6 + $0x22c] sm:$0xf]
    %v10664 = vld [vmem:[#allocation6 + $0x230] sm:$0xf]
    %v10665 = vld [vmem:[#allocation6 + $0x234] sm:$0xf]
    %v10666 = vld [vmem:[#allocation6 + $0x238] sm:$0xf]
    %v10667 = vld [vmem:[#allocation6 + $0x23c] sm:$0xf]
    %v10668 = vld [vmem:[#allocation6 + $0x240] sm:$0xf]
    %v10669 = vld [vmem:[#allocation6 + $0x244] sm:$0xf]
    %v10670 = vld [vmem:[#allocation6 + $0x248] sm:$0xf]
    %v10671 = vld [vmem:[#allocation6 + $0x24c] sm:$0xf]
    %v10672 = vld [vmem:[#allocation6 + $0x250] sm:$0xf]
    %v10673 = vld [vmem:[#allocation6 + $0x254] sm:$0xf]
    %v10674 = vld [vmem:[#allocation6 + $0x258] sm:$0xf]
    %v10675 = vld [vmem:[#allocation6 + $0x25c] sm:$0xf]
    %v10676 = vld [vmem:[#allocation6 + $0x260] sm:$0xf]
    %v10677 = vld [vmem:[#allocation6 + $0x264] sm:$0xf]
    %v10678 = vld [vmem:[#allocation6 + $0x268] sm:$0xf]
    %v10679 = vld [vmem:[#allocation6 + $0x26c] sm:$0xf]
    %v10680 = vld [vmem:[#allocation6 + $0x270] sm:$0xf]
    %v10681 = vld [vmem:[#allocation6 + $0x274] sm:$0xf]
    %v10682 = vld [vmem:[#allocation6 + $0x278] sm:$0xf]
    %v10683 = vld [vmem:[#allocation6 + $0x27c] sm:$0xf]
    %v10684 = vld [vmem:[#allocation6 + $0x280] sm:$0xf]
    %v10685 = vld [vmem:[#allocation6 + $0x284] sm:$0xf]
    %v10686 = vld [vmem:[#allocation6 + $0x288] sm:$0xf]
    %v10687 = vld [vmem:[#allocation6 + $0x28c] sm:$0xf]
    %v10688 = vld [vmem:[#allocation6 + $0x290] sm:$0xf]
    %v10689 = vld [vmem:[#allocation6 + $0x294] sm:$0xf]
    %v10690 = vld [vmem:[#allocation6 + $0x298] sm:$0xf]
    %v10691 = vld [vmem:[#allocation6 + $0x29c] sm:$0xf]
    %v10692 = vld [vmem:[#allocation6 + $0x2a0] sm:$0xf]
    %v10693 = vld [vmem:[#allocation6 + $0x2a4] sm:$0xf]
    %v10694 = vld [vmem:[#allocation6 + $0x2a8] sm:$0xf]
    %v10695 = vld [vmem:[#allocation6 + $0x2ac] sm:$0xf]
    %v10696 = vld [vmem:[#allocation6 + $0x2b0] sm:$0xf]
    %v10697 = vld [vmem:[#allocation6 + $0x2b4] sm:$0xf]
    %v10698 = vld [vmem:[#allocation6 + $0x2b8] sm:$0xf]
    %v10699 = vld [vmem:[#allocation6 + $0x2bc] sm:$0xf]
    %v10700 = vld [vmem:[#allocation6 + $0x2c0] sm:$0xf]
    %v10701 = vld [vmem:[#allocation6 + $0x2c4] sm:$0xf]
    %v10702 = vld [vmem:[#allocation6 + $0x2c8] sm:$0xf]
    %v10703 = vld [vmem:[#allocation6 + $0x2cc] sm:$0xf]
    %v10704 = vld [vmem:[#allocation6 + $0x2d0] sm:$0xf]
    %v10705 = vld [vmem:[#allocation6 + $0x2d4] sm:$0xf]
    %v10706 = vld [vmem:[#allocation6 + $0x2d8] sm:$0xf]
    %v10707 = vld [vmem:[#allocation6 + $0x2dc] sm:$0xf]
    %v10708 = vld [vmem:[#allocation6 + $0x2e0] sm:$0xf]
    %v10709 = vld [vmem:[#allocation6 + $0x2e4] sm:$0xf]
    %v10710 = vld [vmem:[#allocation6 + $0x2e8] sm:$0xf]
    %v10711 = vld [vmem:[#allocation6 + $0x2ec] sm:$0xf]
    %v10712 = vld [vmem:[#allocation6 + $0x2f0] sm:$0xf]
    %v10713 = vld [vmem:[#allocation6 + $0x2f4] sm:$0xf]
    %v10714 = vld [vmem:[#allocation6 + $0x2f8] sm:$0xf]
    %v10715 = vld [vmem:[#allocation6 + $0x2fc] sm:$0xf]
    %v10716 = vld [vmem:[#allocation6 + $0x300] sm:$0xf]
    %v10717 = vld [vmem:[#allocation6 + $0x304] sm:$0xf]
    %v10718 = vld [vmem:[#allocation6 + $0x308] sm:$0xf]
    %v10719 = vld [vmem:[#allocation6 + $0x30c] sm:$0xf]
    %v10720 = vld [vmem:[#allocation6 + $0x310] sm:$0xf]
    %v10721 = vld [vmem:[#allocation6 + $0x314] sm:$0xf]
    %v10722 = vld [vmem:[#allocation6 + $0x318] sm:$0xf]
    %v10723 = vld [vmem:[#allocation6 + $0x31c] sm:$0xf]
    %v10724 = vld [vmem:[#allocation6 + $0x320] sm:$0xf]
    %v10725 = vld [vmem:[#allocation6 + $0x324] sm:$0xf]
    %v10726 = vld [vmem:[#allocation6 + $0x328] sm:$0xf]
    %v10727 = vld [vmem:[#allocation6 + $0x32c] sm:$0xf]
    %v10728 = vld [vmem:[#allocation6 + $0x330] sm:$0xf]
    %v10729 = vld [vmem:[#allocation6 + $0x334] sm:$0xf]
    %v10730 = vld [vmem:[#allocation6 + $0x338] sm:$0xf]
    %v10731 = vld [vmem:[#allocation6 + $0x33c] sm:$0xf]
    %v10732 = vld [vmem:[#allocation6 + $0x340] sm:$0xf]
    %v10733 = vld [vmem:[#allocation6 + $0x344] sm:$0xf]
    %v10734 = vld [vmem:[#allocation6 + $0x348] sm:$0xf]
    %v10735 = vld [vmem:[#allocation6 + $0x34c] sm:$0xf]
    %v10736 = vld [vmem:[#allocation6 + $0x350] sm:$0xf]
    %v10737 = vld [vmem:[#allocation6 + $0x354] sm:$0xf]
    %v10738 = vld [vmem:[#allocation6 + $0x358] sm:$0xf]
    %v10739 = vld [vmem:[#allocation6 + $0x35c] sm:$0xf]
    %v10740 = vld [vmem:[#allocation6 + $0x360] sm:$0xf]
    %v10741 = vld [vmem:[#allocation6 + $0x364] sm:$0xf]
    %v10742 = vld [vmem:[#allocation6 + $0x368] sm:$0xf]
    %v10743 = vld [vmem:[#allocation6 + $0x36c] sm:$0xf]
    %v10744 = vld [vmem:[#allocation6 + $0x370] sm:$0xf]
    %v10745 = vld [vmem:[#allocation6 + $0x374] sm:$0xf]
    %v10746 = vld [vmem:[#allocation6 + $0x378] sm:$0xf]
    %v10747 = vld [vmem:[#allocation6 + $0x37c] sm:$0xf]
    %v10748 = vld [vmem:[#allocation6 + $0x380] sm:$0xf]
    %v10749 = vld [vmem:[#allocation6 + $0x384] sm:$0xf]
    %v10750 = vld [vmem:[#allocation6 + $0x388] sm:$0xf]
    %v10751 = vld [vmem:[#allocation6 + $0x38c] sm:$0xf]
    %v10752 = vld [vmem:[#allocation6 + $0x390] sm:$0xf]
    %v10753 = vld [vmem:[#allocation6 + $0x394] sm:$0xf]
    %v10754 = vld [vmem:[#allocation6 + $0x398] sm:$0xf]
    %v10755 = vld [vmem:[#allocation6 + $0x39c] sm:$0xf]
    %v10756 = vld [vmem:[#allocation6 + $0x3a0] sm:$0xf]
    %v10757 = vld [vmem:[#allocation6 + $0x3a4] sm:$0xf]
    %v10758 = vld [vmem:[#allocation6 + $0x3a8] sm:$0xf]
    %v10759 = vld [vmem:[#allocation6 + $0x3ac] sm:$0xf]
    %v10760 = vld [vmem:[#allocation6 + $0x3b0] sm:$0xf]
    %v10761 = vld [vmem:[#allocation6 + $0x3b4] sm:$0xf]
    %v10762 = vld [vmem:[#allocation6 + $0x3b8] sm:$0xf]
    %v10763 = vld [vmem:[#allocation6 + $0x3bc] sm:$0xf]
    %v10764 = vld [vmem:[#allocation6 + $0x3c0] sm:$0xf]
    %v10765 = vld [vmem:[#allocation6 + $0x3c4] sm:$0xf]
    %v10766 = vld [vmem:[#allocation6 + $0x3c8] sm:$0xf]
    %v10767 = vld [vmem:[#allocation6 + $0x3cc] sm:$0xf]
    %v10768 = vld [vmem:[#allocation6 + $0x3d0] sm:$0xf]
    %v10769 = vld [vmem:[#allocation6 + $0x3d4] sm:$0xf]
    %v10770 = vld [vmem:[#allocation6 + $0x3d8] sm:$0xf]
    %v10771 = vld [vmem:[#allocation6 + $0x3dc] sm:$0xf]
    %v10772 = vld [vmem:[#allocation6 + $0x3e0] sm:$0xf]
    %v10773 = vld [vmem:[#allocation6 + $0x3e4] sm:$0xf]
    %v10774 = vld [vmem:[#allocation6 + $0x3e8] sm:$0xf]
    %v10775 = vld [vmem:[#allocation6 + $0x3ec] sm:$0xf]
    %v10776 = vld [vmem:[#allocation6 + $0x3f0] sm:$0xf]
    %v10777 = vld [vmem:[#allocation6 + $0x3f4] sm:$0xf]
    %v10778 = vld [vmem:[#allocation6 + $0x3f8] sm:$0xf]
    %v10779 = vld [vmem:[#allocation6 + $0x3fc] sm:$0xf]
    %v10780 = vld [vmem:[#allocation6 + $0x400] sm:$0xf]
    %v10781 = vld [vmem:[#allocation6 + $0x404] sm:$0xf]
    %v10782 = vld [vmem:[#allocation6 + $0x408] sm:$0xf]
    %v10783 = vld [vmem:[#allocation6 + $0x40c] sm:$0xf]
    %v10784 = vld [vmem:[#allocation6 + $0x410] sm:$0xf]
    %v10785 = vld [vmem:[#allocation6 + $0x414] sm:$0xf]
    %v10786 = vld [vmem:[#allocation6 + $0x418] sm:$0xf]
    %v10787 = vld [vmem:[#allocation6 + $0x41c] sm:$0xf]
    %v10788 = vld [vmem:[#allocation6 + $0x420] sm:$0xf]
    %v10789 = vld [vmem:[#allocation6 + $0x424] sm:$0xf]
    %v10790 = vld [vmem:[#allocation6 + $0x428] sm:$0xf]
    %v10791 = vld [vmem:[#allocation6 + $0x42c] sm:$0xf]
    %v10792 = vld [vmem:[#allocation6 + $0x430] sm:$0xf]
    %v10793 = vld [vmem:[#allocation6 + $0x434] sm:$0xf]
    %v10794 = vld [vmem:[#allocation6 + $0x438] sm:$0xf]
    %v10795 = vld [vmem:[#allocation6 + $0x43c] sm:$0xf]
    %v10796 = vld [vmem:[#allocation6 + $0x440] sm:$0xf]
    %v10797 = vld [vmem:[#allocation6 + $0x444] sm:$0xf]
    %v10798 = vld [vmem:[#allocation6 + $0x448] sm:$0xf]
    %v10799 = vld [vmem:[#allocation6 + $0x44c] sm:$0xf]
    %v10800 = vld [vmem:[#allocation6 + $0x450] sm:$0xf]
    %v10801 = vld [vmem:[#allocation6 + $0x454] sm:$0xf]
    %v10802 = vld [vmem:[#allocation6 + $0x458] sm:$0xf]
    %v10803 = vld [vmem:[#allocation6 + $0x45c] sm:$0xf]
    %v10804 = vld [vmem:[#allocation6 + $0x460] sm:$0xf]
    %v10805 = vld [vmem:[#allocation6 + $0x464] sm:$0xf]
    %v10806 = vld [vmem:[#allocation6 + $0x468] sm:$0xf]
    %v10807 = vld [vmem:[#allocation6 + $0x46c] sm:$0xf]
    %v10808 = vld [vmem:[#allocation6 + $0x470] sm:$0xf]
    %v10809 = vld [vmem:[#allocation6 + $0x474] sm:$0xf]
    %v10810 = vld [vmem:[#allocation6 + $0x478] sm:$0xf]
    %v10811 = vld [vmem:[#allocation6 + $0x47c] sm:$0xf]
    %v10812 = vld [vmem:[#allocation6 + $0x480] sm:$0xf]
    %v10813 = vld [vmem:[#allocation6 + $0x484] sm:$0xf]
    %v10814 = vld [vmem:[#allocation6 + $0x488] sm:$0xf]
    %v10815 = vld [vmem:[#allocation6 + $0x48c] sm:$0xf]
    %v10816 = vld [vmem:[#allocation6 + $0x490] sm:$0xf]
    %v10817 = vld [vmem:[#allocation6 + $0x494] sm:$0xf]
    %v10818 = vld [vmem:[#allocation6 + $0x498] sm:$0xf]
    %v10819 = vld [vmem:[#allocation6 + $0x49c] sm:$0xf]
    %v10820 = vld [vmem:[#allocation6 + $0x4a0] sm:$0xf]
    %v10821 = vld [vmem:[#allocation6 + $0x4a4] sm:$0xf]
    %v10822 = vld [vmem:[#allocation6 + $0x4a8] sm:$0xf]
    %v10823 = vld [vmem:[#allocation6 + $0x4ac] sm:$0xf]
    %v10824 = vld [vmem:[#allocation6 + $0x4b0] sm:$0xf]
    %v10825 = vld [vmem:[#allocation6 + $0x4b4] sm:$0xf]
    %v10826 = vld [vmem:[#allocation6 + $0x4b8] sm:$0xf]
    %v10827 = vld [vmem:[#allocation6 + $0x4bc] sm:$0xf]
    %v10828 = vld [vmem:[#allocation6 + $0x4c0] sm:$0xf]
    %v10829 = vld [vmem:[#allocation6 + $0x4c4] sm:$0xf]
    %v10830 = vld [vmem:[#allocation6 + $0x4c8] sm:$0xf]
    %v10831 = vld [vmem:[#allocation6 + $0x4cc] sm:$0xf]
    %v10832 = vld [vmem:[#allocation6 + $0x4d0] sm:$0xf]
    %v10833 = vld [vmem:[#allocation6 + $0x4d4] sm:$0xf]
    %v10834 = vld [vmem:[#allocation6 + $0x4d8] sm:$0xf]
    %v10835 = vld [vmem:[#allocation6 + $0x4dc] sm:$0xf]
    %v10836 = vld [vmem:[#allocation6 + $0x4e0] sm:$0xf]
    %v10837 = vld [vmem:[#allocation6 + $0x4e4] sm:$0xf]
    %v10838 = vld [vmem:[#allocation6 + $0x4e8] sm:$0xf]
    %v10839 = vld [vmem:[#allocation6 + $0x4ec] sm:$0xf]
    %v10840 = vld [vmem:[#allocation6 + $0x4f0] sm:$0xf]
    %v10841 = vld [vmem:[#allocation6 + $0x4f4] sm:$0xf]
    %v10842 = vld [vmem:[#allocation6 + $0x4f8] sm:$0xf]
    %v10843 = vld [vmem:[#allocation6 + $0x4fc] sm:$0xf]
    %v10844 = vld [vmem:[#allocation6 + $0x500] sm:$0xf]
    %v10845 = vld [vmem:[#allocation6 + $0x504] sm:$0xf]
    %v10846 = vld [vmem:[#allocation6 + $0x508] sm:$0xf]
    %v10847 = vld [vmem:[#allocation6 + $0x50c] sm:$0xf]
    %v10848 = vld [vmem:[#allocation6 + $0x510] sm:$0xf]
    %v10849 = vld [vmem:[#allocation6 + $0x514] sm:$0xf]
    %v10850 = vld [vmem:[#allocation6 + $0x518] sm:$0xf]
    %v10851 = vld [vmem:[#allocation6 + $0x51c] sm:$0xf]
    %v10852 = vld [vmem:[#allocation6 + $0x520] sm:$0xf]
    %v10853 = vld [vmem:[#allocation6 + $0x524] sm:$0xf]
    %v10854 = vld [vmem:[#allocation6 + $0x528] sm:$0xf]
    %v10855 = vld [vmem:[#allocation6 + $0x52c] sm:$0xf]
    %v10856 = vld [vmem:[#allocation6 + $0x530] sm:$0xf]
    %v10857 = vld [vmem:[#allocation6 + $0x534] sm:$0xf]
    %v10858 = vld [vmem:[#allocation6 + $0x538] sm:$0xf]
    %v10859 = vld [vmem:[#allocation6 + $0x53c] sm:$0xf]
    %v10860 = vld [vmem:[#allocation6 + $0x540] sm:$0xf]
    %v10861 = vld [vmem:[#allocation6 + $0x544] sm:$0xf]
    %v10862 = vld [vmem:[#allocation6 + $0x548] sm:$0xf]
    %v10863 = vld [vmem:[#allocation6 + $0x54c] sm:$0xf]
    %v10864 = vld [vmem:[#allocation6 + $0x550] sm:$0xf]
    %v10865 = vld [vmem:[#allocation6 + $0x554] sm:$0xf]
    %v10866 = vld [vmem:[#allocation6 + $0x558] sm:$0xf]
    %v10867 = vld [vmem:[#allocation6 + $0x55c] sm:$0xf]
    %v10868 = vld [vmem:[#allocation6 + $0x560] sm:$0xf]
    %v10869 = vld [vmem:[#allocation6 + $0x564] sm:$0xf]
    %v10870 = vld [vmem:[#allocation6 + $0x568] sm:$0xf]
    %v10871 = vld [vmem:[#allocation6 + $0x56c] sm:$0xf]
    %v10872 = vld [vmem:[#allocation6 + $0x570] sm:$0xf]
    %v10873 = vld [vmem:[#allocation6 + $0x574] sm:$0xf]
    %v10874 = vld [vmem:[#allocation6 + $0x578] sm:$0xf]
    %v10875 = vld [vmem:[#allocation6 + $0x57c] sm:$0xf]
    %v10876 = vld [vmem:[#allocation6 + $0x580] sm:$0xf]
    %v10877 = vld [vmem:[#allocation6 + $0x584] sm:$0xf]
    %v10878 = vld [vmem:[#allocation6 + $0x588] sm:$0xf]
    %v10879 = vld [vmem:[#allocation6 + $0x58c] sm:$0xf]
    %v10880 = vld [vmem:[#allocation6 + $0x590] sm:$0xf]
    %v10881 = vld [vmem:[#allocation6 + $0x594] sm:$0xf]
    %v10882 = vld [vmem:[#allocation6 + $0x598] sm:$0xf]
    %v10883 = vld [vmem:[#allocation6 + $0x59c] sm:$0xf]
    %v10884 = vld [vmem:[#allocation6 + $0x5a0] sm:$0xf]
    %v10885 = vld [vmem:[#allocation6 + $0x5a4] sm:$0xf]
    %v10886 = vld [vmem:[#allocation6 + $0x5a8] sm:$0xf]
    %v10887 = vld [vmem:[#allocation6 + $0x5ac] sm:$0xf]
    %v10888 = vld [vmem:[#allocation6 + $0x5b0] sm:$0xf]
    %v10889 = vld [vmem:[#allocation6 + $0x5b4] sm:$0xf]
    %v10890 = vld [vmem:[#allocation6 + $0x5b8] sm:$0xf]
    %v10891 = vld [vmem:[#allocation6 + $0x5bc] sm:$0xf]
    %v10892 = vld [vmem:[#allocation6 + $0x5c0] sm:$0xf]
    %v10893 = vld [vmem:[#allocation6 + $0x5c4] sm:$0xf]
    %v10894 = vld [vmem:[#allocation6 + $0x5c8] sm:$0xf]
    %v10895 = vld [vmem:[#allocation6 + $0x5cc] sm:$0xf]
    %v10896 = vld [vmem:[#allocation6 + $0x5d0] sm:$0xf]
    %v10897 = vld [vmem:[#allocation6 + $0x5d4] sm:$0xf]
    %v10898 = vld [vmem:[#allocation6 + $0x5d8] sm:$0xf]
    %v10899 = vld [vmem:[#allocation6 + $0x5dc] sm:$0xf]
    %v10900 = vld [vmem:[#allocation6 + $0x5e0] sm:$0xf]
    %v10901 = vld [vmem:[#allocation6 + $0x5e4] sm:$0xf]
    %v10902 = vld [vmem:[#allocation6 + $0x5e8] sm:$0xf]
    %v10903 = vld [vmem:[#allocation6 + $0x5ec] sm:$0xf]
    %v10904 = vld [vmem:[#allocation6 + $0x5f0] sm:$0xf]
    %v10905 = vld [vmem:[#allocation6 + $0x5f4] sm:$0xf]
    %v10906 = vld [vmem:[#allocation6 + $0x5f8] sm:$0xf]
    %v10907 = vld [vmem:[#allocation6 + $0x5fc] sm:$0xf]
    %v10908 = vld [vmem:[#allocation6 + $0x600] sm:$0xf]
    %v10909 = vld [vmem:[#allocation6 + $0x604] sm:$0xf]
    %v10910 = vld [vmem:[#allocation6 + $0x608] sm:$0xf]
    %v10911 = vld [vmem:[#allocation6 + $0x60c] sm:$0xf]
    %v10912 = vld [vmem:[#allocation6 + $0x610] sm:$0xf]
    %v10913 = vld [vmem:[#allocation6 + $0x614] sm:$0xf]
    %v10914 = vld [vmem:[#allocation6 + $0x618] sm:$0xf]
    %v10915 = vld [vmem:[#allocation6 + $0x61c] sm:$0xf]
    %v10916 = vld [vmem:[#allocation6 + $0x620] sm:$0xf]
    %v10917 = vld [vmem:[#allocation6 + $0x624] sm:$0xf]
    %v10918 = vld [vmem:[#allocation6 + $0x628] sm:$0xf]
    %v10919 = vld [vmem:[#allocation6 + $0x62c] sm:$0xf]
    %v10920 = vld [vmem:[#allocation6 + $0x630] sm:$0xf]
    %v10921 = vld [vmem:[#allocation6 + $0x634] sm:$0xf]
    %v10922 = vld [vmem:[#allocation6 + $0x638] sm:$0xf]
    %v10923 = vld [vmem:[#allocation6 + $0x63c] sm:$0xf]
    %v10924 = vld [vmem:[%s6] sm:$0x1]
    %v10926 = vlaneseq
    %v10927 = vshrl.u32 %v10926, 7
    %v10928 = vsub.s32 0, %v10927
    %v10929 = vrot.slane %v10924, %v10928
    %v10944 = vunpack.c.l.b16 %v10511
    %v10945 = vunpack.c.h.b16 %v10511
    %v10946 = vunpack.c.l.b16 %v10512
    %v10947 = vunpack.c.h.b16 %v10512
    %v10948 = vunpack.c.l.b16 %v10513
    %v10949 = vunpack.c.h.b16 %v10513
    %v10950 = vunpack.c.l.b16 %v10514
    %v10951 = vunpack.c.h.b16 %v10514
    %v10952 = vunpack.c.l.b16 %v10515
    %v10953 = vunpack.c.h.b16 %v10515
    %v10954 = vunpack.c.l.b16 %v10516
    %v10955 = vunpack.c.h.b16 %v10516
    %v10956 = vunpack.c.l.b16 %v10517
    %v10957 = vunpack.c.h.b16 %v10517
    %v10958 = vunpack.c.l.b16 %v10518
    %v10959 = vunpack.c.h.b16 %v10518
    %v10960 = vunpack.c.l.b16 %v10519
    %v10961 = vunpack.c.h.b16 %v10519
    %v10962 = vunpack.c.l.b16 %v10520
    %v10963 = vunpack.c.h.b16 %v10520
    %v10964 = vunpack.c.l.b16 %v10521
    %v10965 = vunpack.c.h.b16 %v10521
    %v10966 = vunpack.c.l.b16 %v10522
    %v10967 = vunpack.c.h.b16 %v10522
    %v10968 = vunpack.c.l.b16 %v10523
    %v10969 = vpack.c.b16 %v10944, %v10944
    %v10970 = vpack.c.b16 %v10945, %v10945
    %v10971 = vpack.c.b16 %v10946, %v10946
    %v10972 = vpack.c.b16 %v10947, %v10947
    %v10973 = vpack.c.b16 %v10948, %v10948
    %v10974 = vpack.c.b16 %v10949, %v10949
    %v10975 = vpack.c.b16 %v10950, %v10950
    %v10976 = vpack.c.b16 %v10951, %v10951
    %v10977 = vpack.c.b16 %v10952, %v10952
    %v10978 = vpack.c.b16 %v10953, %v10953
    %v10979 = vpack.c.b16 %v10954, %v10954
    %v10980 = vpack.c.b16 %v10955, %v10955
    %v10981 = vpack.c.b16 %v10956, %v10956
    %v10982 = vpack.c.b16 %v10957, %v10957
    %v10983 = vpack.c.b16 %v10958, %v10958
    %v10984 = vpack.c.b16 %v10959, %v10959
    %v10985 = vpack.c.b16 %v10960, %v10960
    %v10986 = vpack.c.b16 %v10961, %v10961
    %v10987 = vpack.c.b16 %v10962, %v10962
    %v10988 = vpack.c.b16 %v10963, %v10963
    %v10989 = vpack.c.b16 %v10964, %v10964
    %v10990 = vpack.c.b16 %v10965, %v10965
    %v10991 = vpack.c.b16 %v10966, %v10966
    %v10992 = vpack.c.b16 %v10967, %v10967
    %v10993 = vpack.c.b16 %v10968, %v10968
    %v11419 = vunpack.c.l.b16 %v10524
    %v11420 = vunpack.c.l.b16 %v10525
    %v11421 = vunpack.c.l.b16 %v10526
    %v11422 = vunpack.c.l.b16 %v10527
    %v11423 = vunpack.c.l.b16 %v10528
    %v11424 = vunpack.c.l.b16 %v10529
    %v11425 = vunpack.c.l.b16 %v10530
    %v11426 = vunpack.c.l.b16 %v10531
    %v11427 = vunpack.c.l.b16 %v10532
    %v11428 = vunpack.c.l.b16 %v10533
    %v11429 = vunpack.c.l.b16 %v10534
    %v11430 = vunpack.c.l.b16 %v10535
    %v11431 = vunpack.c.l.b16 %v10536
    %v11432 = vunpack.c.l.b16 %v10537
    %v11433 = vunpack.c.l.b16 %v10538
    %v11434 = vunpack.c.l.b16 %v10539
    %v11435 = vunpack.c.l.b16 %v10540
    %v11436 = vunpack.c.l.b16 %v10541
    %v11437 = vunpack.c.l.b16 %v10542
    %v11438 = vunpack.c.l.b16 %v10543
    %v11439 = vunpack.c.l.b16 %v10544
    %v11440 = vunpack.c.l.b16 %v10545
    %v11441 = vunpack.c.l.b16 %v10546
    %v11442 = vunpack.c.l.b16 %v10547
    %v11443 = vunpack.c.l.b16 %v10548
    %v11444 = vunpack.c.l.b16 %v10549
    %v11445 = vunpack.c.l.b16 %v10550
    %v11446 = vunpack.c.l.b16 %v10551
    %v11447 = vunpack.c.l.b16 %v10552
    %v11448 = vunpack.c.l.b16 %v10553
    %v11449 = vunpack.c.l.b16 %v10554
    %v11450 = vunpack.c.l.b16 %v10555
    %v11451 = vunpack.c.l.b16 %v10556
    %v11452 = vunpack.c.l.b16 %v10557
    %v11453 = vunpack.c.l.b16 %v10558
    %v11454 = vunpack.c.l.b16 %v10559
    %v11455 = vunpack.c.l.b16 %v10560
    %v11456 = vunpack.c.l.b16 %v10561
    %v11457 = vunpack.c.l.b16 %v10562
    %v11458 = vunpack.c.l.b16 %v10563
    %v11459 = vunpack.c.l.b16 %v10564
    %v11460 = vunpack.c.l.b16 %v10565
    %v11461 = vunpack.c.l.b16 %v10566
    %v11462 = vunpack.c.l.b16 %v10567
    %v11463 = vunpack.c.l.b16 %v10568
    %v11464 = vunpack.c.l.b16 %v10569
    %v11465 = vunpack.c.l.b16 %v10570
    %v11466 = vunpack.c.l.b16 %v10571
    %v11467 = vunpack.c.l.b16 %v10572
    %v11468 = vunpack.c.l.b16 %v10573
    %v11469 = vunpack.c.l.b16 %v10574
    %v11470 = vunpack.c.l.b16 %v10575
    %v11471 = vunpack.c.l.b16 %v10576
    %v11472 = vunpack.c.l.b16 %v10577
    %v11473 = vunpack.c.l.b16 %v10578
    %v11474 = vunpack.c.l.b16 %v10579
    %v11475 = vunpack.c.l.b16 %v10580
    %v11476 = vunpack.c.l.b16 %v10581
    %v11477 = vunpack.c.l.b16 %v10582
    %v11478 = vunpack.c.l.b16 %v10583
    %v11479 = vunpack.c.l.b16 %v10584
    %v11480 = vunpack.c.l.b16 %v10585
    %v11481 = vunpack.c.l.b16 %v10586
    %v11482 = vunpack.c.l.b16 %v10587
    %v11483 = vunpack.c.l.b16 %v10588
    %v11484 = vunpack.c.l.b16 %v10589
    %v11485 = vunpack.c.l.b16 %v10590
    %v11486 = vunpack.c.l.b16 %v10591
    %v11487 = vunpack.c.l.b16 %v10592
    %v11488 = vunpack.c.l.b16 %v10593
    %v11489 = vunpack.c.l.b16 %v10594
    %v11490 = vunpack.c.l.b16 %v10595
    %v11491 = vunpack.c.l.b16 %v10596
    %v11492 = vunpack.c.l.b16 %v10597
    %v11493 = vunpack.c.l.b16 %v10598
    %v11494 = vunpack.c.l.b16 %v10599
    %v11495 = vunpack.c.l.b16 %v10600
    %v11496 = vunpack.c.l.b16 %v10601
    %v11497 = vunpack.c.l.b16 %v10602
    %v11498 = vunpack.c.l.b16 %v10603
    %v11499 = vunpack.c.l.b16 %v10604
    %v11500 = vunpack.c.l.b16 %v10605
    %v11501 = vunpack.c.l.b16 %v10606
    %v11502 = vunpack.c.l.b16 %v10607
    %v11503 = vunpack.c.l.b16 %v10608
    %v11504 = vunpack.c.l.b16 %v10609
    %v11505 = vunpack.c.l.b16 %v10610
    %v11506 = vunpack.c.l.b16 %v10611
    %v11507 = vunpack.c.l.b16 %v10612
    %v11508 = vunpack.c.l.b16 %v10613
    %v11509 = vunpack.c.l.b16 %v10614
    %v11510 = vunpack.c.l.b16 %v10615
    %v11511 = vunpack.c.l.b16 %v10616
    %v11512 = vunpack.c.l.b16 %v10617
    %v11513 = vunpack.c.l.b16 %v10618
    %v11514 = vunpack.c.l.b16 %v10619
    %v11515 = vunpack.c.l.b16 %v10620
    %v11516 = vunpack.c.l.b16 %v10621
    %v11517 = vunpack.c.l.b16 %v10622
    %v11518 = vunpack.c.l.b16 %v10623
    %v11519 = vunpack.c.l.b16 %v10624
    %v11520 = vunpack.c.l.b16 %v10625
    %v11521 = vunpack.c.l.b16 %v10626
    %v11522 = vunpack.c.l.b16 %v10627
    %v11523 = vunpack.c.l.b16 %v10628
    %v11524 = vunpack.c.l.b16 %v10629
    %v11525 = vunpack.c.l.b16 %v10630
    %v11526 = vunpack.c.l.b16 %v10631
    %v11527 = vunpack.c.l.b16 %v10632
    %v11528 = vunpack.c.l.b16 %v10633
    %v11529 = vunpack.c.l.b16 %v10634
    %v11530 = vunpack.c.l.b16 %v10635
    %v11531 = vunpack.c.l.b16 %v10636
    %v11532 = vunpack.c.l.b16 %v10637
    %v11533 = vunpack.c.l.b16 %v10638
    %v11534 = vunpack.c.l.b16 %v10639
    %v11535 = vunpack.c.l.b16 %v10640
    %v11536 = vunpack.c.l.b16 %v10641
    %v11537 = vunpack.c.l.b16 %v10642
    %v11538 = vunpack.c.l.b16 %v10643
    %v11539 = vunpack.c.l.b16 %v10644
    %v11540 = vunpack.c.l.b16 %v10645
    %v11541 = vunpack.c.l.b16 %v10646
    %v11542 = vunpack.c.l.b16 %v10647
    %v11543 = vunpack.c.l.b16 %v10648
    %v11544 = vunpack.c.l.b16 %v10649
    %v11545 = vunpack.c.l.b16 %v10650
    %v11546 = vunpack.c.l.b16 %v10651
    %v11547 = vunpack.c.l.b16 %v10652
    %v11548 = vunpack.c.l.b16 %v10653
    %v11549 = vunpack.c.l.b16 %v10654
    %v11550 = vunpack.c.l.b16 %v10655
    %v11551 = vunpack.c.l.b16 %v10656
    %v11552 = vunpack.c.l.b16 %v10657
    %v11553 = vunpack.c.l.b16 %v10658
    %v11554 = vunpack.c.l.b16 %v10659
    %v11555 = vunpack.c.l.b16 %v10660
    %v11556 = vunpack.c.l.b16 %v10661
    %v11557 = vunpack.c.l.b16 %v10662
    %v11558 = vunpack.c.l.b16 %v10663
    %v11559 = vunpack.c.l.b16 %v10664
    %v11560 = vunpack.c.l.b16 %v10665
    %v11561 = vunpack.c.l.b16 %v10666
    %v11562 = vunpack.c.l.b16 %v10667
    %v11563 = vunpack.c.l.b16 %v10668
    %v11564 = vunpack.c.l.b16 %v10669
    %v11565 = vunpack.c.l.b16 %v10670
    %v11566 = vunpack.c.l.b16 %v10671
    %v11567 = vunpack.c.l.b16 %v10672
    %v11568 = vunpack.c.l.b16 %v10673
    %v11569 = vunpack.c.l.b16 %v10674
    %v11570 = vunpack.c.l.b16 %v10675
    %v11571 = vunpack.c.l.b16 %v10676
    %v11572 = vunpack.c.l.b16 %v10677
    %v11573 = vunpack.c.l.b16 %v10678
    %v11574 = vunpack.c.l.b16 %v10679
    %v11575 = vunpack.c.l.b16 %v10680
    %v11576 = vunpack.c.l.b16 %v10681
    %v11577 = vunpack.c.l.b16 %v10682
    %v11578 = vunpack.c.l.b16 %v10683
    %v11579 = vunpack.c.l.b16 %v10684
    %v11580 = vunpack.c.l.b16 %v10685
    %v11581 = vunpack.c.l.b16 %v10686
    %v11582 = vunpack.c.l.b16 %v10687
    %v11583 = vunpack.c.l.b16 %v10688
    %v11584 = vunpack.c.l.b16 %v10689
    %v11585 = vunpack.c.l.b16 %v10690
    %v11586 = vunpack.c.l.b16 %v10691
    %v11587 = vunpack.c.l.b16 %v10692
    %v11588 = vunpack.c.l.b16 %v10693
    %v11589 = vunpack.c.l.b16 %v10694
    %v11590 = vunpack.c.l.b16 %v10695
    %v11591 = vunpack.c.l.b16 %v10696
    %v11592 = vunpack.c.l.b16 %v10697
    %v11593 = vunpack.c.l.b16 %v10698
    %v11594 = vunpack.c.l.b16 %v10699
    %v11595 = vunpack.c.l.b16 %v10700
    %v11596 = vunpack.c.l.b16 %v10701
    %v11597 = vunpack.c.l.b16 %v10702
    %v11598 = vunpack.c.l.b16 %v10703
    %v11599 = vunpack.c.l.b16 %v10704
    %v11600 = vunpack.c.l.b16 %v10705
    %v11601 = vunpack.c.l.b16 %v10706
    %v11602 = vunpack.c.l.b16 %v10707
    %v11603 = vunpack.c.l.b16 %v10708
    %v11604 = vunpack.c.l.b16 %v10709
    %v11605 = vunpack.c.l.b16 %v10710
    %v11606 = vunpack.c.l.b16 %v10711
    %v11607 = vunpack.c.l.b16 %v10712
    %v11608 = vunpack.c.l.b16 %v10713
    %v11609 = vunpack.c.l.b16 %v10714
    %v11610 = vunpack.c.l.b16 %v10715
    %v11611 = vunpack.c.l.b16 %v10716
    %v11612 = vunpack.c.l.b16 %v10717
    %v11613 = vunpack.c.l.b16 %v10718
    %v11614 = vunpack.c.l.b16 %v10719
    %v11615 = vunpack.c.l.b16 %v10720
    %v11616 = vunpack.c.l.b16 %v10721
    %v11617 = vunpack.c.l.b16 %v10722
    %v11618 = vunpack.c.l.b16 %v10723
    %v11619 = vunpack.c.l.b16 %v10724
    %v11620 = vunpack.c.l.b16 %v10725
    %v11621 = vunpack.c.l.b16 %v10726
    %v11622 = vunpack.c.l.b16 %v10727
    %v11623 = vunpack.c.l.b16 %v10728
    %v11624 = vunpack.c.l.b16 %v10729
    %v11625 = vunpack.c.l.b16 %v10730
    %v11626 = vunpack.c.l.b16 %v10731
    %v11627 = vunpack.c.l.b16 %v10732
    %v11628 = vunpack.c.l.b16 %v10733
    %v11629 = vunpack.c.l.b16 %v10734
    %v11630 = vunpack.c.l.b16 %v10735
    %v11631 = vunpack.c.l.b16 %v10736
    %v11632 = vunpack.c.l.b16 %v10737
    %v11633 = vunpack.c.l.b16 %v10738
    %v11634 = vunpack.c.l.b16 %v10739
    %v11635 = vunpack.c.l.b16 %v10740
    %v11636 = vunpack.c.l.b16 %v10741
    %v11637 = vunpack.c.l.b16 %v10742
    %v11638 = vunpack.c.l.b16 %v10743
    %v11639 = vunpack.c.l.b16 %v10744
    %v11640 = vunpack.c.l.b16 %v10745
    %v11641 = vunpack.c.l.b16 %v10746
    %v11642 = vunpack.c.l.b16 %v10747
    %v11643 = vunpack.c.l.b16 %v10748
    %v11644 = vunpack.c.l.b16 %v10749
    %v11645 = vunpack.c.l.b16 %v10750
    %v11646 = vunpack.c.l.b16 %v10751
    %v11647 = vunpack.c.l.b16 %v10752
    %v11648 = vunpack.c.l.b16 %v10753
    %v11649 = vunpack.c.l.b16 %v10754
    %v11650 = vunpack.c.l.b16 %v10755
    %v11651 = vunpack.c.l.b16 %v10756
    %v11652 = vunpack.c.l.b16 %v10757
    %v11653 = vunpack.c.l.b16 %v10758
    %v11654 = vunpack.c.l.b16 %v10759
    %v11655 = vunpack.c.l.b16 %v10760
    %v11656 = vunpack.c.l.b16 %v10761
    %v11657 = vunpack.c.l.b16 %v10762
    %v11658 = vunpack.c.l.b16 %v10763
    %v11659 = vunpack.c.l.b16 %v10764
    %v11660 = vunpack.c.l.b16 %v10765
    %v11661 = vunpack.c.l.b16 %v10766
    %v11662 = vunpack.c.l.b16 %v10767
    %v11663 = vunpack.c.l.b16 %v10768
    %v11664 = vunpack.c.l.b16 %v10769
    %v11665 = vunpack.c.l.b16 %v10770
    %v11666 = vunpack.c.l.b16 %v10771
    %v11667 = vunpack.c.l.b16 %v10772
    %v11668 = vunpack.c.l.b16 %v10773
    %v11669 = vunpack.c.l.b16 %v10774
    %v11670 = vunpack.c.l.b16 %v10775
    %v11671 = vunpack.c.l.b16 %v10776
    %v11672 = vunpack.c.l.b16 %v10777
    %v11673 = vunpack.c.l.b16 %v10778
    %v11674 = vunpack.c.l.b16 %v10779
    %v11675 = vunpack.c.l.b16 %v10780
    %v11676 = vunpack.c.l.b16 %v10781
    %v11677 = vunpack.c.l.b16 %v10782
    %v11678 = vunpack.c.l.b16 %v10783
    %v11679 = vunpack.c.l.b16 %v10784
    %v11680 = vunpack.c.l.b16 %v10785
    %v11681 = vunpack.c.l.b16 %v10786
    %v11682 = vunpack.c.l.b16 %v10787
    %v11683 = vunpack.c.l.b16 %v10788
    %v11684 = vunpack.c.l.b16 %v10789
    %v11685 = vunpack.c.l.b16 %v10790
    %v11686 = vunpack.c.l.b16 %v10791
    %v11687 = vunpack.c.l.b16 %v10792
    %v11688 = vunpack.c.l.b16 %v10793
    %v11689 = vunpack.c.l.b16 %v10794
    %v11690 = vunpack.c.l.b16 %v10795
    %v11691 = vunpack.c.l.b16 %v10796
    %v11692 = vunpack.c.l.b16 %v10797
    %v11693 = vunpack.c.l.b16 %v10798
    %v11694 = vunpack.c.l.b16 %v10799
    %v11695 = vunpack.c.l.b16 %v10800
    %v11696 = vunpack.c.l.b16 %v10801
    %v11697 = vunpack.c.l.b16 %v10802
    %v11698 = vunpack.c.l.b16 %v10803
    %v11699 = vunpack.c.l.b16 %v10804
    %v11700 = vunpack.c.l.b16 %v10805
    %v11701 = vunpack.c.l.b16 %v10806
    %v11702 = vunpack.c.l.b16 %v10807
    %v11703 = vunpack.c.l.b16 %v10808
    %v11704 = vunpack.c.l.b16 %v10809
    %v11705 = vunpack.c.l.b16 %v10810
    %v11706 = vunpack.c.l.b16 %v10811
    %v11707 = vunpack.c.l.b16 %v10812
    %v11708 = vunpack.c.l.b16 %v10813
    %v11709 = vunpack.c.l.b16 %v10814
    %v11710 = vunpack.c.l.b16 %v10815
    %v11711 = vunpack.c.l.b16 %v10816
    %v11712 = vunpack.c.l.b16 %v10817
    %v11713 = vunpack.c.l.b16 %v10818
    %v11714 = vunpack.c.l.b16 %v10819
    %v11715 = vunpack.c.l.b16 %v10820
    %v11716 = vunpack.c.l.b16 %v10821
    %v11717 = vunpack.c.l.b16 %v10822
    %v11718 = vunpack.c.l.b16 %v10823
    %v11719 = vunpack.c.l.b16 %v10824
    %v11720 = vunpack.c.l.b16 %v10825
    %v11721 = vunpack.c.l.b16 %v10826
    %v11722 = vunpack.c.l.b16 %v10827
    %v11723 = vunpack.c.l.b16 %v10828
    %v11724 = vunpack.c.l.b16 %v10829
    %v11725 = vunpack.c.l.b16 %v10830
    %v11726 = vunpack.c.l.b16 %v10831
    %v11727 = vunpack.c.l.b16 %v10832
    %v11728 = vunpack.c.l.b16 %v10833
    %v11729 = vunpack.c.l.b16 %v10834
    %v11730 = vunpack.c.l.b16 %v10835
    %v11731 = vunpack.c.l.b16 %v10836
    %v11732 = vunpack.c.l.b16 %v10837
    %v11733 = vunpack.c.l.b16 %v10838
    %v11734 = vunpack.c.l.b16 %v10839
    %v11735 = vunpack.c.l.b16 %v10840
    %v11736 = vunpack.c.l.b16 %v10841
    %v11737 = vunpack.c.l.b16 %v10842
    %v11738 = vunpack.c.l.b16 %v10843
    %v11739 = vunpack.c.l.b16 %v10844
    %v11740 = vunpack.c.l.b16 %v10845
    %v11741 = vunpack.c.l.b16 %v10846
    %v11742 = vunpack.c.l.b16 %v10847
    %v11743 = vunpack.c.l.b16 %v10848
    %v11744 = vunpack.c.l.b16 %v10849
    %v11745 = vunpack.c.l.b16 %v10850
    %v11746 = vunpack.c.l.b16 %v10851
    %v11747 = vunpack.c.l.b16 %v10852
    %v11748 = vunpack.c.l.b16 %v10853
    %v11749 = vunpack.c.l.b16 %v10854
    %v11750 = vunpack.c.l.b16 %v10855
    %v11751 = vunpack.c.l.b16 %v10856
    %v11752 = vunpack.c.l.b16 %v10857
    %v11753 = vunpack.c.l.b16 %v10858
    %v11754 = vunpack.c.l.b16 %v10859
    %v11755 = vunpack.c.l.b16 %v10860
    %v11756 = vunpack.c.l.b16 %v10861
    %v11757 = vunpack.c.l.b16 %v10862
    %v11758 = vunpack.c.l.b16 %v10863
    %v11759 = vunpack.c.l.b16 %v10864
    %v11760 = vunpack.c.l.b16 %v10865
    %v11761 = vunpack.c.l.b16 %v10866
    %v11762 = vunpack.c.l.b16 %v10867
    %v11763 = vunpack.c.l.b16 %v10868
    %v11764 = vunpack.c.l.b16 %v10869
    %v11765 = vunpack.c.l.b16 %v10870
    %v11766 = vunpack.c.l.b16 %v10871
    %v11767 = vunpack.c.l.b16 %v10872
    %v11768 = vunpack.c.l.b16 %v10873
    %v11769 = vunpack.c.l.b16 %v10874
    %v11770 = vunpack.c.l.b16 %v10875
    %v11771 = vunpack.c.l.b16 %v10876
    %v11772 = vunpack.c.l.b16 %v10877
    %v11773 = vunpack.c.l.b16 %v10878
    %v11774 = vunpack.c.l.b16 %v10879
    %v11775 = vunpack.c.l.b16 %v10880
    %v11776 = vunpack.c.l.b16 %v10881
    %v11777 = vunpack.c.l.b16 %v10882
    %v11778 = vunpack.c.l.b16 %v10883
    %v11779 = vunpack.c.l.b16 %v10884
    %v11780 = vunpack.c.l.b16 %v10885
    %v11781 = vunpack.c.l.b16 %v10886
    %v11782 = vunpack.c.l.b16 %v10887
    %v11783 = vunpack.c.l.b16 %v10888
    %v11784 = vunpack.c.l.b16 %v10889
    %v11785 = vunpack.c.l.b16 %v10890
    %v11786 = vunpack.c.l.b16 %v10891
    %v11787 = vunpack.c.l.b16 %v10892
    %v11788 = vunpack.c.l.b16 %v10893
    %v11789 = vunpack.c.l.b16 %v10894
    %v11790 = vunpack.c.l.b16 %v10895
    %v11791 = vunpack.c.l.b16 %v10896
    %v11792 = vunpack.c.l.b16 %v10897
    %v11793 = vunpack.c.l.b16 %v10898
    %v11794 = vunpack.c.l.b16 %v10899
    %v11795 = vunpack.c.l.b16 %v10900
    %v11796 = vunpack.c.l.b16 %v10901
    %v11797 = vunpack.c.l.b16 %v10902
    %v11798 = vunpack.c.l.b16 %v10903
    %v11799 = vunpack.c.l.b16 %v10904
    %v11800 = vunpack.c.l.b16 %v10905
    %v11801 = vunpack.c.l.b16 %v10906
    %v11802 = vunpack.c.l.b16 %v10907
    %v11803 = vunpack.c.l.b16 %v10908
    %v11804 = vunpack.c.l.b16 %v10909
    %v11805 = vunpack.c.l.b16 %v10910
    %v11806 = vunpack.c.l.b16 %v10911
    %v11807 = vunpack.c.l.b16 %v10912
    %v11808 = vunpack.c.l.b16 %v10913
    %v11809 = vunpack.c.l.b16 %v10914
    %v11810 = vunpack.c.l.b16 %v10915
    %v11811 = vunpack.c.l.b16 %v10916
    %v11812 = vunpack.c.l.b16 %v10917
    %v11813 = vunpack.c.l.b16 %v10918
    %v11814 = vunpack.c.l.b16 %v10919
    %v11815 = vunpack.c.l.b16 %v10920
    %v11816 = vunpack.c.l.b16 %v10921
    %v11817 = vunpack.c.l.b16 %v10922
    %v11818 = vunpack.c.l.b16 %v10923
    %v11819 = vpack.c.b16 %v11420, %v11419
    %v11820 = vpack.c.b16 %v11422, %v11421
    %v11821 = vpack.c.b16 %v11424, %v11423
    %v11822 = vpack.c.b16 %v11426, %v11425
    %v11823 = vpack.c.b16 %v11428, %v11427
    %v11824 = vpack.c.b16 %v11430, %v11429
    %v11825 = vpack.c.b16 %v11432, %v11431
    %v11826 = vpack.c.b16 %v11434, %v11433
    %v11827 = vpack.c.b16 %v11436, %v11435
    %v11828 = vpack.c.b16 %v11438, %v11437
    %v11829 = vpack.c.b16 %v11440, %v11439
    %v11830 = vpack.c.b16 %v11442, %v11441
    %v11831 = vpack.c.b16 %v11444, %v11443
    %v11832 = vpack.c.b16 %v11446, %v11445
    %v11833 = vpack.c.b16 %v11448, %v11447
    %v11834 = vpack.c.b16 %v11450, %v11449
    %v11835 = vpack.c.b16 %v11452, %v11451
    %v11836 = vpack.c.b16 %v11454, %v11453
    %v11837 = vpack.c.b16 %v11456, %v11455
    %v11838 = vpack.c.b16 %v11458, %v11457
    %v11839 = vpack.c.b16 %v11460, %v11459
    %v11840 = vpack.c.b16 %v11462, %v11461
    %v11841 = vpack.c.b16 %v11464, %v11463
    %v11842 = vpack.c.b16 %v11466, %v11465
    %v11843 = vpack.c.b16 %v11468, %v11467
    %v11844 = vpack.c.b16 %v11470, %v11469
    %v11845 = vpack.c.b16 %v11472, %v11471
    %v11846 = vpack.c.b16 %v11474, %v11473
    %v11847 = vpack.c.b16 %v11476, %v11475
    %v11848 = vpack.c.b16 %v11478, %v11477
    %v11849 = vpack.c.b16 %v11480, %v11479
    %v11850 = vpack.c.b16 %v11482, %v11481
    %v11851 = vpack.c.b16 %v11484, %v11483
    %v11852 = vpack.c.b16 %v11486, %v11485
    %v11853 = vpack.c.b16 %v11488, %v11487
    %v11854 = vpack.c.b16 %v11490, %v11489
    %v11855 = vpack.c.b16 %v11492, %v11491
    %v11856 = vpack.c.b16 %v11494, %v11493
    %v11857 = vpack.c.b16 %v11496, %v11495
    %v11858 = vpack.c.b16 %v11498, %v11497
    %v11859 = vpack.c.b16 %v11500, %v11499
    %v11860 = vpack.c.b16 %v11502, %v11501
    %v11861 = vpack.c.b16 %v11504, %v11503
    %v11862 = vpack.c.b16 %v11506, %v11505
    %v11863 = vpack.c.b16 %v11508, %v11507
    %v11864 = vpack.c.b16 %v11510, %v11509
    %v11865 = vpack.c.b16 %v11512, %v11511
    %v11866 = vpack.c.b16 %v11514, %v11513
    %v11867 = vpack.c.b16 %v11516, %v11515
    %v11868 = vpack.c.b16 %v11518, %v11517
    %v11869 = vpack.c.b16 %v11520, %v11519
    %v11870 = vpack.c.b16 %v11522, %v11521
    %v11871 = vpack.c.b16 %v11524, %v11523
    %v11872 = vpack.c.b16 %v11526, %v11525
    %v11873 = vpack.c.b16 %v11528, %v11527
    %v11874 = vpack.c.b16 %v11530, %v11529
    %v11875 = vpack.c.b16 %v11532, %v11531
    %v11876 = vpack.c.b16 %v11534, %v11533
    %v11877 = vpack.c.b16 %v11536, %v11535
    %v11878 = vpack.c.b16 %v11538, %v11537
    %v11879 = vpack.c.b16 %v11540, %v11539
    %v11880 = vpack.c.b16 %v11542, %v11541
    %v11881 = vpack.c.b16 %v11544, %v11543
    %v11882 = vpack.c.b16 %v11546, %v11545
    %v11883 = vpack.c.b16 %v11548, %v11547
    %v11884 = vpack.c.b16 %v11550, %v11549
    %v11885 = vpack.c.b16 %v11552, %v11551
    %v11886 = vpack.c.b16 %v11554, %v11553
    %v11887 = vpack.c.b16 %v11556, %v11555
    %v11888 = vpack.c.b16 %v11558, %v11557
    %v11889 = vpack.c.b16 %v11560, %v11559
    %v11890 = vpack.c.b16 %v11562, %v11561
    %v11891 = vpack.c.b16 %v11564, %v11563
    %v11892 = vpack.c.b16 %v11566, %v11565
    %v11893 = vpack.c.b16 %v11568, %v11567
    %v11894 = vpack.c.b16 %v11570, %v11569
    %v11895 = vpack.c.b16 %v11572, %v11571
    %v11896 = vpack.c.b16 %v11574, %v11573
    %v11897 = vpack.c.b16 %v11576, %v11575
    %v11898 = vpack.c.b16 %v11578, %v11577
    %v11899 = vpack.c.b16 %v11580, %v11579
    %v11900 = vpack.c.b16 %v11582, %v11581
    %v11901 = vpack.c.b16 %v11584, %v11583
    %v11902 = vpack.c.b16 %v11586, %v11585
    %v11903 = vpack.c.b16 %v11588, %v11587
    %v11904 = vpack.c.b16 %v11590, %v11589
    %v11905 = vpack.c.b16 %v11592, %v11591
    %v11906 = vpack.c.b16 %v11594, %v11593
    %v11907 = vpack.c.b16 %v11596, %v11595
    %v11908 = vpack.c.b16 %v11598, %v11597
    %v11909 = vpack.c.b16 %v11600, %v11599
    %v11910 = vpack.c.b16 %v11602, %v11601
    %v11911 = vpack.c.b16 %v11604, %v11603
    %v11912 = vpack.c.b16 %v11606, %v11605
    %v11913 = vpack.c.b16 %v11608, %v11607
    %v11914 = vpack.c.b16 %v11610, %v11609
    %v11915 = vpack.c.b16 %v11612, %v11611
    %v11916 = vpack.c.b16 %v11614, %v11613
    %v11917 = vpack.c.b16 %v11616, %v11615
    %v11918 = vpack.c.b16 %v11618, %v11617
    %v11919 = vpack.c.b16 %v11620, %v11619
    %v11920 = vpack.c.b16 %v11622, %v11621
    %v11921 = vpack.c.b16 %v11624, %v11623
    %v11922 = vpack.c.b16 %v11626, %v11625
    %v11923 = vpack.c.b16 %v11628, %v11627
    %v11924 = vpack.c.b16 %v11630, %v11629
    %v11925 = vpack.c.b16 %v11632, %v11631
    %v11926 = vpack.c.b16 %v11634, %v11633
    %v11927 = vpack.c.b16 %v11636, %v11635
    %v11928 = vpack.c.b16 %v11638, %v11637
    %v11929 = vpack.c.b16 %v11640, %v11639
    %v11930 = vpack.c.b16 %v11642, %v11641
    %v11931 = vpack.c.b16 %v11644, %v11643
    %v11932 = vpack.c.b16 %v11646, %v11645
    %v11933 = vpack.c.b16 %v11648, %v11647
    %v11934 = vpack.c.b16 %v11650, %v11649
    %v11935 = vpack.c.b16 %v11652, %v11651
    %v11936 = vpack.c.b16 %v11654, %v11653
    %v11937 = vpack.c.b16 %v11656, %v11655
    %v11938 = vpack.c.b16 %v11658, %v11657
    %v11939 = vpack.c.b16 %v11660, %v11659
    %v11940 = vpack.c.b16 %v11662, %v11661
    %v11941 = vpack.c.b16 %v11664, %v11663
    %v11942 = vpack.c.b16 %v11666, %v11665
    %v11943 = vpack.c.b16 %v11668, %v11667
    %v11944 = vpack.c.b16 %v11670, %v11669
    %v11945 = vpack.c.b16 %v11672, %v11671
    %v11946 = vpack.c.b16 %v11674, %v11673
    %v11947 = vpack.c.b16 %v11676, %v11675
    %v11948 = vpack.c.b16 %v11678, %v11677
    %v11949 = vpack.c.b16 %v11680, %v11679
    %v11950 = vpack.c.b16 %v11682, %v11681
    %v11951 = vpack.c.b16 %v11684, %v11683
    %v11952 = vpack.c.b16 %v11686, %v11685
    %v11953 = vpack.c.b16 %v11688, %v11687
    %v11954 = vpack.c.b16 %v11690, %v11689
    %v11955 = vpack.c.b16 %v11692, %v11691
    %v11956 = vpack.c.b16 %v11694, %v11693
    %v11957 = vpack.c.b16 %v11696, %v11695
    %v11958 = vpack.c.b16 %v11698, %v11697
    %v11959 = vpack.c.b16 %v11700, %v11699
    %v11960 = vpack.c.b16 %v11702, %v11701
    %v11961 = vpack.c.b16 %v11704, %v11703
    %v11962 = vpack.c.b16 %v11706, %v11705
    %v11963 = vpack.c.b16 %v11708, %v11707
    %v11964 = vpack.c.b16 %v11710, %v11709
    %v11965 = vpack.c.b16 %v11712, %v11711
    %v11966 = vpack.c.b16 %v11714, %v11713
    %v11967 = vpack.c.b16 %v11716, %v11715
    %v11968 = vpack.c.b16 %v11718, %v11717
    %v11969 = vpack.c.b16 %v11720, %v11719
    %v11970 = vpack.c.b16 %v11722, %v11721
    %v11971 = vpack.c.b16 %v11724, %v11723
    %v11972 = vpack.c.b16 %v11726, %v11725
    %v11973 = vpack.c.b16 %v11728, %v11727
    %v11974 = vpack.c.b16 %v11730, %v11729
    %v11975 = vpack.c.b16 %v11732, %v11731
    %v11976 = vpack.c.b16 %v11734, %v11733
    %v11977 = vpack.c.b16 %v11736, %v11735
    %v11978 = vpack.c.b16 %v11738, %v11737
    %v11979 = vpack.c.b16 %v11740, %v11739
    %v11980 = vpack.c.b16 %v11742, %v11741
    %v11981 = vpack.c.b16 %v11744, %v11743
    %v11982 = vpack.c.b16 %v11746, %v11745
    %v11983 = vpack.c.b16 %v11748, %v11747
    %v11984 = vpack.c.b16 %v11750, %v11749
    %v11985 = vpack.c.b16 %v11752, %v11751
    %v11986 = vpack.c.b16 %v11754, %v11753
    %v11987 = vpack.c.b16 %v11756, %v11755
    %v11988 = vpack.c.b16 %v11758, %v11757
    %v11989 = vpack.c.b16 %v11760, %v11759
    %v11990 = vpack.c.b16 %v11762, %v11761
    %v11991 = vpack.c.b16 %v11764, %v11763
    %v11992 = vpack.c.b16 %v11766, %v11765
    %v11993 = vpack.c.b16 %v11768, %v11767
    %v11994 = vpack.c.b16 %v11770, %v11769
    %v11995 = vpack.c.b16 %v11772, %v11771
    %v11996 = vpack.c.b16 %v11774, %v11773
    %v11997 = vpack.c.b16 %v11776, %v11775
    %v11998 = vpack.c.b16 %v11778, %v11777
    %v11999 = vpack.c.b16 %v11780, %v11779
    %v12000 = vpack.c.b16 %v11782, %v11781
    %v12001 = vpack.c.b16 %v11784, %v11783
    %v12002 = vpack.c.b16 %v11786, %v11785
    %v12003 = vpack.c.b16 %v11788, %v11787
    %v12004 = vpack.c.b16 %v11790, %v11789
    %v12005 = vpack.c.b16 %v11792, %v11791
    %v12006 = vpack.c.b16 %v11794, %v11793
    %v12007 = vpack.c.b16 %v11796, %v11795
    %v12008 = vpack.c.b16 %v11798, %v11797
    %v12009 = vpack.c.b16 %v11800, %v11799
    %v12010 = vpack.c.b16 %v11802, %v11801
    %v12011 = vpack.c.b16 %v11804, %v11803
    %v12012 = vpack.c.b16 %v11806, %v11805
    %v12013 = vpack.c.b16 %v11808, %v11807
    %v12014 = vpack.c.b16 %v11810, %v11809
    %v12015 = vpack.c.b16 %v11812, %v11811
    %v12016 = vpack.c.b16 %v11814, %v11813
    %v12017 = vpack.c.b16 %v11816, %v11815
    %v12018 = vpack.c.b16 %v11818, %v11817
    %12219 = vmatprep.subr.bf16.mxu0 0
    %12220 = vmatpush1.bf16.msra.mxu0 %v11826
    %12221 = vmatprep.subr.bf16.mxu0 0
    %12222 = vmatpush1.bf16.msra.mxu0 %v11825
    %12223 = vmatprep.subr.bf16.mxu0 0
    %12224 = vmatpush1.bf16.msra.mxu0 %v11824
    %12225 = vmatprep.subr.bf16.mxu0 0
    %12226 = vmatpush1.bf16.msra.mxu0 %v11823
    %12227 = vmatprep.subr.bf16.mxu0 0
    %12228 = vmatpush1.bf16.msra.mxu0 %v11822
    %12229 = vmatprep.subr.bf16.mxu0 0
    %12230 = vmatpush1.bf16.msra.mxu0 %v11821
    %12231 = vmatprep.subr.bf16.mxu0 0
    %12232 = vmatpush1.bf16.msra.mxu0 %v11820
    %12233 = vmatprep.subr.bf16.mxu0 0
    %12234 = vmatpush1.bf16.msra.mxu0 %v11819
    %12235 = vmatprep.subr.bf16.mxu0 0
    %12236 = vmatpush2.bf16.msra.mxu0 %v11834
    %12237 = vmatprep.subr.bf16.mxu0 0
    %12238 = vmatpush2.bf16.msra.mxu0 %v11833
    %12239 = vmatprep.subr.bf16.mxu0 0
    %12240 = vmatpush2.bf16.msra.mxu0 %v11832
    %12241 = vmatprep.subr.bf16.mxu0 0
    %12242 = vmatpush2.bf16.msra.mxu0 %v11831
    %12243 = vmatprep.subr.bf16.mxu0 0
    %12244 = vmatpush2.bf16.msra.mxu0 %v11830
    %12245 = vmatprep.subr.bf16.mxu0 0
    %12246 = vmatpush2.bf16.msra.mxu0 %v11829
    %12247 = vmatprep.subr.bf16.mxu0 0
    %12248 = vmatpush2.bf16.msra.mxu0 %v11828
    %12249 = vmatprep.subr.bf16.mxu0 0
    %12250 = vmatpush2.bf16.msra.mxu0 %v11827
    %12251 = vmatprep.mubr.bf16.mxu0 %v10970
    %12252 = vmatmul.mubr.bf16.gmra.mxu0 %v10969
    %v12253 = vpop.f32.mrf.mxu0
    %v12254 = vadd.f32 %v10929, %v12253
    %v12255 = vpop.f32.mrf.mxu0
    %v12256 = vpop.f32.mrf.mxu0
    %v12257 = vpop.f32.mrf.mxu0
    %12258 = vdwg.mxu0
    %12259 = vmatprep.subr.bf16.mxu0 0
    %12260 = vmatpush1.bf16.msra.mxu0 %v11842
    %12261 = vmatprep.subr.bf16.mxu0 0
    %12262 = vmatpush1.bf16.msra.mxu0 %v11841
    %12263 = vmatprep.subr.bf16.mxu0 0
    %12264 = vmatpush1.bf16.msra.mxu0 %v11840
    %12265 = vmatprep.subr.bf16.mxu0 0
    %12266 = vmatpush1.bf16.msra.mxu0 %v11839
    %12267 = vmatprep.subr.bf16.mxu0 0
    %12268 = vmatpush1.bf16.msra.mxu0 %v11838
    %12269 = vmatprep.subr.bf16.mxu0 0
    %12270 = vmatpush1.bf16.msra.mxu0 %v11837
    %12271 = vmatprep.subr.bf16.mxu0 0
    %12272 = vmatpush1.bf16.msra.mxu0 %v11836
    %12273 = vmatprep.subr.bf16.mxu0 0
    %12274 = vmatpush1.bf16.msra.mxu0 %v11835
    %12275 = vmatprep.subr.bf16.mxu0 0
    %12276 = vmatpush2.bf16.msra.mxu0 %v11850
    %12277 = vmatprep.subr.bf16.mxu0 0
    %12278 = vmatpush2.bf16.msra.mxu0 %v11849
    %12279 = vmatprep.subr.bf16.mxu0 0
    %12280 = vmatpush2.bf16.msra.mxu0 %v11848
    %12281 = vmatprep.subr.bf16.mxu0 0
    %12282 = vmatpush2.bf16.msra.mxu0 %v11847
    %12283 = vmatprep.subr.bf16.mxu0 0
    %12284 = vmatpush2.bf16.msra.mxu0 %v11846
    %12285 = vmatprep.subr.bf16.mxu0 0
    %12286 = vmatpush2.bf16.msra.mxu0 %v11845
    %12287 = vmatprep.subr.bf16.mxu0 0
    %12288 = vmatpush2.bf16.msra.mxu0 %v11844
    %12289 = vmatprep.subr.bf16.mxu0 0
    %12290 = vmatpush2.bf16.msra.mxu0 %v11843
    %12291 = vmatprep.mubr.bf16.mxu0 %v10972
    %12292 = vmatmul.mubr.bf16.gmra.mxu0 %v10971
    %v12293 = vpop.f32.mrf.mxu0
    %v12294 = vadd.f32 %v12254, %v12293
    %v12295 = vpop.f32.mrf.mxu0
    %v12296 = vpop.f32.mrf.mxu0
    %v12297 = vpop.f32.mrf.mxu0
    %12298 = vdwg.mxu0
    %12299 = vmatprep.subr.bf16.mxu0 0
    %12300 = vmatpush1.bf16.msra.mxu0 %v11858
    %12301 = vmatprep.subr.bf16.mxu0 0
    %12302 = vmatpush1.bf16.msra.mxu0 %v11857
    %12303 = vmatprep.subr.bf16.mxu0 0
    %12304 = vmatpush1.bf16.msra.mxu0 %v11856
    %12305 = vmatprep.subr.bf16.mxu0 0
    %12306 = vmatpush1.bf16.msra.mxu0 %v11855
    %12307 = vmatprep.subr.bf16.mxu0 0
    %12308 = vmatpush1.bf16.msra.mxu0 %v11854
    %12309 = vmatprep.subr.bf16.mxu0 0
    %12310 = vmatpush1.bf16.msra.mxu0 %v11853
    %12311 = vmatprep.subr.bf16.mxu0 0
    %12312 = vmatpush1.bf16.msra.mxu0 %v11852
    %12313 = vmatprep.subr.bf16.mxu0 0
    %12314 = vmatpush1.bf16.msra.mxu0 %v11851
    %12315 = vmatprep.subr.bf16.mxu0 0
    %12316 = vmatpush2.bf16.msra.mxu0 %v11866
    %12317 = vmatprep.subr.bf16.mxu0 0
    %12318 = vmatpush2.bf16.msra.mxu0 %v11865
    %12319 = vmatprep.subr.bf16.mxu0 0
    %12320 = vmatpush2.bf16.msra.mxu0 %v11864
    %12321 = vmatprep.subr.bf16.mxu0 0
    %12322 = vmatpush2.bf16.msra.mxu0 %v11863
    %12323 = vmatprep.subr.bf16.mxu0 0
    %12324 = vmatpush2.bf16.msra.mxu0 %v11862
    %12325 = vmatprep.subr.bf16.mxu0 0
    %12326 = vmatpush2.bf16.msra.mxu0 %v11861
    %12327 = vmatprep.subr.bf16.mxu0 0
    %12328 = vmatpush2.bf16.msra.mxu0 %v11860
    %12329 = vmatprep.subr.bf16.mxu0 0
    %12330 = vmatpush2.bf16.msra.mxu0 %v11859
    %12331 = vmatprep.mubr.bf16.mxu0 %v10974
    %12332 = vmatmul.mubr.bf16.gmra.mxu0 %v10973
    %v12333 = vpop.f32.mrf.mxu0
    %v12334 = vadd.f32 %v12294, %v12333
    %v12335 = vpop.f32.mrf.mxu0
    %v12336 = vpop.f32.mrf.mxu0
    %v12337 = vpop.f32.mrf.mxu0
    %12338 = vdwg.mxu0
    %12339 = vmatprep.subr.bf16.mxu0 0
    %12340 = vmatpush1.bf16.msra.mxu0 %v11874
    %12341 = vmatprep.subr.bf16.mxu0 0
    %12342 = vmatpush1.bf16.msra.mxu0 %v11873
    %12343 = vmatprep.subr.bf16.mxu0 0
    %12344 = vmatpush1.bf16.msra.mxu0 %v11872
    %12345 = vmatprep.subr.bf16.mxu0 0
    %12346 = vmatpush1.bf16.msra.mxu0 %v11871
    %12347 = vmatprep.subr.bf16.mxu0 0
    %12348 = vmatpush1.bf16.msra.mxu0 %v11870
    %12349 = vmatprep.subr.bf16.mxu0 0
    %12350 = vmatpush1.bf16.msra.mxu0 %v11869
    %12351 = vmatprep.subr.bf16.mxu0 0
    %12352 = vmatpush1.bf16.msra.mxu0 %v11868
    %12353 = vmatprep.subr.bf16.mxu0 0
    %12354 = vmatpush1.bf16.msra.mxu0 %v11867
    %12355 = vmatprep.subr.bf16.mxu0 0
    %12356 = vmatpush2.bf16.msra.mxu0 %v11882
    %12357 = vmatprep.subr.bf16.mxu0 0
    %12358 = vmatpush2.bf16.msra.mxu0 %v11881
    %12359 = vmatprep.subr.bf16.mxu0 0
    %12360 = vmatpush2.bf16.msra.mxu0 %v11880
    %12361 = vmatprep.subr.bf16.mxu0 0
    %12362 = vmatpush2.bf16.msra.mxu0 %v11879
    %12363 = vmatprep.subr.bf16.mxu0 0
    %12364 = vmatpush2.bf16.msra.mxu0 %v11878
    %12365 = vmatprep.subr.bf16.mxu0 0
    %12366 = vmatpush2.bf16.msra.mxu0 %v11877
    %12367 = vmatprep.subr.bf16.mxu0 0
    %12368 = vmatpush2.bf16.msra.mxu0 %v11876
    %12369 = vmatprep.subr.bf16.mxu0 0
    %12370 = vmatpush2.bf16.msra.mxu0 %v11875
    %12371 = vmatprep.mubr.bf16.mxu0 %v10976
    %12372 = vmatmul.mubr.bf16.gmra.mxu0 %v10975
    %v12373 = vpop.f32.mrf.mxu0
    %v12374 = vadd.f32 %v12334, %v12373
    %v12375 = vpop.f32.mrf.mxu0
    %v12376 = vpop.f32.mrf.mxu0
    %v12377 = vpop.f32.mrf.mxu0
    %12378 = vdwg.mxu0
    %12379 = vmatprep.subr.bf16.mxu0 0
    %12380 = vmatpush1.bf16.msra.mxu0 %v11890
    %12381 = vmatprep.subr.bf16.mxu0 0
    %12382 = vmatpush1.bf16.msra.mxu0 %v11889
    %12383 = vmatprep.subr.bf16.mxu0 0
    %12384 = vmatpush1.bf16.msra.mxu0 %v11888
    %12385 = vmatprep.subr.bf16.mxu0 0
    %12386 = vmatpush1.bf16.msra.mxu0 %v11887
    %12387 = vmatprep.subr.bf16.mxu0 0
    %12388 = vmatpush1.bf16.msra.mxu0 %v11886
    %12389 = vmatprep.subr.bf16.mxu0 0
    %12390 = vmatpush1.bf16.msra.mxu0 %v11885
    %12391 = vmatprep.subr.bf16.mxu0 0
    %12392 = vmatpush1.bf16.msra.mxu0 %v11884
    %12393 = vmatprep.subr.bf16.mxu0 0
    %12394 = vmatpush1.bf16.msra.mxu0 %v11883
    %12395 = vmatprep.subr.bf16.mxu0 0
    %12396 = vmatpush2.bf16.msra.mxu0 %v11898
    %12397 = vmatprep.subr.bf16.mxu0 0
    %12398 = vmatpush2.bf16.msra.mxu0 %v11897
    %12399 = vmatprep.subr.bf16.mxu0 0
    %12400 = vmatpush2.bf16.msra.mxu0 %v11896
    %12401 = vmatprep.subr.bf16.mxu0 0
    %12402 = vmatpush2.bf16.msra.mxu0 %v11895
    %12403 = vmatprep.subr.bf16.mxu0 0
    %12404 = vmatpush2.bf16.msra.mxu0 %v11894
    %12405 = vmatprep.subr.bf16.mxu0 0
    %12406 = vmatpush2.bf16.msra.mxu0 %v11893
    %12407 = vmatprep.subr.bf16.mxu0 0
    %12408 = vmatpush2.bf16.msra.mxu0 %v11892
    %12409 = vmatprep.subr.bf16.mxu0 0
    %12410 = vmatpush2.bf16.msra.mxu0 %v11891
    %12411 = vmatprep.mubr.bf16.mxu0 %v10978
    %12412 = vmatmul.mubr.bf16.gmra.mxu0 %v10977
    %v12413 = vpop.f32.mrf.mxu0
    %v12414 = vadd.f32 %v12374, %v12413
    %v12415 = vpop.f32.mrf.mxu0
    %v12416 = vpop.f32.mrf.mxu0
    %v12417 = vpop.f32.mrf.mxu0
    %12418 = vdwg.mxu0
    %12419 = vmatprep.subr.bf16.mxu0 0
    %12420 = vmatpush1.bf16.msra.mxu0 %v11906
    %12421 = vmatprep.subr.bf16.mxu0 0
    %12422 = vmatpush1.bf16.msra.mxu0 %v11905
    %12423 = vmatprep.subr.bf16.mxu0 0
    %12424 = vmatpush1.bf16.msra.mxu0 %v11904
    %12425 = vmatprep.subr.bf16.mxu0 0
    %12426 = vmatpush1.bf16.msra.mxu0 %v11903
    %12427 = vmatprep.subr.bf16.mxu0 0
    %12428 = vmatpush1.bf16.msra.mxu0 %v11902
    %12429 = vmatprep.subr.bf16.mxu0 0
    %12430 = vmatpush1.bf16.msra.mxu0 %v11901
    %12431 = vmatprep.subr.bf16.mxu0 0
    %12432 = vmatpush1.bf16.msra.mxu0 %v11900
    %12433 = vmatprep.subr.bf16.mxu0 0
    %12434 = vmatpush1.bf16.msra.mxu0 %v11899
    %12435 = vmatprep.subr.bf16.mxu0 0
    %12436 = vmatpush2.bf16.msra.mxu0 %v11914
    %12437 = vmatprep.subr.bf16.mxu0 0
    %12438 = vmatpush2.bf16.msra.mxu0 %v11913
    %12439 = vmatprep.subr.bf16.mxu0 0
    %12440 = vmatpush2.bf16.msra.mxu0 %v11912
    %12441 = vmatprep.subr.bf16.mxu0 0
    %12442 = vmatpush2.bf16.msra.mxu0 %v11911
    %12443 = vmatprep.subr.bf16.mxu0 0
    %12444 = vmatpush2.bf16.msra.mxu0 %v11910
    %12445 = vmatprep.subr.bf16.mxu0 0
    %12446 = vmatpush2.bf16.msra.mxu0 %v11909
    %12447 = vmatprep.subr.bf16.mxu0 0
    %12448 = vmatpush2.bf16.msra.mxu0 %v11908
    %12449 = vmatprep.subr.bf16.mxu0 0
    %12450 = vmatpush2.bf16.msra.mxu0 %v11907
    %12451 = vmatprep.mubr.bf16.mxu0 %v10980
    %12452 = vmatmul.mubr.bf16.gmra.mxu0 %v10979
    %v12453 = vpop.f32.mrf.mxu0
    %v12454 = vadd.f32 %v12414, %v12453
    %v12455 = vpop.f32.mrf.mxu0
    %v12456 = vpop.f32.mrf.mxu0
    %v12457 = vpop.f32.mrf.mxu0
    %12458 = vdwg.mxu0
    %12459 = vmatprep.subr.bf16.mxu0 0
    %12460 = vmatpush1.bf16.msra.mxu0 %v11922
    %12461 = vmatprep.subr.bf16.mxu0 0
    %12462 = vmatpush1.bf16.msra.mxu0 %v11921
    %12463 = vmatprep.subr.bf16.mxu0 0
    %12464 = vmatpush1.bf16.msra.mxu0 %v11920
    %12465 = vmatprep.subr.bf16.mxu0 0
    %12466 = vmatpush1.bf16.msra.mxu0 %v11919
    %12467 = vmatprep.subr.bf16.mxu0 0
    %12468 = vmatpush1.bf16.msra.mxu0 %v11918
    %12469 = vmatprep.subr.bf16.mxu0 0
    %12470 = vmatpush1.bf16.msra.mxu0 %v11917
    %12471 = vmatprep.subr.bf16.mxu0 0
    %12472 = vmatpush1.bf16.msra.mxu0 %v11916
    %12473 = vmatprep.subr.bf16.mxu0 0
    %12474 = vmatpush1.bf16.msra.mxu0 %v11915
    %12475 = vmatprep.subr.bf16.mxu0 0
    %12476 = vmatpush2.bf16.msra.mxu0 %v11930
    %12477 = vmatprep.subr.bf16.mxu0 0
    %12478 = vmatpush2.bf16.msra.mxu0 %v11929
    %12479 = vmatprep.subr.bf16.mxu0 0
    %12480 = vmatpush2.bf16.msra.mxu0 %v11928
    %12481 = vmatprep.subr.bf16.mxu0 0
    %12482 = vmatpush2.bf16.msra.mxu0 %v11927
    %12483 = vmatprep.subr.bf16.mxu0 0
    %12484 = vmatpush2.bf16.msra.mxu0 %v11926
    %12485 = vmatprep.subr.bf16.mxu0 0
    %12486 = vmatpush2.bf16.msra.mxu0 %v11925
    %12487 = vmatprep.subr.bf16.mxu0 0
    %12488 = vmatpush2.bf16.msra.mxu0 %v11924
    %12489 = vmatprep.subr.bf16.mxu0 0
    %12490 = vmatpush2.bf16.msra.mxu0 %v11923
    %12491 = vmatprep.mubr.bf16.mxu0 %v10982
    %12492 = vmatmul.mubr.bf16.gmra.mxu0 %v10981
    %v12493 = vpop.f32.mrf.mxu0
    %v12494 = vadd.f32 %v12454, %v12493
    %v12495 = vpop.f32.mrf.mxu0
    %v12496 = vpop.f32.mrf.mxu0
    %v12497 = vpop.f32.mrf.mxu0
    %12498 = vdwg.mxu0
    %12499 = vmatprep.subr.bf16.mxu0 0
    %12500 = vmatpush1.bf16.msra.mxu0 %v11938
    %12501 = vmatprep.subr.bf16.mxu0 0
    %12502 = vmatpush1.bf16.msra.mxu0 %v11937
    %12503 = vmatprep.subr.bf16.mxu0 0
    %12504 = vmatpush1.bf16.msra.mxu0 %v11936
    %12505 = vmatprep.subr.bf16.mxu0 0
    %12506 = vmatpush1.bf16.msra.mxu0 %v11935
    %12507 = vmatprep.subr.bf16.mxu0 0
    %12508 = vmatpush1.bf16.msra.mxu0 %v11934
    %12509 = vmatprep.subr.bf16.mxu0 0
    %12510 = vmatpush1.bf16.msra.mxu0 %v11933
    %12511 = vmatprep.subr.bf16.mxu0 0
    %12512 = vmatpush1.bf16.msra.mxu0 %v11932
    %12513 = vmatprep.subr.bf16.mxu0 0
    %12514 = vmatpush1.bf16.msra.mxu0 %v11931
    %12515 = vmatprep.subr.bf16.mxu0 0
    %12516 = vmatpush2.bf16.msra.mxu0 %v11946
    %12517 = vmatprep.subr.bf16.mxu0 0
    %12518 = vmatpush2.bf16.msra.mxu0 %v11945
    %12519 = vmatprep.subr.bf16.mxu0 0
    %12520 = vmatpush2.bf16.msra.mxu0 %v11944
    %12521 = vmatprep.subr.bf16.mxu0 0
    %12522 = vmatpush2.bf16.msra.mxu0 %v11943
    %12523 = vmatprep.subr.bf16.mxu0 0
    %12524 = vmatpush2.bf16.msra.mxu0 %v11942
    %12525 = vmatprep.subr.bf16.mxu0 0
    %12526 = vmatpush2.bf16.msra.mxu0 %v11941
    %12527 = vmatprep.subr.bf16.mxu0 0
    %12528 = vmatpush2.bf16.msra.mxu0 %v11940
    %12529 = vmatprep.subr.bf16.mxu0 0
    %12530 = vmatpush2.bf16.msra.mxu0 %v11939
    %12531 = vmatprep.mubr.bf16.mxu0 %v10984
    %12532 = vmatmul.mubr.bf16.gmra.mxu0 %v10983
    %v12533 = vpop.f32.mrf.mxu0
    %v12534 = vadd.f32 %v12494, %v12533
    %v12535 = vpop.f32.mrf.mxu0
    %v12536 = vpop.f32.mrf.mxu0
    %v12537 = vpop.f32.mrf.mxu0
    %12538 = vdwg.mxu0
    %12539 = vmatprep.subr.bf16.mxu0 0
    %12540 = vmatpush1.bf16.msra.mxu0 %v11954
    %12541 = vmatprep.subr.bf16.mxu0 0
    %12542 = vmatpush1.bf16.msra.mxu0 %v11953
    %12543 = vmatprep.subr.bf16.mxu0 0
    %12544 = vmatpush1.bf16.msra.mxu0 %v11952
    %12545 = vmatprep.subr.bf16.mxu0 0
    %12546 = vmatpush1.bf16.msra.mxu0 %v11951
    %12547 = vmatprep.subr.bf16.mxu0 0
    %12548 = vmatpush1.bf16.msra.mxu0 %v11950
    %12549 = vmatprep.subr.bf16.mxu0 0
    %12550 = vmatpush1.bf16.msra.mxu0 %v11949
    %12551 = vmatprep.subr.bf16.mxu0 0
    %12552 = vmatpush1.bf16.msra.mxu0 %v11948
    %12553 = vmatprep.subr.bf16.mxu0 0
    %12554 = vmatpush1.bf16.msra.mxu0 %v11947
    %12555 = vmatprep.subr.bf16.mxu0 0
    %12556 = vmatpush2.bf16.msra.mxu0 %v11962
    %12557 = vmatprep.subr.bf16.mxu0 0
    %12558 = vmatpush2.bf16.msra.mxu0 %v11961
    %12559 = vmatprep.subr.bf16.mxu0 0
    %12560 = vmatpush2.bf16.msra.mxu0 %v11960
    %12561 = vmatprep.subr.bf16.mxu0 0
    %12562 = vmatpush2.bf16.msra.mxu0 %v11959
    %12563 = vmatprep.subr.bf16.mxu0 0
    %12564 = vmatpush2.bf16.msra.mxu0 %v11958
    %12565 = vmatprep.subr.bf16.mxu0 0
    %12566 = vmatpush2.bf16.msra.mxu0 %v11957
    %12567 = vmatprep.subr.bf16.mxu0 0
    %12568 = vmatpush2.bf16.msra.mxu0 %v11956
    %12569 = vmatprep.subr.bf16.mxu0 0
    %12570 = vmatpush2.bf16.msra.mxu0 %v11955
    %12571 = vmatprep.mubr.bf16.mxu0 %v10986
    %12572 = vmatmul.mubr.bf16.gmra.mxu0 %v10985
    %v12573 = vpop.f32.mrf.mxu0
    %v12574 = vadd.f32 %v12534, %v12573
    %v12575 = vpop.f32.mrf.mxu0
    %v12576 = vpop.f32.mrf.mxu0
    %v12577 = vpop.f32.mrf.mxu0
    %12578 = vdwg.mxu0
    %12579 = vmatprep.subr.bf16.mxu0 0
    %12580 = vmatpush1.bf16.msra.mxu0 %v11970
    %12581 = vmatprep.subr.bf16.mxu0 0
    %12582 = vmatpush1.bf16.msra.mxu0 %v11969
    %12583 = vmatprep.subr.bf16.mxu0 0
    %12584 = vmatpush1.bf16.msra.mxu0 %v11968
    %12585 = vmatprep.subr.bf16.mxu0 0
    %12586 = vmatpush1.bf16.msra.mxu0 %v11967
    %12587 = vmatprep.subr.bf16.mxu0 0
    %12588 = vmatpush1.bf16.msra.mxu0 %v11966
    %12589 = vmatprep.subr.bf16.mxu0 0
    %12590 = vmatpush1.bf16.msra.mxu0 %v11965
    %12591 = vmatprep.subr.bf16.mxu0 0
    %12592 = vmatpush1.bf16.msra.mxu0 %v11964
    %12593 = vmatprep.subr.bf16.mxu0 0
    %12594 = vmatpush1.bf16.msra.mxu0 %v11963
    %12595 = vmatprep.subr.bf16.mxu0 0
    %12596 = vmatpush2.bf16.msra.mxu0 %v11978
    %12597 = vmatprep.subr.bf16.mxu0 0
    %12598 = vmatpush2.bf16.msra.mxu0 %v11977
    %12599 = vmatprep.subr.bf16.mxu0 0
    %12600 = vmatpush2.bf16.msra.mxu0 %v11976
    %12601 = vmatprep.subr.bf16.mxu0 0
    %12602 = vmatpush2.bf16.msra.mxu0 %v11975
    %12603 = vmatprep.subr.bf16.mxu0 0
    %12604 = vmatpush2.bf16.msra.mxu0 %v11974
    %12605 = vmatprep.subr.bf16.mxu0 0
    %12606 = vmatpush2.bf16.msra.mxu0 %v11973
    %12607 = vmatprep.subr.bf16.mxu0 0
    %12608 = vmatpush2.bf16.msra.mxu0 %v11972
    %12609 = vmatprep.subr.bf16.mxu0 0
    %12610 = vmatpush2.bf16.msra.mxu0 %v11971
    %12611 = vmatprep.mubr.bf16.mxu0 %v10988
    %12612 = vmatmul.mubr.bf16.gmra.mxu0 %v10987
    %v12613 = vpop.f32.mrf.mxu0
    %v12614 = vadd.f32 %v12574, %v12613
    %v12615 = vpop.f32.mrf.mxu0
    %v12616 = vpop.f32.mrf.mxu0
    %v12617 = vpop.f32.mrf.mxu0
    %12618 = vdwg.mxu0
    %12619 = vmatprep.subr.bf16.mxu0 0
    %12620 = vmatpush1.bf16.msra.mxu0 %v11986
    %12621 = vmatprep.subr.bf16.mxu0 0
    %12622 = vmatpush1.bf16.msra.mxu0 %v11985
    %12623 = vmatprep.subr.bf16.mxu0 0
    %12624 = vmatpush1.bf16.msra.mxu0 %v11984
    %12625 = vmatprep.subr.bf16.mxu0 0
    %12626 = vmatpush1.bf16.msra.mxu0 %v11983
    %12627 = vmatprep.subr.bf16.mxu0 0
    %12628 = vmatpush1.bf16.msra.mxu0 %v11982
    %12629 = vmatprep.subr.bf16.mxu0 0
    %12630 = vmatpush1.bf16.msra.mxu0 %v11981
    %12631 = vmatprep.subr.bf16.mxu0 0
    %12632 = vmatpush1.bf16.msra.mxu0 %v11980
    %12633 = vmatprep.subr.bf16.mxu0 0
    %12634 = vmatpush1.bf16.msra.mxu0 %v11979
    %12635 = vmatprep.subr.bf16.mxu0 0
    %12636 = vmatpush2.bf16.msra.mxu0 %v11994
    %12637 = vmatprep.subr.bf16.mxu0 0
    %12638 = vmatpush2.bf16.msra.mxu0 %v11993
    %12639 = vmatprep.subr.bf16.mxu0 0
    %12640 = vmatpush2.bf16.msra.mxu0 %v11992
    %12641 = vmatprep.subr.bf16.mxu0 0
    %12642 = vmatpush2.bf16.msra.mxu0 %v11991
    %12643 = vmatprep.subr.bf16.mxu0 0
    %12644 = vmatpush2.bf16.msra.mxu0 %v11990
    %12645 = vmatprep.subr.bf16.mxu0 0
    %12646 = vmatpush2.bf16.msra.mxu0 %v11989
    %12647 = vmatprep.subr.bf16.mxu0 0
    %12648 = vmatpush2.bf16.msra.mxu0 %v11988
    %12649 = vmatprep.subr.bf16.mxu0 0
    %12650 = vmatpush2.bf16.msra.mxu0 %v11987
    %12651 = vmatprep.mubr.bf16.mxu0 %v10990
    %12652 = vmatmul.mubr.bf16.gmra.mxu0 %v10989
    %v12653 = vpop.f32.mrf.mxu0
    %v12654 = vadd.f32 %v12614, %v12653
    %v12655 = vpop.f32.mrf.mxu0
    %v12656 = vpop.f32.mrf.mxu0
    %v12657 = vpop.f32.mrf.mxu0
    %12658 = vdwg.mxu0
    %12659 = vmatprep.subr.bf16.mxu0 0
    %12660 = vmatpush1.bf16.msra.mxu0 %v12002
    %12661 = vmatprep.subr.bf16.mxu0 0
    %12662 = vmatpush1.bf16.msra.mxu0 %v12001
    %12663 = vmatprep.subr.bf16.mxu0 0
    %12664 = vmatpush1.bf16.msra.mxu0 %v12000
    %12665 = vmatprep.subr.bf16.mxu0 0
    %12666 = vmatpush1.bf16.msra.mxu0 %v11999
    %12667 = vmatprep.subr.bf16.mxu0 0
    %12668 = vmatpush1.bf16.msra.mxu0 %v11998
    %12669 = vmatprep.subr.bf16.mxu0 0
    %12670 = vmatpush1.bf16.msra.mxu0 %v11997
    %12671 = vmatprep.subr.bf16.mxu0 0
    %12672 = vmatpush1.bf16.msra.mxu0 %v11996
    %12673 = vmatprep.subr.bf16.mxu0 0
    %12674 = vmatpush1.bf16.msra.mxu0 %v11995
    %12675 = vmatprep.subr.bf16.mxu0 0
    %12676 = vmatpush2.bf16.msra.mxu0 %v12010
    %12677 = vmatprep.subr.bf16.mxu0 0
    %12678 = vmatpush2.bf16.msra.mxu0 %v12009
    %12679 = vmatprep.subr.bf16.mxu0 0
    %12680 = vmatpush2.bf16.msra.mxu0 %v12008
    %12681 = vmatprep.subr.bf16.mxu0 0
    %12682 = vmatpush2.bf16.msra.mxu0 %v12007
    %12683 = vmatprep.subr.bf16.mxu0 0
    %12684 = vmatpush2.bf16.msra.mxu0 %v12006
    %12685 = vmatprep.subr.bf16.mxu0 0
    %12686 = vmatpush2.bf16.msra.mxu0 %v12005
    %12687 = vmatprep.subr.bf16.mxu0 0
    %12688 = vmatpush2.bf16.msra.mxu0 %v12004
    %12689 = vmatprep.subr.bf16.mxu0 0
    %12690 = vmatpush2.bf16.msra.mxu0 %v12003
    %12691 = vmatprep.mubr.bf16.mxu0 %v10992
    %12692 = vmatmul.mubr.bf16.gmra.mxu0 %v10991
    %v12693 = vpop.f32.mrf.mxu0
    %v12694 = vadd.f32 %v12654, %v12693
    %v12695 = vpop.f32.mrf.mxu0
    %v12696 = vpop.f32.mrf.mxu0
    %v12697 = vpop.f32.mrf.mxu0
    %12698 = vdwg.mxu0
    %12699 = vmatprep.subr.bf16.mxu0 0
    %12700 = vmatpush1.bf16.msra.mxu0 %v12018
    %12701 = vmatprep.subr.bf16.mxu0 0
    %12702 = vmatpush1.bf16.msra.mxu0 %v12017
    %12703 = vmatprep.subr.bf16.mxu0 0
    %12704 = vmatpush1.bf16.msra.mxu0 %v12016
    %12705 = vmatprep.subr.bf16.mxu0 0
    %12706 = vmatpush1.bf16.msra.mxu0 %v12015
    %12707 = vmatprep.subr.bf16.mxu0 0
    %12708 = vmatpush1.bf16.msra.mxu0 %v12014
    %12709 = vmatprep.subr.bf16.mxu0 0
    %12710 = vmatpush1.bf16.msra.mxu0 %v12013
    %12711 = vmatprep.subr.bf16.mxu0 0
    %12712 = vmatpush1.bf16.msra.mxu0 %v12012
    %12713 = vmatprep.subr.bf16.mxu0 0
    %12714 = vmatpush1.bf16.msra.mxu0 %v12011
    %12715 = vmatprep.subr.bf16.mxu0 0
    %12716 = vmatpush2.bf16.msra.mxu0 0
    %12717 = vmatprep.subr.bf16.mxu0 0
    %12718 = vmatpush2.bf16.msra.mxu0 0
    %12719 = vmatprep.subr.bf16.mxu0 0
    %12720 = vmatpush2.bf16.msra.mxu0 0
    %12721 = vmatprep.subr.bf16.mxu0 0
    %12722 = vmatpush2.bf16.msra.mxu0 0
    %12723 = vmatprep.subr.bf16.mxu0 0
    %12724 = vmatpush2.bf16.msra.mxu0 0
    %12725 = vmatprep.subr.bf16.mxu0 0
    %12726 = vmatpush2.bf16.msra.mxu0 0
    %12727 = vmatprep.subr.bf16.mxu0 0
    %12728 = vmatpush2.bf16.msra.mxu0 0
    %12729 = vmatprep.subr.bf16.mxu0 0
    %12730 = vmatpush2.bf16.msra.mxu0 0
    %12731 = vmatprep.mubr.bf16.mxu0 0
    %12732 = vmatmul.mubr.bf16.gmra.mxu0 %v10993
    %v12733 = vpop.f32.mrf.mxu0
    %v12734 = vadd.f32 %v12694, %v12733
    %v12735 = vpop.f32.mrf.mxu0
    %v12736 = vpop.f32.mrf.mxu0
    %v12737 = vpop.f32.mrf.mxu0
    %12738 = vdwg.mxu0
    %v12739 = vmax.f32 %v12734, 0.0
    %v12740 = vld [vmem:[%s7] sm:$0xff]
    %v12741 = vld [vmem:[%s7 + $0x8] sm:$0xff]
    %v12742 = vld [vmem:[%s7 + $0x10] sm:$0xff]
    %v12743 = vld [vmem:[%s7 + $0x18] sm:$0xff]
    %v12744 = vld [vmem:[%s7 + $0x20] sm:$0xff]
    %v12745 = vld [vmem:[%s7 + $0x28] sm:$0xff]
    %v12746 = vld [vmem:[%s7 + $0x30] sm:$0xff]
    %v12747 = vld [vmem:[%s7 + $0x38] sm:$0xff]
    %v12748 = vld [vmem:[%s7 + $0x40] sm:$0xff]
    %v12749 = vld [vmem:[%s7 + $0x48] sm:$0xff]
    %v12750 = vld [vmem:[%s7 + $0x50] sm:$0xff]
    %v12751 = vld [vmem:[%s7 + $0x58] sm:$0xff]
    %v12752 = vld [vmem:[%s7 + $0x60] sm:$0xff]
    %v12753 = vld [vmem:[%s7 + $0x68] sm:$0xff]
    %v12754 = vld [vmem:[%s7 + $0x70] sm:$0xff]
    %v12755 = vld [vmem:[%s7 + $0x78] sm:$0xff]
    %v12756 = vld [vmem:[%s8] sm:$0x1]
    %v12758 = vlaneseq
    %v12759 = vshrl.u32 %v12758, 7
    %v12760 = vsub.s32 0, %v12759
    %v12761 = vrot.slane %v12756, %v12760
    %12763 = vmatprep.subr.mxu0 0.0
    %12764 = vmatpush1.msra.mxu0 %v12755
    %12765 = vmatprep.subr.mxu0 0.0
    %12766 = vmatpush1.msra.mxu0 %v12754
    %12767 = vmatprep.subr.mxu0 0.0
    %12768 = vmatpush1.msra.mxu0 %v12753
    %12769 = vmatprep.subr.mxu0 0.0
    %12770 = vmatpush1.msra.mxu0 %v12752
    %12771 = vmatprep.subr.mxu0 0.0
    %12772 = vmatpush1.msra.mxu0 %v12751
    %12773 = vmatprep.subr.mxu0 0.0
    %12774 = vmatpush1.msra.mxu0 %v12750
    %12775 = vmatprep.subr.mxu0 0.0
    %12776 = vmatpush1.msra.mxu0 %v12749
    %12777 = vmatprep.subr.mxu0 0.0
    %12778 = vmatpush1.msra.mxu0 %v12748
    %12779 = vmatprep.subr.mxu0 0.0
    %12780 = vmatpush1.msra.mxu0 %v12747
    %12781 = vmatprep.subr.mxu0 0.0
    %12782 = vmatpush1.msra.mxu0 %v12746
    %12783 = vmatprep.subr.mxu0 0.0
    %12784 = vmatpush1.msra.mxu0 %v12745
    %12785 = vmatprep.subr.mxu0 0.0
    %12786 = vmatpush1.msra.mxu0 %v12744
    %12787 = vmatprep.subr.mxu0 0.0
    %12788 = vmatpush1.msra.mxu0 %v12743
    %12789 = vmatprep.subr.mxu0 0.0
    %12790 = vmatpush1.msra.mxu0 %v12742
    %12791 = vmatprep.subr.mxu0 0.0
    %12792 = vmatpush1.msra.mxu0 %v12741
    %12793 = vmatprep.subr.mxu0 0.0
    %12794 = vmatpush1.msra.mxu0 %v12740
    %12795 = vmatprep.subr.mxu0 0.0
    %12796 = vmatpush2.msra.mxu0 0.0
    %12797 = vmatprep.subr.mxu0 0.0
    %12798 = vmatpush2.msra.mxu0 0.0
    %12799 = vmatprep.subr.mxu0 0.0
    %12800 = vmatpush2.msra.mxu0 0.0
    %12801 = vmatprep.subr.mxu0 0.0
    %12802 = vmatpush2.msra.mxu0 0.0
    %12803 = vmatprep.subr.mxu0 0.0
    %12804 = vmatpush2.msra.mxu0 0.0
    %12805 = vmatprep.subr.mxu0 0.0
    %12806 = vmatpush2.msra.mxu0 0.0
    %12807 = vmatprep.subr.mxu0 0.0
    %12808 = vmatpush2.msra.mxu0 0.0
    %12809 = vmatprep.subr.mxu0 0.0
    %12810 = vmatpush2.msra.mxu0 0.0
    %12811 = vmatprep.subr.mxu0 0.0
    %12812 = vmatpush2.msra.mxu0 0.0
    %12813 = vmatprep.subr.mxu0 0.0
    %12814 = vmatpush2.msra.mxu0 0.0
    %12815 = vmatprep.subr.mxu0 0.0
    %12816 = vmatpush2.msra.mxu0 0.0
    %12817 = vmatprep.subr.mxu0 0.0
    %12818 = vmatpush2.msra.mxu0 0.0
    %12819 = vmatprep.subr.mxu0 0.0
    %12820 = vmatpush2.msra.mxu0 0.0
    %12821 = vmatprep.subr.mxu0 0.0
    %12822 = vmatpush2.msra.mxu0 0.0
    %12823 = vmatprep.subr.mxu0 0.0
    %12824 = vmatpush2.msra.mxu0 0.0
    %12825 = vmatprep.subr.mxu0 0.0
    %12826 = vmatpush2.msra.mxu0 0.0
    %12827 = vmatprep.mubr.f32.mxu0 0.0
    %12828 = vmatmul.mubr.f32.gmra.mxu0 %v12739
    %v12829 = vpop.f32.mrf.mxu0
    %v12830 = vadd.f32 %v12761, %v12829
    %v12831 = vpop.f32.mrf.mxu0
    %12832 = vdwg.mxu0
    %12833 = vst [vmem:[%s9] sm:$0xff] %v12830
    // Predicated region
    $region42: #{_lambda_.1} parent=1 // pred_check
      _
    $region43: #{_lambda_.1} parent=1 // pred_check_branch
      %12835 = sbr.rel (0) target = $region45
    $region44: #{_lambda_.1} parent=1 // pred_region
      _
    $region45: #{_lambda_.1} parent=1 // pred_fallthru
      _
    // Predicated region
    $region46: #{_lambda_.1} parent=1 // pred_check
      _
    $region47: #{_lambda_.1} parent=1 // pred_check_branch
      %12837 = sbr.rel (0) target = $region49
    $region48: #{_lambda_.1} parent=1 // pred_region
      _
    $region49: #{_lambda_.1} parent=1 // pred_fallthru
      _
    %12838 = vsyncpa [#allocation7], 1

</llo_original>
